<compile_context>
chip_gen: v7x
topology: tpu7x:2x2x1
jax: 0.10.0
libtpu: 0.0.40
codegen_flags: <defaults>
</compile_context>

<pallas_src>
import functools

import jax
import jax.numpy as jnp
from jax.experimental import pallas as pl
from jax.experimental.pallas import tpu as pltpu

EPS = 1e-5


def _conv_bn_kernel(x_ref, w_ref, g_ref, b_ref, o_ref,
                    acc_ref, sum_ref, sq_ref, scale_ref, shift_ref,
                    *, n_imgs, out_h, out_w, padded_w, k_h, k_w, eps):
    """Fused 3x3 conv (stride 1, pad 1) + training-mode BatchNorm.

    Grid = (phase, image):
      phase 0: conv tile -> accumulate masked per-channel sum / sum-of-squares.
      phase 1: recompute conv tile -> apply folded affine  y * scale + shift.
    """
    phase = pl.program_id(0)
    n = pl.program_id(1)

    padded_rows = x_ref.shape[0]          # (H+2)*(W+2), e.g. 256 for 14x14

    x = x_ref[...]                        # (padded_rows, Cin)

    # --- conv: k_h*k_w accumulated MXU matmuls. Row r of the padded-flat input
    #     is pixel (r // padded_w, r % padded_w); shifting the matmul result by
    #     s = kh*padded_w + kw aligns it so accumulator row r is output pixel
    #     (r // padded_w, r % padded_w). Wrapped/edge rows are junk and are
    #     masked out of the statistics / sliced off in the wrapper.
    for k in range(k_h * k_w):
        kh, kw = divmod(k, k_w)
        s = kh * padded_w + kw
        y_k = jnp.dot(x, w_ref[k], preferred_element_type=jnp.float32)
        if s:
            # y_k'[r] = y_k[r + s] for all rows we care about.
            y_k = jnp.concatenate([y_k[s:, :], y_k[:s, :]], axis=0)
        if k == 0:
            acc_ref[...] = y_k
        else:
            acc_ref[...] += y_k

    y = acc_ref[...]                      # raw conv output (junk rows included)

    # Rows corresponding to real output pixels (h < out_h and w < out_w).
    r = jax.lax.broadcasted_iota(jnp.int32, (padded_rows, 1), 0)
    valid = jnp.logical_and(r < out_h * padded_w, r % padded_w < out_w)
    y_masked = jnp.where(valid, y, 0.0)

    @pl.when(jnp.logical_and(phase == 0, n == 0))
    def _init_stats():
        sum_ref[...] = jnp.zeros_like(sum_ref)
        sq_ref[...] = jnp.zeros_like(sq_ref)

    @pl.when(phase == 0)
    def _accumulate_stats():
        sum_ref[...] += jnp.sum(y_masked, axis=0, keepdims=True)
        sq_ref[...] += jnp.sum(y_masked * y, axis=0, keepdims=True)
        o_ref[...] = y                    # placeholder; overwritten in phase 1

    @pl.when(jnp.logical_and(phase == 1, n == 0))
    def _finalize_stats():
        inv_count = 1.0 / float(n_imgs * out_h * out_w)
        mean = sum_ref[...] * inv_count
        var = sq_ref[...] * inv_count - mean * mean       # biased batch variance
        scale = jax.lax.rsqrt(var + eps) * g_ref[...]     # folded BN scale
        scale_ref[...] = scale
        shift_ref[...] = b_ref[...] - mean * scale        # folded BN shift

    @pl.when(phase == 1)
    def _apply_bn():
        o_ref[...] = y * scale_ref[...] + shift_ref[...]


@jax.jit
def conv2d_batchnorm(x_nchw, weight_oihw, gamma, beta):
    """Conv2d(Cin->Cout, 3x3, stride 1, pad 1, bias=False) + BatchNorm2d (training)."""
    N, C, H, W = x_nchw.shape
    Cout, Cin, KH, KW = weight_oihw.shape
    assert C == Cin and KH == 3 and KW == 3
    PH, PW = H + 2, W + 2                 # padded spatial dims
    PR = PH * PW                          # padded rows per image (256 for 14x14)

    # Glue: NCHW -> NHWC (interface requirement), zero-pad, flatten spatial rows.
    x = jnp.transpose(x_nchw, (0, 2, 3, 1)).astype(jnp.float32)
    xp = jnp.pad(x, ((0, 0), (1, 1), (1, 1), (0, 0)))     # (N, PH, PW, Cin)
    x_rows = xp.reshape(N * PR, Cin)

    # weight (Cout, Cin, KH, KW) -> (KH*KW, Cin, Cout)
    w = jnp.transpose(weight_oihw, (2, 3, 1, 0)).reshape(KH * KW, Cin, Cout)
    w = w.astype(jnp.float32)
    gm = gamma.reshape(1, Cout).astype(jnp.float32)
    bt = beta.reshape(1, Cout).astype(jnp.float32)

    kernel = functools.partial(
        _conv_bn_kernel, n_imgs=N, out_h=H, out_w=W, padded_w=PW,
        k_h=KH, k_w=KW, eps=EPS)

    flops = 2 * N * 2 * KH * KW * PR * Cin * Cout        # 2 phases, MAC = 2 flops
    bytes_accessed = 4 * (x_rows.size + w.size + gm.size + bt.size + N * PR * Cout)

    out_rows = pl.pallas_call(
        kernel,
        out_shape=jax.ShapeDtypeStruct((N * PR, Cout), jnp.float32),
        grid=(2, N),                                      # (phase, image)
        in_specs=[
            pl.BlockSpec((PR, Cin), lambda p, n: (n, 0)),
            pl.BlockSpec((KH * KW, Cin, Cout), lambda p, n: (0, 0, 0)),
            pl.BlockSpec((1, Cout), lambda p, n: (0, 0)),
            pl.BlockSpec((1, Cout), lambda p, n: (0, 0)),
        ],
        out_specs=pl.BlockSpec((PR, Cout), lambda p, n: (n, 0)),
        scratch_shapes=[
            pltpu.VMEM((PR, Cout), jnp.float32),   # conv accumulator
            pltpu.VMEM((1, Cout), jnp.float32),    # per-channel sum
            pltpu.VMEM((1, Cout), jnp.float32),    # per-channel sum of squares
            pltpu.VMEM((1, Cout), jnp.float32),    # folded BN scale
            pltpu.VMEM((1, Cout), jnp.float32),    # folded BN shift
        ],
        compiler_params=pltpu.CompilerParams(
            dimension_semantics=("arbitrary", "arbitrary"),
            vmem_limit_bytes=32 * 1024 * 1024,
        ),
        cost_estimate=pl.CostEstimate(
            flops=flops, transcendentals=Cout, bytes_accessed=bytes_accessed),
    )(x_rows, w, gm, bt)

    # Row r of each image's (PR, Cout) slab is output pixel (r // PW, r % PW);
    # drop the junk rows/cols and return NCHW to match the PyTorch module.
    out = out_rows.reshape(N, PH, PW, Cout)[:, :H, :W, :]
    return jnp.transpose(out, (0, 3, 1, 2))


def _reference(x_nchw, weight_oihw, gamma, beta):
    y = jax.lax.conv_general_dilated(
        x_nchw, weight_oihw, window_strides=(1, 1), padding=((1, 1), (1, 1)),
        dimension_numbers=("NCHW", "OIHW", "NCHW"))
    mean = jnp.mean(y, axis=(0, 2, 3), keepdims=True)
    var = jnp.mean(jnp.square(y - mean), axis=(0, 2, 3), keepdims=True)
    inv = jax.lax.rsqrt(var + EPS)
    return (y - mean) * inv * gamma.reshape(1, -1, 1, 1) + beta.reshape(1, -1, 1, 1)


if __name__ == "__main__":
    key = jax.random.PRNGKey(0)
    kx, kw, kg, kb = jax.random.split(key, 4)

    # Shapes from the module: Conv2d(256 -> 256, 3x3, s=1, p=1), input (1,256,14,14).
    N, C, H, W = 1, 256, 14, 14
    Cout, KH, KW = 256, 3, 3

    x = jax.random.normal(kx, (N, C, H, W), dtype=jnp.float32)
    fan_in = C * KH * KW
    weight = jax.random.normal(kw, (Cout, C, KH, KW), dtype=jnp.float32) * (2.0 / fan_in) ** 0.5
    gamma = 1.0 + 0.1 * jax.random.normal(kg, (Cout,), dtype=jnp.float32)
    beta = 0.1 * jax.random.normal(kb, (Cout,), dtype=jnp.float32)

    out = jax.block_until_ready(conv2d_batchnorm(x, weight, gamma, beta))
    ref = jax.block_until_ready(_reference(x, weight, gamma, beta))

    assert out.shape == (N, Cout, H, W), out.shape
    max_err = float(jnp.max(jnp.abs(out - ref)))
    assert jnp.allclose(out, ref, atol=1e-3, rtol=1e-3), max_err

    print("KERNEL_OK")
</pallas_src>

<mosaic_0001>
module attributes {stable_mosaic.version = 11 : i64} {
  func.func @_conv_bn_kernel(%arg0: i32, %arg1: i32, %arg2: memref<256x256xf32, #tpu.memory_space<vmem>>, %arg3: memref<9x256x256xf32, #tpu.memory_space<vmem>>, %arg4: memref<1x256xf32, #tpu.memory_space<vmem>>, %arg5: memref<1x256xf32, #tpu.memory_space<vmem>>, %arg6: memref<256x256xf32, #tpu.memory_space<vmem>>, %arg7: memref<256x256xf32, #tpu.memory_space<vmem>>, %arg8: memref<1x256xf32, #tpu.memory_space<vmem>>, %arg9: memref<1x256xf32, #tpu.memory_space<vmem>>, %arg10: memref<1x256xf32, #tpu.memory_space<vmem>>, %arg11: memref<1x256xf32, #tpu.memory_space<vmem>>) attributes {dimension_semantics = [#tpu.dimension_semantics<arbitrary>, #tpu.dimension_semantics<arbitrary>], iteration_bounds = array<i64: 2, 1>, scalar_prefetch = 0 : i64, scratch_operands = 5 : i64, tpu.core_type = #tpu.core_type<tc>, window_params = [{transform_indices = @transform_0, window_bounds = array<i64: 256, 256>}, {pipeline_mode = #tpu.pipeline_mode<synchronous>, transform_indices = @transform_1, window_bounds = array<i64: 9, 256, 256>}, {pipeline_mode = #tpu.pipeline_mode<synchronous>, transform_indices = @transform_2, window_bounds = array<i64: 1, 256>}, {pipeline_mode = #tpu.pipeline_mode<synchronous>, transform_indices = @transform_3, window_bounds = array<i64: 1, 256>}, {transform_indices = @transform_4, window_bounds = array<i64: 256, 256>}]} {
    %c0 = arith.constant 0 : index
    %c0_0 = arith.constant 0 : index
    %0 = vector.load %arg2[%c0, %c0_0] : memref<256x256xf32, #tpu.memory_space<vmem>>, vector<256x256xf32>
    %c0_1 = arith.constant 0 : index
    %c0_2 = arith.constant 0 : index
    %c0_3 = arith.constant 0 : index
    %1 = vector.load %arg3[%c0_1, %c0_2, %c0_3] : memref<9x256x256xf32, #tpu.memory_space<vmem>>, vector<1x256x256xf32>
    %2 = vector.shape_cast %1 : vector<1x256x256xf32> to vector<256x256xf32>
    %cst = arith.constant dense<0.000000e+00> : vector<256x256xf32>
    %3 = tpu.matmul %0, %2, %cst {dimension_numbers = #tpu.dot_dimension_numbers<[1], [0], [0], [1], [0, 0, 1, 1], [], []>} : vector<256x256xf32>, vector<256x256xf32>, vector<256x256xf32> -> vector<256x256xf32>
    %c0_4 = arith.constant 0 : index
    %c0_5 = arith.constant 0 : index
    %4 = vector.load %arg7[%c0_4, %c0_5] : memref<256x256xf32, #tpu.memory_space<vmem>>, vector<256x256xf32>
    tpu.vector_store %arg7[%c0_4, %c0_5], %3 {strides = array<i32>} : memref<256x256xf32, #tpu.memory_space<vmem>>, vector<256x256xf32>,
    %c1 = arith.constant 1 : index
    %c0_6 = arith.constant 0 : index
    %c0_7 = arith.constant 0 : index
    %5 = vector.load %arg3[%c1, %c0_6, %c0_7] : memref<9x256x256xf32, #tpu.memory_space<vmem>>, vector<1x256x256xf32>
    %6 = vector.shape_cast %5 : vector<1x256x256xf32> to vector<256x256xf32>
    %cst_8 = arith.constant dense<0.000000e+00> : vector<256x256xf32>
    %7 = tpu.matmul %0, %6, %cst_8 {dimension_numbers = #tpu.dot_dimension_numbers<[1], [0], [0], [1], [0, 0, 1, 1], [], []>} : vector<256x256xf32>, vector<256x256xf32>, vector<256x256xf32> -> vector<256x256xf32>
    %8 = vector.extract_strided_slice %7 {offsets = [1, 0], sizes = [255, 256], strides = [1, 1]} : vector<256x256xf32> to vector<255x256xf32>
    %9 = vector.extract_strided_slice %7 {offsets = [0, 0], sizes = [1, 256], strides = [1, 1]} : vector<256x256xf32> to vector<1x256xf32>
    %10 = tpu.concatenate %8, %9 in 0 : vector<255x256xf32>, vector<1x256xf32> -> vector<256x256xf32>
    %c0_9 = arith.constant 0 : index
    %c0_10 = arith.constant 0 : index
    %11 = vector.load %arg7[%c0_9, %c0_10] : memref<256x256xf32, #tpu.memory_space<vmem>>, vector<256x256xf32>
    %12 = arith.addf %11, %10 : vector<256x256xf32>
    %c0_11 = arith.constant 0 : index
    %c0_12 = arith.constant 0 : index
    %13 = vector.load %arg7[%c0_11, %c0_12] : memref<256x256xf32, #tpu.memory_space<vmem>>, vector<256x256xf32>
    tpu.vector_store %arg7[%c0_11, %c0_12], %12 {strides = array<i32>} : memref<256x256xf32, #tpu.memory_space<vmem>>, vector<256x256xf32>,
    %c2 = arith.constant 2 : index
    %c0_13 = arith.constant 0 : index
    %c0_14 = arith.constant 0 : index
    %14 = vector.load %arg3[%c2, %c0_13, %c0_14] : memref<9x256x256xf32, #tpu.memory_space<vmem>>, vector<1x256x256xf32>
    %15 = vector.shape_cast %14 : vector<1x256x256xf32> to vector<256x256xf32>
    %cst_15 = arith.constant dense<0.000000e+00> : vector<256x256xf32>
    %16 = tpu.matmul %0, %15, %cst_15 {dimension_numbers = #tpu.dot_dimension_numbers<[1], [0], [0], [1], [0, 0, 1, 1], [], []>} : vector<256x256xf32>, vector<256x256xf32>, vector<256x256xf32> -> vector<256x256xf32>
    %17 = vector.extract_strided_slice %16 {offsets = [2, 0], sizes = [254, 256], strides = [1, 1]} : vector<256x256xf32> to vector<254x256xf32>
    %18 = vector.extract_strided_slice %16 {offsets = [0, 0], sizes = [2, 256], strides = [1, 1]} : vector<256x256xf32> to vector<2x256xf32>
    %19 = tpu.concatenate %17, %18 in 0 : vector<254x256xf32>, vector<2x256xf32> -> vector<256x256xf32>
    %c0_16 = arith.constant 0 : index
    %c0_17 = arith.constant 0 : index
    %20 = vector.load %arg7[%c0_16, %c0_17] : memref<256x256xf32, #tpu.memory_space<vmem>>, vector<256x256xf32>
    %21 = arith.addf %20, %19 : vector<256x256xf32>
    %c0_18 = arith.constant 0 : index
    %c0_19 = arith.constant 0 : index
    %22 = vector.load %arg7[%c0_18, %c0_19] : memref<256x256xf32, #tpu.memory_space<vmem>>, vector<256x256xf32>
    tpu.vector_store %arg7[%c0_18, %c0_19], %21 {strides = array<i32>} : memref<256x256xf32, #tpu.memory_space<vmem>>, vector<256x256xf32>,
    %c3 = arith.constant 3 : index
    %c0_20 = arith.constant 0 : index
    %c0_21 = arith.constant 0 : index
    %23 = vector.load %arg3[%c3, %c0_20, %c0_21] : memref<9x256x256xf32, #tpu.memory_space<vmem>>, vector<1x256x256xf32>
    %24 = vector.shape_cast %23 : vector<1x256x256xf32> to vector<256x256xf32>
    %cst_22 = arith.constant dense<0.000000e+00> : vector<256x256xf32>
    %25 = tpu.matmul %0, %24, %cst_22 {dimension_numbers = #tpu.dot_dimension_numbers<[1], [0], [0], [1], [0, 0, 1, 1], [], []>} : vector<256x256xf32>, vector<256x256xf32>, vector<256x256xf32> -> vector<256x256xf32>
    %26 = vector.extract_strided_slice %25 {offsets = [16, 0], sizes = [240, 256], strides = [1, 1]} : vector<256x256xf32> to vector<240x256xf32>
    %27 = vector.extract_strided_slice %25 {offsets = [0, 0], sizes = [16, 256], strides = [1, 1]} : vector<256x256xf32> to vector<16x256xf32>
    %28 = tpu.concatenate %26, %27 in 0 : vector<240x256xf32>, vector<16x256xf32> -> vector<256x256xf32>
    %c0_23 = arith.constant 0 : index
    %c0_24 = arith.constant 0 : index
    %29 = vector.load %arg7[%c0_23, %c0_24] : memref<256x256xf32, #tpu.memory_space<vmem>>, vector<256x256xf32>
    %30 = arith.addf %29, %28 : vector<256x256xf32>
    %c0_25 = arith.constant 0 : index
    %c0_26 = arith.constant 0 : index
    %31 = vector.load %arg7[%c0_25, %c0_26] : memref<256x256xf32, #tpu.memory_space<vmem>>, vector<256x256xf32>
    tpu.vector_store %arg7[%c0_25, %c0_26], %30 {strides = array<i32>} : memref<256x256xf32, #tpu.memory_space<vmem>>, vector<256x256xf32>,
    %c4 = arith.constant 4 : index
    %c0_27 = arith.constant 0 : index
    %c0_28 = arith.constant 0 : index
    %32 = vector.load %arg3[%c4, %c0_27, %c0_28] : memref<9x256x256xf32, #tpu.memory_space<vmem>>, vector<1x256x256xf32>
    %33 = vector.shape_cast %32 : vector<1x256x256xf32> to vector<256x256xf32>
    %cst_29 = arith.constant dense<0.000000e+00> : vector<256x256xf32>
    %34 = tpu.matmul %0, %33, %cst_29 {dimension_numbers = #tpu.dot_dimension_numbers<[1], [0], [0], [1], [0, 0, 1, 1], [], []>} : vector<256x256xf32>, vector<256x256xf32>, vector<256x256xf32> -> vector<256x256xf32>
    %35 = vector.extract_strided_slice %34 {offsets = [17, 0], sizes = [239, 256], strides = [1, 1]} : vector<256x256xf32> to vector<239x256xf32>
    %36 = vector.extract_strided_slice %34 {offsets = [0, 0], sizes = [17, 256], strides = [1, 1]} : vector<256x256xf32> to vector<17x256xf32>
    %37 = tpu.concatenate %35, %36 in 0 : vector<239x256xf32>, vector<17x256xf32> -> vector<256x256xf32>
    %c0_30 = arith.constant 0 : index
    %c0_31 = arith.constant 0 : index
    %38 = vector.load %arg7[%c0_30, %c0_31] : memref<256x256xf32, #tpu.memory_space<vmem>>, vector<256x256xf32>
    %39 = arith.addf %38, %37 : vector<256x256xf32>
    %c0_32 = arith.constant 0 : index
    %c0_33 = arith.constant 0 : index
    %40 = vector.load %arg7[%c0_32, %c0_33] : memref<256x256xf32, #tpu.memory_space<vmem>>, vector<256x256xf32>
    tpu.vector_store %arg7[%c0_32, %c0_33], %39 {strides = array<i32>} : memref<256x256xf32, #tpu.memory_space<vmem>>, vector<256x256xf32>,
    %c5 = arith.constant 5 : index
    %c0_34 = arith.constant 0 : index
    %c0_35 = arith.constant 0 : index
    %41 = vector.load %arg3[%c5, %c0_34, %c0_35] : memref<9x256x256xf32, #tpu.memory_space<vmem>>, vector<1x256x256xf32>
    %42 = vector.shape_cast %41 : vector<1x256x256xf32> to vector<256x256xf32>
    %cst_36 = arith.constant dense<0.000000e+00> : vector<256x256xf32>
    %43 = tpu.matmul %0, %42, %cst_36 {dimension_numbers = #tpu.dot_dimension_numbers<[1], [0], [0], [1], [0, 0, 1, 1], [], []>} : vector<256x256xf32>, vector<256x256xf32>, vector<256x256xf32> -> vector<256x256xf32>
    %44 = vector.extract_strided_slice %43 {offsets = [18, 0], sizes = [238, 256], strides = [1, 1]} : vector<256x256xf32> to vector<238x256xf32>
    %45 = vector.extract_strided_slice %43 {offsets = [0, 0], sizes = [18, 256], strides = [1, 1]} : vector<256x256xf32> to vector<18x256xf32>
    %46 = tpu.concatenate %44, %45 in 0 : vector<238x256xf32>, vector<18x256xf32> -> vector<256x256xf32>
    %c0_37 = arith.constant 0 : index
    %c0_38 = arith.constant 0 : index
    %47 = vector.load %arg7[%c0_37, %c0_38] : memref<256x256xf32, #tpu.memory_space<vmem>>, vector<256x256xf32>
    %48 = arith.addf %47, %46 : vector<256x256xf32>
    %c0_39 = arith.constant 0 : index
    %c0_40 = arith.constant 0 : index
    %49 = vector.load %arg7[%c0_39, %c0_40] : memref<256x256xf32, #tpu.memory_space<vmem>>, vector<256x256xf32>
    tpu.vector_store %arg7[%c0_39, %c0_40], %48 {strides = array<i32>} : memref<256x256xf32, #tpu.memory_space<vmem>>, vector<256x256xf32>,
    %c6 = arith.constant 6 : index
    %c0_41 = arith.constant 0 : index
    %c0_42 = arith.constant 0 : index
    %50 = vector.load %arg3[%c6, %c0_41, %c0_42] : memref<9x256x256xf32, #tpu.memory_space<vmem>>, vector<1x256x256xf32>
    %51 = vector.shape_cast %50 : vector<1x256x256xf32> to vector<256x256xf32>
    %cst_43 = arith.constant dense<0.000000e+00> : vector<256x256xf32>
    %52 = tpu.matmul %0, %51, %cst_43 {dimension_numbers = #tpu.dot_dimension_numbers<[1], [0], [0], [1], [0, 0, 1, 1], [], []>} : vector<256x256xf32>, vector<256x256xf32>, vector<256x256xf32> -> vector<256x256xf32>
    %53 = vector.extract_strided_slice %52 {offsets = [32, 0], sizes = [224, 256], strides = [1, 1]} : vector<256x256xf32> to vector<224x256xf32>
    %54 = vector.extract_strided_slice %52 {offsets = [0, 0], sizes = [32, 256], strides = [1, 1]} : vector<256x256xf32> to vector<32x256xf32>
    %55 = tpu.concatenate %53, %54 in 0 : vector<224x256xf32>, vector<32x256xf32> -> vector<256x256xf32>
    %c0_44 = arith.constant 0 : index
    %c0_45 = arith.constant 0 : index
    %56 = vector.load %arg7[%c0_44, %c0_45] : memref<256x256xf32, #tpu.memory_space<vmem>>, vector<256x256xf32>
    %57 = arith.addf %56, %55 : vector<256x256xf32>
    %c0_46 = arith.constant 0 : index
    %c0_47 = arith.constant 0 : index
    %58 = vector.load %arg7[%c0_46, %c0_47] : memref<256x256xf32, #tpu.memory_space<vmem>>, vector<256x256xf32>
    tpu.vector_store %arg7[%c0_46, %c0_47], %57 {strides = array<i32>} : memref<256x256xf32, #tpu.memory_space<vmem>>, vector<256x256xf32>,
    %c7 = arith.constant 7 : index
    %c0_48 = arith.constant 0 : index
    %c0_49 = arith.constant 0 : index
    %59 = vector.load %arg3[%c7, %c0_48, %c0_49] : memref<9x256x256xf32, #tpu.memory_space<vmem>>, vector<1x256x256xf32>
    %60 = vector.shape_cast %59 : vector<1x256x256xf32> to vector<256x256xf32>
    %cst_50 = arith.constant dense<0.000000e+00> : vector<256x256xf32>
    %61 = tpu.matmul %0, %60, %cst_50 {dimension_numbers = #tpu.dot_dimension_numbers<[1], [0], [0], [1], [0, 0, 1, 1], [], []>} : vector<256x256xf32>, vector<256x256xf32>, vector<256x256xf32> -> vector<256x256xf32>
    %62 = vector.extract_strided_slice %61 {offsets = [33, 0], sizes = [223, 256], strides = [1, 1]} : vector<256x256xf32> to vector<223x256xf32>
    %63 = vector.extract_strided_slice %61 {offsets = [0, 0], sizes = [33, 256], strides = [1, 1]} : vector<256x256xf32> to vector<33x256xf32>
    %64 = tpu.concatenate %62, %63 in 0 : vector<223x256xf32>, vector<33x256xf32> -> vector<256x256xf32>
    %c0_51 = arith.constant 0 : index
    %c0_52 = arith.constant 0 : index
    %65 = vector.load %arg7[%c0_51, %c0_52] : memref<256x256xf32, #tpu.memory_space<vmem>>, vector<256x256xf32>
    %66 = arith.addf %65, %64 : vector<256x256xf32>
    %c0_53 = arith.constant 0 : index
    %c0_54 = arith.constant 0 : index
    %67 = vector.load %arg7[%c0_53, %c0_54] : memref<256x256xf32, #tpu.memory_space<vmem>>, vector<256x256xf32>
    tpu.vector_store %arg7[%c0_53, %c0_54], %66 {strides = array<i32>} : memref<256x256xf32, #tpu.memory_space<vmem>>, vector<256x256xf32>,
    %c8 = arith.constant 8 : index
    %c0_55 = arith.constant 0 : index
    %c0_56 = arith.constant 0 : index
    %68 = vector.load %arg3[%c8, %c0_55, %c0_56] : memref<9x256x256xf32, #tpu.memory_space<vmem>>, vector<1x256x256xf32>
    %69 = vector.shape_cast %68 : vector<1x256x256xf32> to vector<256x256xf32>
    %cst_57 = arith.constant dense<0.000000e+00> : vector<256x256xf32>
    %70 = tpu.matmul %0, %69, %cst_57 {dimension_numbers = #tpu.dot_dimension_numbers<[1], [0], [0], [1], [0, 0, 1, 1], [], []>} : vector<256x256xf32>, vector<256x256xf32>, vector<256x256xf32> -> vector<256x256xf32>
    %71 = vector.extract_strided_slice %70 {offsets = [34, 0], sizes = [222, 256], strides = [1, 1]} : vector<256x256xf32> to vector<222x256xf32>
    %72 = vector.extract_strided_slice %70 {offsets = [0, 0], sizes = [34, 256], strides = [1, 1]} : vector<256x256xf32> to vector<34x256xf32>
    %73 = tpu.concatenate %71, %72 in 0 : vector<222x256xf32>, vector<34x256xf32> -> vector<256x256xf32>
    %c0_58 = arith.constant 0 : index
    %c0_59 = arith.constant 0 : index
    %74 = vector.load %arg7[%c0_58, %c0_59] : memref<256x256xf32, #tpu.memory_space<vmem>>, vector<256x256xf32>
    %75 = arith.addf %74, %73 : vector<256x256xf32>
    %c0_60 = arith.constant 0 : index
    %c0_61 = arith.constant 0 : index
    %76 = vector.load %arg7[%c0_60, %c0_61] : memref<256x256xf32, #tpu.memory_space<vmem>>, vector<256x256xf32>
    tpu.vector_store %arg7[%c0_60, %c0_61], %75 {strides = array<i32>} : memref<256x256xf32, #tpu.memory_space<vmem>>, vector<256x256xf32>,
    %c0_62 = arith.constant 0 : index
    %c0_63 = arith.constant 0 : index
    %77 = vector.load %arg7[%c0_62, %c0_63] : memref<256x256xf32, #tpu.memory_space<vmem>>, vector<256x256xf32>
    %78 = tpu.iota {dimensions = array<i32: 0>} : vector<256x1xi32>
    %c224_i32 = arith.constant 224 : i32
    %79 = vector.broadcast %c224_i32 : i32 to vector<256x1xi32>
    %80 = arith.cmpi slt, %78, %79 : vector<256x1xi32>
    %c16_i32 = arith.constant 16 : i32
    %c0_i32 = arith.constant 0 : i32
    %81 = arith.cmpi eq, %c16_i32, %c0_i32 : i32
    %c1_i32 = arith.constant 1 : i32
    %82 = arith.select %81, %c1_i32, %c16_i32 : i32
    %83 = vector.broadcast %82 : i32 to vector<256x1xi32>
    %84 = arith.remsi %78, %83 : vector<256x1xi32>
    %c0_i32_64 = arith.constant 0 : i32
    %85 = vector.broadcast %c0_i32_64 : i32 to vector<256x1xi32>
    %86 = arith.cmpi ne, %84, %85 : vector<256x1xi32>
    %c0_i32_65 = arith.constant 0 : i32
    %87 = vector.broadcast %c0_i32_65 : i32 to vector<256x1xi32>
    %88 = arith.cmpi slt, %84, %87 : vector<256x1xi32>
    %c0_i32_66 = arith.constant 0 : i32
    %89 = arith.cmpi slt, %82, %c0_i32_66 : i32
    %90 = vector.broadcast %89 : i1 to vector<256x1xi1>
    %91 = vector.broadcast %90 : vector<256x1xi1> to vector<256x1xi1>
    %92 = arith.xori %88, %91 : vector<256x1xi1>
    %93 = arith.andi %92, %86 : vector<256x1xi1>
    %94 = vector.broadcast %82 : i32 to vector<256x1xi32>
    %95 = arith.addi %84, %94 : vector<256x1xi32>
    %96 = arith.select %93, %95, %84 : vector<256x1xi1>, vector<256x1xi32>
    %c14_i32 = arith.constant 14 : i32
    %97 = vector.broadcast %c14_i32 : i32 to vector<256x1xi32>
    %98 = arith.cmpi slt, %96, %97 : vector<256x1xi32>
    %99 = arith.andi %80, %98 : vector<256x1xi1>
    %cst_67 = arith.constant 0.000000e+00 : f32
    %100 = vector.shape_cast %99 : vector<256x1xi1> to vector<256x1xi1>
    %101 = vector.broadcast %100 : vector<256x1xi1> to vector<256x256xi1>
    %102 = vector.broadcast %cst_67 : f32 to vector<256x256xf32>
    %103 = arith.select %101, %77, %102 : vector<256x256xi1>, vector<256x256xf32>
    %c0_i32_68 = arith.constant 0 : i32
    %104 = arith.cmpi eq, %arg0, %c0_i32_68 : i32
    %c0_i32_69 = arith.constant 0 : i32
    %105 = arith.cmpi eq, %arg1, %c0_i32_69 : i32
    %106 = arith.andi %104, %105 : i1
    %107 = arith.extui %106 : i1 to i32
    %c0_i32_70 = arith.constant 0 : i32
    %108 = arith.cmpi ne, %107, %c0_i32_70 : i32
    scf.if %108 {
      %cst_78 = arith.constant 0.000000e+00 : f32
      %120 = vector.broadcast %cst_78 : f32 to vector<1x256xf32>
      %c0_79 = arith.constant 0 : index
      %c0_80 = arith.constant 0 : index
      %121 = vector.load %arg8[%c0_79, %c0_80] : memref<1x256xf32, #tpu.memory_space<vmem>>, vector<1x256xf32>
      tpu.vector_store %arg8[%c0_79, %c0_80], %120 {strides = array<i32>} : memref<1x256xf32, #tpu.memory_space<vmem>>, vector<1x256xf32>,
      %cst_81 = arith.constant 0.000000e+00 : f32
      %122 = vector.broadcast %cst_81 : f32 to vector<1x256xf32>
      %c0_82 = arith.constant 0 : index
      %c0_83 = arith.constant 0 : index
      %123 = vector.load %arg9[%c0_82, %c0_83] : memref<1x256xf32, #tpu.memory_space<vmem>>, vector<1x256xf32>
      tpu.vector_store %arg9[%c0_82, %c0_83], %122 {strides = array<i32>} : memref<1x256xf32, #tpu.memory_space<vmem>>, vector<1x256xf32>,
    } else {
    }
    %c0_i32_71 = arith.constant 0 : i32
    %109 = arith.cmpi eq, %arg0, %c0_i32_71 : i32
    %110 = arith.extui %109 : i1 to i32
    %c0_i32_72 = arith.constant 0 : i32
    %111 = arith.cmpi ne, %110, %c0_i32_72 : i32
    scf.if %111 {
      %c0_78 = arith.constant 0 : index
      %c0_79 = arith.constant 0 : index
      %120 = vector.load %arg8[%c0_78, %c0_79] : memref<1x256xf32, #tpu.memory_space<vmem>>, vector<1x256xf32>
      %cst_80 = arith.constant dense<0.000000e+00> : vector<256xf32>
      %121 = vector.multi_reduction <add>, %103, %cst_80 [0] : vector<256x256xf32> to vector<256xf32>
      %122 = vector.shape_cast %121 : vector<256xf32> to vector<1x256xf32>
      %123 = arith.addf %120, %122 : vector<1x256xf32>
      %c0_81 = arith.constant 0 : index
      %c0_82 = arith.constant 0 : index
      %124 = vector.load %arg8[%c0_81, %c0_82] : memref<1x256xf32, #tpu.memory_space<vmem>>, vector<1x256xf32>
      tpu.vector_store %arg8[%c0_81, %c0_82], %123 {strides = array<i32>} : memref<1x256xf32, #tpu.memory_space<vmem>>, vector<1x256xf32>,
      %c0_83 = arith.constant 0 : index
      %c0_84 = arith.constant 0 : index
      %125 = vector.load %arg9[%c0_83, %c0_84] : memref<1x256xf32, #tpu.memory_space<vmem>>, vector<1x256xf32>
      %126 = arith.mulf %103, %77 : vector<256x256xf32>
      %cst_85 = arith.constant dense<0.000000e+00> : vector<256xf32>
      %127 = vector.multi_reduction <add>, %126, %cst_85 [0] : vector<256x256xf32> to vector<256xf32>
      %128 = vector.shape_cast %127 : vector<256xf32> to vector<1x256xf32>
      %129 = arith.addf %125, %128 : vector<1x256xf32>
      %c0_86 = arith.constant 0 : index
      %c0_87 = arith.constant 0 : index
      %130 = vector.load %arg9[%c0_86, %c0_87] : memref<1x256xf32, #tpu.memory_space<vmem>>, vector<1x256xf32>
      tpu.vector_store %arg9[%c0_86, %c0_87], %129 {strides = array<i32>} : memref<1x256xf32, #tpu.memory_space<vmem>>, vector<1x256xf32>,
      %c0_88 = arith.constant 0 : index
      %c0_89 = arith.constant 0 : index
      %131 = vector.load %arg6[%c0_88, %c0_89] : memref<256x256xf32, #tpu.memory_space<vmem>>, vector<256x256xf32>
      tpu.vector_store %arg6[%c0_88, %c0_89], %77 {strides = array<i32>} : memref<256x256xf32, #tpu.memory_space<vmem>>, vector<256x256xf32>,
    } else {
    }
    %c1_i32_73 = arith.constant 1 : i32
    %112 = arith.cmpi eq, %arg0, %c1_i32_73 : i32
    %c0_i32_74 = arith.constant 0 : i32
    %113 = arith.cmpi eq, %arg1, %c0_i32_74 : i32
    %114 = arith.andi %112, %113 : i1
    %115 = arith.extui %114 : i1 to i32
    %c0_i32_75 = arith.constant 0 : i32
    %116 = arith.cmpi ne, %115, %c0_i32_75 : i32
    scf.if %116 {
      %c0_78 = arith.constant 0 : index
      %c0_79 = arith.constant 0 : index
      %120 = vector.load %arg8[%c0_78, %c0_79] : memref<1x256xf32, #tpu.memory_space<vmem>>, vector<1x256xf32>
      %cst_80 = arith.constant 0.00510204071 : f32
      %121 = vector.broadcast %cst_80 : f32 to vector<1x256xf32>
      %122 = arith.mulf %120, %121 : vector<1x256xf32>
      %c0_81 = arith.constant 0 : index
      %c0_82 = arith.constant 0 : index
      %123 = vector.load %arg9[%c0_81, %c0_82] : memref<1x256xf32, #tpu.memory_space<vmem>>, vector<1x256xf32>
      %cst_83 = arith.constant 0.00510204071 : f32
      %124 = vector.broadcast %cst_83 : f32 to vector<1x256xf32>
      %125 = arith.mulf %123, %124 : vector<1x256xf32>
      %126 = arith.mulf %122, %122 : vector<1x256xf32>
      %127 = arith.subf %125, %126 : vector<1x256xf32>
      %cst_84 = arith.constant 9.99999974E-6 : f32
      %128 = vector.broadcast %cst_84 : f32 to vector<1x256xf32>
      %129 = arith.addf %127, %128 : vector<1x256xf32>
      %130 = math.rsqrt %129 : vector<1x256xf32>
      %c0_85 = arith.constant 0 : index
      %c0_86 = arith.constant 0 : index
      %131 = vector.load %arg4[%c0_85, %c0_86] : memref<1x256xf32, #tpu.memory_space<vmem>>, vector<1x256xf32>
      %132 = arith.mulf %130, %131 : vector<1x256xf32>
      %c0_87 = arith.constant 0 : index
      %c0_88 = arith.constant 0 : index
      %133 = vector.load %arg10[%c0_87, %c0_88] : memref<1x256xf32, #tpu.memory_space<vmem>>, vector<1x256xf32>
      tpu.vector_store %arg10[%c0_87, %c0_88], %132 {strides = array<i32>} : memref<1x256xf32, #tpu.memory_space<vmem>>, vector<1x256xf32>,
      %c0_89 = arith.constant 0 : index
      %c0_90 = arith.constant 0 : index
      %134 = vector.load %arg5[%c0_89, %c0_90] : memref<1x256xf32, #tpu.memory_space<vmem>>, vector<1x256xf32>
      %135 = arith.mulf %122, %132 : vector<1x256xf32>
      %136 = arith.subf %134, %135 : vector<1x256xf32>
      %c0_91 = arith.constant 0 : index
      %c0_92 = arith.constant 0 : index
      %137 = vector.load %arg11[%c0_91, %c0_92] : memref<1x256xf32, #tpu.memory_space<vmem>>, vector<1x256xf32>
      tpu.vector_store %arg11[%c0_91, %c0_92], %136 {strides = array<i32>} : memref<1x256xf32, #tpu.memory_space<vmem>>, vector<1x256xf32>,
    } else {
    }
    %c1_i32_76 = arith.constant 1 : i32
    %117 = arith.cmpi eq, %arg0, %c1_i32_76 : i32
    %118 = arith.extui %117 : i1 to i32
    %c0_i32_77 = arith.constant 0 : i32
    %119 = arith.cmpi ne, %118, %c0_i32_77 : i32
    scf.if %119 {
      %c0_78 = arith.constant 0 : index
      %c0_79 = arith.constant 0 : index
      %120 = vector.load %arg10[%c0_78, %c0_79] : memref<1x256xf32, #tpu.memory_space<vmem>>, vector<1x256xf32>
      %121 = vector.broadcast %120 : vector<1x256xf32> to vector<256x256xf32>
      %122 = arith.mulf %77, %121 : vector<256x256xf32>
      %c0_80 = arith.constant 0 : index
      %c0_81 = arith.constant 0 : index
      %123 = vector.load %arg11[%c0_80, %c0_81] : memref<1x256xf32, #tpu.memory_space<vmem>>, vector<1x256xf32>
      %124 = vector.broadcast %123 : vector<1x256xf32> to vector<256x256xf32>
      %125 = arith.addf %122, %124 : vector<256x256xf32>
      %c0_82 = arith.constant 0 : index
      %c0_83 = arith.constant 0 : index
      %126 = vector.load %arg6[%c0_82, %c0_83] : memref<256x256xf32, #tpu.memory_space<vmem>>, vector<256x256xf32>
      tpu.vector_store %arg6[%c0_82, %c0_83], %125 {strides = array<i32>} : memref<256x256xf32, #tpu.memory_space<vmem>>, vector<256x256xf32>,
    } else {
    }
    return
  }
  func.func @transform_0(%arg0: i32, %arg1: i32) -> (i32, i32) {
    %c0_i32 = arith.constant 0 : i32
    %c0_i32_0 = arith.constant 0 : i32
    return %arg1, %c0_i32 : i32, i32
  }
  func.func @transform_1(%arg0: i32, %arg1: i32) -> (i32, i32, i32) {
    %c0_i32 = arith.constant 0 : i32
    %c0_i32_0 = arith.constant 0 : i32
    %c0_i32_1 = arith.constant 0 : i32
    %c0_i32_2 = arith.constant 0 : i32
    return %c0_i32, %c0_i32_0, %c0_i32_1 : i32, i32, i32
  }
  func.func @transform_2(%arg0: i32, %arg1: i32) -> (i32, i32) {
    %c0_i32 = arith.constant 0 : i32
    %c0_i32_0 = arith.constant 0 : i32
    %c0_i32_1 = arith.constant 0 : i32
    return %c0_i32, %c0_i32_0 : i32, i32
  }
  func.func @transform_3(%arg0: i32, %arg1: i32) -> (i32, i32) {
    %c0_i32 = arith.constant 0 : i32
    %c0_i32_0 = arith.constant 0 : i32
    %c0_i32_1 = arith.constant 0 : i32
    return %c0_i32, %c0_i32_0 : i32, i32
  }
  func.func @transform_4(%arg0: i32, %arg1: i32) -> (i32, i32) {
    %c0_i32 = arith.constant 0 : i32
    %c0_i32_0 = arith.constant 0 : i32
    return %arg1, %c0_i32 : i32, i32
  }
}

</mosaic_0001>

<llo_original>
// kernel: conv2d_batchnorm.1
$region0: #{conv2d_batchnorm.1}
  #allocation0 [shape = 'u32[]', space=smem, size = 0x4, offset = 0x4, fixed_abs, tag = 'smem constant byte address 0x4 - core index']
  #allocation1 [shape = 'u32[144,128]{1,0:T(1,128)}', space=vmem, size = 0x12000, scoped, tag = 'internal scratch']
  #allocation2 [shape = 'f32[256,256]{1,0:T(8,128)}', space=vmem, size = 0x40000, scoped, tag = 'scratch operand']
  #allocation3 [shape = 'f32[1,256]{1,0:T(1,128)}', space=vmem, size = 0x400, scoped, tag = 'scratch operand']
  #allocation4 [shape = 'f32[1,256]{1,0:T(1,128)}', space=vmem, size = 0x400, scoped, tag = 'scratch operand']
  #allocation5 [shape = 'f32[1,256]{1,0:T(1,128)}', space=vmem, size = 0x400, scoped, tag = 'scratch operand']
  #allocation6 [shape = 'f32[1,256]{1,0:T(1,128)}', space=vmem, size = 0x400, scoped, tag = 'scratch operand']
  %s0 = inlined_call_operand.vmem [shape: f32[256,256], index: 0, kind: input, shape index: {}]
  %s1 = inlined_call_operand.vmem [shape: f32[9,256,256], index: 1, kind: input, shape index: {}]
  %s2 = inlined_call_operand.vmem [shape: f32[1,256], index: 2, kind: input, shape index: {}]
  %s3 = inlined_call_operand.vmem [shape: f32[1,256], index: 3, kind: input, shape index: {}]
  %s4 = inlined_call_operand.vmem [shape: f32[256,256], index: 4, kind: output, shape index: {}]
  %s5 = sld [smem:[#allocation0]]
  $region65: #{conv2d_batchnorm.1} parent=0
    _
  %s7 = ssub.s32 1, %s5
  %s8 = scalar_select 0, %s7, %s5
  loop: start=0, step=1, limit=4
  $region2: #{conv2d_batchnorm.1} parent=0 // loop_pre_header
    _
  $region3: #{conv2d_batchnorm.1} parent=0 // loop_header
    %s10 = sphi 0, %s14
    %p11 = scmp.ge.s32.totalorder %s10, 4
    %s17 = sphi 0, %s29
    %s18 = sphi 0, %s25
    %s19 = sphi 0, %s17
    %s20 = sphi 0, %s18
    %s21 = sphi 0, %s19
    %s22 = sphi 0, %s20
    %s32 = sphi 0, %s34
    %s35 = sphi 0, %s32
    %s36 = sphi 0, %s35
    %s52 = sphi 0, %s36
    %s56 = sphi 0, %s56
    %s58 = sphi 0, %s56
    %s59 = sphi 0, %s58
    %s73 = sphi 0, %s59
    %s77 = sphi 0, %s77
    %s79 = sphi 0, %s77
    %s80 = sphi 0, %s79
    %s94 = sphi 0, %s80
    %s98 = sphi 0, %s98
    %s100 = sphi 0, %s98
    %s101 = sphi 0, %s100
    %s115 = sphi 0, %s101
    %s121 = sphi 0, %s123
    %s124 = sphi 0, %s121
    %s125 = sphi 0, %s124
    %s141 = sphi 0, %s125
  $region4: #{conv2d_batchnorm.1} parent=0 // loop_header_branch
    %13 = sbr.rel (%p11) target = $region8
  $region5: #{conv2d_batchnorm.1} parent=0 // loop_body
    %s15 = ssub.s32 %s10, 1
    %s16 = ssub.s32 %s10, 2
    %s23 = sadd.s32 1, %s18
    %p24 = scmp.ge.s32.totalorder %s23, 1
    %s25 = scalar_select %p24, 0, %s23
    %s26 = sadd.s32 1, %s17
    %s27 = scalar_select %p24, %s26, %s17
    %p28 = scmp.ge.s32.totalorder %s27, 2
    %s29 = scalar_select %p28, 0, %s27
    %s30 = ssub.s32 %s18, %s25
    %p31 = scmp.eq.s32.totalorder %s30, 0
    %s33 = sadd.s32 %s32, 1
    %s34 = scalar_select %p31, %s32, %s33
    %p37 = pneg %p31
    %p38 = scmp.eq.s32.totalorder %s10, 1
    %p39 = por %p37, %p38
    %p40 = scmp.ne.s32.totalorder %s32, %s35
    %p41 = scmp.eq.s32.totalorder %s10, 0
    %p42 = por %p40, %p41
    %p43 = scmp.ne.s32.totalorder %s32, %s35
    %p44 = scmp.eq.s32.totalorder %s15, 1
    %p45 = por %p43, %p44
    %p46 = scmp.ne.s32.totalorder %s35, %s36
    %p47 = scmp.eq.s32.totalorder %s15, 0
    %p48 = por %p46, %p47
    %p49 = scmp.ne.s32.totalorder %s35, %s36
    %p50 = scmp.eq.s32.totalorder %s16, 1
    %p51 = por %p49, %p50
    %p53 = scmp.ne.s32.totalorder %s36, %s52
    %p54 = scmp.eq.s32.totalorder %s16, 0
    %p55 = por %p53, %p54
    %s57 = sadd.s32 %s56, 1
    %p60 = scmp.eq.s32.totalorder %s10, 1
    %p61 = scmp.ne.s32.totalorder %s56, %s58
    %p62 = scmp.eq.s32.totalorder %s10, 0
    %p63 = por %p61, %p62
    %p64 = scmp.ne.s32.totalorder %s56, %s58
    %p65 = scmp.eq.s32.totalorder %s15, 1
    %p66 = por %p64, %p65
    %p67 = scmp.ne.s32.totalorder %s58, %s59
    %p68 = scmp.eq.s32.totalorder %s15, 0
    %p69 = por %p67, %p68
    %p70 = scmp.ne.s32.totalorder %s58, %s59
    %p71 = scmp.eq.s32.totalorder %s16, 1
    %p72 = por %p70, %p71
    %p74 = scmp.ne.s32.totalorder %s59, %s73
    %p75 = scmp.eq.s32.totalorder %s16, 0
    %p76 = por %p74, %p75
    %s78 = sadd.s32 %s77, 1
    %p81 = scmp.eq.s32.totalorder %s10, 1
    %p82 = scmp.ne.s32.totalorder %s77, %s79
    %p83 = scmp.eq.s32.totalorder %s10, 0
    %p84 = por %p82, %p83
    %p85 = scmp.ne.s32.totalorder %s77, %s79
    %p86 = scmp.eq.s32.totalorder %s15, 1
    %p87 = por %p85, %p86
    %p88 = scmp.ne.s32.totalorder %s79, %s80
    %p89 = scmp.eq.s32.totalorder %s15, 0
    %p90 = por %p88, %p89
    %p91 = scmp.ne.s32.totalorder %s79, %s80
    %p92 = scmp.eq.s32.totalorder %s16, 1
    %p93 = por %p91, %p92
    %p95 = scmp.ne.s32.totalorder %s80, %s94
    %p96 = scmp.eq.s32.totalorder %s16, 0
    %p97 = por %p95, %p96
    %s99 = sadd.s32 %s98, 1
    %p102 = scmp.eq.s32.totalorder %s10, 1
    %p103 = scmp.ne.s32.totalorder %s98, %s100
    %p104 = scmp.eq.s32.totalorder %s10, 0
    %p105 = por %p103, %p104
    %p106 = scmp.ne.s32.totalorder %s98, %s100
    %p107 = scmp.eq.s32.totalorder %s15, 1
    %p108 = por %p106, %p107
    %p109 = scmp.ne.s32.totalorder %s100, %s101
    %p110 = scmp.eq.s32.totalorder %s15, 0
    %p111 = por %p109, %p110
    %p112 = scmp.ne.s32.totalorder %s100, %s101
    %p113 = scmp.eq.s32.totalorder %s16, 1
    %p114 = por %p112, %p113
    %p116 = scmp.ne.s32.totalorder %s101, %s115
    %p117 = scmp.eq.s32.totalorder %s16, 0
    %p118 = por %p116, %p117
    %s119 = ssub.s32 %s18, %s25
    %p120 = scmp.eq.s32.totalorder %s119, 0
    %s122 = sadd.s32 %s121, 1
    %s123 = scalar_select %p120, %s121, %s122
    %p126 = pneg %p120
    %p127 = scmp.eq.s32.totalorder %s10, 1
    %p128 = por %p126, %p127
    %p129 = scmp.ne.s32.totalorder %s121, %s124
    %p130 = scmp.eq.s32.totalorder %s10, 0
    %p131 = por %p129, %p130
    %p132 = scmp.ne.s32.totalorder %s121, %s124
    %p133 = scmp.eq.s32.totalorder %s15, 1
    %p134 = por %p132, %p133
    %p135 = scmp.ne.s32.totalorder %s124, %s125
    %p136 = scmp.eq.s32.totalorder %s15, 0
    %p137 = por %p135, %p136
    %p138 = scmp.ne.s32.totalorder %s124, %s125
    %p139 = scmp.eq.s32.totalorder %s16, 1
    %p140 = por %p138, %p139
    %p142 = scmp.ne.s32.totalorder %s125, %s141
    %p143 = scmp.eq.s32.totalorder %s16, 0
    %p144 = por %p142, %p143
    %p145 = scmp.le.s32.totalorder 1, %s10
    %p146 = scmp.lt.s32.totalorder %s10, 3
    %p147 = pnand %p145, %p146
    %p148 = pneg %p147
    // Predicated region
    $region9: #{conv2d_batchnorm.1} parent=5 // pred_check
      _
    $region10: #{conv2d_batchnorm.1} parent=5 // pred_check_branch
      %150 = sbr.rel (%p147) target = $region12
    $region11: #{conv2d_batchnorm.1} parent=5 // pred_region
      %s151 = ssub.s32 %s10, 1
      // Predicated region
      $region13: #{conv2d_batchnorm.1} parent=11 // pred_check
        %p152 = pneg %p48
      $region14: #{conv2d_batchnorm.1} parent=11 // pred_check_branch
        %154 = sbr.rel (%p152) target = $region16
      $region15: #{conv2d_batchnorm.1} parent=11 // pred_region
        %s155 = smul.u32 32, %s20
        %p156 = scmp.lt.s32.totalorder %s155, 31
        %s157 = scalar_select %p156, %s155, 31
        %s158 = smul.addr %s157, 2
        %s159 = smul.addr %s158, 8
        %s160 = scalar_lea.vmem %s0, %s159
        %s161 = smul.u32 32, %s20
      $region16: #{conv2d_batchnorm.1} parent=11 // pred_fallthru
        _
      // Predicated region
      $region17: #{conv2d_batchnorm.1} parent=11 // pred_check
        %p162 = pneg %p69
      $region18: #{conv2d_batchnorm.1} parent=11 // pred_check_branch
        %164 = sbr.rel (%p162) target = $region20
      $region19: #{conv2d_batchnorm.1} parent=11 // pred_region
        _
      $region20: #{conv2d_batchnorm.1} parent=11 // pred_fallthru
        _
      // Predicated region
      $region21: #{conv2d_batchnorm.1} parent=11 // pred_check
        %p165 = pneg %p90
      $region22: #{conv2d_batchnorm.1} parent=11 // pred_check_branch
        %167 = sbr.rel (%p165) target = $region24
      $region23: #{conv2d_batchnorm.1} parent=11 // pred_region
        _
      $region24: #{conv2d_batchnorm.1} parent=11 // pred_fallthru
        _
      // Predicated region
      $region25: #{conv2d_batchnorm.1} parent=11 // pred_check
        %p168 = pneg %p111
      $region26: #{conv2d_batchnorm.1} parent=11 // pred_check_branch
        %170 = sbr.rel (%p168) target = $region28
      $region27: #{conv2d_batchnorm.1} parent=11 // pred_region
        _
      $region28: #{conv2d_batchnorm.1} parent=11 // pred_fallthru
        _
    $region12: #{conv2d_batchnorm.1} parent=5 // pred_fallthru
      _
    %p171 = scmp.lt.s32.totalorder %s10, 2
    // Predicated region
    $region29: #{conv2d_batchnorm.1} parent=5 // pred_check
      %p172 = pneg %p171
    $region30: #{conv2d_batchnorm.1} parent=5 // pred_check_branch
      %174 = sbr.rel (%p172) target = $region32
    $region31: #{conv2d_batchnorm.1} parent=5 // pred_region
      _
    $region32: #{conv2d_batchnorm.1} parent=5 // pred_fallthru
      _
    %p175 = scmp.le.s32.totalorder 1, %s10
    %p176 = scmp.lt.s32.totalorder %s10, 3
    %p177 = pnand %p175, %p176
    %p178 = pneg %p177
    // Predicated region
    $region33: #{conv2d_batchnorm.1} parent=5 // pred_check
      _
    $region34: #{conv2d_batchnorm.1} parent=5 // pred_check_branch
      %180 = sbr.rel (%p177) target = $region36
    $region35: #{conv2d_batchnorm.1} parent=5 // pred_region
      %s181 = ssub.s32 %s10, 1
      %s182 = smul.u32 32, %s20
      %p183 = scmp.lt.s32.totalorder %s182, 31
      %s184 = scalar_select %p183, %s182, 31
      %s185 = smul.addr %s184, 2
      %s186 = smul.addr %s185, 8
      %s187 = scalar_lea.vmem %s0, %s186
      %p188 = pneg %p48
      %p189 = pneg %p45
      %p190 = pneg %p69
      %p191 = pneg %p66
      %p192 = pneg %p90
      %p193 = pneg %p87
      %p194 = pneg %p111
      %p195 = pneg %p108
      %p196 = pneg %p137
      %p197 = pneg %p134
      %s198 = smul.u32 32, %s20
      %p199 = scmp.lt.s32.totalorder %s198, 31
      %s200 = scalar_select %p199, %s198, 31
      %s201 = smul.addr %s200, 2
      %s202 = smul.addr %s201, 8
      %s203 = scalar_lea.vmem %s4, %s202
      %s204 = smul.u32 32, %s20
      %p205 = scmp.lt.s32.totalorder %s204, 31
      %s206 = scalar_select %p205, %s204, 31
      %s207 = smul.addr %s206, 2
      %s208 = smul.addr %s207, 8
      %s209 = scalar_lea.vmem %s0, %s208
      %s210 = smul.u32 32, %s20
      %s211 = smul.u32 32, %s20
      %p212 = scmp.lt.s32.totalorder %s211, 31
      %s213 = scalar_select %p212, %s211, 31
      %s214 = smul.addr %s213, 2
      %s215 = smul.addr %s214, 8
      %s216 = scalar_lea.vmem %s4, %s215
      %s217 = smul.u32 32, %s20
      %v218 = vld [vmem:[%s209] sm:$0xff]
      %v219 = vld [vmem:[%s209 + $0x8] sm:$0xff]
      %v220 = vld [vmem:[%s209 + $0x10] sm:$0xff]
      %v221 = vld [vmem:[%s209 + $0x18] sm:$0xff]
      %v222 = vld [vmem:[%s209 + $0x20] sm:$0xff]
      %v223 = vld [vmem:[%s209 + $0x28] sm:$0xff]
      %v224 = vld [vmem:[%s209 + $0x30] sm:$0xff]
      %v225 = vld [vmem:[%s209 + $0x38] sm:$0xff]
      %v226 = vld [vmem:[%s209 + $0x40] sm:$0xff]
      %v227 = vld [vmem:[%s209 + $0x48] sm:$0xff]
      %v228 = vld [vmem:[%s209 + $0x50] sm:$0xff]
      %v229 = vld [vmem:[%s209 + $0x58] sm:$0xff]
      %v230 = vld [vmem:[%s209 + $0x60] sm:$0xff]
      %v231 = vld [vmem:[%s209 + $0x68] sm:$0xff]
      %v232 = vld [vmem:[%s209 + $0x70] sm:$0xff]
      %v233 = vld [vmem:[%s209 + $0x78] sm:$0xff]
      %v234 = vld [vmem:[%s209 + $0x80] sm:$0xff]
      %v235 = vld [vmem:[%s209 + $0x88] sm:$0xff]
      %v236 = vld [vmem:[%s209 + $0x90] sm:$0xff]
      %v237 = vld [vmem:[%s209 + $0x98] sm:$0xff]
      %v238 = vld [vmem:[%s209 + $0xa0] sm:$0xff]
      %v239 = vld [vmem:[%s209 + $0xa8] sm:$0xff]
      %v240 = vld [vmem:[%s209 + $0xb0] sm:$0xff]
      %v241 = vld [vmem:[%s209 + $0xb8] sm:$0xff]
      %v242 = vld [vmem:[%s209 + $0xc0] sm:$0xff]
      %v243 = vld [vmem:[%s209 + $0xc8] sm:$0xff]
      %v244 = vld [vmem:[%s209 + $0xd0] sm:$0xff]
      %v245 = vld [vmem:[%s209 + $0xd8] sm:$0xff]
      %v246 = vld [vmem:[%s209 + $0xe0] sm:$0xff]
      %v247 = vld [vmem:[%s209 + $0xe8] sm:$0xff]
      %v248 = vld [vmem:[%s209 + $0xf0] sm:$0xff]
      %v249 = vld [vmem:[%s209 + $0xf8] sm:$0xff]
      %v250 = vld [vmem:[%s209 + $0x100] sm:$0xff]
      %v251 = vld [vmem:[%s209 + $0x108] sm:$0xff]
      %v252 = vld [vmem:[%s209 + $0x110] sm:$0xff]
      %v253 = vld [vmem:[%s209 + $0x118] sm:$0xff]
      %v254 = vld [vmem:[%s209 + $0x120] sm:$0xff]
      %v255 = vld [vmem:[%s209 + $0x128] sm:$0xff]
      %v256 = vld [vmem:[%s209 + $0x130] sm:$0xff]
      %v257 = vld [vmem:[%s209 + $0x138] sm:$0xff]
      %v258 = vld [vmem:[%s209 + $0x140] sm:$0xff]
      %v259 = vld [vmem:[%s209 + $0x148] sm:$0xff]
      %v260 = vld [vmem:[%s209 + $0x150] sm:$0xff]
      %v261 = vld [vmem:[%s209 + $0x158] sm:$0xff]
      %v262 = vld [vmem:[%s209 + $0x160] sm:$0xff]
      %v263 = vld [vmem:[%s209 + $0x168] sm:$0xff]
      %v264 = vld [vmem:[%s209 + $0x170] sm:$0xff]
      %v265 = vld [vmem:[%s209 + $0x178] sm:$0xff]
      %v266 = vld [vmem:[%s209 + $0x180] sm:$0xff]
      %v267 = vld [vmem:[%s209 + $0x188] sm:$0xff]
      %v268 = vld [vmem:[%s209 + $0x190] sm:$0xff]
      %v269 = vld [vmem:[%s209 + $0x198] sm:$0xff]
      %v270 = vld [vmem:[%s209 + $0x1a0] sm:$0xff]
      %v271 = vld [vmem:[%s209 + $0x1a8] sm:$0xff]
      %v272 = vld [vmem:[%s209 + $0x1b0] sm:$0xff]
      %v273 = vld [vmem:[%s209 + $0x1b8] sm:$0xff]
      %v274 = vld [vmem:[%s209 + $0x1c0] sm:$0xff]
      %v275 = vld [vmem:[%s209 + $0x1c8] sm:$0xff]
      %v276 = vld [vmem:[%s209 + $0x1d0] sm:$0xff]
      %v277 = vld [vmem:[%s209 + $0x1d8] sm:$0xff]
      %v278 = vld [vmem:[%s209 + $0x1e0] sm:$0xff]
      %v279 = vld [vmem:[%s209 + $0x1e8] sm:$0xff]
      %v280 = vld [vmem:[%s209 + $0x1f0] sm:$0xff]
      %v281 = vld [vmem:[%s209 + $0x1f8] sm:$0xff]
      %v282 = vld [vmem:[%s1] sm:$0xff]
      %v283 = vld [vmem:[%s1 + $0x8] sm:$0xff]
      %v284 = vld [vmem:[%s1 + $0x10] sm:$0xff]
      %v285 = vld [vmem:[%s1 + $0x18] sm:$0xff]
      %v286 = vld [vmem:[%s1 + $0x20] sm:$0xff]
      %v287 = vld [vmem:[%s1 + $0x28] sm:$0xff]
      %v288 = vld [vmem:[%s1 + $0x30] sm:$0xff]
      %v289 = vld [vmem:[%s1 + $0x38] sm:$0xff]
      %v290 = vld [vmem:[%s1 + $0x40] sm:$0xff]
      %v291 = vld [vmem:[%s1 + $0x48] sm:$0xff]
      %v292 = vld [vmem:[%s1 + $0x50] sm:$0xff]
      %v293 = vld [vmem:[%s1 + $0x58] sm:$0xff]
      %v294 = vld [vmem:[%s1 + $0x60] sm:$0xff]
      %v295 = vld [vmem:[%s1 + $0x68] sm:$0xff]
      %v296 = vld [vmem:[%s1 + $0x70] sm:$0xff]
      %v297 = vld [vmem:[%s1 + $0x78] sm:$0xff]
      %v298 = vld [vmem:[%s1 + $0x80] sm:$0xff]
      %v299 = vld [vmem:[%s1 + $0x88] sm:$0xff]
      %v300 = vld [vmem:[%s1 + $0x90] sm:$0xff]
      %v301 = vld [vmem:[%s1 + $0x98] sm:$0xff]
      %v302 = vld [vmem:[%s1 + $0xa0] sm:$0xff]
      %v303 = vld [vmem:[%s1 + $0xa8] sm:$0xff]
      %v304 = vld [vmem:[%s1 + $0xb0] sm:$0xff]
      %v305 = vld [vmem:[%s1 + $0xb8] sm:$0xff]
      %v306 = vld [vmem:[%s1 + $0xc0] sm:$0xff]
      %v307 = vld [vmem:[%s1 + $0xc8] sm:$0xff]
      %v308 = vld [vmem:[%s1 + $0xd0] sm:$0xff]
      %v309 = vld [vmem:[%s1 + $0xd8] sm:$0xff]
      %v310 = vld [vmem:[%s1 + $0xe0] sm:$0xff]
      %v311 = vld [vmem:[%s1 + $0xe8] sm:$0xff]
      %v312 = vld [vmem:[%s1 + $0xf0] sm:$0xff]
      %v313 = vld [vmem:[%s1 + $0xf8] sm:$0xff]
      %v314 = vld [vmem:[%s1 + $0x100] sm:$0xff]
      %v315 = vld [vmem:[%s1 + $0x108] sm:$0xff]
      %v316 = vld [vmem:[%s1 + $0x110] sm:$0xff]
      %v317 = vld [vmem:[%s1 + $0x118] sm:$0xff]
      %v318 = vld [vmem:[%s1 + $0x120] sm:$0xff]
      %v319 = vld [vmem:[%s1 + $0x128] sm:$0xff]
      %v320 = vld [vmem:[%s1 + $0x130] sm:$0xff]
      %v321 = vld [vmem:[%s1 + $0x138] sm:$0xff]
      %v322 = vld [vmem:[%s1 + $0x140] sm:$0xff]
      %v323 = vld [vmem:[%s1 + $0x148] sm:$0xff]
      %v324 = vld [vmem:[%s1 + $0x150] sm:$0xff]
      %v325 = vld [vmem:[%s1 + $0x158] sm:$0xff]
      %v326 = vld [vmem:[%s1 + $0x160] sm:$0xff]
      %v327 = vld [vmem:[%s1 + $0x168] sm:$0xff]
      %v328 = vld [vmem:[%s1 + $0x170] sm:$0xff]
      %v329 = vld [vmem:[%s1 + $0x178] sm:$0xff]
      %v330 = vld [vmem:[%s1 + $0x180] sm:$0xff]
      %v331 = vld [vmem:[%s1 + $0x188] sm:$0xff]
      %v332 = vld [vmem:[%s1 + $0x190] sm:$0xff]
      %v333 = vld [vmem:[%s1 + $0x198] sm:$0xff]
      %v334 = vld [vmem:[%s1 + $0x1a0] sm:$0xff]
      %v335 = vld [vmem:[%s1 + $0x1a8] sm:$0xff]
      %v336 = vld [vmem:[%s1 + $0x1b0] sm:$0xff]
      %v337 = vld [vmem:[%s1 + $0x1b8] sm:$0xff]
      %v338 = vld [vmem:[%s1 + $0x1c0] sm:$0xff]
      %v339 = vld [vmem:[%s1 + $0x1c8] sm:$0xff]
      %v340 = vld [vmem:[%s1 + $0x1d0] sm:$0xff]
      %v341 = vld [vmem:[%s1 + $0x1d8] sm:$0xff]
      %v342 = vld [vmem:[%s1 + $0x1e0] sm:$0xff]
      %v343 = vld [vmem:[%s1 + $0x1e8] sm:$0xff]
      %v344 = vld [vmem:[%s1 + $0x1f0] sm:$0xff]
      %v345 = vld [vmem:[%s1 + $0x1f8] sm:$0xff]
      %346 = vmatprep.subr.mxu0 %v283
      %347 = vmatpush1.msra.mxu0 %v282
      %348 = vmatprep.subr.mxu0 %v285
      %349 = vmatpush1.msra.mxu0 %v284
      %350 = vmatprep.subr.mxu0 %v287
      %351 = vmatpush1.msra.mxu0 %v286
      %352 = vmatprep.subr.mxu0 %v289
      %353 = vmatpush1.msra.mxu0 %v288
      %354 = vmatprep.subr.mxu0 %v291
      %355 = vmatpush1.msra.mxu0 %v290
      %356 = vmatprep.subr.mxu0 %v293
      %357 = vmatpush1.msra.mxu0 %v292
      %358 = vmatprep.subr.mxu0 %v295
      %359 = vmatpush1.msra.mxu0 %v294
      %360 = vmatprep.subr.mxu0 %v297
      %361 = vmatpush1.msra.mxu0 %v296
      %362 = vmatprep.subr.mxu0 %v299
      %363 = vmatpush1.msra.mxu0 %v298
      %364 = vmatprep.subr.mxu0 %v301
      %365 = vmatpush1.msra.mxu0 %v300
      %366 = vmatprep.subr.mxu0 %v303
      %367 = vmatpush1.msra.mxu0 %v302
      %368 = vmatprep.subr.mxu0 %v305
      %369 = vmatpush1.msra.mxu0 %v304
      %370 = vmatprep.subr.mxu0 %v307
      %371 = vmatpush1.msra.mxu0 %v306
      %372 = vmatprep.subr.mxu0 %v309
      %373 = vmatpush1.msra.mxu0 %v308
      %374 = vmatprep.subr.mxu0 %v311
      %375 = vmatpush1.msra.mxu0 %v310
      %376 = vmatprep.subr.mxu0 %v313
      %377 = vmatpush1.msra.mxu0 %v312
      %378 = vmatprep.subr.mxu0 %v315
      %379 = vmatpush1.msra.mxu0 %v314
      %380 = vmatprep.subr.mxu0 %v317
      %381 = vmatpush1.msra.mxu0 %v316
      %382 = vmatprep.subr.mxu0 %v319
      %383 = vmatpush1.msra.mxu0 %v318
      %384 = vmatprep.subr.mxu0 %v321
      %385 = vmatpush1.msra.mxu0 %v320
      %386 = vmatprep.subr.mxu0 %v323
      %387 = vmatpush1.msra.mxu0 %v322
      %388 = vmatprep.subr.mxu0 %v325
      %389 = vmatpush1.msra.mxu0 %v324
      %390 = vmatprep.subr.mxu0 %v327
      %391 = vmatpush1.msra.mxu0 %v326
      %392 = vmatprep.subr.mxu0 %v329
      %393 = vmatpush1.msra.mxu0 %v328
      %394 = vmatprep.subr.mxu0 %v331
      %395 = vmatpush1.msra.mxu0 %v330
      %396 = vmatprep.subr.mxu0 %v333
      %397 = vmatpush1.msra.mxu0 %v332
      %398 = vmatprep.subr.mxu0 %v335
      %399 = vmatpush1.msra.mxu0 %v334
      %400 = vmatprep.subr.mxu0 %v337
      %401 = vmatpush1.msra.mxu0 %v336
      %402 = vmatprep.subr.mxu0 %v339
      %403 = vmatpush1.msra.mxu0 %v338
      %404 = vmatprep.subr.mxu0 %v341
      %405 = vmatpush1.msra.mxu0 %v340
      %406 = vmatprep.subr.mxu0 %v343
      %407 = vmatpush1.msra.mxu0 %v342
      %408 = vmatprep.subr.mxu0 %v345
      %409 = vmatpush1.msra.mxu0 %v344
      %410 = vmatprep.mubr.f32.mxu0 %v219
      %411 = vmatmul.mubr.f32.gmra.mrb[0].mxu0 %v218
      %v412 = vpop.f32.mrb[0].mxu0
      %v413 = vadd.f32 0.0, %v412
      %v414 = vpop.f32.mrb[0].mxu0
      %v415 = vadd.f32 0.0, %v414
      %416 = vmatprep.mubr.f32.mxu0 %v221
      %417 = vmatmul.mubr.f32.gmra.mrb[0].mxu0 %v220
      %v418 = vpop.f32.mrb[0].mxu0
      %v419 = vadd.f32 0.0, %v418
      %v420 = vpop.f32.mrb[0].mxu0
      %v421 = vadd.f32 0.0, %v420
      %422 = vmatprep.mubr.f32.mxu0 %v223
      %423 = vmatmul.mubr.f32.gmra.mrb[0].mxu0 %v222
      %v424 = vpop.f32.mrb[0].mxu0
      %v425 = vadd.f32 0.0, %v424
      %v426 = vpop.f32.mrb[0].mxu0
      %v427 = vadd.f32 0.0, %v426
      %428 = vmatprep.mubr.f32.mxu0 %v225
      %429 = vmatmul.mubr.f32.gmra.mrb[0].mxu0 %v224
      %v430 = vpop.f32.mrb[0].mxu0
      %v431 = vadd.f32 0.0, %v430
      %v432 = vpop.f32.mrb[0].mxu0
      %v433 = vadd.f32 0.0, %v432
      %434 = vmatprep.mubr.f32.mxu0 %v227
      %435 = vmatmul.mubr.f32.gmra.mrb[0].mxu0 %v226
      %v436 = vpop.f32.mrb[0].mxu0
      %v437 = vadd.f32 0.0, %v436
      %v438 = vpop.f32.mrb[0].mxu0
      %v439 = vadd.f32 0.0, %v438
      %440 = vmatprep.mubr.f32.mxu0 %v229
      %441 = vmatmul.mubr.f32.gmra.mrb[0].mxu0 %v228
      %v442 = vpop.f32.mrb[0].mxu0
      %v443 = vadd.f32 0.0, %v442
      %v444 = vpop.f32.mrb[0].mxu0
      %v445 = vadd.f32 0.0, %v444
      %446 = vmatprep.mubr.f32.mxu0 %v231
      %447 = vmatmul.mubr.f32.gmra.mrb[0].mxu0 %v230
      %v448 = vpop.f32.mrb[0].mxu0
      %v449 = vadd.f32 0.0, %v448
      %v450 = vpop.f32.mrb[0].mxu0
      %v451 = vadd.f32 0.0, %v450
      %452 = vmatprep.mubr.f32.mxu0 %v233
      %453 = vmatmul.mubr.f32.gmra.mrb[0].mxu0 %v232
      %v454 = vpop.f32.mrb[0].mxu0
      %v455 = vadd.f32 0.0, %v454
      %v456 = vpop.f32.mrb[0].mxu0
      %v457 = vadd.f32 0.0, %v456
      %458 = vmatprep.mubr.f32.mxu0 %v235
      %459 = vmatmul.mubr.f32.gmra.mrb[0].mxu0 %v234
      %v460 = vpop.f32.mrb[0].mxu0
      %v461 = vadd.f32 0.0, %v460
      %v462 = vpop.f32.mrb[0].mxu0
      %v463 = vadd.f32 0.0, %v462
      %464 = vmatprep.mubr.f32.mxu0 %v237
      %465 = vmatmul.mubr.f32.gmra.mrb[0].mxu0 %v236
      %v466 = vpop.f32.mrb[0].mxu0
      %v467 = vadd.f32 0.0, %v466
      %v468 = vpop.f32.mrb[0].mxu0
      %v469 = vadd.f32 0.0, %v468
      %470 = vmatprep.mubr.f32.mxu0 %v239
      %471 = vmatmul.mubr.f32.gmra.mrb[0].mxu0 %v238
      %v472 = vpop.f32.mrb[0].mxu0
      %v473 = vadd.f32 0.0, %v472
      %v474 = vpop.f32.mrb[0].mxu0
      %v475 = vadd.f32 0.0, %v474
      %476 = vmatprep.mubr.f32.mxu0 %v241
      %477 = vmatmul.mubr.f32.gmra.mrb[0].mxu0 %v240
      %v478 = vpop.f32.mrb[0].mxu0
      %v479 = vadd.f32 0.0, %v478
      %v480 = vpop.f32.mrb[0].mxu0
      %v481 = vadd.f32 0.0, %v480
      %482 = vmatprep.mubr.f32.mxu0 %v243
      %483 = vmatmul.mubr.f32.gmra.mrb[0].mxu0 %v242
      %v484 = vpop.f32.mrb[0].mxu0
      %v485 = vadd.f32 0.0, %v484
      %v486 = vpop.f32.mrb[0].mxu0
      %v487 = vadd.f32 0.0, %v486
      %488 = vmatprep.mubr.f32.mxu0 %v245
      %489 = vmatmul.mubr.f32.gmra.mrb[0].mxu0 %v244
      %v490 = vpop.f32.mrb[0].mxu0
      %v491 = vadd.f32 0.0, %v490
      %v492 = vpop.f32.mrb[0].mxu0
      %v493 = vadd.f32 0.0, %v492
      %494 = vmatprep.mubr.f32.mxu0 %v247
      %495 = vmatmul.mubr.f32.gmra.mrb[0].mxu0 %v246
      %v496 = vpop.f32.mrb[0].mxu0
      %v497 = vadd.f32 0.0, %v496
      %v498 = vpop.f32.mrb[0].mxu0
      %v499 = vadd.f32 0.0, %v498
      %500 = vmatprep.mubr.f32.mxu0 %v249
      %501 = vmatmul.mubr.f32.gmra.mrb[0].mxu0 %v248
      %v502 = vpop.f32.mrb[0].mxu0
      %v503 = vadd.f32 0.0, %v502
      %v504 = vpop.f32.mrb[0].mxu0
      %v505 = vadd.f32 0.0, %v504
      %506 = vmatprep.mubr.f32.mxu0 %v251
      %507 = vmatmul.mubr.f32.gmra.mrb[0].mxu0 %v250
      %v508 = vpop.f32.mrb[0].mxu0
      %v509 = vadd.f32 0.0, %v508
      %v510 = vpop.f32.mrb[0].mxu0
      %v511 = vadd.f32 0.0, %v510
      %512 = vmatprep.mubr.f32.mxu0 %v253
      %513 = vmatmul.mubr.f32.gmra.mrb[0].mxu0 %v252
      %v514 = vpop.f32.mrb[0].mxu0
      %v515 = vadd.f32 0.0, %v514
      %v516 = vpop.f32.mrb[0].mxu0
      %v517 = vadd.f32 0.0, %v516
      %518 = vmatprep.mubr.f32.mxu0 %v255
      %519 = vmatmul.mubr.f32.gmra.mrb[0].mxu0 %v254
      %v520 = vpop.f32.mrb[0].mxu0
      %v521 = vadd.f32 0.0, %v520
      %v522 = vpop.f32.mrb[0].mxu0
      %v523 = vadd.f32 0.0, %v522
      %524 = vmatprep.mubr.f32.mxu0 %v257
      %525 = vmatmul.mubr.f32.gmra.mrb[0].mxu0 %v256
      %v526 = vpop.f32.mrb[0].mxu0
      %v527 = vadd.f32 0.0, %v526
      %v528 = vpop.f32.mrb[0].mxu0
      %v529 = vadd.f32 0.0, %v528
      %530 = vmatprep.mubr.f32.mxu0 %v259
      %531 = vmatmul.mubr.f32.gmra.mrb[0].mxu0 %v258
      %v532 = vpop.f32.mrb[0].mxu0
      %v533 = vadd.f32 0.0, %v532
      %v534 = vpop.f32.mrb[0].mxu0
      %v535 = vadd.f32 0.0, %v534
      %536 = vmatprep.mubr.f32.mxu0 %v261
      %537 = vmatmul.mubr.f32.gmra.mrb[0].mxu0 %v260
      %v538 = vpop.f32.mrb[0].mxu0
      %v539 = vadd.f32 0.0, %v538
      %v540 = vpop.f32.mrb[0].mxu0
      %v541 = vadd.f32 0.0, %v540
      %542 = vmatprep.mubr.f32.mxu0 %v263
      %543 = vmatmul.mubr.f32.gmra.mrb[0].mxu0 %v262
      %v544 = vpop.f32.mrb[0].mxu0
      %v545 = vadd.f32 0.0, %v544
      %v546 = vpop.f32.mrb[0].mxu0
      %v547 = vadd.f32 0.0, %v546
      %548 = vmatprep.mubr.f32.mxu0 %v265
      %549 = vmatmul.mubr.f32.gmra.mrb[0].mxu0 %v264
      %v550 = vpop.f32.mrb[0].mxu0
      %v551 = vadd.f32 0.0, %v550
      %v552 = vpop.f32.mrb[0].mxu0
      %v553 = vadd.f32 0.0, %v552
      %554 = vmatprep.mubr.f32.mxu0 %v267
      %555 = vmatmul.mubr.f32.gmra.mrb[0].mxu0 %v266
      %v556 = vpop.f32.mrb[0].mxu0
      %v557 = vadd.f32 0.0, %v556
      %v558 = vpop.f32.mrb[0].mxu0
      %v559 = vadd.f32 0.0, %v558
      %560 = vmatprep.mubr.f32.mxu0 %v269
      %561 = vmatmul.mubr.f32.gmra.mrb[0].mxu0 %v268
      %v562 = vpop.f32.mrb[0].mxu0
      %v563 = vadd.f32 0.0, %v562
      %v564 = vpop.f32.mrb[0].mxu0
      %v565 = vadd.f32 0.0, %v564
      %566 = vmatprep.mubr.f32.mxu0 %v271
      %567 = vmatmul.mubr.f32.gmra.mrb[0].mxu0 %v270
      %v568 = vpop.f32.mrb[0].mxu0
      %v569 = vadd.f32 0.0, %v568
      %v570 = vpop.f32.mrb[0].mxu0
      %v571 = vadd.f32 0.0, %v570
      %572 = vmatprep.mubr.f32.mxu0 %v273
      %573 = vmatmul.mubr.f32.gmra.mrb[0].mxu0 %v272
      %v574 = vpop.f32.mrb[0].mxu0
      %v575 = vadd.f32 0.0, %v574
      %v576 = vpop.f32.mrb[0].mxu0
      %v577 = vadd.f32 0.0, %v576
      %578 = vmatprep.mubr.f32.mxu0 %v275
      %579 = vmatmul.mubr.f32.gmra.mrb[0].mxu0 %v274
      %v580 = vpop.f32.mrb[0].mxu0
      %v581 = vadd.f32 0.0, %v580
      %v582 = vpop.f32.mrb[0].mxu0
      %v583 = vadd.f32 0.0, %v582
      %584 = vmatprep.mubr.f32.mxu0 %v277
      %585 = vmatmul.mubr.f32.gmra.mrb[0].mxu0 %v276
      %v586 = vpop.f32.mrb[0].mxu0
      %v587 = vadd.f32 0.0, %v586
      %v588 = vpop.f32.mrb[0].mxu0
      %v589 = vadd.f32 0.0, %v588
      %590 = vmatprep.mubr.f32.mxu0 %v279
      %591 = vmatmul.mubr.f32.gmra.mrb[0].mxu0 %v278
      %v592 = vpop.f32.mrb[0].mxu0
      %v593 = vadd.f32 0.0, %v592
      %v594 = vpop.f32.mrb[0].mxu0
      %v595 = vadd.f32 0.0, %v594
      %596 = vmatprep.mubr.f32.mxu0 %v281
      %597 = vmatmul.mubr.f32.gmra.mrb[0].mxu0 %v280
      %v598 = vpop.f32.mrb[0].mxu0
      %v599 = vadd.f32 0.0, %v598
      %v600 = vpop.f32.mrb[0].mxu0
      %v601 = vadd.f32 0.0, %v600
      %602 = vdwg.mxu0
      %603 = vst [vmem:[#allocation2] sm:$0xff] %v413
      %604 = vst [vmem:[#allocation2 + $0x8] sm:$0xff] %v415
      %605 = vst [vmem:[#allocation2 + $0x10] sm:$0xff] %v419
      %606 = vst [vmem:[#allocation2 + $0x18] sm:$0xff] %v421
      %607 = vst [vmem:[#allocation2 + $0x20] sm:$0xff] %v425
      %608 = vst [vmem:[#allocation2 + $0x28] sm:$0xff] %v427
      %609 = vst [vmem:[#allocation2 + $0x30] sm:$0xff] %v431
      %610 = vst [vmem:[#allocation2 + $0x38] sm:$0xff] %v433
      %611 = vst [vmem:[#allocation2 + $0x40] sm:$0xff] %v437
      %612 = vst [vmem:[#allocation2 + $0x48] sm:$0xff] %v439
      %613 = vst [vmem:[#allocation2 + $0x50] sm:$0xff] %v443
      %614 = vst [vmem:[#allocation2 + $0x58] sm:$0xff] %v445
      %615 = vst [vmem:[#allocation2 + $0x60] sm:$0xff] %v449
      %616 = vst [vmem:[#allocation2 + $0x68] sm:$0xff] %v451
      %617 = vst [vmem:[#allocation2 + $0x70] sm:$0xff] %v455
      %618 = vst [vmem:[#allocation2 + $0x78] sm:$0xff] %v457
      %619 = vst [vmem:[#allocation2 + $0x80] sm:$0xff] %v461
      %620 = vst [vmem:[#allocation2 + $0x88] sm:$0xff] %v463
      %621 = vst [vmem:[#allocation2 + $0x90] sm:$0xff] %v467
      %622 = vst [vmem:[#allocation2 + $0x98] sm:$0xff] %v469
      %623 = vst [vmem:[#allocation2 + $0xa0] sm:$0xff] %v473
      %624 = vst [vmem:[#allocation2 + $0xa8] sm:$0xff] %v475
      %625 = vst [vmem:[#allocation2 + $0xb0] sm:$0xff] %v479
      %626 = vst [vmem:[#allocation2 + $0xb8] sm:$0xff] %v481
      %627 = vst [vmem:[#allocation2 + $0xc0] sm:$0xff] %v485
      %628 = vst [vmem:[#allocation2 + $0xc8] sm:$0xff] %v487
      %629 = vst [vmem:[#allocation2 + $0xd0] sm:$0xff] %v491
      %630 = vst [vmem:[#allocation2 + $0xd8] sm:$0xff] %v493
      %631 = vst [vmem:[#allocation2 + $0xe0] sm:$0xff] %v497
      %632 = vst [vmem:[#allocation2 + $0xe8] sm:$0xff] %v499
      %633 = vst [vmem:[#allocation2 + $0xf0] sm:$0xff] %v503
      %634 = vst [vmem:[#allocation2 + $0xf8] sm:$0xff] %v505
      %635 = vst [vmem:[#allocation2 + $0x100] sm:$0xff] %v509
      %636 = vst [vmem:[#allocation2 + $0x108] sm:$0xff] %v511
      %637 = vst [vmem:[#allocation2 + $0x110] sm:$0xff] %v515
      %638 = vst [vmem:[#allocation2 + $0x118] sm:$0xff] %v517
      %639 = vst [vmem:[#allocation2 + $0x120] sm:$0xff] %v521
      %640 = vst [vmem:[#allocation2 + $0x128] sm:$0xff] %v523
      %641 = vst [vmem:[#allocation2 + $0x130] sm:$0xff] %v527
      %642 = vst [vmem:[#allocation2 + $0x138] sm:$0xff] %v529
      %643 = vst [vmem:[#allocation2 + $0x140] sm:$0xff] %v533
      %644 = vst [vmem:[#allocation2 + $0x148] sm:$0xff] %v535
      %645 = vst [vmem:[#allocation2 + $0x150] sm:$0xff] %v539
      %646 = vst [vmem:[#allocation2 + $0x158] sm:$0xff] %v541
      %647 = vst [vmem:[#allocation2 + $0x160] sm:$0xff] %v545
      %648 = vst [vmem:[#allocation2 + $0x168] sm:$0xff] %v547
      %649 = vst [vmem:[#allocation2 + $0x170] sm:$0xff] %v551
      %650 = vst [vmem:[#allocation2 + $0x178] sm:$0xff] %v553
      %651 = vst [vmem:[#allocation2 + $0x180] sm:$0xff] %v557
      %652 = vst [vmem:[#allocation2 + $0x188] sm:$0xff] %v559
      %653 = vst [vmem:[#allocation2 + $0x190] sm:$0xff] %v563
      %654 = vst [vmem:[#allocation2 + $0x198] sm:$0xff] %v565
      %655 = vst [vmem:[#allocation2 + $0x1a0] sm:$0xff] %v569
      %656 = vst [vmem:[#allocation2 + $0x1a8] sm:$0xff] %v571
      %657 = vst [vmem:[#allocation2 + $0x1b0] sm:$0xff] %v575
      %658 = vst [vmem:[#allocation2 + $0x1b8] sm:$0xff] %v577
      %659 = vst [vmem:[#allocation2 + $0x1c0] sm:$0xff] %v581
      %660 = vst [vmem:[#allocation2 + $0x1c8] sm:$0xff] %v583
      %661 = vst [vmem:[#allocation2 + $0x1d0] sm:$0xff] %v587
      %662 = vst [vmem:[#allocation2 + $0x1d8] sm:$0xff] %v589
      %663 = vst [vmem:[#allocation2 + $0x1e0] sm:$0xff] %v593
      %664 = vst [vmem:[#allocation2 + $0x1e8] sm:$0xff] %v595
      %665 = vst [vmem:[#allocation2 + $0x1f0] sm:$0xff] %v599
      %666 = vst [vmem:[#allocation2 + $0x1f8] sm:$0xff] %v601
      %s667 = scalar_lea.vmem %s1, 512
      %v668 = vld [vmem:[%s667] sm:$0xff]
      %v669 = vld [vmem:[%s667 + $0x8] sm:$0xff]
      %v670 = vld [vmem:[%s667 + $0x10] sm:$0xff]
      %v671 = vld [vmem:[%s667 + $0x18] sm:$0xff]
      %v672 = vld [vmem:[%s667 + $0x20] sm:$0xff]
      %v673 = vld [vmem:[%s667 + $0x28] sm:$0xff]
      %v674 = vld [vmem:[%s667 + $0x30] sm:$0xff]
      %v675 = vld [vmem:[%s667 + $0x38] sm:$0xff]
      %v676 = vld [vmem:[%s667 + $0x40] sm:$0xff]
      %v677 = vld [vmem:[%s667 + $0x48] sm:$0xff]
      %v678 = vld [vmem:[%s667 + $0x50] sm:$0xff]
      %v679 = vld [vmem:[%s667 + $0x58] sm:$0xff]
      %v680 = vld [vmem:[%s667 + $0x60] sm:$0xff]
      %v681 = vld [vmem:[%s667 + $0x68] sm:$0xff]
      %v682 = vld [vmem:[%s667 + $0x70] sm:$0xff]
      %v683 = vld [vmem:[%s667 + $0x78] sm:$0xff]
      %v684 = vld [vmem:[%s667 + $0x80] sm:$0xff]
      %v685 = vld [vmem:[%s667 + $0x88] sm:$0xff]
      %v686 = vld [vmem:[%s667 + $0x90] sm:$0xff]
      %v687 = vld [vmem:[%s667 + $0x98] sm:$0xff]
      %v688 = vld [vmem:[%s667 + $0xa0] sm:$0xff]
      %v689 = vld [vmem:[%s667 + $0xa8] sm:$0xff]
      %v690 = vld [vmem:[%s667 + $0xb0] sm:$0xff]
      %v691 = vld [vmem:[%s667 + $0xb8] sm:$0xff]
      %v692 = vld [vmem:[%s667 + $0xc0] sm:$0xff]
      %v693 = vld [vmem:[%s667 + $0xc8] sm:$0xff]
      %v694 = vld [vmem:[%s667 + $0xd0] sm:$0xff]
      %v695 = vld [vmem:[%s667 + $0xd8] sm:$0xff]
      %v696 = vld [vmem:[%s667 + $0xe0] sm:$0xff]
      %v697 = vld [vmem:[%s667 + $0xe8] sm:$0xff]
      %v698 = vld [vmem:[%s667 + $0xf0] sm:$0xff]
      %v699 = vld [vmem:[%s667 + $0xf8] sm:$0xff]
      %v700 = vld [vmem:[%s667 + $0x100] sm:$0xff]
      %v701 = vld [vmem:[%s667 + $0x108] sm:$0xff]
      %v702 = vld [vmem:[%s667 + $0x110] sm:$0xff]
      %v703 = vld [vmem:[%s667 + $0x118] sm:$0xff]
      %v704 = vld [vmem:[%s667 + $0x120] sm:$0xff]
      %v705 = vld [vmem:[%s667 + $0x128] sm:$0xff]
      %v706 = vld [vmem:[%s667 + $0x130] sm:$0xff]
      %v707 = vld [vmem:[%s667 + $0x138] sm:$0xff]
      %v708 = vld [vmem:[%s667 + $0x140] sm:$0xff]
      %v709 = vld [vmem:[%s667 + $0x148] sm:$0xff]
      %v710 = vld [vmem:[%s667 + $0x150] sm:$0xff]
      %v711 = vld [vmem:[%s667 + $0x158] sm:$0xff]
      %v712 = vld [vmem:[%s667 + $0x160] sm:$0xff]
      %v713 = vld [vmem:[%s667 + $0x168] sm:$0xff]
      %v714 = vld [vmem:[%s667 + $0x170] sm:$0xff]
      %v715 = vld [vmem:[%s667 + $0x178] sm:$0xff]
      %v716 = vld [vmem:[%s667 + $0x180] sm:$0xff]
      %v717 = vld [vmem:[%s667 + $0x188] sm:$0xff]
      %v718 = vld [vmem:[%s667 + $0x190] sm:$0xff]
      %v719 = vld [vmem:[%s667 + $0x198] sm:$0xff]
      %v720 = vld [vmem:[%s667 + $0x1a0] sm:$0xff]
      %v721 = vld [vmem:[%s667 + $0x1a8] sm:$0xff]
      %v722 = vld [vmem:[%s667 + $0x1b0] sm:$0xff]
      %v723 = vld [vmem:[%s667 + $0x1b8] sm:$0xff]
      %v724 = vld [vmem:[%s667 + $0x1c0] sm:$0xff]
      %v725 = vld [vmem:[%s667 + $0x1c8] sm:$0xff]
      %v726 = vld [vmem:[%s667 + $0x1d0] sm:$0xff]
      %v727 = vld [vmem:[%s667 + $0x1d8] sm:$0xff]
      %v728 = vld [vmem:[%s667 + $0x1e0] sm:$0xff]
      %v729 = vld [vmem:[%s667 + $0x1e8] sm:$0xff]
      %v730 = vld [vmem:[%s667 + $0x1f0] sm:$0xff]
      %v731 = vld [vmem:[%s667 + $0x1f8] sm:$0xff]
      %732 = vmatprep.subr.mxu0 %v669
      %733 = vmatpush1.msra.mxu0 %v668
      %734 = vmatprep.subr.mxu0 %v671
      %735 = vmatpush1.msra.mxu0 %v670
      %736 = vmatprep.subr.mxu0 %v673
      %737 = vmatpush1.msra.mxu0 %v672
      %738 = vmatprep.subr.mxu0 %v675
      %739 = vmatpush1.msra.mxu0 %v674
      %740 = vmatprep.subr.mxu0 %v677
      %741 = vmatpush1.msra.mxu0 %v676
      %742 = vmatprep.subr.mxu0 %v679
      %743 = vmatpush1.msra.mxu0 %v678
      %744 = vmatprep.subr.mxu0 %v681
      %745 = vmatpush1.msra.mxu0 %v680
      %746 = vmatprep.subr.mxu0 %v683
      %747 = vmatpush1.msra.mxu0 %v682
      %748 = vmatprep.subr.mxu0 %v685
      %749 = vmatpush1.msra.mxu0 %v684
      %750 = vmatprep.subr.mxu0 %v687
      %751 = vmatpush1.msra.mxu0 %v686
      %752 = vmatprep.subr.mxu0 %v689
      %753 = vmatpush1.msra.mxu0 %v688
      %754 = vmatprep.subr.mxu0 %v691
      %755 = vmatpush1.msra.mxu0 %v690
      %756 = vmatprep.subr.mxu0 %v693
      %757 = vmatpush1.msra.mxu0 %v692
      %758 = vmatprep.subr.mxu0 %v695
      %759 = vmatpush1.msra.mxu0 %v694
      %760 = vmatprep.subr.mxu0 %v697
      %761 = vmatpush1.msra.mxu0 %v696
      %762 = vmatprep.subr.mxu0 %v699
      %763 = vmatpush1.msra.mxu0 %v698
      %764 = vmatprep.subr.mxu0 %v701
      %765 = vmatpush1.msra.mxu0 %v700
      %766 = vmatprep.subr.mxu0 %v703
      %767 = vmatpush1.msra.mxu0 %v702
      %768 = vmatprep.subr.mxu0 %v705
      %769 = vmatpush1.msra.mxu0 %v704
      %770 = vmatprep.subr.mxu0 %v707
      %771 = vmatpush1.msra.mxu0 %v706
      %772 = vmatprep.subr.mxu0 %v709
      %773 = vmatpush1.msra.mxu0 %v708
      %774 = vmatprep.subr.mxu0 %v711
      %775 = vmatpush1.msra.mxu0 %v710
      %776 = vmatprep.subr.mxu0 %v713
      %777 = vmatpush1.msra.mxu0 %v712
      %778 = vmatprep.subr.mxu0 %v715
      %779 = vmatpush1.msra.mxu0 %v714
      %780 = vmatprep.subr.mxu0 %v717
      %781 = vmatpush1.msra.mxu0 %v716
      %782 = vmatprep.subr.mxu0 %v719
      %783 = vmatpush1.msra.mxu0 %v718
      %784 = vmatprep.subr.mxu0 %v721
      %785 = vmatpush1.msra.mxu0 %v720
      %786 = vmatprep.subr.mxu0 %v723
      %787 = vmatpush1.msra.mxu0 %v722
      %788 = vmatprep.subr.mxu0 %v725
      %789 = vmatpush1.msra.mxu0 %v724
      %790 = vmatprep.subr.mxu0 %v727
      %791 = vmatpush1.msra.mxu0 %v726
      %792 = vmatprep.subr.mxu0 %v729
      %793 = vmatpush1.msra.mxu0 %v728
      %794 = vmatprep.subr.mxu0 %v731
      %795 = vmatpush1.msra.mxu0 %v730
      %796 = vmatprep.mubr.f32.mxu0 %v219
      %797 = vmatmul.mubr.f32.gmra.mrb[0].mxu0 %v218
      %v798 = vpop.f32.mrb[0].mxu0
      %v799 = vadd.f32 0.0, %v798
      %v800 = vpop.f32.mrb[0].mxu0
      %v801 = vadd.f32 0.0, %v800
      %802 = vmatprep.mubr.f32.mxu0 %v221
      %803 = vmatmul.mubr.f32.gmra.mrb[0].mxu0 %v220
      %v804 = vpop.f32.mrb[0].mxu0
      %v805 = vadd.f32 0.0, %v804
      %v806 = vpop.f32.mrb[0].mxu0
      %v807 = vadd.f32 0.0, %v806
      %808 = vmatprep.mubr.f32.mxu0 %v223
      %809 = vmatmul.mubr.f32.gmra.mrb[0].mxu0 %v222
      %v810 = vpop.f32.mrb[0].mxu0
      %v811 = vadd.f32 0.0, %v810
      %v812 = vpop.f32.mrb[0].mxu0
      %v813 = vadd.f32 0.0, %v812
      %814 = vmatprep.mubr.f32.mxu0 %v225
      %815 = vmatmul.mubr.f32.gmra.mrb[0].mxu0 %v224
      %v816 = vpop.f32.mrb[0].mxu0
      %v817 = vadd.f32 0.0, %v816
      %v818 = vpop.f32.mrb[0].mxu0
      %v819 = vadd.f32 0.0, %v818
      %820 = vmatprep.mubr.f32.mxu0 %v227
      %821 = vmatmul.mubr.f32.gmra.mrb[0].mxu0 %v226
      %v822 = vpop.f32.mrb[0].mxu0
      %v823 = vadd.f32 0.0, %v822
      %v824 = vpop.f32.mrb[0].mxu0
      %v825 = vadd.f32 0.0, %v824
      %826 = vmatprep.mubr.f32.mxu0 %v229
      %827 = vmatmul.mubr.f32.gmra.mrb[0].mxu0 %v228
      %v828 = vpop.f32.mrb[0].mxu0
      %v829 = vadd.f32 0.0, %v828
      %v830 = vpop.f32.mrb[0].mxu0
      %v831 = vadd.f32 0.0, %v830
      %832 = vmatprep.mubr.f32.mxu0 %v231
      %833 = vmatmul.mubr.f32.gmra.mrb[0].mxu0 %v230
      %v834 = vpop.f32.mrb[0].mxu0
      %v835 = vadd.f32 0.0, %v834
      %v836 = vpop.f32.mrb[0].mxu0
      %v837 = vadd.f32 0.0, %v836
      %838 = vmatprep.mubr.f32.mxu0 %v233
      %839 = vmatmul.mubr.f32.gmra.mrb[0].mxu0 %v232
      %v840 = vpop.f32.mrb[0].mxu0
      %v841 = vadd.f32 0.0, %v840
      %v842 = vpop.f32.mrb[0].mxu0
      %v843 = vadd.f32 0.0, %v842
      %844 = vmatprep.mubr.f32.mxu0 %v235
      %845 = vmatmul.mubr.f32.gmra.mrb[0].mxu0 %v234
      %v846 = vpop.f32.mrb[0].mxu0
      %v847 = vadd.f32 0.0, %v846
      %v848 = vpop.f32.mrb[0].mxu0
      %v849 = vadd.f32 0.0, %v848
      %850 = vmatprep.mubr.f32.mxu0 %v237
      %851 = vmatmul.mubr.f32.gmra.mrb[0].mxu0 %v236
      %v852 = vpop.f32.mrb[0].mxu0
      %v853 = vadd.f32 0.0, %v852
      %v854 = vpop.f32.mrb[0].mxu0
      %v855 = vadd.f32 0.0, %v854
      %856 = vmatprep.mubr.f32.mxu0 %v239
      %857 = vmatmul.mubr.f32.gmra.mrb[0].mxu0 %v238
      %v858 = vpop.f32.mrb[0].mxu0
      %v859 = vadd.f32 0.0, %v858
      %v860 = vpop.f32.mrb[0].mxu0
      %v861 = vadd.f32 0.0, %v860
      %862 = vmatprep.mubr.f32.mxu0 %v241
      %863 = vmatmul.mubr.f32.gmra.mrb[0].mxu0 %v240
      %v864 = vpop.f32.mrb[0].mxu0
      %v865 = vadd.f32 0.0, %v864
      %v866 = vpop.f32.mrb[0].mxu0
      %v867 = vadd.f32 0.0, %v866
      %868 = vmatprep.mubr.f32.mxu0 %v243
      %869 = vmatmul.mubr.f32.gmra.mrb[0].mxu0 %v242
      %v870 = vpop.f32.mrb[0].mxu0
      %v871 = vadd.f32 0.0, %v870
      %v872 = vpop.f32.mrb[0].mxu0
      %v873 = vadd.f32 0.0, %v872
      %874 = vmatprep.mubr.f32.mxu0 %v245
      %875 = vmatmul.mubr.f32.gmra.mrb[0].mxu0 %v244
      %v876 = vpop.f32.mrb[0].mxu0
      %v877 = vadd.f32 0.0, %v876
      %v878 = vpop.f32.mrb[0].mxu0
      %v879 = vadd.f32 0.0, %v878
      %880 = vmatprep.mubr.f32.mxu0 %v247
      %881 = vmatmul.mubr.f32.gmra.mrb[0].mxu0 %v246
      %v882 = vpop.f32.mrb[0].mxu0
      %v883 = vadd.f32 0.0, %v882
      %v884 = vpop.f32.mrb[0].mxu0
      %v885 = vadd.f32 0.0, %v884
      %886 = vmatprep.mubr.f32.mxu0 %v249
      %887 = vmatmul.mubr.f32.gmra.mrb[0].mxu0 %v248
      %v888 = vpop.f32.mrb[0].mxu0
      %v889 = vadd.f32 0.0, %v888
      %v890 = vpop.f32.mrb[0].mxu0
      %v891 = vadd.f32 0.0, %v890
      %892 = vmatprep.mubr.f32.mxu0 %v251
      %893 = vmatmul.mubr.f32.gmra.mrb[0].mxu0 %v250
      %v894 = vpop.f32.mrb[0].mxu0
      %v895 = vadd.f32 0.0, %v894
      %v896 = vpop.f32.mrb[0].mxu0
      %v897 = vadd.f32 0.0, %v896
      %898 = vmatprep.mubr.f32.mxu0 %v253
      %899 = vmatmul.mubr.f32.gmra.mrb[0].mxu0 %v252
      %v900 = vpop.f32.mrb[0].mxu0
      %v901 = vadd.f32 0.0, %v900
      %v902 = vpop.f32.mrb[0].mxu0
      %v903 = vadd.f32 0.0, %v902
      %904 = vmatprep.mubr.f32.mxu0 %v255
      %905 = vmatmul.mubr.f32.gmra.mrb[0].mxu0 %v254
      %v906 = vpop.f32.mrb[0].mxu0
      %v907 = vadd.f32 0.0, %v906
      %v908 = vpop.f32.mrb[0].mxu0
      %v909 = vadd.f32 0.0, %v908
      %910 = vmatprep.mubr.f32.mxu0 %v257
      %911 = vmatmul.mubr.f32.gmra.mrb[0].mxu0 %v256
      %v912 = vpop.f32.mrb[0].mxu0
      %v913 = vadd.f32 0.0, %v912
      %v914 = vpop.f32.mrb[0].mxu0
      %v915 = vadd.f32 0.0, %v914
      %916 = vmatprep.mubr.f32.mxu0 %v259
      %917 = vmatmul.mubr.f32.gmra.mrb[0].mxu0 %v258
      %v918 = vpop.f32.mrb[0].mxu0
      %v919 = vadd.f32 0.0, %v918
      %v920 = vpop.f32.mrb[0].mxu0
      %v921 = vadd.f32 0.0, %v920
      %922 = vmatprep.mubr.f32.mxu0 %v261
      %923 = vmatmul.mubr.f32.gmra.mrb[0].mxu0 %v260
      %v924 = vpop.f32.mrb[0].mxu0
      %v925 = vadd.f32 0.0, %v924
      %v926 = vpop.f32.mrb[0].mxu0
      %v927 = vadd.f32 0.0, %v926
      %928 = vmatprep.mubr.f32.mxu0 %v263
      %929 = vmatmul.mubr.f32.gmra.mrb[0].mxu0 %v262
      %v930 = vpop.f32.mrb[0].mxu0
      %v931 = vadd.f32 0.0, %v930
      %v932 = vpop.f32.mrb[0].mxu0
      %v933 = vadd.f32 0.0, %v932
      %934 = vmatprep.mubr.f32.mxu0 %v265
      %935 = vmatmul.mubr.f32.gmra.mrb[0].mxu0 %v264
      %v936 = vpop.f32.mrb[0].mxu0
      %v937 = vadd.f32 0.0, %v936
      %v938 = vpop.f32.mrb[0].mxu0
      %v939 = vadd.f32 0.0, %v938
      %940 = vmatprep.mubr.f32.mxu0 %v267
      %941 = vmatmul.mubr.f32.gmra.mrb[0].mxu0 %v266
      %v942 = vpop.f32.mrb[0].mxu0
      %v943 = vadd.f32 0.0, %v942
      %v944 = vpop.f32.mrb[0].mxu0
      %v945 = vadd.f32 0.0, %v944
      %946 = vmatprep.mubr.f32.mxu0 %v269
      %947 = vmatmul.mubr.f32.gmra.mrb[0].mxu0 %v268
      %v948 = vpop.f32.mrb[0].mxu0
      %v949 = vadd.f32 0.0, %v948
      %v950 = vpop.f32.mrb[0].mxu0
      %v951 = vadd.f32 0.0, %v950
      %952 = vmatprep.mubr.f32.mxu0 %v271
      %953 = vmatmul.mubr.f32.gmra.mrb[0].mxu0 %v270
      %v954 = vpop.f32.mrb[0].mxu0
      %v955 = vadd.f32 0.0, %v954
      %v956 = vpop.f32.mrb[0].mxu0
      %v957 = vadd.f32 0.0, %v956
      %958 = vmatprep.mubr.f32.mxu0 %v273
      %959 = vmatmul.mubr.f32.gmra.mrb[0].mxu0 %v272
      %v960 = vpop.f32.mrb[0].mxu0
      %v961 = vadd.f32 0.0, %v960
      %v962 = vpop.f32.mrb[0].mxu0
      %v963 = vadd.f32 0.0, %v962
      %964 = vmatprep.mubr.f32.mxu0 %v275
      %965 = vmatmul.mubr.f32.gmra.mrb[0].mxu0 %v274
      %v966 = vpop.f32.mrb[0].mxu0
      %v967 = vadd.f32 0.0, %v966
      %v968 = vpop.f32.mrb[0].mxu0
      %v969 = vadd.f32 0.0, %v968
      %970 = vmatprep.mubr.f32.mxu0 %v277
      %971 = vmatmul.mubr.f32.gmra.mrb[0].mxu0 %v276
      %v972 = vpop.f32.mrb[0].mxu0
      %v973 = vadd.f32 0.0, %v972
      %v974 = vpop.f32.mrb[0].mxu0
      %v975 = vadd.f32 0.0, %v974
      %976 = vmatprep.mubr.f32.mxu0 %v279
      %977 = vmatmul.mubr.f32.gmra.mrb[0].mxu0 %v278
      %v978 = vpop.f32.mrb[0].mxu0
      %v979 = vadd.f32 0.0, %v978
      %v980 = vpop.f32.mrb[0].mxu0
      %v981 = vadd.f32 0.0, %v980
      %982 = vmatprep.mubr.f32.mxu0 %v281
      %983 = vmatmul.mubr.f32.gmra.mrb[0].mxu0 %v280
      %v984 = vpop.f32.mrb[0].mxu0
      %v985 = vadd.f32 0.0, %v984
      %v986 = vpop.f32.mrb[0].mxu0
      %v987 = vadd.f32 0.0, %v986
      %988 = vdwg.mxu0
      %vm1053 = vcmask 1046528
      %v1054 = vrot.slane %v799, 1
      %v1055 = vrot.slane %v805, 1
      %v1056 = vsel %vm1053, %v1054, %v1055
      %v1057 = vrot.slane %v801, 1
      %v1058 = vrot.slane %v807, 1
      %v1059 = vsel %vm1053, %v1057, %v1058
      %v1060 = vrot.slane %v811, 1
      %v1061 = vsel %vm1053, %v1055, %v1060
      %v1062 = vrot.slane %v813, 1
      %v1063 = vsel %vm1053, %v1058, %v1062
      %v1064 = vrot.slane %v817, 1
      %v1065 = vsel %vm1053, %v1060, %v1064
      %v1066 = vrot.slane %v819, 1
      %v1067 = vsel %vm1053, %v1062, %v1066
      %v1068 = vrot.slane %v823, 1
      %v1069 = vsel %vm1053, %v1064, %v1068
      %v1070 = vrot.slane %v825, 1
      %v1071 = vsel %vm1053, %v1066, %v1070
      %v1072 = vrot.slane %v829, 1
      %v1073 = vsel %vm1053, %v1068, %v1072
      %v1074 = vrot.slane %v831, 1
      %v1075 = vsel %vm1053, %v1070, %v1074
      %v1076 = vrot.slane %v835, 1
      %v1077 = vsel %vm1053, %v1072, %v1076
      %v1078 = vrot.slane %v837, 1
      %v1079 = vsel %vm1053, %v1074, %v1078
      %v1080 = vrot.slane %v841, 1
      %v1081 = vsel %vm1053, %v1076, %v1080
      %v1082 = vrot.slane %v843, 1
      %v1083 = vsel %vm1053, %v1078, %v1082
      %v1084 = vrot.slane %v847, 1
      %v1085 = vsel %vm1053, %v1080, %v1084
      %v1086 = vrot.slane %v849, 1
      %v1087 = vsel %vm1053, %v1082, %v1086
      %v1088 = vrot.slane %v853, 1
      %v1089 = vsel %vm1053, %v1084, %v1088
      %v1090 = vrot.slane %v855, 1
      %v1091 = vsel %vm1053, %v1086, %v1090
      %v1092 = vrot.slane %v859, 1
      %v1093 = vsel %vm1053, %v1088, %v1092
      %v1094 = vrot.slane %v861, 1
      %v1095 = vsel %vm1053, %v1090, %v1094
      %v1096 = vrot.slane %v865, 1
      %v1097 = vsel %vm1053, %v1092, %v1096
      %v1098 = vrot.slane %v867, 1
      %v1099 = vsel %vm1053, %v1094, %v1098
      %v1100 = vrot.slane %v871, 1
      %v1101 = vsel %vm1053, %v1096, %v1100
      %v1102 = vrot.slane %v873, 1
      %v1103 = vsel %vm1053, %v1098, %v1102
      %v1104 = vrot.slane %v877, 1
      %v1105 = vsel %vm1053, %v1100, %v1104
      %v1106 = vrot.slane %v879, 1
      %v1107 = vsel %vm1053, %v1102, %v1106
      %v1108 = vrot.slane %v883, 1
      %v1109 = vsel %vm1053, %v1104, %v1108
      %v1110 = vrot.slane %v885, 1
      %v1111 = vsel %vm1053, %v1106, %v1110
      %v1112 = vrot.slane %v889, 1
      %v1113 = vsel %vm1053, %v1108, %v1112
      %v1114 = vrot.slane %v891, 1
      %v1115 = vsel %vm1053, %v1110, %v1114
      %v1116 = vrot.slane %v895, 1
      %v1117 = vsel %vm1053, %v1112, %v1116
      %v1118 = vrot.slane %v897, 1
      %v1119 = vsel %vm1053, %v1114, %v1118
      %v1120 = vrot.slane %v901, 1
      %v1121 = vsel %vm1053, %v1116, %v1120
      %v1122 = vrot.slane %v903, 1
      %v1123 = vsel %vm1053, %v1118, %v1122
      %v1124 = vrot.slane %v907, 1
      %v1125 = vsel %vm1053, %v1120, %v1124
      %v1126 = vrot.slane %v909, 1
      %v1127 = vsel %vm1053, %v1122, %v1126
      %v1128 = vrot.slane %v913, 1
      %v1129 = vsel %vm1053, %v1124, %v1128
      %v1130 = vrot.slane %v915, 1
      %v1131 = vsel %vm1053, %v1126, %v1130
      %v1132 = vrot.slane %v919, 1
      %v1133 = vsel %vm1053, %v1128, %v1132
      %v1134 = vrot.slane %v921, 1
      %v1135 = vsel %vm1053, %v1130, %v1134
      %v1136 = vrot.slane %v925, 1
      %v1137 = vsel %vm1053, %v1132, %v1136
      %v1138 = vrot.slane %v927, 1
      %v1139 = vsel %vm1053, %v1134, %v1138
      %v1140 = vrot.slane %v931, 1
      %v1141 = vsel %vm1053, %v1136, %v1140
      %v1142 = vrot.slane %v933, 1
      %v1143 = vsel %vm1053, %v1138, %v1142
      %v1144 = vrot.slane %v937, 1
      %v1145 = vsel %vm1053, %v1140, %v1144
      %v1146 = vrot.slane %v939, 1
      %v1147 = vsel %vm1053, %v1142, %v1146
      %v1148 = vrot.slane %v943, 1
      %v1149 = vsel %vm1053, %v1144, %v1148
      %v1150 = vrot.slane %v945, 1
      %v1151 = vsel %vm1053, %v1146, %v1150
      %v1152 = vrot.slane %v949, 1
      %v1153 = vsel %vm1053, %v1148, %v1152
      %v1154 = vrot.slane %v951, 1
      %v1155 = vsel %vm1053, %v1150, %v1154
      %v1156 = vrot.slane %v955, 1
      %v1157 = vsel %vm1053, %v1152, %v1156
      %v1158 = vrot.slane %v957, 1
      %v1159 = vsel %vm1053, %v1154, %v1158
      %v1160 = vrot.slane %v961, 1
      %v1161 = vsel %vm1053, %v1156, %v1160
      %v1162 = vrot.slane %v963, 1
      %v1163 = vsel %vm1053, %v1158, %v1162
      %v1164 = vrot.slane %v967, 1
      %v1165 = vsel %vm1053, %v1160, %v1164
      %v1166 = vrot.slane %v969, 1
      %v1167 = vsel %vm1053, %v1162, %v1166
      %v1168 = vrot.slane %v973, 1
      %v1169 = vsel %vm1053, %v1164, %v1168
      %v1170 = vrot.slane %v975, 1
      %v1171 = vsel %vm1053, %v1166, %v1170
      %v1172 = vrot.slane %v979, 1
      %v1173 = vsel %vm1053, %v1168, %v1172
      %v1174 = vrot.slane %v981, 1
      %v1175 = vsel %vm1053, %v1170, %v1174
      %v1176 = vrot.slane %v985, 1
      %v1177 = vsel %vm1053, %v1172, %v1176
      %v1178 = vrot.slane %v987, 1
      %v1179 = vsel %vm1053, %v1174, %v1178
      %v1246 = vsel %vm1053, %v1176, %v1054
      %v1247 = vsel %vm1053, %v1178, %v1057
      %v1248 = vld [vmem:[#allocation2] sm:$0xff]
      %v1249 = vld [vmem:[#allocation2 + $0x8] sm:$0xff]
      %v1250 = vld [vmem:[#allocation2 + $0x10] sm:$0xff]
      %v1251 = vld [vmem:[#allocation2 + $0x18] sm:$0xff]
      %v1252 = vld [vmem:[#allocation2 + $0x20] sm:$0xff]
      %v1253 = vld [vmem:[#allocation2 + $0x28] sm:$0xff]
      %v1254 = vld [vmem:[#allocation2 + $0x30] sm:$0xff]
      %v1255 = vld [vmem:[#allocation2 + $0x38] sm:$0xff]
      %v1256 = vld [vmem:[#allocation2 + $0x40] sm:$0xff]
      %v1257 = vld [vmem:[#allocation2 + $0x48] sm:$0xff]
      %v1258 = vld [vmem:[#allocation2 + $0x50] sm:$0xff]
      %v1259 = vld [vmem:[#allocation2 + $0x58] sm:$0xff]
      %v1260 = vld [vmem:[#allocation2 + $0x60] sm:$0xff]
      %v1261 = vld [vmem:[#allocation2 + $0x68] sm:$0xff]
      %v1262 = vld [vmem:[#allocation2 + $0x70] sm:$0xff]
      %v1263 = vld [vmem:[#allocation2 + $0x78] sm:$0xff]
      %v1264 = vld [vmem:[#allocation2 + $0x80] sm:$0xff]
      %v1265 = vld [vmem:[#allocation2 + $0x88] sm:$0xff]
      %v1266 = vld [vmem:[#allocation2 + $0x90] sm:$0xff]
      %v1267 = vld [vmem:[#allocation2 + $0x98] sm:$0xff]
      %v1268 = vld [vmem:[#allocation2 + $0xa0] sm:$0xff]
      %v1269 = vld [vmem:[#allocation2 + $0xa8] sm:$0xff]
      %v1270 = vld [vmem:[#allocation2 + $0xb0] sm:$0xff]
      %v1271 = vld [vmem:[#allocation2 + $0xb8] sm:$0xff]
      %v1272 = vld [vmem:[#allocation2 + $0xc0] sm:$0xff]
      %v1273 = vld [vmem:[#allocation2 + $0xc8] sm:$0xff]
      %v1274 = vld [vmem:[#allocation2 + $0xd0] sm:$0xff]
      %v1275 = vld [vmem:[#allocation2 + $0xd8] sm:$0xff]
      %v1276 = vld [vmem:[#allocation2 + $0xe0] sm:$0xff]
      %v1277 = vld [vmem:[#allocation2 + $0xe8] sm:$0xff]
      %v1278 = vld [vmem:[#allocation2 + $0xf0] sm:$0xff]
      %v1279 = vld [vmem:[#allocation2 + $0xf8] sm:$0xff]
      %v1280 = vld [vmem:[#allocation2 + $0x100] sm:$0xff]
      %v1281 = vld [vmem:[#allocation2 + $0x108] sm:$0xff]
      %v1282 = vld [vmem:[#allocation2 + $0x110] sm:$0xff]
      %v1283 = vld [vmem:[#allocation2 + $0x118] sm:$0xff]
      %v1284 = vld [vmem:[#allocation2 + $0x120] sm:$0xff]
      %v1285 = vld [vmem:[#allocation2 + $0x128] sm:$0xff]
      %v1286 = vld [vmem:[#allocation2 + $0x130] sm:$0xff]
      %v1287 = vld [vmem:[#allocation2 + $0x138] sm:$0xff]
      %v1288 = vld [vmem:[#allocation2 + $0x140] sm:$0xff]
      %v1289 = vld [vmem:[#allocation2 + $0x148] sm:$0xff]
      %v1290 = vld [vmem:[#allocation2 + $0x150] sm:$0xff]
      %v1291 = vld [vmem:[#allocation2 + $0x158] sm:$0xff]
      %v1292 = vld [vmem:[#allocation2 + $0x160] sm:$0xff]
      %v1293 = vld [vmem:[#allocation2 + $0x168] sm:$0xff]
      %v1294 = vld [vmem:[#allocation2 + $0x170] sm:$0xff]
      %v1295 = vld [vmem:[#allocation2 + $0x178] sm:$0xff]
      %v1296 = vld [vmem:[#allocation2 + $0x180] sm:$0xff]
      %v1297 = vld [vmem:[#allocation2 + $0x188] sm:$0xff]
      %v1298 = vld [vmem:[#allocation2 + $0x190] sm:$0xff]
      %v1299 = vld [vmem:[#allocation2 + $0x198] sm:$0xff]
      %v1300 = vld [vmem:[#allocation2 + $0x1a0] sm:$0xff]
      %v1301 = vld [vmem:[#allocation2 + $0x1a8] sm:$0xff]
      %v1302 = vld [vmem:[#allocation2 + $0x1b0] sm:$0xff]
      %v1303 = vld [vmem:[#allocation2 + $0x1b8] sm:$0xff]
      %v1304 = vld [vmem:[#allocation2 + $0x1c0] sm:$0xff]
      %v1305 = vld [vmem:[#allocation2 + $0x1c8] sm:$0xff]
      %v1306 = vld [vmem:[#allocation2 + $0x1d0] sm:$0xff]
      %v1307 = vld [vmem:[#allocation2 + $0x1d8] sm:$0xff]
      %v1308 = vld [vmem:[#allocation2 + $0x1e0] sm:$0xff]
      %v1309 = vld [vmem:[#allocation2 + $0x1e8] sm:$0xff]
      %v1310 = vld [vmem:[#allocation2 + $0x1f0] sm:$0xff]
      %v1311 = vld [vmem:[#allocation2 + $0x1f8] sm:$0xff]
      %v1312 = vadd.f32 %v1248, %v1056
      %v1313 = vadd.f32 %v1249, %v1059
      %v1314 = vadd.f32 %v1250, %v1061
      %v1315 = vadd.f32 %v1251, %v1063
      %v1316 = vadd.f32 %v1252, %v1065
      %v1317 = vadd.f32 %v1253, %v1067
      %v1318 = vadd.f32 %v1254, %v1069
      %v1319 = vadd.f32 %v1255, %v1071
      %v1320 = vadd.f32 %v1256, %v1073
      %v1321 = vadd.f32 %v1257, %v1075
      %v1322 = vadd.f32 %v1258, %v1077
      %v1323 = vadd.f32 %v1259, %v1079
      %v1324 = vadd.f32 %v1260, %v1081
      %v1325 = vadd.f32 %v1261, %v1083
      %v1326 = vadd.f32 %v1262, %v1085
      %v1327 = vadd.f32 %v1263, %v1087
      %v1328 = vadd.f32 %v1264, %v1089
      %v1329 = vadd.f32 %v1265, %v1091
      %v1330 = vadd.f32 %v1266, %v1093
      %v1331 = vadd.f32 %v1267, %v1095
      %v1332 = vadd.f32 %v1268, %v1097
      %v1333 = vadd.f32 %v1269, %v1099
      %v1334 = vadd.f32 %v1270, %v1101
      %v1335 = vadd.f32 %v1271, %v1103
      %v1336 = vadd.f32 %v1272, %v1105
      %v1337 = vadd.f32 %v1273, %v1107
      %v1338 = vadd.f32 %v1274, %v1109
      %v1339 = vadd.f32 %v1275, %v1111
      %v1340 = vadd.f32 %v1276, %v1113
      %v1341 = vadd.f32 %v1277, %v1115
      %v1342 = vadd.f32 %v1278, %v1117
      %v1343 = vadd.f32 %v1279, %v1119
      %v1344 = vadd.f32 %v1280, %v1121
      %v1345 = vadd.f32 %v1281, %v1123
      %v1346 = vadd.f32 %v1282, %v1125
      %v1347 = vadd.f32 %v1283, %v1127
      %v1348 = vadd.f32 %v1284, %v1129
      %v1349 = vadd.f32 %v1285, %v1131
      %v1350 = vadd.f32 %v1286, %v1133
      %v1351 = vadd.f32 %v1287, %v1135
      %v1352 = vadd.f32 %v1288, %v1137
      %v1353 = vadd.f32 %v1289, %v1139
      %v1354 = vadd.f32 %v1290, %v1141
      %v1355 = vadd.f32 %v1291, %v1143
      %v1356 = vadd.f32 %v1292, %v1145
      %v1357 = vadd.f32 %v1293, %v1147
      %v1358 = vadd.f32 %v1294, %v1149
      %v1359 = vadd.f32 %v1295, %v1151
      %v1360 = vadd.f32 %v1296, %v1153
      %v1361 = vadd.f32 %v1297, %v1155
      %v1362 = vadd.f32 %v1298, %v1157
      %v1363 = vadd.f32 %v1299, %v1159
      %v1364 = vadd.f32 %v1300, %v1161
      %v1365 = vadd.f32 %v1301, %v1163
      %v1366 = vadd.f32 %v1302, %v1165
      %v1367 = vadd.f32 %v1303, %v1167
      %v1368 = vadd.f32 %v1304, %v1169
      %v1369 = vadd.f32 %v1305, %v1171
      %v1370 = vadd.f32 %v1306, %v1173
      %v1371 = vadd.f32 %v1307, %v1175
      %v1372 = vadd.f32 %v1308, %v1177
      %v1373 = vadd.f32 %v1309, %v1179
      %v1374 = vadd.f32 %v1310, %v1246
      %v1375 = vadd.f32 %v1311, %v1247
      %1376 = vst [vmem:[#allocation2] sm:$0xff] %v1312
      %1377 = vst [vmem:[#allocation2 + $0x8] sm:$0xff] %v1313
      %1378 = vst [vmem:[#allocation2 + $0x10] sm:$0xff] %v1314
      %1379 = vst [vmem:[#allocation2 + $0x18] sm:$0xff] %v1315
      %1380 = vst [vmem:[#allocation2 + $0x20] sm:$0xff] %v1316
      %1381 = vst [vmem:[#allocation2 + $0x28] sm:$0xff] %v1317
      %1382 = vst [vmem:[#allocation2 + $0x30] sm:$0xff] %v1318
      %1383 = vst [vmem:[#allocation2 + $0x38] sm:$0xff] %v1319
      %1384 = vst [vmem:[#allocation2 + $0x40] sm:$0xff] %v1320
      %1385 = vst [vmem:[#allocation2 + $0x48] sm:$0xff] %v1321
      %1386 = vst [vmem:[#allocation2 + $0x50] sm:$0xff] %v1322
      %1387 = vst [vmem:[#allocation2 + $0x58] sm:$0xff] %v1323
      %1388 = vst [vmem:[#allocation2 + $0x60] sm:$0xff] %v1324
      %1389 = vst [vmem:[#allocation2 + $0x68] sm:$0xff] %v1325
      %1390 = vst [vmem:[#allocation2 + $0x70] sm:$0xff] %v1326
      %1391 = vst [vmem:[#allocation2 + $0x78] sm:$0xff] %v1327
      %1392 = vst [vmem:[#allocation2 + $0x80] sm:$0xff] %v1328
      %1393 = vst [vmem:[#allocation2 + $0x88] sm:$0xff] %v1329
      %1394 = vst [vmem:[#allocation2 + $0x90] sm:$0xff] %v1330
      %1395 = vst [vmem:[#allocation2 + $0x98] sm:$0xff] %v1331
      %1396 = vst [vmem:[#allocation2 + $0xa0] sm:$0xff] %v1332
      %1397 = vst [vmem:[#allocation2 + $0xa8] sm:$0xff] %v1333
      %1398 = vst [vmem:[#allocation2 + $0xb0] sm:$0xff] %v1334
      %1399 = vst [vmem:[#allocation2 + $0xb8] sm:$0xff] %v1335
      %1400 = vst [vmem:[#allocation2 + $0xc0] sm:$0xff] %v1336
      %1401 = vst [vmem:[#allocation2 + $0xc8] sm:$0xff] %v1337
      %1402 = vst [vmem:[#allocation2 + $0xd0] sm:$0xff] %v1338
      %1403 = vst [vmem:[#allocation2 + $0xd8] sm:$0xff] %v1339
      %1404 = vst [vmem:[#allocation2 + $0xe0] sm:$0xff] %v1340
      %1405 = vst [vmem:[#allocation2 + $0xe8] sm:$0xff] %v1341
      %1406 = vst [vmem:[#allocation2 + $0xf0] sm:$0xff] %v1342
      %1407 = vst [vmem:[#allocation2 + $0xf8] sm:$0xff] %v1343
      %1408 = vst [vmem:[#allocation2 + $0x100] sm:$0xff] %v1344
      %1409 = vst [vmem:[#allocation2 + $0x108] sm:$0xff] %v1345
      %1410 = vst [vmem:[#allocation2 + $0x110] sm:$0xff] %v1346
      %1411 = vst [vmem:[#allocation2 + $0x118] sm:$0xff] %v1347
      %1412 = vst [vmem:[#allocation2 + $0x120] sm:$0xff] %v1348
      %1413 = vst [vmem:[#allocation2 + $0x128] sm:$0xff] %v1349
      %1414 = vst [vmem:[#allocation2 + $0x130] sm:$0xff] %v1350
      %1415 = vst [vmem:[#allocation2 + $0x138] sm:$0xff] %v1351
      %1416 = vst [vmem:[#allocation2 + $0x140] sm:$0xff] %v1352
      %1417 = vst [vmem:[#allocation2 + $0x148] sm:$0xff] %v1353
      %1418 = vst [vmem:[#allocation2 + $0x150] sm:$0xff] %v1354
      %1419 = vst [vmem:[#allocation2 + $0x158] sm:$0xff] %v1355
      %1420 = vst [vmem:[#allocation2 + $0x160] sm:$0xff] %v1356
      %1421 = vst [vmem:[#allocation2 + $0x168] sm:$0xff] %v1357
      %1422 = vst [vmem:[#allocation2 + $0x170] sm:$0xff] %v1358
      %1423 = vst [vmem:[#allocation2 + $0x178] sm:$0xff] %v1359
      %1424 = vst [vmem:[#allocation2 + $0x180] sm:$0xff] %v1360
      %1425 = vst [vmem:[#allocation2 + $0x188] sm:$0xff] %v1361
      %1426 = vst [vmem:[#allocation2 + $0x190] sm:$0xff] %v1362
      %1427 = vst [vmem:[#allocation2 + $0x198] sm:$0xff] %v1363
      %1428 = vst [vmem:[#allocation2 + $0x1a0] sm:$0xff] %v1364
      %1429 = vst [vmem:[#allocation2 + $0x1a8] sm:$0xff] %v1365
      %1430 = vst [vmem:[#allocation2 + $0x1b0] sm:$0xff] %v1366
      %1431 = vst [vmem:[#allocation2 + $0x1b8] sm:$0xff] %v1367
      %1432 = vst [vmem:[#allocation2 + $0x1c0] sm:$0xff] %v1368
      %1433 = vst [vmem:[#allocation2 + $0x1c8] sm:$0xff] %v1369
      %1434 = vst [vmem:[#allocation2 + $0x1d0] sm:$0xff] %v1370
      %1435 = vst [vmem:[#allocation2 + $0x1d8] sm:$0xff] %v1371
      %1436 = vst [vmem:[#allocation2 + $0x1e0] sm:$0xff] %v1372
      %1437 = vst [vmem:[#allocation2 + $0x1e8] sm:$0xff] %v1373
      %1438 = vst [vmem:[#allocation2 + $0x1f0] sm:$0xff] %v1374
      %1439 = vst [vmem:[#allocation2 + $0x1f8] sm:$0xff] %v1375
      %s1440 = scalar_lea.vmem %s1, 1024
      %v1441 = vld [vmem:[%s1440] sm:$0xff]
      %v1442 = vld [vmem:[%s1440 + $0x8] sm:$0xff]
      %v1443 = vld [vmem:[%s1440 + $0x10] sm:$0xff]
      %v1444 = vld [vmem:[%s1440 + $0x18] sm:$0xff]
      %v1445 = vld [vmem:[%s1440 + $0x20] sm:$0xff]
      %v1446 = vld [vmem:[%s1440 + $0x28] sm:$0xff]
      %v1447 = vld [vmem:[%s1440 + $0x30] sm:$0xff]
      %v1448 = vld [vmem:[%s1440 + $0x38] sm:$0xff]
      %v1449 = vld [vmem:[%s1440 + $0x40] sm:$0xff]
      %v1450 = vld [vmem:[%s1440 + $0x48] sm:$0xff]
      %v1451 = vld [vmem:[%s1440 + $0x50] sm:$0xff]
      %v1452 = vld [vmem:[%s1440 + $0x58] sm:$0xff]
      %v1453 = vld [vmem:[%s1440 + $0x60] sm:$0xff]
      %v1454 = vld [vmem:[%s1440 + $0x68] sm:$0xff]
      %v1455 = vld [vmem:[%s1440 + $0x70] sm:$0xff]
      %v1456 = vld [vmem:[%s1440 + $0x78] sm:$0xff]
      %v1457 = vld [vmem:[%s1440 + $0x80] sm:$0xff]
      %v1458 = vld [vmem:[%s1440 + $0x88] sm:$0xff]
      %v1459 = vld [vmem:[%s1440 + $0x90] sm:$0xff]
      %v1460 = vld [vmem:[%s1440 + $0x98] sm:$0xff]
      %v1461 = vld [vmem:[%s1440 + $0xa0] sm:$0xff]
      %v1462 = vld [vmem:[%s1440 + $0xa8] sm:$0xff]
      %v1463 = vld [vmem:[%s1440 + $0xb0] sm:$0xff]
      %v1464 = vld [vmem:[%s1440 + $0xb8] sm:$0xff]
      %v1465 = vld [vmem:[%s1440 + $0xc0] sm:$0xff]
      %v1466 = vld [vmem:[%s1440 + $0xc8] sm:$0xff]
      %v1467 = vld [vmem:[%s1440 + $0xd0] sm:$0xff]
      %v1468 = vld [vmem:[%s1440 + $0xd8] sm:$0xff]
      %v1469 = vld [vmem:[%s1440 + $0xe0] sm:$0xff]
      %v1470 = vld [vmem:[%s1440 + $0xe8] sm:$0xff]
      %v1471 = vld [vmem:[%s1440 + $0xf0] sm:$0xff]
      %v1472 = vld [vmem:[%s1440 + $0xf8] sm:$0xff]
      %v1473 = vld [vmem:[%s1440 + $0x100] sm:$0xff]
      %v1474 = vld [vmem:[%s1440 + $0x108] sm:$0xff]
      %v1475 = vld [vmem:[%s1440 + $0x110] sm:$0xff]
      %v1476 = vld [vmem:[%s1440 + $0x118] sm:$0xff]
      %v1477 = vld [vmem:[%s1440 + $0x120] sm:$0xff]
      %v1478 = vld [vmem:[%s1440 + $0x128] sm:$0xff]
      %v1479 = vld [vmem:[%s1440 + $0x130] sm:$0xff]
      %v1480 = vld [vmem:[%s1440 + $0x138] sm:$0xff]
      %v1481 = vld [vmem:[%s1440 + $0x140] sm:$0xff]
      %v1482 = vld [vmem:[%s1440 + $0x148] sm:$0xff]
      %v1483 = vld [vmem:[%s1440 + $0x150] sm:$0xff]
      %v1484 = vld [vmem:[%s1440 + $0x158] sm:$0xff]
      %v1485 = vld [vmem:[%s1440 + $0x160] sm:$0xff]
      %v1486 = vld [vmem:[%s1440 + $0x168] sm:$0xff]
      %v1487 = vld [vmem:[%s1440 + $0x170] sm:$0xff]
      %v1488 = vld [vmem:[%s1440 + $0x178] sm:$0xff]
      %v1489 = vld [vmem:[%s1440 + $0x180] sm:$0xff]
      %v1490 = vld [vmem:[%s1440 + $0x188] sm:$0xff]
      %v1491 = vld [vmem:[%s1440 + $0x190] sm:$0xff]
      %v1492 = vld [vmem:[%s1440 + $0x198] sm:$0xff]
      %v1493 = vld [vmem:[%s1440 + $0x1a0] sm:$0xff]
      %v1494 = vld [vmem:[%s1440 + $0x1a8] sm:$0xff]
      %v1495 = vld [vmem:[%s1440 + $0x1b0] sm:$0xff]
      %v1496 = vld [vmem:[%s1440 + $0x1b8] sm:$0xff]
      %v1497 = vld [vmem:[%s1440 + $0x1c0] sm:$0xff]
      %v1498 = vld [vmem:[%s1440 + $0x1c8] sm:$0xff]
      %v1499 = vld [vmem:[%s1440 + $0x1d0] sm:$0xff]
      %v1500 = vld [vmem:[%s1440 + $0x1d8] sm:$0xff]
      %v1501 = vld [vmem:[%s1440 + $0x1e0] sm:$0xff]
      %v1502 = vld [vmem:[%s1440 + $0x1e8] sm:$0xff]
      %v1503 = vld [vmem:[%s1440 + $0x1f0] sm:$0xff]
      %v1504 = vld [vmem:[%s1440 + $0x1f8] sm:$0xff]
      %1505 = vmatprep.subr.mxu0 %v1442
      %1506 = vmatpush1.msra.mxu0 %v1441
      %1507 = vmatprep.subr.mxu0 %v1444
      %1508 = vmatpush1.msra.mxu0 %v1443
      %1509 = vmatprep.subr.mxu0 %v1446
      %1510 = vmatpush1.msra.mxu0 %v1445
      %1511 = vmatprep.subr.mxu0 %v1448
      %1512 = vmatpush1.msra.mxu0 %v1447
      %1513 = vmatprep.subr.mxu0 %v1450
      %1514 = vmatpush1.msra.mxu0 %v1449
      %1515 = vmatprep.subr.mxu0 %v1452
      %1516 = vmatpush1.msra.mxu0 %v1451
      %1517 = vmatprep.subr.mxu0 %v1454
      %1518 = vmatpush1.msra.mxu0 %v1453
      %1519 = vmatprep.subr.mxu0 %v1456
      %1520 = vmatpush1.msra.mxu0 %v1455
      %1521 = vmatprep.subr.mxu0 %v1458
      %1522 = vmatpush1.msra.mxu0 %v1457
      %1523 = vmatprep.subr.mxu0 %v1460
      %1524 = vmatpush1.msra.mxu0 %v1459
      %1525 = vmatprep.subr.mxu0 %v1462
      %1526 = vmatpush1.msra.mxu0 %v1461
      %1527 = vmatprep.subr.mxu0 %v1464
      %1528 = vmatpush1.msra.mxu0 %v1463
      %1529 = vmatprep.subr.mxu0 %v1466
      %1530 = vmatpush1.msra.mxu0 %v1465
      %1531 = vmatprep.subr.mxu0 %v1468
      %1532 = vmatpush1.msra.mxu0 %v1467
      %1533 = vmatprep.subr.mxu0 %v1470
      %1534 = vmatpush1.msra.mxu0 %v1469
      %1535 = vmatprep.subr.mxu0 %v1472
      %1536 = vmatpush1.msra.mxu0 %v1471
      %1537 = vmatprep.subr.mxu0 %v1474
      %1538 = vmatpush1.msra.mxu0 %v1473
      %1539 = vmatprep.subr.mxu0 %v1476
      %1540 = vmatpush1.msra.mxu0 %v1475
      %1541 = vmatprep.subr.mxu0 %v1478
      %1542 = vmatpush1.msra.mxu0 %v1477
      %1543 = vmatprep.subr.mxu0 %v1480
      %1544 = vmatpush1.msra.mxu0 %v1479
      %1545 = vmatprep.subr.mxu0 %v1482
      %1546 = vmatpush1.msra.mxu0 %v1481
      %1547 = vmatprep.subr.mxu0 %v1484
      %1548 = vmatpush1.msra.mxu0 %v1483
      %1549 = vmatprep.subr.mxu0 %v1486
      %1550 = vmatpush1.msra.mxu0 %v1485
      %1551 = vmatprep.subr.mxu0 %v1488
      %1552 = vmatpush1.msra.mxu0 %v1487
      %1553 = vmatprep.subr.mxu0 %v1490
      %1554 = vmatpush1.msra.mxu0 %v1489
      %1555 = vmatprep.subr.mxu0 %v1492
      %1556 = vmatpush1.msra.mxu0 %v1491
      %1557 = vmatprep.subr.mxu0 %v1494
      %1558 = vmatpush1.msra.mxu0 %v1493
      %1559 = vmatprep.subr.mxu0 %v1496
      %1560 = vmatpush1.msra.mxu0 %v1495
      %1561 = vmatprep.subr.mxu0 %v1498
      %1562 = vmatpush1.msra.mxu0 %v1497
      %1563 = vmatprep.subr.mxu0 %v1500
      %1564 = vmatpush1.msra.mxu0 %v1499
      %1565 = vmatprep.subr.mxu0 %v1502
      %1566 = vmatpush1.msra.mxu0 %v1501
      %1567 = vmatprep.subr.mxu0 %v1504
      %1568 = vmatpush1.msra.mxu0 %v1503
      %1569 = vmatprep.mubr.f32.mxu0 %v219
      %1570 = vmatmul.mubr.f32.gmra.mrb[0].mxu0 %v218
      %v1571 = vpop.f32.mrb[0].mxu0
      %v1572 = vadd.f32 0.0, %v1571
      %v1573 = vpop.f32.mrb[0].mxu0
      %v1574 = vadd.f32 0.0, %v1573
      %1575 = vmatprep.mubr.f32.mxu0 %v221
      %1576 = vmatmul.mubr.f32.gmra.mrb[0].mxu0 %v220
      %v1577 = vpop.f32.mrb[0].mxu0
      %v1578 = vadd.f32 0.0, %v1577
      %v1579 = vpop.f32.mrb[0].mxu0
      %v1580 = vadd.f32 0.0, %v1579
      %1581 = vmatprep.mubr.f32.mxu0 %v223
      %1582 = vmatmul.mubr.f32.gmra.mrb[0].mxu0 %v222
      %v1583 = vpop.f32.mrb[0].mxu0
      %v1584 = vadd.f32 0.0, %v1583
      %v1585 = vpop.f32.mrb[0].mxu0
      %v1586 = vadd.f32 0.0, %v1585
      %1587 = vmatprep.mubr.f32.mxu0 %v225
      %1588 = vmatmul.mubr.f32.gmra.mrb[0].mxu0 %v224
      %v1589 = vpop.f32.mrb[0].mxu0
      %v1590 = vadd.f32 0.0, %v1589
      %v1591 = vpop.f32.mrb[0].mxu0
      %v1592 = vadd.f32 0.0, %v1591
      %1593 = vmatprep.mubr.f32.mxu0 %v227
      %1594 = vmatmul.mubr.f32.gmra.mrb[0].mxu0 %v226
      %v1595 = vpop.f32.mrb[0].mxu0
      %v1596 = vadd.f32 0.0, %v1595
      %v1597 = vpop.f32.mrb[0].mxu0
      %v1598 = vadd.f32 0.0, %v1597
      %1599 = vmatprep.mubr.f32.mxu0 %v229
      %1600 = vmatmul.mubr.f32.gmra.mrb[0].mxu0 %v228
      %v1601 = vpop.f32.mrb[0].mxu0
      %v1602 = vadd.f32 0.0, %v1601
      %v1603 = vpop.f32.mrb[0].mxu0
      %v1604 = vadd.f32 0.0, %v1603
      %1605 = vmatprep.mubr.f32.mxu0 %v231
      %1606 = vmatmul.mubr.f32.gmra.mrb[0].mxu0 %v230
      %v1607 = vpop.f32.mrb[0].mxu0
      %v1608 = vadd.f32 0.0, %v1607
      %v1609 = vpop.f32.mrb[0].mxu0
      %v1610 = vadd.f32 0.0, %v1609
      %1611 = vmatprep.mubr.f32.mxu0 %v233
      %1612 = vmatmul.mubr.f32.gmra.mrb[0].mxu0 %v232
      %v1613 = vpop.f32.mrb[0].mxu0
      %v1614 = vadd.f32 0.0, %v1613
      %v1615 = vpop.f32.mrb[0].mxu0
      %v1616 = vadd.f32 0.0, %v1615
      %1617 = vmatprep.mubr.f32.mxu0 %v235
      %1618 = vmatmul.mubr.f32.gmra.mrb[0].mxu0 %v234
      %v1619 = vpop.f32.mrb[0].mxu0
      %v1620 = vadd.f32 0.0, %v1619
      %v1621 = vpop.f32.mrb[0].mxu0
      %v1622 = vadd.f32 0.0, %v1621
      %1623 = vmatprep.mubr.f32.mxu0 %v237
      %1624 = vmatmul.mubr.f32.gmra.mrb[0].mxu0 %v236
      %v1625 = vpop.f32.mrb[0].mxu0
      %v1626 = vadd.f32 0.0, %v1625
      %v1627 = vpop.f32.mrb[0].mxu0
      %v1628 = vadd.f32 0.0, %v1627
      %1629 = vmatprep.mubr.f32.mxu0 %v239
      %1630 = vmatmul.mubr.f32.gmra.mrb[0].mxu0 %v238
      %v1631 = vpop.f32.mrb[0].mxu0
      %v1632 = vadd.f32 0.0, %v1631
      %v1633 = vpop.f32.mrb[0].mxu0
      %v1634 = vadd.f32 0.0, %v1633
      %1635 = vmatprep.mubr.f32.mxu0 %v241
      %1636 = vmatmul.mubr.f32.gmra.mrb[0].mxu0 %v240
      %v1637 = vpop.f32.mrb[0].mxu0
      %v1638 = vadd.f32 0.0, %v1637
      %v1639 = vpop.f32.mrb[0].mxu0
      %v1640 = vadd.f32 0.0, %v1639
      %1641 = vmatprep.mubr.f32.mxu0 %v243
      %1642 = vmatmul.mubr.f32.gmra.mrb[0].mxu0 %v242
      %v1643 = vpop.f32.mrb[0].mxu0
      %v1644 = vadd.f32 0.0, %v1643
      %v1645 = vpop.f32.mrb[0].mxu0
      %v1646 = vadd.f32 0.0, %v1645
      %1647 = vmatprep.mubr.f32.mxu0 %v245
      %1648 = vmatmul.mubr.f32.gmra.mrb[0].mxu0 %v244
      %v1649 = vpop.f32.mrb[0].mxu0
      %v1650 = vadd.f32 0.0, %v1649
      %v1651 = vpop.f32.mrb[0].mxu0
      %v1652 = vadd.f32 0.0, %v1651
      %1653 = vmatprep.mubr.f32.mxu0 %v247
      %1654 = vmatmul.mubr.f32.gmra.mrb[0].mxu0 %v246
      %v1655 = vpop.f32.mrb[0].mxu0
      %v1656 = vadd.f32 0.0, %v1655
      %v1657 = vpop.f32.mrb[0].mxu0
      %v1658 = vadd.f32 0.0, %v1657
      %1659 = vmatprep.mubr.f32.mxu0 %v249
      %1660 = vmatmul.mubr.f32.gmra.mrb[0].mxu0 %v248
      %v1661 = vpop.f32.mrb[0].mxu0
      %v1662 = vadd.f32 0.0, %v1661
      %v1663 = vpop.f32.mrb[0].mxu0
      %v1664 = vadd.f32 0.0, %v1663
      %1665 = vmatprep.mubr.f32.mxu0 %v251
      %1666 = vmatmul.mubr.f32.gmra.mrb[0].mxu0 %v250
      %v1667 = vpop.f32.mrb[0].mxu0
      %v1668 = vadd.f32 0.0, %v1667
      %v1669 = vpop.f32.mrb[0].mxu0
      %v1670 = vadd.f32 0.0, %v1669
      %1671 = vmatprep.mubr.f32.mxu0 %v253
      %1672 = vmatmul.mubr.f32.gmra.mrb[0].mxu0 %v252
      %v1673 = vpop.f32.mrb[0].mxu0
      %v1674 = vadd.f32 0.0, %v1673
      %v1675 = vpop.f32.mrb[0].mxu0
      %v1676 = vadd.f32 0.0, %v1675
      %1677 = vmatprep.mubr.f32.mxu0 %v255
      %1678 = vmatmul.mubr.f32.gmra.mrb[0].mxu0 %v254
      %v1679 = vpop.f32.mrb[0].mxu0
      %v1680 = vadd.f32 0.0, %v1679
      %v1681 = vpop.f32.mrb[0].mxu0
      %v1682 = vadd.f32 0.0, %v1681
      %1683 = vmatprep.mubr.f32.mxu0 %v257
      %1684 = vmatmul.mubr.f32.gmra.mrb[0].mxu0 %v256
      %v1685 = vpop.f32.mrb[0].mxu0
      %v1686 = vadd.f32 0.0, %v1685
      %v1687 = vpop.f32.mrb[0].mxu0
      %v1688 = vadd.f32 0.0, %v1687
      %1689 = vmatprep.mubr.f32.mxu0 %v259
      %1690 = vmatmul.mubr.f32.gmra.mrb[0].mxu0 %v258
      %v1691 = vpop.f32.mrb[0].mxu0
      %v1692 = vadd.f32 0.0, %v1691
      %v1693 = vpop.f32.mrb[0].mxu0
      %v1694 = vadd.f32 0.0, %v1693
      %1695 = vmatprep.mubr.f32.mxu0 %v261
      %1696 = vmatmul.mubr.f32.gmra.mrb[0].mxu0 %v260
      %v1697 = vpop.f32.mrb[0].mxu0
      %v1698 = vadd.f32 0.0, %v1697
      %v1699 = vpop.f32.mrb[0].mxu0
      %v1700 = vadd.f32 0.0, %v1699
      %1701 = vmatprep.mubr.f32.mxu0 %v263
      %1702 = vmatmul.mubr.f32.gmra.mrb[0].mxu0 %v262
      %v1703 = vpop.f32.mrb[0].mxu0
      %v1704 = vadd.f32 0.0, %v1703
      %v1705 = vpop.f32.mrb[0].mxu0
      %v1706 = vadd.f32 0.0, %v1705
      %1707 = vmatprep.mubr.f32.mxu0 %v265
      %1708 = vmatmul.mubr.f32.gmra.mrb[0].mxu0 %v264
      %v1709 = vpop.f32.mrb[0].mxu0
      %v1710 = vadd.f32 0.0, %v1709
      %v1711 = vpop.f32.mrb[0].mxu0
      %v1712 = vadd.f32 0.0, %v1711
      %1713 = vmatprep.mubr.f32.mxu0 %v267
      %1714 = vmatmul.mubr.f32.gmra.mrb[0].mxu0 %v266
      %v1715 = vpop.f32.mrb[0].mxu0
      %v1716 = vadd.f32 0.0, %v1715
      %v1717 = vpop.f32.mrb[0].mxu0
      %v1718 = vadd.f32 0.0, %v1717
      %1719 = vmatprep.mubr.f32.mxu0 %v269
      %1720 = vmatmul.mubr.f32.gmra.mrb[0].mxu0 %v268
      %v1721 = vpop.f32.mrb[0].mxu0
      %v1722 = vadd.f32 0.0, %v1721
      %v1723 = vpop.f32.mrb[0].mxu0
      %v1724 = vadd.f32 0.0, %v1723
      %1725 = vmatprep.mubr.f32.mxu0 %v271
      %1726 = vmatmul.mubr.f32.gmra.mrb[0].mxu0 %v270
      %v1727 = vpop.f32.mrb[0].mxu0
      %v1728 = vadd.f32 0.0, %v1727
      %v1729 = vpop.f32.mrb[0].mxu0
      %v1730 = vadd.f32 0.0, %v1729
      %1731 = vmatprep.mubr.f32.mxu0 %v273
      %1732 = vmatmul.mubr.f32.gmra.mrb[0].mxu0 %v272
      %v1733 = vpop.f32.mrb[0].mxu0
      %v1734 = vadd.f32 0.0, %v1733
      %v1735 = vpop.f32.mrb[0].mxu0
      %v1736 = vadd.f32 0.0, %v1735
      %1737 = vmatprep.mubr.f32.mxu0 %v275
      %1738 = vmatmul.mubr.f32.gmra.mrb[0].mxu0 %v274
      %v1739 = vpop.f32.mrb[0].mxu0
      %v1740 = vadd.f32 0.0, %v1739
      %v1741 = vpop.f32.mrb[0].mxu0
      %v1742 = vadd.f32 0.0, %v1741
      %1743 = vmatprep.mubr.f32.mxu0 %v277
      %1744 = vmatmul.mubr.f32.gmra.mrb[0].mxu0 %v276
      %v1745 = vpop.f32.mrb[0].mxu0
      %v1746 = vadd.f32 0.0, %v1745
      %v1747 = vpop.f32.mrb[0].mxu0
      %v1748 = vadd.f32 0.0, %v1747
      %1749 = vmatprep.mubr.f32.mxu0 %v279
      %1750 = vmatmul.mubr.f32.gmra.mrb[0].mxu0 %v278
      %v1751 = vpop.f32.mrb[0].mxu0
      %v1752 = vadd.f32 0.0, %v1751
      %v1753 = vpop.f32.mrb[0].mxu0
      %v1754 = vadd.f32 0.0, %v1753
      %1755 = vmatprep.mubr.f32.mxu0 %v281
      %1756 = vmatmul.mubr.f32.gmra.mrb[0].mxu0 %v280
      %v1757 = vpop.f32.mrb[0].mxu0
      %v1758 = vadd.f32 0.0, %v1757
      %v1759 = vpop.f32.mrb[0].mxu0
      %v1760 = vadd.f32 0.0, %v1759
      %1761 = vdwg.mxu0
      %vm1826 = vcmask 1045504
      %v1827 = vrot.slane %v1572, 2
      %v1828 = vrot.slane %v1578, 2
      %v1829 = vsel %vm1826, %v1827, %v1828
      %v1830 = vrot.slane %v1574, 2
      %v1831 = vrot.slane %v1580, 2
      %v1832 = vsel %vm1826, %v1830, %v1831
      %v1833 = vrot.slane %v1584, 2
      %v1834 = vsel %vm1826, %v1828, %v1833
      %v1835 = vrot.slane %v1586, 2
      %v1836 = vsel %vm1826, %v1831, %v1835
      %v1837 = vrot.slane %v1590, 2
      %v1838 = vsel %vm1826, %v1833, %v1837
      %v1839 = vrot.slane %v1592, 2
      %v1840 = vsel %vm1826, %v1835, %v1839
      %v1841 = vrot.slane %v1596, 2
      %v1842 = vsel %vm1826, %v1837, %v1841
      %v1843 = vrot.slane %v1598, 2
      %v1844 = vsel %vm1826, %v1839, %v1843
      %v1845 = vrot.slane %v1602, 2
      %v1846 = vsel %vm1826, %v1841, %v1845
      %v1847 = vrot.slane %v1604, 2
      %v1848 = vsel %vm1826, %v1843, %v1847
      %v1849 = vrot.slane %v1608, 2
      %v1850 = vsel %vm1826, %v1845, %v1849
      %v1851 = vrot.slane %v1610, 2
      %v1852 = vsel %vm1826, %v1847, %v1851
      %v1853 = vrot.slane %v1614, 2
      %v1854 = vsel %vm1826, %v1849, %v1853
      %v1855 = vrot.slane %v1616, 2
      %v1856 = vsel %vm1826, %v1851, %v1855
      %v1857 = vrot.slane %v1620, 2
      %v1858 = vsel %vm1826, %v1853, %v1857
      %v1859 = vrot.slane %v1622, 2
      %v1860 = vsel %vm1826, %v1855, %v1859
      %v1861 = vrot.slane %v1626, 2
      %v1862 = vsel %vm1826, %v1857, %v1861
      %v1863 = vrot.slane %v1628, 2
      %v1864 = vsel %vm1826, %v1859, %v1863
      %v1865 = vrot.slane %v1632, 2
      %v1866 = vsel %vm1826, %v1861, %v1865
      %v1867 = vrot.slane %v1634, 2
      %v1868 = vsel %vm1826, %v1863, %v1867
      %v1869 = vrot.slane %v1638, 2
      %v1870 = vsel %vm1826, %v1865, %v1869
      %v1871 = vrot.slane %v1640, 2
      %v1872 = vsel %vm1826, %v1867, %v1871
      %v1873 = vrot.slane %v1644, 2
      %v1874 = vsel %vm1826, %v1869, %v1873
      %v1875 = vrot.slane %v1646, 2
      %v1876 = vsel %vm1826, %v1871, %v1875
      %v1877 = vrot.slane %v1650, 2
      %v1878 = vsel %vm1826, %v1873, %v1877
      %v1879 = vrot.slane %v1652, 2
      %v1880 = vsel %vm1826, %v1875, %v1879
      %v1881 = vrot.slane %v1656, 2
      %v1882 = vsel %vm1826, %v1877, %v1881
      %v1883 = vrot.slane %v1658, 2
      %v1884 = vsel %vm1826, %v1879, %v1883
      %v1885 = vrot.slane %v1662, 2
      %v1886 = vsel %vm1826, %v1881, %v1885
      %v1887 = vrot.slane %v1664, 2
      %v1888 = vsel %vm1826, %v1883, %v1887
      %v1889 = vrot.slane %v1668, 2
      %v1890 = vsel %vm1826, %v1885, %v1889
      %v1891 = vrot.slane %v1670, 2
      %v1892 = vsel %vm1826, %v1887, %v1891
      %v1893 = vrot.slane %v1674, 2
      %v1894 = vsel %vm1826, %v1889, %v1893
      %v1895 = vrot.slane %v1676, 2
      %v1896 = vsel %vm1826, %v1891, %v1895
      %v1897 = vrot.slane %v1680, 2
      %v1898 = vsel %vm1826, %v1893, %v1897
      %v1899 = vrot.slane %v1682, 2
      %v1900 = vsel %vm1826, %v1895, %v1899
      %v1901 = vrot.slane %v1686, 2
      %v1902 = vsel %vm1826, %v1897, %v1901
      %v1903 = vrot.slane %v1688, 2
      %v1904 = vsel %vm1826, %v1899, %v1903
      %v1905 = vrot.slane %v1692, 2
      %v1906 = vsel %vm1826, %v1901, %v1905
      %v1907 = vrot.slane %v1694, 2
      %v1908 = vsel %vm1826, %v1903, %v1907
      %v1909 = vrot.slane %v1698, 2
      %v1910 = vsel %vm1826, %v1905, %v1909
      %v1911 = vrot.slane %v1700, 2
      %v1912 = vsel %vm1826, %v1907, %v1911
      %v1913 = vrot.slane %v1704, 2
      %v1914 = vsel %vm1826, %v1909, %v1913
      %v1915 = vrot.slane %v1706, 2
      %v1916 = vsel %vm1826, %v1911, %v1915
      %v1917 = vrot.slane %v1710, 2
      %v1918 = vsel %vm1826, %v1913, %v1917
      %v1919 = vrot.slane %v1712, 2
      %v1920 = vsel %vm1826, %v1915, %v1919
      %v1921 = vrot.slane %v1716, 2
      %v1922 = vsel %vm1826, %v1917, %v1921
      %v1923 = vrot.slane %v1718, 2
      %v1924 = vsel %vm1826, %v1919, %v1923
      %v1925 = vrot.slane %v1722, 2
      %v1926 = vsel %vm1826, %v1921, %v1925
      %v1927 = vrot.slane %v1724, 2
      %v1928 = vsel %vm1826, %v1923, %v1927
      %v1929 = vrot.slane %v1728, 2
      %v1930 = vsel %vm1826, %v1925, %v1929
      %v1931 = vrot.slane %v1730, 2
      %v1932 = vsel %vm1826, %v1927, %v1931
      %v1933 = vrot.slane %v1734, 2
      %v1934 = vsel %vm1826, %v1929, %v1933
      %v1935 = vrot.slane %v1736, 2
      %v1936 = vsel %vm1826, %v1931, %v1935
      %v1937 = vrot.slane %v1740, 2
      %v1938 = vsel %vm1826, %v1933, %v1937
      %v1939 = vrot.slane %v1742, 2
      %v1940 = vsel %vm1826, %v1935, %v1939
      %v1941 = vrot.slane %v1746, 2
      %v1942 = vsel %vm1826, %v1937, %v1941
      %v1943 = vrot.slane %v1748, 2
      %v1944 = vsel %vm1826, %v1939, %v1943
      %v1945 = vrot.slane %v1752, 2
      %v1946 = vsel %vm1826, %v1941, %v1945
      %v1947 = vrot.slane %v1754, 2
      %v1948 = vsel %vm1826, %v1943, %v1947
      %v1949 = vrot.slane %v1758, 2
      %v1950 = vsel %vm1826, %v1945, %v1949
      %v1951 = vrot.slane %v1760, 2
      %v1952 = vsel %vm1826, %v1947, %v1951
      %v2019 = vsel %vm1826, %v1949, %v1827
      %v2020 = vsel %vm1826, %v1951, %v1830
      %v2021 = vld [vmem:[#allocation2] sm:$0xff]
      %v2022 = vld [vmem:[#allocation2 + $0x8] sm:$0xff]
      %v2023 = vld [vmem:[#allocation2 + $0x10] sm:$0xff]
      %v2024 = vld [vmem:[#allocation2 + $0x18] sm:$0xff]
      %v2025 = vld [vmem:[#allocation2 + $0x20] sm:$0xff]
      %v2026 = vld [vmem:[#allocation2 + $0x28] sm:$0xff]
      %v2027 = vld [vmem:[#allocation2 + $0x30] sm:$0xff]
      %v2028 = vld [vmem:[#allocation2 + $0x38] sm:$0xff]
      %v2029 = vld [vmem:[#allocation2 + $0x40] sm:$0xff]
      %v2030 = vld [vmem:[#allocation2 + $0x48] sm:$0xff]
      %v2031 = vld [vmem:[#allocation2 + $0x50] sm:$0xff]
      %v2032 = vld [vmem:[#allocation2 + $0x58] sm:$0xff]
      %v2033 = vld [vmem:[#allocation2 + $0x60] sm:$0xff]
      %v2034 = vld [vmem:[#allocation2 + $0x68] sm:$0xff]
      %v2035 = vld [vmem:[#allocation2 + $0x70] sm:$0xff]
      %v2036 = vld [vmem:[#allocation2 + $0x78] sm:$0xff]
      %v2037 = vld [vmem:[#allocation2 + $0x80] sm:$0xff]
      %v2038 = vld [vmem:[#allocation2 + $0x88] sm:$0xff]
      %v2039 = vld [vmem:[#allocation2 + $0x90] sm:$0xff]
      %v2040 = vld [vmem:[#allocation2 + $0x98] sm:$0xff]
      %v2041 = vld [vmem:[#allocation2 + $0xa0] sm:$0xff]
      %v2042 = vld [vmem:[#allocation2 + $0xa8] sm:$0xff]
      %v2043 = vld [vmem:[#allocation2 + $0xb0] sm:$0xff]
      %v2044 = vld [vmem:[#allocation2 + $0xb8] sm:$0xff]
      %v2045 = vld [vmem:[#allocation2 + $0xc0] sm:$0xff]
      %v2046 = vld [vmem:[#allocation2 + $0xc8] sm:$0xff]
      %v2047 = vld [vmem:[#allocation2 + $0xd0] sm:$0xff]
      %v2048 = vld [vmem:[#allocation2 + $0xd8] sm:$0xff]
      %v2049 = vld [vmem:[#allocation2 + $0xe0] sm:$0xff]
      %v2050 = vld [vmem:[#allocation2 + $0xe8] sm:$0xff]
      %v2051 = vld [vmem:[#allocation2 + $0xf0] sm:$0xff]
      %v2052 = vld [vmem:[#allocation2 + $0xf8] sm:$0xff]
      %v2053 = vld [vmem:[#allocation2 + $0x100] sm:$0xff]
      %v2054 = vld [vmem:[#allocation2 + $0x108] sm:$0xff]
      %v2055 = vld [vmem:[#allocation2 + $0x110] sm:$0xff]
      %v2056 = vld [vmem:[#allocation2 + $0x118] sm:$0xff]
      %v2057 = vld [vmem:[#allocation2 + $0x120] sm:$0xff]
      %v2058 = vld [vmem:[#allocation2 + $0x128] sm:$0xff]
      %v2059 = vld [vmem:[#allocation2 + $0x130] sm:$0xff]
      %v2060 = vld [vmem:[#allocation2 + $0x138] sm:$0xff]
      %v2061 = vld [vmem:[#allocation2 + $0x140] sm:$0xff]
      %v2062 = vld [vmem:[#allocation2 + $0x148] sm:$0xff]
      %v2063 = vld [vmem:[#allocation2 + $0x150] sm:$0xff]
      %v2064 = vld [vmem:[#allocation2 + $0x158] sm:$0xff]
      %v2065 = vld [vmem:[#allocation2 + $0x160] sm:$0xff]
      %v2066 = vld [vmem:[#allocation2 + $0x168] sm:$0xff]
      %v2067 = vld [vmem:[#allocation2 + $0x170] sm:$0xff]
      %v2068 = vld [vmem:[#allocation2 + $0x178] sm:$0xff]
      %v2069 = vld [vmem:[#allocation2 + $0x180] sm:$0xff]
      %v2070 = vld [vmem:[#allocation2 + $0x188] sm:$0xff]
      %v2071 = vld [vmem:[#allocation2 + $0x190] sm:$0xff]
      %v2072 = vld [vmem:[#allocation2 + $0x198] sm:$0xff]
      %v2073 = vld [vmem:[#allocation2 + $0x1a0] sm:$0xff]
      %v2074 = vld [vmem:[#allocation2 + $0x1a8] sm:$0xff]
      %v2075 = vld [vmem:[#allocation2 + $0x1b0] sm:$0xff]
      %v2076 = vld [vmem:[#allocation2 + $0x1b8] sm:$0xff]
      %v2077 = vld [vmem:[#allocation2 + $0x1c0] sm:$0xff]
      %v2078 = vld [vmem:[#allocation2 + $0x1c8] sm:$0xff]
      %v2079 = vld [vmem:[#allocation2 + $0x1d0] sm:$0xff]
      %v2080 = vld [vmem:[#allocation2 + $0x1d8] sm:$0xff]
      %v2081 = vld [vmem:[#allocation2 + $0x1e0] sm:$0xff]
      %v2082 = vld [vmem:[#allocation2 + $0x1e8] sm:$0xff]
      %v2083 = vld [vmem:[#allocation2 + $0x1f0] sm:$0xff]
      %v2084 = vld [vmem:[#allocation2 + $0x1f8] sm:$0xff]
      %v2085 = vadd.f32 %v2021, %v1829
      %v2086 = vadd.f32 %v2022, %v1832
      %v2087 = vadd.f32 %v2023, %v1834
      %v2088 = vadd.f32 %v2024, %v1836
      %v2089 = vadd.f32 %v2025, %v1838
      %v2090 = vadd.f32 %v2026, %v1840
      %v2091 = vadd.f32 %v2027, %v1842
      %v2092 = vadd.f32 %v2028, %v1844
      %v2093 = vadd.f32 %v2029, %v1846
      %v2094 = vadd.f32 %v2030, %v1848
      %v2095 = vadd.f32 %v2031, %v1850
      %v2096 = vadd.f32 %v2032, %v1852
      %v2097 = vadd.f32 %v2033, %v1854
      %v2098 = vadd.f32 %v2034, %v1856
      %v2099 = vadd.f32 %v2035, %v1858
      %v2100 = vadd.f32 %v2036, %v1860
      %v2101 = vadd.f32 %v2037, %v1862
      %v2102 = vadd.f32 %v2038, %v1864
      %v2103 = vadd.f32 %v2039, %v1866
      %v2104 = vadd.f32 %v2040, %v1868
      %v2105 = vadd.f32 %v2041, %v1870
      %v2106 = vadd.f32 %v2042, %v1872
      %v2107 = vadd.f32 %v2043, %v1874
      %v2108 = vadd.f32 %v2044, %v1876
      %v2109 = vadd.f32 %v2045, %v1878
      %v2110 = vadd.f32 %v2046, %v1880
      %v2111 = vadd.f32 %v2047, %v1882
      %v2112 = vadd.f32 %v2048, %v1884
      %v2113 = vadd.f32 %v2049, %v1886
      %v2114 = vadd.f32 %v2050, %v1888
      %v2115 = vadd.f32 %v2051, %v1890
      %v2116 = vadd.f32 %v2052, %v1892
      %v2117 = vadd.f32 %v2053, %v1894
      %v2118 = vadd.f32 %v2054, %v1896
      %v2119 = vadd.f32 %v2055, %v1898
      %v2120 = vadd.f32 %v2056, %v1900
      %v2121 = vadd.f32 %v2057, %v1902
      %v2122 = vadd.f32 %v2058, %v1904
      %v2123 = vadd.f32 %v2059, %v1906
      %v2124 = vadd.f32 %v2060, %v1908
      %v2125 = vadd.f32 %v2061, %v1910
      %v2126 = vadd.f32 %v2062, %v1912
      %v2127 = vadd.f32 %v2063, %v1914
      %v2128 = vadd.f32 %v2064, %v1916
      %v2129 = vadd.f32 %v2065, %v1918
      %v2130 = vadd.f32 %v2066, %v1920
      %v2131 = vadd.f32 %v2067, %v1922
      %v2132 = vadd.f32 %v2068, %v1924
      %v2133 = vadd.f32 %v2069, %v1926
      %v2134 = vadd.f32 %v2070, %v1928
      %v2135 = vadd.f32 %v2071, %v1930
      %v2136 = vadd.f32 %v2072, %v1932
      %v2137 = vadd.f32 %v2073, %v1934
      %v2138 = vadd.f32 %v2074, %v1936
      %v2139 = vadd.f32 %v2075, %v1938
      %v2140 = vadd.f32 %v2076, %v1940
      %v2141 = vadd.f32 %v2077, %v1942
      %v2142 = vadd.f32 %v2078, %v1944
      %v2143 = vadd.f32 %v2079, %v1946
      %v2144 = vadd.f32 %v2080, %v1948
      %v2145 = vadd.f32 %v2081, %v1950
      %v2146 = vadd.f32 %v2082, %v1952
      %v2147 = vadd.f32 %v2083, %v2019
      %v2148 = vadd.f32 %v2084, %v2020
      %2149 = vst [vmem:[#allocation2] sm:$0xff] %v2085
      %2150 = vst [vmem:[#allocation2 + $0x8] sm:$0xff] %v2086
      %2151 = vst [vmem:[#allocation2 + $0x10] sm:$0xff] %v2087
      %2152 = vst [vmem:[#allocation2 + $0x18] sm:$0xff] %v2088
      %2153 = vst [vmem:[#allocation2 + $0x20] sm:$0xff] %v2089
      %2154 = vst [vmem:[#allocation2 + $0x28] sm:$0xff] %v2090
      %2155 = vst [vmem:[#allocation2 + $0x30] sm:$0xff] %v2091
      %2156 = vst [vmem:[#allocation2 + $0x38] sm:$0xff] %v2092
      %2157 = vst [vmem:[#allocation2 + $0x40] sm:$0xff] %v2093
      %2158 = vst [vmem:[#allocation2 + $0x48] sm:$0xff] %v2094
      %2159 = vst [vmem:[#allocation2 + $0x50] sm:$0xff] %v2095
      %2160 = vst [vmem:[#allocation2 + $0x58] sm:$0xff] %v2096
      %2161 = vst [vmem:[#allocation2 + $0x60] sm:$0xff] %v2097
      %2162 = vst [vmem:[#allocation2 + $0x68] sm:$0xff] %v2098
      %2163 = vst [vmem:[#allocation2 + $0x70] sm:$0xff] %v2099
      %2164 = vst [vmem:[#allocation2 + $0x78] sm:$0xff] %v2100
      %2165 = vst [vmem:[#allocation2 + $0x80] sm:$0xff] %v2101
      %2166 = vst [vmem:[#allocation2 + $0x88] sm:$0xff] %v2102
      %2167 = vst [vmem:[#allocation2 + $0x90] sm:$0xff] %v2103
      %2168 = vst [vmem:[#allocation2 + $0x98] sm:$0xff] %v2104
      %2169 = vst [vmem:[#allocation2 + $0xa0] sm:$0xff] %v2105
      %2170 = vst [vmem:[#allocation2 + $0xa8] sm:$0xff] %v2106
      %2171 = vst [vmem:[#allocation2 + $0xb0] sm:$0xff] %v2107
      %2172 = vst [vmem:[#allocation2 + $0xb8] sm:$0xff] %v2108
      %2173 = vst [vmem:[#allocation2 + $0xc0] sm:$0xff] %v2109
      %2174 = vst [vmem:[#allocation2 + $0xc8] sm:$0xff] %v2110
      %2175 = vst [vmem:[#allocation2 + $0xd0] sm:$0xff] %v2111
      %2176 = vst [vmem:[#allocation2 + $0xd8] sm:$0xff] %v2112
      %2177 = vst [vmem:[#allocation2 + $0xe0] sm:$0xff] %v2113
      %2178 = vst [vmem:[#allocation2 + $0xe8] sm:$0xff] %v2114
      %2179 = vst [vmem:[#allocation2 + $0xf0] sm:$0xff] %v2115
      %2180 = vst [vmem:[#allocation2 + $0xf8] sm:$0xff] %v2116
      %2181 = vst [vmem:[#allocation2 + $0x100] sm:$0xff] %v2117
      %2182 = vst [vmem:[#allocation2 + $0x108] sm:$0xff] %v2118
      %2183 = vst [vmem:[#allocation2 + $0x110] sm:$0xff] %v2119
      %2184 = vst [vmem:[#allocation2 + $0x118] sm:$0xff] %v2120
      %2185 = vst [vmem:[#allocation2 + $0x120] sm:$0xff] %v2121
      %2186 = vst [vmem:[#allocation2 + $0x128] sm:$0xff] %v2122
      %2187 = vst [vmem:[#allocation2 + $0x130] sm:$0xff] %v2123
      %2188 = vst [vmem:[#allocation2 + $0x138] sm:$0xff] %v2124
      %2189 = vst [vmem:[#allocation2 + $0x140] sm:$0xff] %v2125
      %2190 = vst [vmem:[#allocation2 + $0x148] sm:$0xff] %v2126
      %2191 = vst [vmem:[#allocation2 + $0x150] sm:$0xff] %v2127
      %2192 = vst [vmem:[#allocation2 + $0x158] sm:$0xff] %v2128
      %2193 = vst [vmem:[#allocation2 + $0x160] sm:$0xff] %v2129
      %2194 = vst [vmem:[#allocation2 + $0x168] sm:$0xff] %v2130
      %2195 = vst [vmem:[#allocation2 + $0x170] sm:$0xff] %v2131
      %2196 = vst [vmem:[#allocation2 + $0x178] sm:$0xff] %v2132
      %2197 = vst [vmem:[#allocation2 + $0x180] sm:$0xff] %v2133
      %2198 = vst [vmem:[#allocation2 + $0x188] sm:$0xff] %v2134
      %2199 = vst [vmem:[#allocation2 + $0x190] sm:$0xff] %v2135
      %2200 = vst [vmem:[#allocation2 + $0x198] sm:$0xff] %v2136
      %2201 = vst [vmem:[#allocation2 + $0x1a0] sm:$0xff] %v2137
      %2202 = vst [vmem:[#allocation2 + $0x1a8] sm:$0xff] %v2138
      %2203 = vst [vmem:[#allocation2 + $0x1b0] sm:$0xff] %v2139
      %2204 = vst [vmem:[#allocation2 + $0x1b8] sm:$0xff] %v2140
      %2205 = vst [vmem:[#allocation2 + $0x1c0] sm:$0xff] %v2141
      %2206 = vst [vmem:[#allocation2 + $0x1c8] sm:$0xff] %v2142
      %2207 = vst [vmem:[#allocation2 + $0x1d0] sm:$0xff] %v2143
      %2208 = vst [vmem:[#allocation2 + $0x1d8] sm:$0xff] %v2144
      %2209 = vst [vmem:[#allocation2 + $0x1e0] sm:$0xff] %v2145
      %2210 = vst [vmem:[#allocation2 + $0x1e8] sm:$0xff] %v2146
      %2211 = vst [vmem:[#allocation2 + $0x1f0] sm:$0xff] %v2147
      %2212 = vst [vmem:[#allocation2 + $0x1f8] sm:$0xff] %v2148
      %s2213 = scalar_lea.vmem %s1, 1536
      %v2214 = vld [vmem:[%s2213] sm:$0xff]
      %v2215 = vld [vmem:[%s2213 + $0x8] sm:$0xff]
      %v2216 = vld [vmem:[%s2213 + $0x10] sm:$0xff]
      %v2217 = vld [vmem:[%s2213 + $0x18] sm:$0xff]
      %v2218 = vld [vmem:[%s2213 + $0x20] sm:$0xff]
      %v2219 = vld [vmem:[%s2213 + $0x28] sm:$0xff]
      %v2220 = vld [vmem:[%s2213 + $0x30] sm:$0xff]
      %v2221 = vld [vmem:[%s2213 + $0x38] sm:$0xff]
      %v2222 = vld [vmem:[%s2213 + $0x40] sm:$0xff]
      %v2223 = vld [vmem:[%s2213 + $0x48] sm:$0xff]
      %v2224 = vld [vmem:[%s2213 + $0x50] sm:$0xff]
      %v2225 = vld [vmem:[%s2213 + $0x58] sm:$0xff]
      %v2226 = vld [vmem:[%s2213 + $0x60] sm:$0xff]
      %v2227 = vld [vmem:[%s2213 + $0x68] sm:$0xff]
      %v2228 = vld [vmem:[%s2213 + $0x70] sm:$0xff]
      %v2229 = vld [vmem:[%s2213 + $0x78] sm:$0xff]
      %v2230 = vld [vmem:[%s2213 + $0x80] sm:$0xff]
      %v2231 = vld [vmem:[%s2213 + $0x88] sm:$0xff]
      %v2232 = vld [vmem:[%s2213 + $0x90] sm:$0xff]
      %v2233 = vld [vmem:[%s2213 + $0x98] sm:$0xff]
      %v2234 = vld [vmem:[%s2213 + $0xa0] sm:$0xff]
      %v2235 = vld [vmem:[%s2213 + $0xa8] sm:$0xff]
      %v2236 = vld [vmem:[%s2213 + $0xb0] sm:$0xff]
      %v2237 = vld [vmem:[%s2213 + $0xb8] sm:$0xff]
      %v2238 = vld [vmem:[%s2213 + $0xc0] sm:$0xff]
      %v2239 = vld [vmem:[%s2213 + $0xc8] sm:$0xff]
      %v2240 = vld [vmem:[%s2213 + $0xd0] sm:$0xff]
      %v2241 = vld [vmem:[%s2213 + $0xd8] sm:$0xff]
      %v2242 = vld [vmem:[%s2213 + $0xe0] sm:$0xff]
      %v2243 = vld [vmem:[%s2213 + $0xe8] sm:$0xff]
      %v2244 = vld [vmem:[%s2213 + $0xf0] sm:$0xff]
      %v2245 = vld [vmem:[%s2213 + $0xf8] sm:$0xff]
      %v2246 = vld [vmem:[%s2213 + $0x100] sm:$0xff]
      %v2247 = vld [vmem:[%s2213 + $0x108] sm:$0xff]
      %v2248 = vld [vmem:[%s2213 + $0x110] sm:$0xff]
      %v2249 = vld [vmem:[%s2213 + $0x118] sm:$0xff]
      %v2250 = vld [vmem:[%s2213 + $0x120] sm:$0xff]
      %v2251 = vld [vmem:[%s2213 + $0x128] sm:$0xff]
      %v2252 = vld [vmem:[%s2213 + $0x130] sm:$0xff]
      %v2253 = vld [vmem:[%s2213 + $0x138] sm:$0xff]
      %v2254 = vld [vmem:[%s2213 + $0x140] sm:$0xff]
      %v2255 = vld [vmem:[%s2213 + $0x148] sm:$0xff]
      %v2256 = vld [vmem:[%s2213 + $0x150] sm:$0xff]
      %v2257 = vld [vmem:[%s2213 + $0x158] sm:$0xff]
      %v2258 = vld [vmem:[%s2213 + $0x160] sm:$0xff]
      %v2259 = vld [vmem:[%s2213 + $0x168] sm:$0xff]
      %v2260 = vld [vmem:[%s2213 + $0x170] sm:$0xff]
      %v2261 = vld [vmem:[%s2213 + $0x178] sm:$0xff]
      %v2262 = vld [vmem:[%s2213 + $0x180] sm:$0xff]
      %v2263 = vld [vmem:[%s2213 + $0x188] sm:$0xff]
      %v2264 = vld [vmem:[%s2213 + $0x190] sm:$0xff]
      %v2265 = vld [vmem:[%s2213 + $0x198] sm:$0xff]
      %v2266 = vld [vmem:[%s2213 + $0x1a0] sm:$0xff]
      %v2267 = vld [vmem:[%s2213 + $0x1a8] sm:$0xff]
      %v2268 = vld [vmem:[%s2213 + $0x1b0] sm:$0xff]
      %v2269 = vld [vmem:[%s2213 + $0x1b8] sm:$0xff]
      %v2270 = vld [vmem:[%s2213 + $0x1c0] sm:$0xff]
      %v2271 = vld [vmem:[%s2213 + $0x1c8] sm:$0xff]
      %v2272 = vld [vmem:[%s2213 + $0x1d0] sm:$0xff]
      %v2273 = vld [vmem:[%s2213 + $0x1d8] sm:$0xff]
      %v2274 = vld [vmem:[%s2213 + $0x1e0] sm:$0xff]
      %v2275 = vld [vmem:[%s2213 + $0x1e8] sm:$0xff]
      %v2276 = vld [vmem:[%s2213 + $0x1f0] sm:$0xff]
      %v2277 = vld [vmem:[%s2213 + $0x1f8] sm:$0xff]
      %2278 = vmatprep.subr.mxu0 %v2215
      %2279 = vmatpush1.msra.mxu0 %v2214
      %2280 = vmatprep.subr.mxu0 %v2217
      %2281 = vmatpush1.msra.mxu0 %v2216
      %2282 = vmatprep.subr.mxu0 %v2219
      %2283 = vmatpush1.msra.mxu0 %v2218
      %2284 = vmatprep.subr.mxu0 %v2221
      %2285 = vmatpush1.msra.mxu0 %v2220
      %2286 = vmatprep.subr.mxu0 %v2223
      %2287 = vmatpush1.msra.mxu0 %v2222
      %2288 = vmatprep.subr.mxu0 %v2225
      %2289 = vmatpush1.msra.mxu0 %v2224
      %2290 = vmatprep.subr.mxu0 %v2227
      %2291 = vmatpush1.msra.mxu0 %v2226
      %2292 = vmatprep.subr.mxu0 %v2229
      %2293 = vmatpush1.msra.mxu0 %v2228
      %2294 = vmatprep.subr.mxu0 %v2231
      %2295 = vmatpush1.msra.mxu0 %v2230
      %2296 = vmatprep.subr.mxu0 %v2233
      %2297 = vmatpush1.msra.mxu0 %v2232
      %2298 = vmatprep.subr.mxu0 %v2235
      %2299 = vmatpush1.msra.mxu0 %v2234
      %2300 = vmatprep.subr.mxu0 %v2237
      %2301 = vmatpush1.msra.mxu0 %v2236
      %2302 = vmatprep.subr.mxu0 %v2239
      %2303 = vmatpush1.msra.mxu0 %v2238
      %2304 = vmatprep.subr.mxu0 %v2241
      %2305 = vmatpush1.msra.mxu0 %v2240
      %2306 = vmatprep.subr.mxu0 %v2243
      %2307 = vmatpush1.msra.mxu0 %v2242
      %2308 = vmatprep.subr.mxu0 %v2245
      %2309 = vmatpush1.msra.mxu0 %v2244
      %2310 = vmatprep.subr.mxu0 %v2247
      %2311 = vmatpush1.msra.mxu0 %v2246
      %2312 = vmatprep.subr.mxu0 %v2249
      %2313 = vmatpush1.msra.mxu0 %v2248
      %2314 = vmatprep.subr.mxu0 %v2251
      %2315 = vmatpush1.msra.mxu0 %v2250
      %2316 = vmatprep.subr.mxu0 %v2253
      %2317 = vmatpush1.msra.mxu0 %v2252
      %2318 = vmatprep.subr.mxu0 %v2255
      %2319 = vmatpush1.msra.mxu0 %v2254
      %2320 = vmatprep.subr.mxu0 %v2257
      %2321 = vmatpush1.msra.mxu0 %v2256
      %2322 = vmatprep.subr.mxu0 %v2259
      %2323 = vmatpush1.msra.mxu0 %v2258
      %2324 = vmatprep.subr.mxu0 %v2261
      %2325 = vmatpush1.msra.mxu0 %v2260
      %2326 = vmatprep.subr.mxu0 %v2263
      %2327 = vmatpush1.msra.mxu0 %v2262
      %2328 = vmatprep.subr.mxu0 %v2265
      %2329 = vmatpush1.msra.mxu0 %v2264
      %2330 = vmatprep.subr.mxu0 %v2267
      %2331 = vmatpush1.msra.mxu0 %v2266
      %2332 = vmatprep.subr.mxu0 %v2269
      %2333 = vmatpush1.msra.mxu0 %v2268
      %2334 = vmatprep.subr.mxu0 %v2271
      %2335 = vmatpush1.msra.mxu0 %v2270
      %2336 = vmatprep.subr.mxu0 %v2273
      %2337 = vmatpush1.msra.mxu0 %v2272
      %2338 = vmatprep.subr.mxu0 %v2275
      %2339 = vmatpush1.msra.mxu0 %v2274
      %2340 = vmatprep.subr.mxu0 %v2277
      %2341 = vmatpush1.msra.mxu0 %v2276
      %2342 = vmatprep.mubr.f32.mxu0 %v219
      %2343 = vmatmul.mubr.f32.gmra.mrb[0].mxu0 %v218
      %v2344 = vpop.f32.mrb[0].mxu0
      %v2345 = vadd.f32 0.0, %v2344
      %v2346 = vpop.f32.mrb[0].mxu0
      %v2347 = vadd.f32 0.0, %v2346
      %2348 = vmatprep.mubr.f32.mxu0 %v221
      %2349 = vmatmul.mubr.f32.gmra.mrb[0].mxu0 %v220
      %v2350 = vpop.f32.mrb[0].mxu0
      %v2351 = vadd.f32 0.0, %v2350
      %v2352 = vpop.f32.mrb[0].mxu0
      %v2353 = vadd.f32 0.0, %v2352
      %2354 = vmatprep.mubr.f32.mxu0 %v223
      %2355 = vmatmul.mubr.f32.gmra.mrb[0].mxu0 %v222
      %v2356 = vpop.f32.mrb[0].mxu0
      %v2357 = vadd.f32 0.0, %v2356
      %v2358 = vpop.f32.mrb[0].mxu0
      %v2359 = vadd.f32 0.0, %v2358
      %2360 = vmatprep.mubr.f32.mxu0 %v225
      %2361 = vmatmul.mubr.f32.gmra.mrb[0].mxu0 %v224
      %v2362 = vpop.f32.mrb[0].mxu0
      %v2363 = vadd.f32 0.0, %v2362
      %v2364 = vpop.f32.mrb[0].mxu0
      %v2365 = vadd.f32 0.0, %v2364
      %2366 = vmatprep.mubr.f32.mxu0 %v227
      %2367 = vmatmul.mubr.f32.gmra.mrb[0].mxu0 %v226
      %v2368 = vpop.f32.mrb[0].mxu0
      %v2369 = vadd.f32 0.0, %v2368
      %v2370 = vpop.f32.mrb[0].mxu0
      %v2371 = vadd.f32 0.0, %v2370
      %2372 = vmatprep.mubr.f32.mxu0 %v229
      %2373 = vmatmul.mubr.f32.gmra.mrb[0].mxu0 %v228
      %v2374 = vpop.f32.mrb[0].mxu0
      %v2375 = vadd.f32 0.0, %v2374
      %v2376 = vpop.f32.mrb[0].mxu0
      %v2377 = vadd.f32 0.0, %v2376
      %2378 = vmatprep.mubr.f32.mxu0 %v231
      %2379 = vmatmul.mubr.f32.gmra.mrb[0].mxu0 %v230
      %v2380 = vpop.f32.mrb[0].mxu0
      %v2381 = vadd.f32 0.0, %v2380
      %v2382 = vpop.f32.mrb[0].mxu0
      %v2383 = vadd.f32 0.0, %v2382
      %2384 = vmatprep.mubr.f32.mxu0 %v233
      %2385 = vmatmul.mubr.f32.gmra.mrb[0].mxu0 %v232
      %v2386 = vpop.f32.mrb[0].mxu0
      %v2387 = vadd.f32 0.0, %v2386
      %v2388 = vpop.f32.mrb[0].mxu0
      %v2389 = vadd.f32 0.0, %v2388
      %2390 = vmatprep.mubr.f32.mxu0 %v235
      %2391 = vmatmul.mubr.f32.gmra.mrb[0].mxu0 %v234
      %v2392 = vpop.f32.mrb[0].mxu0
      %v2393 = vadd.f32 0.0, %v2392
      %v2394 = vpop.f32.mrb[0].mxu0
      %v2395 = vadd.f32 0.0, %v2394
      %2396 = vmatprep.mubr.f32.mxu0 %v237
      %2397 = vmatmul.mubr.f32.gmra.mrb[0].mxu0 %v236
      %v2398 = vpop.f32.mrb[0].mxu0
      %v2399 = vadd.f32 0.0, %v2398
      %v2400 = vpop.f32.mrb[0].mxu0
      %v2401 = vadd.f32 0.0, %v2400
      %2402 = vmatprep.mubr.f32.mxu0 %v239
      %2403 = vmatmul.mubr.f32.gmra.mrb[0].mxu0 %v238
      %v2404 = vpop.f32.mrb[0].mxu0
      %v2405 = vadd.f32 0.0, %v2404
      %v2406 = vpop.f32.mrb[0].mxu0
      %v2407 = vadd.f32 0.0, %v2406
      %2408 = vmatprep.mubr.f32.mxu0 %v241
      %2409 = vmatmul.mubr.f32.gmra.mrb[0].mxu0 %v240
      %v2410 = vpop.f32.mrb[0].mxu0
      %v2411 = vadd.f32 0.0, %v2410
      %v2412 = vpop.f32.mrb[0].mxu0
      %v2413 = vadd.f32 0.0, %v2412
      %2414 = vmatprep.mubr.f32.mxu0 %v243
      %2415 = vmatmul.mubr.f32.gmra.mrb[0].mxu0 %v242
      %v2416 = vpop.f32.mrb[0].mxu0
      %v2417 = vadd.f32 0.0, %v2416
      %v2418 = vpop.f32.mrb[0].mxu0
      %v2419 = vadd.f32 0.0, %v2418
      %2420 = vmatprep.mubr.f32.mxu0 %v245
      %2421 = vmatmul.mubr.f32.gmra.mrb[0].mxu0 %v244
      %v2422 = vpop.f32.mrb[0].mxu0
      %v2423 = vadd.f32 0.0, %v2422
      %v2424 = vpop.f32.mrb[0].mxu0
      %v2425 = vadd.f32 0.0, %v2424
      %2426 = vmatprep.mubr.f32.mxu0 %v247
      %2427 = vmatmul.mubr.f32.gmra.mrb[0].mxu0 %v246
      %v2428 = vpop.f32.mrb[0].mxu0
      %v2429 = vadd.f32 0.0, %v2428
      %v2430 = vpop.f32.mrb[0].mxu0
      %v2431 = vadd.f32 0.0, %v2430
      %2432 = vmatprep.mubr.f32.mxu0 %v249
      %2433 = vmatmul.mubr.f32.gmra.mrb[0].mxu0 %v248
      %v2434 = vpop.f32.mrb[0].mxu0
      %v2435 = vadd.f32 0.0, %v2434
      %v2436 = vpop.f32.mrb[0].mxu0
      %v2437 = vadd.f32 0.0, %v2436
      %2438 = vmatprep.mubr.f32.mxu0 %v251
      %2439 = vmatmul.mubr.f32.gmra.mrb[0].mxu0 %v250
      %v2440 = vpop.f32.mrb[0].mxu0
      %v2441 = vadd.f32 0.0, %v2440
      %v2442 = vpop.f32.mrb[0].mxu0
      %v2443 = vadd.f32 0.0, %v2442
      %2444 = vmatprep.mubr.f32.mxu0 %v253
      %2445 = vmatmul.mubr.f32.gmra.mrb[0].mxu0 %v252
      %v2446 = vpop.f32.mrb[0].mxu0
      %v2447 = vadd.f32 0.0, %v2446
      %v2448 = vpop.f32.mrb[0].mxu0
      %v2449 = vadd.f32 0.0, %v2448
      %2450 = vmatprep.mubr.f32.mxu0 %v255
      %2451 = vmatmul.mubr.f32.gmra.mrb[0].mxu0 %v254
      %v2452 = vpop.f32.mrb[0].mxu0
      %v2453 = vadd.f32 0.0, %v2452
      %v2454 = vpop.f32.mrb[0].mxu0
      %v2455 = vadd.f32 0.0, %v2454
      %2456 = vmatprep.mubr.f32.mxu0 %v257
      %2457 = vmatmul.mubr.f32.gmra.mrb[0].mxu0 %v256
      %v2458 = vpop.f32.mrb[0].mxu0
      %v2459 = vadd.f32 0.0, %v2458
      %v2460 = vpop.f32.mrb[0].mxu0
      %v2461 = vadd.f32 0.0, %v2460
      %2462 = vmatprep.mubr.f32.mxu0 %v259
      %2463 = vmatmul.mubr.f32.gmra.mrb[0].mxu0 %v258
      %v2464 = vpop.f32.mrb[0].mxu0
      %v2465 = vadd.f32 0.0, %v2464
      %v2466 = vpop.f32.mrb[0].mxu0
      %v2467 = vadd.f32 0.0, %v2466
      %2468 = vmatprep.mubr.f32.mxu0 %v261
      %2469 = vmatmul.mubr.f32.gmra.mrb[0].mxu0 %v260
      %v2470 = vpop.f32.mrb[0].mxu0
      %v2471 = vadd.f32 0.0, %v2470
      %v2472 = vpop.f32.mrb[0].mxu0
      %v2473 = vadd.f32 0.0, %v2472
      %2474 = vmatprep.mubr.f32.mxu0 %v263
      %2475 = vmatmul.mubr.f32.gmra.mrb[0].mxu0 %v262
      %v2476 = vpop.f32.mrb[0].mxu0
      %v2477 = vadd.f32 0.0, %v2476
      %v2478 = vpop.f32.mrb[0].mxu0
      %v2479 = vadd.f32 0.0, %v2478
      %2480 = vmatprep.mubr.f32.mxu0 %v265
      %2481 = vmatmul.mubr.f32.gmra.mrb[0].mxu0 %v264
      %v2482 = vpop.f32.mrb[0].mxu0
      %v2483 = vadd.f32 0.0, %v2482
      %v2484 = vpop.f32.mrb[0].mxu0
      %v2485 = vadd.f32 0.0, %v2484
      %2486 = vmatprep.mubr.f32.mxu0 %v267
      %2487 = vmatmul.mubr.f32.gmra.mrb[0].mxu0 %v266
      %v2488 = vpop.f32.mrb[0].mxu0
      %v2489 = vadd.f32 0.0, %v2488
      %v2490 = vpop.f32.mrb[0].mxu0
      %v2491 = vadd.f32 0.0, %v2490
      %2492 = vmatprep.mubr.f32.mxu0 %v269
      %2493 = vmatmul.mubr.f32.gmra.mrb[0].mxu0 %v268
      %v2494 = vpop.f32.mrb[0].mxu0
      %v2495 = vadd.f32 0.0, %v2494
      %v2496 = vpop.f32.mrb[0].mxu0
      %v2497 = vadd.f32 0.0, %v2496
      %2498 = vmatprep.mubr.f32.mxu0 %v271
      %2499 = vmatmul.mubr.f32.gmra.mrb[0].mxu0 %v270
      %v2500 = vpop.f32.mrb[0].mxu0
      %v2501 = vadd.f32 0.0, %v2500
      %v2502 = vpop.f32.mrb[0].mxu0
      %v2503 = vadd.f32 0.0, %v2502
      %2504 = vmatprep.mubr.f32.mxu0 %v273
      %2505 = vmatmul.mubr.f32.gmra.mrb[0].mxu0 %v272
      %v2506 = vpop.f32.mrb[0].mxu0
      %v2507 = vadd.f32 0.0, %v2506
      %v2508 = vpop.f32.mrb[0].mxu0
      %v2509 = vadd.f32 0.0, %v2508
      %2510 = vmatprep.mubr.f32.mxu0 %v275
      %2511 = vmatmul.mubr.f32.gmra.mrb[0].mxu0 %v274
      %v2512 = vpop.f32.mrb[0].mxu0
      %v2513 = vadd.f32 0.0, %v2512
      %v2514 = vpop.f32.mrb[0].mxu0
      %v2515 = vadd.f32 0.0, %v2514
      %2516 = vmatprep.mubr.f32.mxu0 %v277
      %2517 = vmatmul.mubr.f32.gmra.mrb[0].mxu0 %v276
      %v2518 = vpop.f32.mrb[0].mxu0
      %v2519 = vadd.f32 0.0, %v2518
      %v2520 = vpop.f32.mrb[0].mxu0
      %v2521 = vadd.f32 0.0, %v2520
      %2522 = vmatprep.mubr.f32.mxu0 %v279
      %2523 = vmatmul.mubr.f32.gmra.mrb[0].mxu0 %v278
      %v2524 = vpop.f32.mrb[0].mxu0
      %v2525 = vadd.f32 0.0, %v2524
      %v2526 = vpop.f32.mrb[0].mxu0
      %v2527 = vadd.f32 0.0, %v2526
      %2528 = vmatprep.mubr.f32.mxu0 %v281
      %2529 = vmatmul.mubr.f32.gmra.mrb[0].mxu0 %v280
      %v2530 = vpop.f32.mrb[0].mxu0
      %v2531 = vadd.f32 0.0, %v2530
      %v2532 = vpop.f32.mrb[0].mxu0
      %v2533 = vadd.f32 0.0, %v2532
      %2534 = vdwg.mxu0
      %v2535 = vld [vmem:[#allocation2] sm:$0xff]
      %v2536 = vld [vmem:[#allocation2 + $0x8] sm:$0xff]
      %v2537 = vld [vmem:[#allocation2 + $0x10] sm:$0xff]
      %v2538 = vld [vmem:[#allocation2 + $0x18] sm:$0xff]
      %v2539 = vld [vmem:[#allocation2 + $0x20] sm:$0xff]
      %v2540 = vld [vmem:[#allocation2 + $0x28] sm:$0xff]
      %v2541 = vld [vmem:[#allocation2 + $0x30] sm:$0xff]
      %v2542 = vld [vmem:[#allocation2 + $0x38] sm:$0xff]
      %v2543 = vld [vmem:[#allocation2 + $0x40] sm:$0xff]
      %v2544 = vld [vmem:[#allocation2 + $0x48] sm:$0xff]
      %v2545 = vld [vmem:[#allocation2 + $0x50] sm:$0xff]
      %v2546 = vld [vmem:[#allocation2 + $0x58] sm:$0xff]
      %v2547 = vld [vmem:[#allocation2 + $0x60] sm:$0xff]
      %v2548 = vld [vmem:[#allocation2 + $0x68] sm:$0xff]
      %v2549 = vld [vmem:[#allocation2 + $0x70] sm:$0xff]
      %v2550 = vld [vmem:[#allocation2 + $0x78] sm:$0xff]
      %v2551 = vld [vmem:[#allocation2 + $0x80] sm:$0xff]
      %v2552 = vld [vmem:[#allocation2 + $0x88] sm:$0xff]
      %v2553 = vld [vmem:[#allocation2 + $0x90] sm:$0xff]
      %v2554 = vld [vmem:[#allocation2 + $0x98] sm:$0xff]
      %v2555 = vld [vmem:[#allocation2 + $0xa0] sm:$0xff]
      %v2556 = vld [vmem:[#allocation2 + $0xa8] sm:$0xff]
      %v2557 = vld [vmem:[#allocation2 + $0xb0] sm:$0xff]
      %v2558 = vld [vmem:[#allocation2 + $0xb8] sm:$0xff]
      %v2559 = vld [vmem:[#allocation2 + $0xc0] sm:$0xff]
      %v2560 = vld [vmem:[#allocation2 + $0xc8] sm:$0xff]
      %v2561 = vld [vmem:[#allocation2 + $0xd0] sm:$0xff]
      %v2562 = vld [vmem:[#allocation2 + $0xd8] sm:$0xff]
      %v2563 = vld [vmem:[#allocation2 + $0xe0] sm:$0xff]
      %v2564 = vld [vmem:[#allocation2 + $0xe8] sm:$0xff]
      %v2565 = vld [vmem:[#allocation2 + $0xf0] sm:$0xff]
      %v2566 = vld [vmem:[#allocation2 + $0xf8] sm:$0xff]
      %v2567 = vld [vmem:[#allocation2 + $0x100] sm:$0xff]
      %v2568 = vld [vmem:[#allocation2 + $0x108] sm:$0xff]
      %v2569 = vld [vmem:[#allocation2 + $0x110] sm:$0xff]
      %v2570 = vld [vmem:[#allocation2 + $0x118] sm:$0xff]
      %v2571 = vld [vmem:[#allocation2 + $0x120] sm:$0xff]
      %v2572 = vld [vmem:[#allocation2 + $0x128] sm:$0xff]
      %v2573 = vld [vmem:[#allocation2 + $0x130] sm:$0xff]
      %v2574 = vld [vmem:[#allocation2 + $0x138] sm:$0xff]
      %v2575 = vld [vmem:[#allocation2 + $0x140] sm:$0xff]
      %v2576 = vld [vmem:[#allocation2 + $0x148] sm:$0xff]
      %v2577 = vld [vmem:[#allocation2 + $0x150] sm:$0xff]
      %v2578 = vld [vmem:[#allocation2 + $0x158] sm:$0xff]
      %v2579 = vld [vmem:[#allocation2 + $0x160] sm:$0xff]
      %v2580 = vld [vmem:[#allocation2 + $0x168] sm:$0xff]
      %v2581 = vld [vmem:[#allocation2 + $0x170] sm:$0xff]
      %v2582 = vld [vmem:[#allocation2 + $0x178] sm:$0xff]
      %v2583 = vld [vmem:[#allocation2 + $0x180] sm:$0xff]
      %v2584 = vld [vmem:[#allocation2 + $0x188] sm:$0xff]
      %v2585 = vld [vmem:[#allocation2 + $0x190] sm:$0xff]
      %v2586 = vld [vmem:[#allocation2 + $0x198] sm:$0xff]
      %v2587 = vld [vmem:[#allocation2 + $0x1a0] sm:$0xff]
      %v2588 = vld [vmem:[#allocation2 + $0x1a8] sm:$0xff]
      %v2589 = vld [vmem:[#allocation2 + $0x1b0] sm:$0xff]
      %v2590 = vld [vmem:[#allocation2 + $0x1b8] sm:$0xff]
      %v2591 = vld [vmem:[#allocation2 + $0x1c0] sm:$0xff]
      %v2592 = vld [vmem:[#allocation2 + $0x1c8] sm:$0xff]
      %v2593 = vld [vmem:[#allocation2 + $0x1d0] sm:$0xff]
      %v2594 = vld [vmem:[#allocation2 + $0x1d8] sm:$0xff]
      %v2595 = vld [vmem:[#allocation2 + $0x1e0] sm:$0xff]
      %v2596 = vld [vmem:[#allocation2 + $0x1e8] sm:$0xff]
      %v2597 = vld [vmem:[#allocation2 + $0x1f0] sm:$0xff]
      %v2598 = vld [vmem:[#allocation2 + $0x1f8] sm:$0xff]
      %v2599 = vadd.f32 %v2535, %v2357
      %v2600 = vadd.f32 %v2536, %v2359
      %v2601 = vadd.f32 %v2537, %v2363
      %v2602 = vadd.f32 %v2538, %v2365
      %v2603 = vadd.f32 %v2539, %v2369
      %v2604 = vadd.f32 %v2540, %v2371
      %v2605 = vadd.f32 %v2541, %v2375
      %v2606 = vadd.f32 %v2542, %v2377
      %v2607 = vadd.f32 %v2543, %v2381
      %v2608 = vadd.f32 %v2544, %v2383
      %v2609 = vadd.f32 %v2545, %v2387
      %v2610 = vadd.f32 %v2546, %v2389
      %v2611 = vadd.f32 %v2547, %v2393
      %v2612 = vadd.f32 %v2548, %v2395
      %v2613 = vadd.f32 %v2549, %v2399
      %v2614 = vadd.f32 %v2550, %v2401
      %v2615 = vadd.f32 %v2551, %v2405
      %v2616 = vadd.f32 %v2552, %v2407
      %v2617 = vadd.f32 %v2553, %v2411
      %v2618 = vadd.f32 %v2554, %v2413
      %v2619 = vadd.f32 %v2555, %v2417
      %v2620 = vadd.f32 %v2556, %v2419
      %v2621 = vadd.f32 %v2557, %v2423
      %v2622 = vadd.f32 %v2558, %v2425
      %v2623 = vadd.f32 %v2559, %v2429
      %v2624 = vadd.f32 %v2560, %v2431
      %v2625 = vadd.f32 %v2561, %v2435
      %v2626 = vadd.f32 %v2562, %v2437
      %v2627 = vadd.f32 %v2563, %v2441
      %v2628 = vadd.f32 %v2564, %v2443
      %v2629 = vadd.f32 %v2565, %v2447
      %v2630 = vadd.f32 %v2566, %v2449
      %v2631 = vadd.f32 %v2567, %v2453
      %v2632 = vadd.f32 %v2568, %v2455
      %v2633 = vadd.f32 %v2569, %v2459
      %v2634 = vadd.f32 %v2570, %v2461
      %v2635 = vadd.f32 %v2571, %v2465
      %v2636 = vadd.f32 %v2572, %v2467
      %v2637 = vadd.f32 %v2573, %v2471
      %v2638 = vadd.f32 %v2574, %v2473
      %v2639 = vadd.f32 %v2575, %v2477
      %v2640 = vadd.f32 %v2576, %v2479
      %v2641 = vadd.f32 %v2577, %v2483
      %v2642 = vadd.f32 %v2578, %v2485
      %v2643 = vadd.f32 %v2579, %v2489
      %v2644 = vadd.f32 %v2580, %v2491
      %v2645 = vadd.f32 %v2581, %v2495
      %v2646 = vadd.f32 %v2582, %v2497
      %v2647 = vadd.f32 %v2583, %v2501
      %v2648 = vadd.f32 %v2584, %v2503
      %v2649 = vadd.f32 %v2585, %v2507
      %v2650 = vadd.f32 %v2586, %v2509
      %v2651 = vadd.f32 %v2587, %v2513
      %v2652 = vadd.f32 %v2588, %v2515
      %v2653 = vadd.f32 %v2589, %v2519
      %v2654 = vadd.f32 %v2590, %v2521
      %v2655 = vadd.f32 %v2591, %v2525
      %v2656 = vadd.f32 %v2592, %v2527
      %v2657 = vadd.f32 %v2593, %v2531
      %v2658 = vadd.f32 %v2594, %v2533
      %v2659 = vadd.f32 %v2595, %v2345
      %v2660 = vadd.f32 %v2596, %v2347
      %v2661 = vadd.f32 %v2597, %v2351
      %v2662 = vadd.f32 %v2598, %v2353
      %2663 = vst [vmem:[#allocation2] sm:$0xff] %v2599
      %2664 = vst [vmem:[#allocation2 + $0x8] sm:$0xff] %v2600
      %2665 = vst [vmem:[#allocation2 + $0x10] sm:$0xff] %v2601
      %2666 = vst [vmem:[#allocation2 + $0x18] sm:$0xff] %v2602
      %2667 = vst [vmem:[#allocation2 + $0x20] sm:$0xff] %v2603
      %2668 = vst [vmem:[#allocation2 + $0x28] sm:$0xff] %v2604
      %2669 = vst [vmem:[#allocation2 + $0x30] sm:$0xff] %v2605
      %2670 = vst [vmem:[#allocation2 + $0x38] sm:$0xff] %v2606
      %2671 = vst [vmem:[#allocation2 + $0x40] sm:$0xff] %v2607
      %2672 = vst [vmem:[#allocation2 + $0x48] sm:$0xff] %v2608
      %2673 = vst [vmem:[#allocation2 + $0x50] sm:$0xff] %v2609
      %2674 = vst [vmem:[#allocation2 + $0x58] sm:$0xff] %v2610
      %2675 = vst [vmem:[#allocation2 + $0x60] sm:$0xff] %v2611
      %2676 = vst [vmem:[#allocation2 + $0x68] sm:$0xff] %v2612
      %2677 = vst [vmem:[#allocation2 + $0x70] sm:$0xff] %v2613
      %2678 = vst [vmem:[#allocation2 + $0x78] sm:$0xff] %v2614
      %2679 = vst [vmem:[#allocation2 + $0x80] sm:$0xff] %v2615
      %2680 = vst [vmem:[#allocation2 + $0x88] sm:$0xff] %v2616
      %2681 = vst [vmem:[#allocation2 + $0x90] sm:$0xff] %v2617
      %2682 = vst [vmem:[#allocation2 + $0x98] sm:$0xff] %v2618
      %2683 = vst [vmem:[#allocation2 + $0xa0] sm:$0xff] %v2619
      %2684 = vst [vmem:[#allocation2 + $0xa8] sm:$0xff] %v2620
      %2685 = vst [vmem:[#allocation2 + $0xb0] sm:$0xff] %v2621
      %2686 = vst [vmem:[#allocation2 + $0xb8] sm:$0xff] %v2622
      %2687 = vst [vmem:[#allocation2 + $0xc0] sm:$0xff] %v2623
      %2688 = vst [vmem:[#allocation2 + $0xc8] sm:$0xff] %v2624
      %2689 = vst [vmem:[#allocation2 + $0xd0] sm:$0xff] %v2625
      %2690 = vst [vmem:[#allocation2 + $0xd8] sm:$0xff] %v2626
      %2691 = vst [vmem:[#allocation2 + $0xe0] sm:$0xff] %v2627
      %2692 = vst [vmem:[#allocation2 + $0xe8] sm:$0xff] %v2628
      %2693 = vst [vmem:[#allocation2 + $0xf0] sm:$0xff] %v2629
      %2694 = vst [vmem:[#allocation2 + $0xf8] sm:$0xff] %v2630
      %2695 = vst [vmem:[#allocation2 + $0x100] sm:$0xff] %v2631
      %2696 = vst [vmem:[#allocation2 + $0x108] sm:$0xff] %v2632
      %2697 = vst [vmem:[#allocation2 + $0x110] sm:$0xff] %v2633
      %2698 = vst [vmem:[#allocation2 + $0x118] sm:$0xff] %v2634
      %2699 = vst [vmem:[#allocation2 + $0x120] sm:$0xff] %v2635
      %2700 = vst [vmem:[#allocation2 + $0x128] sm:$0xff] %v2636
      %2701 = vst [vmem:[#allocation2 + $0x130] sm:$0xff] %v2637
      %2702 = vst [vmem:[#allocation2 + $0x138] sm:$0xff] %v2638
      %2703 = vst [vmem:[#allocation2 + $0x140] sm:$0xff] %v2639
      %2704 = vst [vmem:[#allocation2 + $0x148] sm:$0xff] %v2640
      %2705 = vst [vmem:[#allocation2 + $0x150] sm:$0xff] %v2641
      %2706 = vst [vmem:[#allocation2 + $0x158] sm:$0xff] %v2642
      %2707 = vst [vmem:[#allocation2 + $0x160] sm:$0xff] %v2643
      %2708 = vst [vmem:[#allocation2 + $0x168] sm:$0xff] %v2644
      %2709 = vst [vmem:[#allocation2 + $0x170] sm:$0xff] %v2645
      %2710 = vst [vmem:[#allocation2 + $0x178] sm:$0xff] %v2646
      %2711 = vst [vmem:[#allocation2 + $0x180] sm:$0xff] %v2647
      %2712 = vst [vmem:[#allocation2 + $0x188] sm:$0xff] %v2648
      %2713 = vst [vmem:[#allocation2 + $0x190] sm:$0xff] %v2649
      %2714 = vst [vmem:[#allocation2 + $0x198] sm:$0xff] %v2650
      %2715 = vst [vmem:[#allocation2 + $0x1a0] sm:$0xff] %v2651
      %2716 = vst [vmem:[#allocation2 + $0x1a8] sm:$0xff] %v2652
      %2717 = vst [vmem:[#allocation2 + $0x1b0] sm:$0xff] %v2653
      %2718 = vst [vmem:[#allocation2 + $0x1b8] sm:$0xff] %v2654
      %2719 = vst [vmem:[#allocation2 + $0x1c0] sm:$0xff] %v2655
      %2720 = vst [vmem:[#allocation2 + $0x1c8] sm:$0xff] %v2656
      %2721 = vst [vmem:[#allocation2 + $0x1d0] sm:$0xff] %v2657
      %2722 = vst [vmem:[#allocation2 + $0x1d8] sm:$0xff] %v2658
      %2723 = vst [vmem:[#allocation2 + $0x1e0] sm:$0xff] %v2659
      %2724 = vst [vmem:[#allocation2 + $0x1e8] sm:$0xff] %v2660
      %2725 = vst [vmem:[#allocation2 + $0x1f0] sm:$0xff] %v2661
      %2726 = vst [vmem:[#allocation2 + $0x1f8] sm:$0xff] %v2662
      %s2727 = scalar_lea.vmem %s1, 2048
      %v2728 = vld [vmem:[%s2727] sm:$0xff]
      %v2729 = vld [vmem:[%s2727 + $0x8] sm:$0xff]
      %v2730 = vld [vmem:[%s2727 + $0x10] sm:$0xff]
      %v2731 = vld [vmem:[%s2727 + $0x18] sm:$0xff]
      %v2732 = vld [vmem:[%s2727 + $0x20] sm:$0xff]
      %v2733 = vld [vmem:[%s2727 + $0x28] sm:$0xff]
      %v2734 = vld [vmem:[%s2727 + $0x30] sm:$0xff]
      %v2735 = vld [vmem:[%s2727 + $0x38] sm:$0xff]
      %v2736 = vld [vmem:[%s2727 + $0x40] sm:$0xff]
      %v2737 = vld [vmem:[%s2727 + $0x48] sm:$0xff]
      %v2738 = vld [vmem:[%s2727 + $0x50] sm:$0xff]
      %v2739 = vld [vmem:[%s2727 + $0x58] sm:$0xff]
      %v2740 = vld [vmem:[%s2727 + $0x60] sm:$0xff]
      %v2741 = vld [vmem:[%s2727 + $0x68] sm:$0xff]
      %v2742 = vld [vmem:[%s2727 + $0x70] sm:$0xff]
      %v2743 = vld [vmem:[%s2727 + $0x78] sm:$0xff]
      %v2744 = vld [vmem:[%s2727 + $0x80] sm:$0xff]
      %v2745 = vld [vmem:[%s2727 + $0x88] sm:$0xff]
      %v2746 = vld [vmem:[%s2727 + $0x90] sm:$0xff]
      %v2747 = vld [vmem:[%s2727 + $0x98] sm:$0xff]
      %v2748 = vld [vmem:[%s2727 + $0xa0] sm:$0xff]
      %v2749 = vld [vmem:[%s2727 + $0xa8] sm:$0xff]
      %v2750 = vld [vmem:[%s2727 + $0xb0] sm:$0xff]
      %v2751 = vld [vmem:[%s2727 + $0xb8] sm:$0xff]
      %v2752 = vld [vmem:[%s2727 + $0xc0] sm:$0xff]
      %v2753 = vld [vmem:[%s2727 + $0xc8] sm:$0xff]
      %v2754 = vld [vmem:[%s2727 + $0xd0] sm:$0xff]
      %v2755 = vld [vmem:[%s2727 + $0xd8] sm:$0xff]
      %v2756 = vld [vmem:[%s2727 + $0xe0] sm:$0xff]
      %v2757 = vld [vmem:[%s2727 + $0xe8] sm:$0xff]
      %v2758 = vld [vmem:[%s2727 + $0xf0] sm:$0xff]
      %v2759 = vld [vmem:[%s2727 + $0xf8] sm:$0xff]
      %v2760 = vld [vmem:[%s2727 + $0x100] sm:$0xff]
      %v2761 = vld [vmem:[%s2727 + $0x108] sm:$0xff]
      %v2762 = vld [vmem:[%s2727 + $0x110] sm:$0xff]
      %v2763 = vld [vmem:[%s2727 + $0x118] sm:$0xff]
      %v2764 = vld [vmem:[%s2727 + $0x120] sm:$0xff]
      %v2765 = vld [vmem:[%s2727 + $0x128] sm:$0xff]
      %v2766 = vld [vmem:[%s2727 + $0x130] sm:$0xff]
      %v2767 = vld [vmem:[%s2727 + $0x138] sm:$0xff]
      %v2768 = vld [vmem:[%s2727 + $0x140] sm:$0xff]
      %v2769 = vld [vmem:[%s2727 + $0x148] sm:$0xff]
      %v2770 = vld [vmem:[%s2727 + $0x150] sm:$0xff]
      %v2771 = vld [vmem:[%s2727 + $0x158] sm:$0xff]
      %v2772 = vld [vmem:[%s2727 + $0x160] sm:$0xff]
      %v2773 = vld [vmem:[%s2727 + $0x168] sm:$0xff]
      %v2774 = vld [vmem:[%s2727 + $0x170] sm:$0xff]
      %v2775 = vld [vmem:[%s2727 + $0x178] sm:$0xff]
      %v2776 = vld [vmem:[%s2727 + $0x180] sm:$0xff]
      %v2777 = vld [vmem:[%s2727 + $0x188] sm:$0xff]
      %v2778 = vld [vmem:[%s2727 + $0x190] sm:$0xff]
      %v2779 = vld [vmem:[%s2727 + $0x198] sm:$0xff]
      %v2780 = vld [vmem:[%s2727 + $0x1a0] sm:$0xff]
      %v2781 = vld [vmem:[%s2727 + $0x1a8] sm:$0xff]
      %v2782 = vld [vmem:[%s2727 + $0x1b0] sm:$0xff]
      %v2783 = vld [vmem:[%s2727 + $0x1b8] sm:$0xff]
      %v2784 = vld [vmem:[%s2727 + $0x1c0] sm:$0xff]
      %v2785 = vld [vmem:[%s2727 + $0x1c8] sm:$0xff]
      %v2786 = vld [vmem:[%s2727 + $0x1d0] sm:$0xff]
      %v2787 = vld [vmem:[%s2727 + $0x1d8] sm:$0xff]
      %v2788 = vld [vmem:[%s2727 + $0x1e0] sm:$0xff]
      %v2789 = vld [vmem:[%s2727 + $0x1e8] sm:$0xff]
      %v2790 = vld [vmem:[%s2727 + $0x1f0] sm:$0xff]
      %v2791 = vld [vmem:[%s2727 + $0x1f8] sm:$0xff]
      %2792 = vmatprep.subr.mxu0 %v2729
      %2793 = vmatpush1.msra.mxu0 %v2728
      %2794 = vmatprep.subr.mxu0 %v2731
      %2795 = vmatpush1.msra.mxu0 %v2730
      %2796 = vmatprep.subr.mxu0 %v2733
      %2797 = vmatpush1.msra.mxu0 %v2732
      %2798 = vmatprep.subr.mxu0 %v2735
      %2799 = vmatpush1.msra.mxu0 %v2734
      %2800 = vmatprep.subr.mxu0 %v2737
      %2801 = vmatpush1.msra.mxu0 %v2736
      %2802 = vmatprep.subr.mxu0 %v2739
      %2803 = vmatpush1.msra.mxu0 %v2738
      %2804 = vmatprep.subr.mxu0 %v2741
      %2805 = vmatpush1.msra.mxu0 %v2740
      %2806 = vmatprep.subr.mxu0 %v2743
      %2807 = vmatpush1.msra.mxu0 %v2742
      %2808 = vmatprep.subr.mxu0 %v2745
      %2809 = vmatpush1.msra.mxu0 %v2744
      %2810 = vmatprep.subr.mxu0 %v2747
      %2811 = vmatpush1.msra.mxu0 %v2746
      %2812 = vmatprep.subr.mxu0 %v2749
      %2813 = vmatpush1.msra.mxu0 %v2748
      %2814 = vmatprep.subr.mxu0 %v2751
      %2815 = vmatpush1.msra.mxu0 %v2750
      %2816 = vmatprep.subr.mxu0 %v2753
      %2817 = vmatpush1.msra.mxu0 %v2752
      %2818 = vmatprep.subr.mxu0 %v2755
      %2819 = vmatpush1.msra.mxu0 %v2754
      %2820 = vmatprep.subr.mxu0 %v2757
      %2821 = vmatpush1.msra.mxu0 %v2756
      %2822 = vmatprep.subr.mxu0 %v2759
      %2823 = vmatpush1.msra.mxu0 %v2758
      %2824 = vmatprep.subr.mxu0 %v2761
      %2825 = vmatpush1.msra.mxu0 %v2760
      %2826 = vmatprep.subr.mxu0 %v2763
      %2827 = vmatpush1.msra.mxu0 %v2762
      %2828 = vmatprep.subr.mxu0 %v2765
      %2829 = vmatpush1.msra.mxu0 %v2764
      %2830 = vmatprep.subr.mxu0 %v2767
      %2831 = vmatpush1.msra.mxu0 %v2766
      %2832 = vmatprep.subr.mxu0 %v2769
      %2833 = vmatpush1.msra.mxu0 %v2768
      %2834 = vmatprep.subr.mxu0 %v2771
      %2835 = vmatpush1.msra.mxu0 %v2770
      %2836 = vmatprep.subr.mxu0 %v2773
      %2837 = vmatpush1.msra.mxu0 %v2772
      %2838 = vmatprep.subr.mxu0 %v2775
      %2839 = vmatpush1.msra.mxu0 %v2774
      %2840 = vmatprep.subr.mxu0 %v2777
      %2841 = vmatpush1.msra.mxu0 %v2776
      %2842 = vmatprep.subr.mxu0 %v2779
      %2843 = vmatpush1.msra.mxu0 %v2778
      %2844 = vmatprep.subr.mxu0 %v2781
      %2845 = vmatpush1.msra.mxu0 %v2780
      %2846 = vmatprep.subr.mxu0 %v2783
      %2847 = vmatpush1.msra.mxu0 %v2782
      %2848 = vmatprep.subr.mxu0 %v2785
      %2849 = vmatpush1.msra.mxu0 %v2784
      %2850 = vmatprep.subr.mxu0 %v2787
      %2851 = vmatpush1.msra.mxu0 %v2786
      %2852 = vmatprep.subr.mxu0 %v2789
      %2853 = vmatpush1.msra.mxu0 %v2788
      %2854 = vmatprep.subr.mxu0 %v2791
      %2855 = vmatpush1.msra.mxu0 %v2790
      %2856 = vmatprep.mubr.f32.mxu0 %v219
      %2857 = vmatmul.mubr.f32.gmra.mrb[0].mxu0 %v218
      %v2858 = vpop.f32.mrb[0].mxu0
      %v2859 = vadd.f32 0.0, %v2858
      %v2860 = vpop.f32.mrb[0].mxu0
      %v2861 = vadd.f32 0.0, %v2860
      %2862 = vmatprep.mubr.f32.mxu0 %v221
      %2863 = vmatmul.mubr.f32.gmra.mrb[0].mxu0 %v220
      %v2864 = vpop.f32.mrb[0].mxu0
      %v2865 = vadd.f32 0.0, %v2864
      %v2866 = vpop.f32.mrb[0].mxu0
      %v2867 = vadd.f32 0.0, %v2866
      %2868 = vmatprep.mubr.f32.mxu0 %v223
      %2869 = vmatmul.mubr.f32.gmra.mrb[0].mxu0 %v222
      %v2870 = vpop.f32.mrb[0].mxu0
      %v2871 = vadd.f32 0.0, %v2870
      %v2872 = vpop.f32.mrb[0].mxu0
      %v2873 = vadd.f32 0.0, %v2872
      %2874 = vmatprep.mubr.f32.mxu0 %v225
      %2875 = vmatmul.mubr.f32.gmra.mrb[0].mxu0 %v224
      %v2876 = vpop.f32.mrb[0].mxu0
      %v2877 = vadd.f32 0.0, %v2876
      %v2878 = vpop.f32.mrb[0].mxu0
      %v2879 = vadd.f32 0.0, %v2878
      %2880 = vmatprep.mubr.f32.mxu0 %v227
      %2881 = vmatmul.mubr.f32.gmra.mrb[0].mxu0 %v226
      %v2882 = vpop.f32.mrb[0].mxu0
      %v2883 = vadd.f32 0.0, %v2882
      %v2884 = vpop.f32.mrb[0].mxu0
      %v2885 = vadd.f32 0.0, %v2884
      %2886 = vmatprep.mubr.f32.mxu0 %v229
      %2887 = vmatmul.mubr.f32.gmra.mrb[0].mxu0 %v228
      %v2888 = vpop.f32.mrb[0].mxu0
      %v2889 = vadd.f32 0.0, %v2888
      %v2890 = vpop.f32.mrb[0].mxu0
      %v2891 = vadd.f32 0.0, %v2890
      %2892 = vmatprep.mubr.f32.mxu0 %v231
      %2893 = vmatmul.mubr.f32.gmra.mrb[0].mxu0 %v230
      %v2894 = vpop.f32.mrb[0].mxu0
      %v2895 = vadd.f32 0.0, %v2894
      %v2896 = vpop.f32.mrb[0].mxu0
      %v2897 = vadd.f32 0.0, %v2896
      %2898 = vmatprep.mubr.f32.mxu0 %v233
      %2899 = vmatmul.mubr.f32.gmra.mrb[0].mxu0 %v232
      %v2900 = vpop.f32.mrb[0].mxu0
      %v2901 = vadd.f32 0.0, %v2900
      %v2902 = vpop.f32.mrb[0].mxu0
      %v2903 = vadd.f32 0.0, %v2902
      %2904 = vmatprep.mubr.f32.mxu0 %v235
      %2905 = vmatmul.mubr.f32.gmra.mrb[0].mxu0 %v234
      %v2906 = vpop.f32.mrb[0].mxu0
      %v2907 = vadd.f32 0.0, %v2906
      %v2908 = vpop.f32.mrb[0].mxu0
      %v2909 = vadd.f32 0.0, %v2908
      %2910 = vmatprep.mubr.f32.mxu0 %v237
      %2911 = vmatmul.mubr.f32.gmra.mrb[0].mxu0 %v236
      %v2912 = vpop.f32.mrb[0].mxu0
      %v2913 = vadd.f32 0.0, %v2912
      %v2914 = vpop.f32.mrb[0].mxu0
      %v2915 = vadd.f32 0.0, %v2914
      %2916 = vmatprep.mubr.f32.mxu0 %v239
      %2917 = vmatmul.mubr.f32.gmra.mrb[0].mxu0 %v238
      %v2918 = vpop.f32.mrb[0].mxu0
      %v2919 = vadd.f32 0.0, %v2918
      %v2920 = vpop.f32.mrb[0].mxu0
      %v2921 = vadd.f32 0.0, %v2920
      %2922 = vmatprep.mubr.f32.mxu0 %v241
      %2923 = vmatmul.mubr.f32.gmra.mrb[0].mxu0 %v240
      %v2924 = vpop.f32.mrb[0].mxu0
      %v2925 = vadd.f32 0.0, %v2924
      %v2926 = vpop.f32.mrb[0].mxu0
      %v2927 = vadd.f32 0.0, %v2926
      %2928 = vmatprep.mubr.f32.mxu0 %v243
      %2929 = vmatmul.mubr.f32.gmra.mrb[0].mxu0 %v242
      %v2930 = vpop.f32.mrb[0].mxu0
      %v2931 = vadd.f32 0.0, %v2930
      %v2932 = vpop.f32.mrb[0].mxu0
      %v2933 = vadd.f32 0.0, %v2932
      %2934 = vmatprep.mubr.f32.mxu0 %v245
      %2935 = vmatmul.mubr.f32.gmra.mrb[0].mxu0 %v244
      %v2936 = vpop.f32.mrb[0].mxu0
      %v2937 = vadd.f32 0.0, %v2936
      %v2938 = vpop.f32.mrb[0].mxu0
      %v2939 = vadd.f32 0.0, %v2938
      %2940 = vmatprep.mubr.f32.mxu0 %v247
      %2941 = vmatmul.mubr.f32.gmra.mrb[0].mxu0 %v246
      %v2942 = vpop.f32.mrb[0].mxu0
      %v2943 = vadd.f32 0.0, %v2942
      %v2944 = vpop.f32.mrb[0].mxu0
      %v2945 = vadd.f32 0.0, %v2944
      %2946 = vmatprep.mubr.f32.mxu0 %v249
      %2947 = vmatmul.mubr.f32.gmra.mrb[0].mxu0 %v248
      %v2948 = vpop.f32.mrb[0].mxu0
      %v2949 = vadd.f32 0.0, %v2948
      %v2950 = vpop.f32.mrb[0].mxu0
      %v2951 = vadd.f32 0.0, %v2950
      %2952 = vmatprep.mubr.f32.mxu0 %v251
      %2953 = vmatmul.mubr.f32.gmra.mrb[0].mxu0 %v250
      %v2954 = vpop.f32.mrb[0].mxu0
      %v2955 = vadd.f32 0.0, %v2954
      %v2956 = vpop.f32.mrb[0].mxu0
      %v2957 = vadd.f32 0.0, %v2956
      %2958 = vmatprep.mubr.f32.mxu0 %v253
      %2959 = vmatmul.mubr.f32.gmra.mrb[0].mxu0 %v252
      %v2960 = vpop.f32.mrb[0].mxu0
      %v2961 = vadd.f32 0.0, %v2960
      %v2962 = vpop.f32.mrb[0].mxu0
      %v2963 = vadd.f32 0.0, %v2962
      %2964 = vmatprep.mubr.f32.mxu0 %v255
      %2965 = vmatmul.mubr.f32.gmra.mrb[0].mxu0 %v254
      %v2966 = vpop.f32.mrb[0].mxu0
      %v2967 = vadd.f32 0.0, %v2966
      %v2968 = vpop.f32.mrb[0].mxu0
      %v2969 = vadd.f32 0.0, %v2968
      %2970 = vmatprep.mubr.f32.mxu0 %v257
      %2971 = vmatmul.mubr.f32.gmra.mrb[0].mxu0 %v256
      %v2972 = vpop.f32.mrb[0].mxu0
      %v2973 = vadd.f32 0.0, %v2972
      %v2974 = vpop.f32.mrb[0].mxu0
      %v2975 = vadd.f32 0.0, %v2974
      %2976 = vmatprep.mubr.f32.mxu0 %v259
      %2977 = vmatmul.mubr.f32.gmra.mrb[0].mxu0 %v258
      %v2978 = vpop.f32.mrb[0].mxu0
      %v2979 = vadd.f32 0.0, %v2978
      %v2980 = vpop.f32.mrb[0].mxu0
      %v2981 = vadd.f32 0.0, %v2980
      %2982 = vmatprep.mubr.f32.mxu0 %v261
      %2983 = vmatmul.mubr.f32.gmra.mrb[0].mxu0 %v260
      %v2984 = vpop.f32.mrb[0].mxu0
      %v2985 = vadd.f32 0.0, %v2984
      %v2986 = vpop.f32.mrb[0].mxu0
      %v2987 = vadd.f32 0.0, %v2986
      %2988 = vmatprep.mubr.f32.mxu0 %v263
      %2989 = vmatmul.mubr.f32.gmra.mrb[0].mxu0 %v262
      %v2990 = vpop.f32.mrb[0].mxu0
      %v2991 = vadd.f32 0.0, %v2990
      %v2992 = vpop.f32.mrb[0].mxu0
      %v2993 = vadd.f32 0.0, %v2992
      %2994 = vmatprep.mubr.f32.mxu0 %v265
      %2995 = vmatmul.mubr.f32.gmra.mrb[0].mxu0 %v264
      %v2996 = vpop.f32.mrb[0].mxu0
      %v2997 = vadd.f32 0.0, %v2996
      %v2998 = vpop.f32.mrb[0].mxu0
      %v2999 = vadd.f32 0.0, %v2998
      %3000 = vmatprep.mubr.f32.mxu0 %v267
      %3001 = vmatmul.mubr.f32.gmra.mrb[0].mxu0 %v266
      %v3002 = vpop.f32.mrb[0].mxu0
      %v3003 = vadd.f32 0.0, %v3002
      %v3004 = vpop.f32.mrb[0].mxu0
      %v3005 = vadd.f32 0.0, %v3004
      %3006 = vmatprep.mubr.f32.mxu0 %v269
      %3007 = vmatmul.mubr.f32.gmra.mrb[0].mxu0 %v268
      %v3008 = vpop.f32.mrb[0].mxu0
      %v3009 = vadd.f32 0.0, %v3008
      %v3010 = vpop.f32.mrb[0].mxu0
      %v3011 = vadd.f32 0.0, %v3010
      %3012 = vmatprep.mubr.f32.mxu0 %v271
      %3013 = vmatmul.mubr.f32.gmra.mrb[0].mxu0 %v270
      %v3014 = vpop.f32.mrb[0].mxu0
      %v3015 = vadd.f32 0.0, %v3014
      %v3016 = vpop.f32.mrb[0].mxu0
      %v3017 = vadd.f32 0.0, %v3016
      %3018 = vmatprep.mubr.f32.mxu0 %v273
      %3019 = vmatmul.mubr.f32.gmra.mrb[0].mxu0 %v272
      %v3020 = vpop.f32.mrb[0].mxu0
      %v3021 = vadd.f32 0.0, %v3020
      %v3022 = vpop.f32.mrb[0].mxu0
      %v3023 = vadd.f32 0.0, %v3022
      %3024 = vmatprep.mubr.f32.mxu0 %v275
      %3025 = vmatmul.mubr.f32.gmra.mrb[0].mxu0 %v274
      %v3026 = vpop.f32.mrb[0].mxu0
      %v3027 = vadd.f32 0.0, %v3026
      %v3028 = vpop.f32.mrb[0].mxu0
      %v3029 = vadd.f32 0.0, %v3028
      %3030 = vmatprep.mubr.f32.mxu0 %v277
      %3031 = vmatmul.mubr.f32.gmra.mrb[0].mxu0 %v276
      %v3032 = vpop.f32.mrb[0].mxu0
      %v3033 = vadd.f32 0.0, %v3032
      %v3034 = vpop.f32.mrb[0].mxu0
      %v3035 = vadd.f32 0.0, %v3034
      %3036 = vmatprep.mubr.f32.mxu0 %v279
      %3037 = vmatmul.mubr.f32.gmra.mrb[0].mxu0 %v278
      %v3038 = vpop.f32.mrb[0].mxu0
      %v3039 = vadd.f32 0.0, %v3038
      %v3040 = vpop.f32.mrb[0].mxu0
      %v3041 = vadd.f32 0.0, %v3040
      %3042 = vmatprep.mubr.f32.mxu0 %v281
      %3043 = vmatmul.mubr.f32.gmra.mrb[0].mxu0 %v280
      %v3044 = vpop.f32.mrb[0].mxu0
      %v3045 = vadd.f32 0.0, %v3044
      %v3046 = vpop.f32.mrb[0].mxu0
      %v3047 = vadd.f32 0.0, %v3046
      %3048 = vdwg.mxu0
      %v3109 = vrot.slane %v2871, 1
      %v3110 = vrot.slane %v2877, 1
      %v3111 = vsel %vm1053, %v3109, %v3110
      %v3112 = vrot.slane %v2873, 1
      %v3113 = vrot.slane %v2879, 1
      %v3114 = vsel %vm1053, %v3112, %v3113
      %v3115 = vrot.slane %v2883, 1
      %v3116 = vsel %vm1053, %v3110, %v3115
      %v3117 = vrot.slane %v2885, 1
      %v3118 = vsel %vm1053, %v3113, %v3117
      %v3119 = vrot.slane %v2889, 1
      %v3120 = vsel %vm1053, %v3115, %v3119
      %v3121 = vrot.slane %v2891, 1
      %v3122 = vsel %vm1053, %v3117, %v3121
      %v3123 = vrot.slane %v2895, 1
      %v3124 = vsel %vm1053, %v3119, %v3123
      %v3125 = vrot.slane %v2897, 1
      %v3126 = vsel %vm1053, %v3121, %v3125
      %v3127 = vrot.slane %v2901, 1
      %v3128 = vsel %vm1053, %v3123, %v3127
      %v3129 = vrot.slane %v2903, 1
      %v3130 = vsel %vm1053, %v3125, %v3129
      %v3131 = vrot.slane %v2907, 1
      %v3132 = vsel %vm1053, %v3127, %v3131
      %v3133 = vrot.slane %v2909, 1
      %v3134 = vsel %vm1053, %v3129, %v3133
      %v3135 = vrot.slane %v2913, 1
      %v3136 = vsel %vm1053, %v3131, %v3135
      %v3137 = vrot.slane %v2915, 1
      %v3138 = vsel %vm1053, %v3133, %v3137
      %v3139 = vrot.slane %v2919, 1
      %v3140 = vsel %vm1053, %v3135, %v3139
      %v3141 = vrot.slane %v2921, 1
      %v3142 = vsel %vm1053, %v3137, %v3141
      %v3143 = vrot.slane %v2925, 1
      %v3144 = vsel %vm1053, %v3139, %v3143
      %v3145 = vrot.slane %v2927, 1
      %v3146 = vsel %vm1053, %v3141, %v3145
      %v3147 = vrot.slane %v2931, 1
      %v3148 = vsel %vm1053, %v3143, %v3147
      %v3149 = vrot.slane %v2933, 1
      %v3150 = vsel %vm1053, %v3145, %v3149
      %v3151 = vrot.slane %v2937, 1
      %v3152 = vsel %vm1053, %v3147, %v3151
      %v3153 = vrot.slane %v2939, 1
      %v3154 = vsel %vm1053, %v3149, %v3153
      %v3155 = vrot.slane %v2943, 1
      %v3156 = vsel %vm1053, %v3151, %v3155
      %v3157 = vrot.slane %v2945, 1
      %v3158 = vsel %vm1053, %v3153, %v3157
      %v3159 = vrot.slane %v2949, 1
      %v3160 = vsel %vm1053, %v3155, %v3159
      %v3161 = vrot.slane %v2951, 1
      %v3162 = vsel %vm1053, %v3157, %v3161
      %v3163 = vrot.slane %v2955, 1
      %v3164 = vsel %vm1053, %v3159, %v3163
      %v3165 = vrot.slane %v2957, 1
      %v3166 = vsel %vm1053, %v3161, %v3165
      %v3167 = vrot.slane %v2961, 1
      %v3168 = vsel %vm1053, %v3163, %v3167
      %v3169 = vrot.slane %v2963, 1
      %v3170 = vsel %vm1053, %v3165, %v3169
      %v3171 = vrot.slane %v2967, 1
      %v3172 = vsel %vm1053, %v3167, %v3171
      %v3173 = vrot.slane %v2969, 1
      %v3174 = vsel %vm1053, %v3169, %v3173
      %v3175 = vrot.slane %v2973, 1
      %v3176 = vsel %vm1053, %v3171, %v3175
      %v3177 = vrot.slane %v2975, 1
      %v3178 = vsel %vm1053, %v3173, %v3177
      %v3179 = vrot.slane %v2979, 1
      %v3180 = vsel %vm1053, %v3175, %v3179
      %v3181 = vrot.slane %v2981, 1
      %v3182 = vsel %vm1053, %v3177, %v3181
      %v3183 = vrot.slane %v2985, 1
      %v3184 = vsel %vm1053, %v3179, %v3183
      %v3185 = vrot.slane %v2987, 1
      %v3186 = vsel %vm1053, %v3181, %v3185
      %v3187 = vrot.slane %v2991, 1
      %v3188 = vsel %vm1053, %v3183, %v3187
      %v3189 = vrot.slane %v2993, 1
      %v3190 = vsel %vm1053, %v3185, %v3189
      %v3191 = vrot.slane %v2997, 1
      %v3192 = vsel %vm1053, %v3187, %v3191
      %v3193 = vrot.slane %v2999, 1
      %v3194 = vsel %vm1053, %v3189, %v3193
      %v3195 = vrot.slane %v3003, 1
      %v3196 = vsel %vm1053, %v3191, %v3195
      %v3197 = vrot.slane %v3005, 1
      %v3198 = vsel %vm1053, %v3193, %v3197
      %v3199 = vrot.slane %v3009, 1
      %v3200 = vsel %vm1053, %v3195, %v3199
      %v3201 = vrot.slane %v3011, 1
      %v3202 = vsel %vm1053, %v3197, %v3201
      %v3203 = vrot.slane %v3015, 1
      %v3204 = vsel %vm1053, %v3199, %v3203
      %v3205 = vrot.slane %v3017, 1
      %v3206 = vsel %vm1053, %v3201, %v3205
      %v3207 = vrot.slane %v3021, 1
      %v3208 = vsel %vm1053, %v3203, %v3207
      %v3209 = vrot.slane %v3023, 1
      %v3210 = vsel %vm1053, %v3205, %v3209
      %v3211 = vrot.slane %v3027, 1
      %v3212 = vsel %vm1053, %v3207, %v3211
      %v3213 = vrot.slane %v3029, 1
      %v3214 = vsel %vm1053, %v3209, %v3213
      %v3215 = vrot.slane %v3033, 1
      %v3216 = vsel %vm1053, %v3211, %v3215
      %v3217 = vrot.slane %v3035, 1
      %v3218 = vsel %vm1053, %v3213, %v3217
      %v3219 = vrot.slane %v3039, 1
      %v3220 = vsel %vm1053, %v3215, %v3219
      %v3221 = vrot.slane %v3041, 1
      %v3222 = vsel %vm1053, %v3217, %v3221
      %v3223 = vrot.slane %v3045, 1
      %v3224 = vsel %vm1053, %v3219, %v3223
      %v3225 = vrot.slane %v3047, 1
      %v3226 = vsel %vm1053, %v3221, %v3225
      %v3291 = vrot.slane %v2859, 1
      %v3292 = vrot.slane %v2861, 1
      %v3293 = vrot.slane %v2865, 1
      %v3294 = vsel %vm1053, %v3291, %v3293
      %v3295 = vrot.slane %v2867, 1
      %v3296 = vsel %vm1053, %v3292, %v3295
      %v3297 = vsel %vm1053, %v3293, %v3109
      %v3298 = vsel %vm1053, %v3295, %v3112
      %v3305 = vsel %vm1053, %v3223, %v3291
      %v3306 = vsel %vm1053, %v3225, %v3292
      %v3307 = vld [vmem:[#allocation2] sm:$0xff]
      %v3308 = vld [vmem:[#allocation2 + $0x8] sm:$0xff]
      %v3309 = vld [vmem:[#allocation2 + $0x10] sm:$0xff]
      %v3310 = vld [vmem:[#allocation2 + $0x18] sm:$0xff]
      %v3311 = vld [vmem:[#allocation2 + $0x20] sm:$0xff]
      %v3312 = vld [vmem:[#allocation2 + $0x28] sm:$0xff]
      %v3313 = vld [vmem:[#allocation2 + $0x30] sm:$0xff]
      %v3314 = vld [vmem:[#allocation2 + $0x38] sm:$0xff]
      %v3315 = vld [vmem:[#allocation2 + $0x40] sm:$0xff]
      %v3316 = vld [vmem:[#allocation2 + $0x48] sm:$0xff]
      %v3317 = vld [vmem:[#allocation2 + $0x50] sm:$0xff]
      %v3318 = vld [vmem:[#allocation2 + $0x58] sm:$0xff]
      %v3319 = vld [vmem:[#allocation2 + $0x60] sm:$0xff]
      %v3320 = vld [vmem:[#allocation2 + $0x68] sm:$0xff]
      %v3321 = vld [vmem:[#allocation2 + $0x70] sm:$0xff]
      %v3322 = vld [vmem:[#allocation2 + $0x78] sm:$0xff]
      %v3323 = vld [vmem:[#allocation2 + $0x80] sm:$0xff]
      %v3324 = vld [vmem:[#allocation2 + $0x88] sm:$0xff]
      %v3325 = vld [vmem:[#allocation2 + $0x90] sm:$0xff]
      %v3326 = vld [vmem:[#allocation2 + $0x98] sm:$0xff]
      %v3327 = vld [vmem:[#allocation2 + $0xa0] sm:$0xff]
      %v3328 = vld [vmem:[#allocation2 + $0xa8] sm:$0xff]
      %v3329 = vld [vmem:[#allocation2 + $0xb0] sm:$0xff]
      %v3330 = vld [vmem:[#allocation2 + $0xb8] sm:$0xff]
      %v3331 = vld [vmem:[#allocation2 + $0xc0] sm:$0xff]
      %v3332 = vld [vmem:[#allocation2 + $0xc8] sm:$0xff]
      %v3333 = vld [vmem:[#allocation2 + $0xd0] sm:$0xff]
      %v3334 = vld [vmem:[#allocation2 + $0xd8] sm:$0xff]
      %v3335 = vld [vmem:[#allocation2 + $0xe0] sm:$0xff]
      %v3336 = vld [vmem:[#allocation2 + $0xe8] sm:$0xff]
      %v3337 = vld [vmem:[#allocation2 + $0xf0] sm:$0xff]
      %v3338 = vld [vmem:[#allocation2 + $0xf8] sm:$0xff]
      %v3339 = vld [vmem:[#allocation2 + $0x100] sm:$0xff]
      %v3340 = vld [vmem:[#allocation2 + $0x108] sm:$0xff]
      %v3341 = vld [vmem:[#allocation2 + $0x110] sm:$0xff]
      %v3342 = vld [vmem:[#allocation2 + $0x118] sm:$0xff]
      %v3343 = vld [vmem:[#allocation2 + $0x120] sm:$0xff]
      %v3344 = vld [vmem:[#allocation2 + $0x128] sm:$0xff]
      %v3345 = vld [vmem:[#allocation2 + $0x130] sm:$0xff]
      %v3346 = vld [vmem:[#allocation2 + $0x138] sm:$0xff]
      %v3347 = vld [vmem:[#allocation2 + $0x140] sm:$0xff]
      %v3348 = vld [vmem:[#allocation2 + $0x148] sm:$0xff]
      %v3349 = vld [vmem:[#allocation2 + $0x150] sm:$0xff]
      %v3350 = vld [vmem:[#allocation2 + $0x158] sm:$0xff]
      %v3351 = vld [vmem:[#allocation2 + $0x160] sm:$0xff]
      %v3352 = vld [vmem:[#allocation2 + $0x168] sm:$0xff]
      %v3353 = vld [vmem:[#allocation2 + $0x170] sm:$0xff]
      %v3354 = vld [vmem:[#allocation2 + $0x178] sm:$0xff]
      %v3355 = vld [vmem:[#allocation2 + $0x180] sm:$0xff]
      %v3356 = vld [vmem:[#allocation2 + $0x188] sm:$0xff]
      %v3357 = vld [vmem:[#allocation2 + $0x190] sm:$0xff]
      %v3358 = vld [vmem:[#allocation2 + $0x198] sm:$0xff]
      %v3359 = vld [vmem:[#allocation2 + $0x1a0] sm:$0xff]
      %v3360 = vld [vmem:[#allocation2 + $0x1a8] sm:$0xff]
      %v3361 = vld [vmem:[#allocation2 + $0x1b0] sm:$0xff]
      %v3362 = vld [vmem:[#allocation2 + $0x1b8] sm:$0xff]
      %v3363 = vld [vmem:[#allocation2 + $0x1c0] sm:$0xff]
      %v3364 = vld [vmem:[#allocation2 + $0x1c8] sm:$0xff]
      %v3365 = vld [vmem:[#allocation2 + $0x1d0] sm:$0xff]
      %v3366 = vld [vmem:[#allocation2 + $0x1d8] sm:$0xff]
      %v3367 = vld [vmem:[#allocation2 + $0x1e0] sm:$0xff]
      %v3368 = vld [vmem:[#allocation2 + $0x1e8] sm:$0xff]
      %v3369 = vld [vmem:[#allocation2 + $0x1f0] sm:$0xff]
      %v3370 = vld [vmem:[#allocation2 + $0x1f8] sm:$0xff]
      %v3371 = vadd.f32 %v3307, %v3111
      %v3372 = vadd.f32 %v3308, %v3114
      %v3373 = vadd.f32 %v3309, %v3116
      %v3374 = vadd.f32 %v3310, %v3118
      %v3375 = vadd.f32 %v3311, %v3120
      %v3376 = vadd.f32 %v3312, %v3122
      %v3377 = vadd.f32 %v3313, %v3124
      %v3378 = vadd.f32 %v3314, %v3126
      %v3379 = vadd.f32 %v3315, %v3128
      %v3380 = vadd.f32 %v3316, %v3130
      %v3381 = vadd.f32 %v3317, %v3132
      %v3382 = vadd.f32 %v3318, %v3134
      %v3383 = vadd.f32 %v3319, %v3136
      %v3384 = vadd.f32 %v3320, %v3138
      %v3385 = vadd.f32 %v3321, %v3140
      %v3386 = vadd.f32 %v3322, %v3142
      %v3387 = vadd.f32 %v3323, %v3144
      %v3388 = vadd.f32 %v3324, %v3146
      %v3389 = vadd.f32 %v3325, %v3148
      %v3390 = vadd.f32 %v3326, %v3150
      %v3391 = vadd.f32 %v3327, %v3152
      %v3392 = vadd.f32 %v3328, %v3154
      %v3393 = vadd.f32 %v3329, %v3156
      %v3394 = vadd.f32 %v3330, %v3158
      %v3395 = vadd.f32 %v3331, %v3160
      %v3396 = vadd.f32 %v3332, %v3162
      %v3397 = vadd.f32 %v3333, %v3164
      %v3398 = vadd.f32 %v3334, %v3166
      %v3399 = vadd.f32 %v3335, %v3168
      %v3400 = vadd.f32 %v3336, %v3170
      %v3401 = vadd.f32 %v3337, %v3172
      %v3402 = vadd.f32 %v3338, %v3174
      %v3403 = vadd.f32 %v3339, %v3176
      %v3404 = vadd.f32 %v3340, %v3178
      %v3405 = vadd.f32 %v3341, %v3180
      %v3406 = vadd.f32 %v3342, %v3182
      %v3407 = vadd.f32 %v3343, %v3184
      %v3408 = vadd.f32 %v3344, %v3186
      %v3409 = vadd.f32 %v3345, %v3188
      %v3410 = vadd.f32 %v3346, %v3190
      %v3411 = vadd.f32 %v3347, %v3192
      %v3412 = vadd.f32 %v3348, %v3194
      %v3413 = vadd.f32 %v3349, %v3196
      %v3414 = vadd.f32 %v3350, %v3198
      %v3415 = vadd.f32 %v3351, %v3200
      %v3416 = vadd.f32 %v3352, %v3202
      %v3417 = vadd.f32 %v3353, %v3204
      %v3418 = vadd.f32 %v3354, %v3206
      %v3419 = vadd.f32 %v3355, %v3208
      %v3420 = vadd.f32 %v3356, %v3210
      %v3421 = vadd.f32 %v3357, %v3212
      %v3422 = vadd.f32 %v3358, %v3214
      %v3423 = vadd.f32 %v3359, %v3216
      %v3424 = vadd.f32 %v3360, %v3218
      %v3425 = vadd.f32 %v3361, %v3220
      %v3426 = vadd.f32 %v3362, %v3222
      %v3427 = vadd.f32 %v3363, %v3224
      %v3428 = vadd.f32 %v3364, %v3226
      %v3429 = vadd.f32 %v3365, %v3305
      %v3430 = vadd.f32 %v3366, %v3306
      %v3431 = vadd.f32 %v3367, %v3294
      %v3432 = vadd.f32 %v3368, %v3296
      %v3433 = vadd.f32 %v3369, %v3297
      %v3434 = vadd.f32 %v3370, %v3298
      %3435 = vst [vmem:[#allocation2] sm:$0xff] %v3371
      %3436 = vst [vmem:[#allocation2 + $0x8] sm:$0xff] %v3372
      %3437 = vst [vmem:[#allocation2 + $0x10] sm:$0xff] %v3373
      %3438 = vst [vmem:[#allocation2 + $0x18] sm:$0xff] %v3374
      %3439 = vst [vmem:[#allocation2 + $0x20] sm:$0xff] %v3375
      %3440 = vst [vmem:[#allocation2 + $0x28] sm:$0xff] %v3376
      %3441 = vst [vmem:[#allocation2 + $0x30] sm:$0xff] %v3377
      %3442 = vst [vmem:[#allocation2 + $0x38] sm:$0xff] %v3378
      %3443 = vst [vmem:[#allocation2 + $0x40] sm:$0xff] %v3379
      %3444 = vst [vmem:[#allocation2 + $0x48] sm:$0xff] %v3380
      %3445 = vst [vmem:[#allocation2 + $0x50] sm:$0xff] %v3381
      %3446 = vst [vmem:[#allocation2 + $0x58] sm:$0xff] %v3382
      %3447 = vst [vmem:[#allocation2 + $0x60] sm:$0xff] %v3383
      %3448 = vst [vmem:[#allocation2 + $0x68] sm:$0xff] %v3384
      %3449 = vst [vmem:[#allocation2 + $0x70] sm:$0xff] %v3385
      %3450 = vst [vmem:[#allocation2 + $0x78] sm:$0xff] %v3386
      %3451 = vst [vmem:[#allocation2 + $0x80] sm:$0xff] %v3387
      %3452 = vst [vmem:[#allocation2 + $0x88] sm:$0xff] %v3388
      %3453 = vst [vmem:[#allocation2 + $0x90] sm:$0xff] %v3389
      %3454 = vst [vmem:[#allocation2 + $0x98] sm:$0xff] %v3390
      %3455 = vst [vmem:[#allocation2 + $0xa0] sm:$0xff] %v3391
      %3456 = vst [vmem:[#allocation2 + $0xa8] sm:$0xff] %v3392
      %3457 = vst [vmem:[#allocation2 + $0xb0] sm:$0xff] %v3393
      %3458 = vst [vmem:[#allocation2 + $0xb8] sm:$0xff] %v3394
      %3459 = vst [vmem:[#allocation2 + $0xc0] sm:$0xff] %v3395
      %3460 = vst [vmem:[#allocation2 + $0xc8] sm:$0xff] %v3396
      %3461 = vst [vmem:[#allocation2 + $0xd0] sm:$0xff] %v3397
      %3462 = vst [vmem:[#allocation2 + $0xd8] sm:$0xff] %v3398
      %3463 = vst [vmem:[#allocation2 + $0xe0] sm:$0xff] %v3399
      %3464 = vst [vmem:[#allocation2 + $0xe8] sm:$0xff] %v3400
      %3465 = vst [vmem:[#allocation2 + $0xf0] sm:$0xff] %v3401
      %3466 = vst [vmem:[#allocation2 + $0xf8] sm:$0xff] %v3402
      %3467 = vst [vmem:[#allocation2 + $0x100] sm:$0xff] %v3403
      %3468 = vst [vmem:[#allocation2 + $0x108] sm:$0xff] %v3404
      %3469 = vst [vmem:[#allocation2 + $0x110] sm:$0xff] %v3405
      %3470 = vst [vmem:[#allocation2 + $0x118] sm:$0xff] %v3406
      %3471 = vst [vmem:[#allocation2 + $0x120] sm:$0xff] %v3407
      %3472 = vst [vmem:[#allocation2 + $0x128] sm:$0xff] %v3408
      %3473 = vst [vmem:[#allocation2 + $0x130] sm:$0xff] %v3409
      %3474 = vst [vmem:[#allocation2 + $0x138] sm:$0xff] %v3410
      %3475 = vst [vmem:[#allocation2 + $0x140] sm:$0xff] %v3411
      %3476 = vst [vmem:[#allocation2 + $0x148] sm:$0xff] %v3412
      %3477 = vst [vmem:[#allocation2 + $0x150] sm:$0xff] %v3413
      %3478 = vst [vmem:[#allocation2 + $0x158] sm:$0xff] %v3414
      %3479 = vst [vmem:[#allocation2 + $0x160] sm:$0xff] %v3415
      %3480 = vst [vmem:[#allocation2 + $0x168] sm:$0xff] %v3416
      %3481 = vst [vmem:[#allocation2 + $0x170] sm:$0xff] %v3417
      %3482 = vst [vmem:[#allocation2 + $0x178] sm:$0xff] %v3418
      %3483 = vst [vmem:[#allocation2 + $0x180] sm:$0xff] %v3419
      %3484 = vst [vmem:[#allocation2 + $0x188] sm:$0xff] %v3420
      %3485 = vst [vmem:[#allocation2 + $0x190] sm:$0xff] %v3421
      %3486 = vst [vmem:[#allocation2 + $0x198] sm:$0xff] %v3422
      %3487 = vst [vmem:[#allocation2 + $0x1a0] sm:$0xff] %v3423
      %3488 = vst [vmem:[#allocation2 + $0x1a8] sm:$0xff] %v3424
      %3489 = vst [vmem:[#allocation2 + $0x1b0] sm:$0xff] %v3425
      %3490 = vst [vmem:[#allocation2 + $0x1b8] sm:$0xff] %v3426
      %3491 = vst [vmem:[#allocation2 + $0x1c0] sm:$0xff] %v3427
      %3492 = vst [vmem:[#allocation2 + $0x1c8] sm:$0xff] %v3428
      %3493 = vst [vmem:[#allocation2 + $0x1d0] sm:$0xff] %v3429
      %3494 = vst [vmem:[#allocation2 + $0x1d8] sm:$0xff] %v3430
      %3495 = vst [vmem:[#allocation2 + $0x1e0] sm:$0xff] %v3431
      %3496 = vst [vmem:[#allocation2 + $0x1e8] sm:$0xff] %v3432
      %3497 = vst [vmem:[#allocation2 + $0x1f0] sm:$0xff] %v3433
      %3498 = vst [vmem:[#allocation2 + $0x1f8] sm:$0xff] %v3434
      %s3499 = scalar_lea.vmem %s1, 2560
      %v3500 = vld [vmem:[%s3499] sm:$0xff]
      %v3501 = vld [vmem:[%s3499 + $0x8] sm:$0xff]
      %v3502 = vld [vmem:[%s3499 + $0x10] sm:$0xff]
      %v3503 = vld [vmem:[%s3499 + $0x18] sm:$0xff]
      %v3504 = vld [vmem:[%s3499 + $0x20] sm:$0xff]
      %v3505 = vld [vmem:[%s3499 + $0x28] sm:$0xff]
      %v3506 = vld [vmem:[%s3499 + $0x30] sm:$0xff]
      %v3507 = vld [vmem:[%s3499 + $0x38] sm:$0xff]
      %v3508 = vld [vmem:[%s3499 + $0x40] sm:$0xff]
      %v3509 = vld [vmem:[%s3499 + $0x48] sm:$0xff]
      %v3510 = vld [vmem:[%s3499 + $0x50] sm:$0xff]
      %v3511 = vld [vmem:[%s3499 + $0x58] sm:$0xff]
      %v3512 = vld [vmem:[%s3499 + $0x60] sm:$0xff]
      %v3513 = vld [vmem:[%s3499 + $0x68] sm:$0xff]
      %v3514 = vld [vmem:[%s3499 + $0x70] sm:$0xff]
      %v3515 = vld [vmem:[%s3499 + $0x78] sm:$0xff]
      %v3516 = vld [vmem:[%s3499 + $0x80] sm:$0xff]
      %v3517 = vld [vmem:[%s3499 + $0x88] sm:$0xff]
      %v3518 = vld [vmem:[%s3499 + $0x90] sm:$0xff]
      %v3519 = vld [vmem:[%s3499 + $0x98] sm:$0xff]
      %v3520 = vld [vmem:[%s3499 + $0xa0] sm:$0xff]
      %v3521 = vld [vmem:[%s3499 + $0xa8] sm:$0xff]
      %v3522 = vld [vmem:[%s3499 + $0xb0] sm:$0xff]
      %v3523 = vld [vmem:[%s3499 + $0xb8] sm:$0xff]
      %v3524 = vld [vmem:[%s3499 + $0xc0] sm:$0xff]
      %v3525 = vld [vmem:[%s3499 + $0xc8] sm:$0xff]
      %v3526 = vld [vmem:[%s3499 + $0xd0] sm:$0xff]
      %v3527 = vld [vmem:[%s3499 + $0xd8] sm:$0xff]
      %v3528 = vld [vmem:[%s3499 + $0xe0] sm:$0xff]
      %v3529 = vld [vmem:[%s3499 + $0xe8] sm:$0xff]
      %v3530 = vld [vmem:[%s3499 + $0xf0] sm:$0xff]
      %v3531 = vld [vmem:[%s3499 + $0xf8] sm:$0xff]
      %v3532 = vld [vmem:[%s3499 + $0x100] sm:$0xff]
      %v3533 = vld [vmem:[%s3499 + $0x108] sm:$0xff]
      %v3534 = vld [vmem:[%s3499 + $0x110] sm:$0xff]
      %v3535 = vld [vmem:[%s3499 + $0x118] sm:$0xff]
      %v3536 = vld [vmem:[%s3499 + $0x120] sm:$0xff]
      %v3537 = vld [vmem:[%s3499 + $0x128] sm:$0xff]
      %v3538 = vld [vmem:[%s3499 + $0x130] sm:$0xff]
      %v3539 = vld [vmem:[%s3499 + $0x138] sm:$0xff]
      %v3540 = vld [vmem:[%s3499 + $0x140] sm:$0xff]
      %v3541 = vld [vmem:[%s3499 + $0x148] sm:$0xff]
      %v3542 = vld [vmem:[%s3499 + $0x150] sm:$0xff]
      %v3543 = vld [vmem:[%s3499 + $0x158] sm:$0xff]
      %v3544 = vld [vmem:[%s3499 + $0x160] sm:$0xff]
      %v3545 = vld [vmem:[%s3499 + $0x168] sm:$0xff]
      %v3546 = vld [vmem:[%s3499 + $0x170] sm:$0xff]
      %v3547 = vld [vmem:[%s3499 + $0x178] sm:$0xff]
      %v3548 = vld [vmem:[%s3499 + $0x180] sm:$0xff]
      %v3549 = vld [vmem:[%s3499 + $0x188] sm:$0xff]
      %v3550 = vld [vmem:[%s3499 + $0x190] sm:$0xff]
      %v3551 = vld [vmem:[%s3499 + $0x198] sm:$0xff]
      %v3552 = vld [vmem:[%s3499 + $0x1a0] sm:$0xff]
      %v3553 = vld [vmem:[%s3499 + $0x1a8] sm:$0xff]
      %v3554 = vld [vmem:[%s3499 + $0x1b0] sm:$0xff]
      %v3555 = vld [vmem:[%s3499 + $0x1b8] sm:$0xff]
      %v3556 = vld [vmem:[%s3499 + $0x1c0] sm:$0xff]
      %v3557 = vld [vmem:[%s3499 + $0x1c8] sm:$0xff]
      %v3558 = vld [vmem:[%s3499 + $0x1d0] sm:$0xff]
      %v3559 = vld [vmem:[%s3499 + $0x1d8] sm:$0xff]
      %v3560 = vld [vmem:[%s3499 + $0x1e0] sm:$0xff]
      %v3561 = vld [vmem:[%s3499 + $0x1e8] sm:$0xff]
      %v3562 = vld [vmem:[%s3499 + $0x1f0] sm:$0xff]
      %v3563 = vld [vmem:[%s3499 + $0x1f8] sm:$0xff]
      %3564 = vmatprep.subr.mxu0 %v3501
      %3565 = vmatpush1.msra.mxu0 %v3500
      %3566 = vmatprep.subr.mxu0 %v3503
      %3567 = vmatpush1.msra.mxu0 %v3502
      %3568 = vmatprep.subr.mxu0 %v3505
      %3569 = vmatpush1.msra.mxu0 %v3504
      %3570 = vmatprep.subr.mxu0 %v3507
      %3571 = vmatpush1.msra.mxu0 %v3506
      %3572 = vmatprep.subr.mxu0 %v3509
      %3573 = vmatpush1.msra.mxu0 %v3508
      %3574 = vmatprep.subr.mxu0 %v3511
      %3575 = vmatpush1.msra.mxu0 %v3510
      %3576 = vmatprep.subr.mxu0 %v3513
      %3577 = vmatpush1.msra.mxu0 %v3512
      %3578 = vmatprep.subr.mxu0 %v3515
      %3579 = vmatpush1.msra.mxu0 %v3514
      %3580 = vmatprep.subr.mxu0 %v3517
      %3581 = vmatpush1.msra.mxu0 %v3516
      %3582 = vmatprep.subr.mxu0 %v3519
      %3583 = vmatpush1.msra.mxu0 %v3518
      %3584 = vmatprep.subr.mxu0 %v3521
      %3585 = vmatpush1.msra.mxu0 %v3520
      %3586 = vmatprep.subr.mxu0 %v3523
      %3587 = vmatpush1.msra.mxu0 %v3522
      %3588 = vmatprep.subr.mxu0 %v3525
      %3589 = vmatpush1.msra.mxu0 %v3524
      %3590 = vmatprep.subr.mxu0 %v3527
      %3591 = vmatpush1.msra.mxu0 %v3526
      %3592 = vmatprep.subr.mxu0 %v3529
      %3593 = vmatpush1.msra.mxu0 %v3528
      %3594 = vmatprep.subr.mxu0 %v3531
      %3595 = vmatpush1.msra.mxu0 %v3530
      %3596 = vmatprep.subr.mxu0 %v3533
      %3597 = vmatpush1.msra.mxu0 %v3532
      %3598 = vmatprep.subr.mxu0 %v3535
      %3599 = vmatpush1.msra.mxu0 %v3534
      %3600 = vmatprep.subr.mxu0 %v3537
      %3601 = vmatpush1.msra.mxu0 %v3536
      %3602 = vmatprep.subr.mxu0 %v3539
      %3603 = vmatpush1.msra.mxu0 %v3538
      %3604 = vmatprep.subr.mxu0 %v3541
      %3605 = vmatpush1.msra.mxu0 %v3540
      %3606 = vmatprep.subr.mxu0 %v3543
      %3607 = vmatpush1.msra.mxu0 %v3542
      %3608 = vmatprep.subr.mxu0 %v3545
      %3609 = vmatpush1.msra.mxu0 %v3544
      %3610 = vmatprep.subr.mxu0 %v3547
      %3611 = vmatpush1.msra.mxu0 %v3546
      %3612 = vmatprep.subr.mxu0 %v3549
      %3613 = vmatpush1.msra.mxu0 %v3548
      %3614 = vmatprep.subr.mxu0 %v3551
      %3615 = vmatpush1.msra.mxu0 %v3550
      %3616 = vmatprep.subr.mxu0 %v3553
      %3617 = vmatpush1.msra.mxu0 %v3552
      %3618 = vmatprep.subr.mxu0 %v3555
      %3619 = vmatpush1.msra.mxu0 %v3554
      %3620 = vmatprep.subr.mxu0 %v3557
      %3621 = vmatpush1.msra.mxu0 %v3556
      %3622 = vmatprep.subr.mxu0 %v3559
      %3623 = vmatpush1.msra.mxu0 %v3558
      %3624 = vmatprep.subr.mxu0 %v3561
      %3625 = vmatpush1.msra.mxu0 %v3560
      %3626 = vmatprep.subr.mxu0 %v3563
      %3627 = vmatpush1.msra.mxu0 %v3562
      %3628 = vmatprep.mubr.f32.mxu0 %v219
      %3629 = vmatmul.mubr.f32.gmra.mrb[0].mxu0 %v218
      %v3630 = vpop.f32.mrb[0].mxu0
      %v3631 = vadd.f32 0.0, %v3630
      %v3632 = vpop.f32.mrb[0].mxu0
      %v3633 = vadd.f32 0.0, %v3632
      %3634 = vmatprep.mubr.f32.mxu0 %v221
      %3635 = vmatmul.mubr.f32.gmra.mrb[0].mxu0 %v220
      %v3636 = vpop.f32.mrb[0].mxu0
      %v3637 = vadd.f32 0.0, %v3636
      %v3638 = vpop.f32.mrb[0].mxu0
      %v3639 = vadd.f32 0.0, %v3638
      %3640 = vmatprep.mubr.f32.mxu0 %v223
      %3641 = vmatmul.mubr.f32.gmra.mrb[0].mxu0 %v222
      %v3642 = vpop.f32.mrb[0].mxu0
      %v3643 = vadd.f32 0.0, %v3642
      %v3644 = vpop.f32.mrb[0].mxu0
      %v3645 = vadd.f32 0.0, %v3644
      %3646 = vmatprep.mubr.f32.mxu0 %v225
      %3647 = vmatmul.mubr.f32.gmra.mrb[0].mxu0 %v224
      %v3648 = vpop.f32.mrb[0].mxu0
      %v3649 = vadd.f32 0.0, %v3648
      %v3650 = vpop.f32.mrb[0].mxu0
      %v3651 = vadd.f32 0.0, %v3650
      %3652 = vmatprep.mubr.f32.mxu0 %v227
      %3653 = vmatmul.mubr.f32.gmra.mrb[0].mxu0 %v226
      %v3654 = vpop.f32.mrb[0].mxu0
      %v3655 = vadd.f32 0.0, %v3654
      %v3656 = vpop.f32.mrb[0].mxu0
      %v3657 = vadd.f32 0.0, %v3656
      %3658 = vmatprep.mubr.f32.mxu0 %v229
      %3659 = vmatmul.mubr.f32.gmra.mrb[0].mxu0 %v228
      %v3660 = vpop.f32.mrb[0].mxu0
      %v3661 = vadd.f32 0.0, %v3660
      %v3662 = vpop.f32.mrb[0].mxu0
      %v3663 = vadd.f32 0.0, %v3662
      %3664 = vmatprep.mubr.f32.mxu0 %v231
      %3665 = vmatmul.mubr.f32.gmra.mrb[0].mxu0 %v230
      %v3666 = vpop.f32.mrb[0].mxu0
      %v3667 = vadd.f32 0.0, %v3666
      %v3668 = vpop.f32.mrb[0].mxu0
      %v3669 = vadd.f32 0.0, %v3668
      %3670 = vmatprep.mubr.f32.mxu0 %v233
      %3671 = vmatmul.mubr.f32.gmra.mrb[0].mxu0 %v232
      %v3672 = vpop.f32.mrb[0].mxu0
      %v3673 = vadd.f32 0.0, %v3672
      %v3674 = vpop.f32.mrb[0].mxu0
      %v3675 = vadd.f32 0.0, %v3674
      %3676 = vmatprep.mubr.f32.mxu0 %v235
      %3677 = vmatmul.mubr.f32.gmra.mrb[0].mxu0 %v234
      %v3678 = vpop.f32.mrb[0].mxu0
      %v3679 = vadd.f32 0.0, %v3678
      %v3680 = vpop.f32.mrb[0].mxu0
      %v3681 = vadd.f32 0.0, %v3680
      %3682 = vmatprep.mubr.f32.mxu0 %v237
      %3683 = vmatmul.mubr.f32.gmra.mrb[0].mxu0 %v236
      %v3684 = vpop.f32.mrb[0].mxu0
      %v3685 = vadd.f32 0.0, %v3684
      %v3686 = vpop.f32.mrb[0].mxu0
      %v3687 = vadd.f32 0.0, %v3686
      %3688 = vmatprep.mubr.f32.mxu0 %v239
      %3689 = vmatmul.mubr.f32.gmra.mrb[0].mxu0 %v238
      %v3690 = vpop.f32.mrb[0].mxu0
      %v3691 = vadd.f32 0.0, %v3690
      %v3692 = vpop.f32.mrb[0].mxu0
      %v3693 = vadd.f32 0.0, %v3692
      %3694 = vmatprep.mubr.f32.mxu0 %v241
      %3695 = vmatmul.mubr.f32.gmra.mrb[0].mxu0 %v240
      %v3696 = vpop.f32.mrb[0].mxu0
      %v3697 = vadd.f32 0.0, %v3696
      %v3698 = vpop.f32.mrb[0].mxu0
      %v3699 = vadd.f32 0.0, %v3698
      %3700 = vmatprep.mubr.f32.mxu0 %v243
      %3701 = vmatmul.mubr.f32.gmra.mrb[0].mxu0 %v242
      %v3702 = vpop.f32.mrb[0].mxu0
      %v3703 = vadd.f32 0.0, %v3702
      %v3704 = vpop.f32.mrb[0].mxu0
      %v3705 = vadd.f32 0.0, %v3704
      %3706 = vmatprep.mubr.f32.mxu0 %v245
      %3707 = vmatmul.mubr.f32.gmra.mrb[0].mxu0 %v244
      %v3708 = vpop.f32.mrb[0].mxu0
      %v3709 = vadd.f32 0.0, %v3708
      %v3710 = vpop.f32.mrb[0].mxu0
      %v3711 = vadd.f32 0.0, %v3710
      %3712 = vmatprep.mubr.f32.mxu0 %v247
      %3713 = vmatmul.mubr.f32.gmra.mrb[0].mxu0 %v246
      %v3714 = vpop.f32.mrb[0].mxu0
      %v3715 = vadd.f32 0.0, %v3714
      %v3716 = vpop.f32.mrb[0].mxu0
      %v3717 = vadd.f32 0.0, %v3716
      %3718 = vmatprep.mubr.f32.mxu0 %v249
      %3719 = vmatmul.mubr.f32.gmra.mrb[0].mxu0 %v248
      %v3720 = vpop.f32.mrb[0].mxu0
      %v3721 = vadd.f32 0.0, %v3720
      %v3722 = vpop.f32.mrb[0].mxu0
      %v3723 = vadd.f32 0.0, %v3722
      %3724 = vmatprep.mubr.f32.mxu0 %v251
      %3725 = vmatmul.mubr.f32.gmra.mrb[0].mxu0 %v250
      %v3726 = vpop.f32.mrb[0].mxu0
      %v3727 = vadd.f32 0.0, %v3726
      %v3728 = vpop.f32.mrb[0].mxu0
      %v3729 = vadd.f32 0.0, %v3728
      %3730 = vmatprep.mubr.f32.mxu0 %v253
      %3731 = vmatmul.mubr.f32.gmra.mrb[0].mxu0 %v252
      %v3732 = vpop.f32.mrb[0].mxu0
      %v3733 = vadd.f32 0.0, %v3732
      %v3734 = vpop.f32.mrb[0].mxu0
      %v3735 = vadd.f32 0.0, %v3734
      %3736 = vmatprep.mubr.f32.mxu0 %v255
      %3737 = vmatmul.mubr.f32.gmra.mrb[0].mxu0 %v254
      %v3738 = vpop.f32.mrb[0].mxu0
      %v3739 = vadd.f32 0.0, %v3738
      %v3740 = vpop.f32.mrb[0].mxu0
      %v3741 = vadd.f32 0.0, %v3740
      %3742 = vmatprep.mubr.f32.mxu0 %v257
      %3743 = vmatmul.mubr.f32.gmra.mrb[0].mxu0 %v256
      %v3744 = vpop.f32.mrb[0].mxu0
      %v3745 = vadd.f32 0.0, %v3744
      %v3746 = vpop.f32.mrb[0].mxu0
      %v3747 = vadd.f32 0.0, %v3746
      %3748 = vmatprep.mubr.f32.mxu0 %v259
      %3749 = vmatmul.mubr.f32.gmra.mrb[0].mxu0 %v258
      %v3750 = vpop.f32.mrb[0].mxu0
      %v3751 = vadd.f32 0.0, %v3750
      %v3752 = vpop.f32.mrb[0].mxu0
      %v3753 = vadd.f32 0.0, %v3752
      %3754 = vmatprep.mubr.f32.mxu0 %v261
      %3755 = vmatmul.mubr.f32.gmra.mrb[0].mxu0 %v260
      %v3756 = vpop.f32.mrb[0].mxu0
      %v3757 = vadd.f32 0.0, %v3756
      %v3758 = vpop.f32.mrb[0].mxu0
      %v3759 = vadd.f32 0.0, %v3758
      %3760 = vmatprep.mubr.f32.mxu0 %v263
      %3761 = vmatmul.mubr.f32.gmra.mrb[0].mxu0 %v262
      %v3762 = vpop.f32.mrb[0].mxu0
      %v3763 = vadd.f32 0.0, %v3762
      %v3764 = vpop.f32.mrb[0].mxu0
      %v3765 = vadd.f32 0.0, %v3764
      %3766 = vmatprep.mubr.f32.mxu0 %v265
      %3767 = vmatmul.mubr.f32.gmra.mrb[0].mxu0 %v264
      %v3768 = vpop.f32.mrb[0].mxu0
      %v3769 = vadd.f32 0.0, %v3768
      %v3770 = vpop.f32.mrb[0].mxu0
      %v3771 = vadd.f32 0.0, %v3770
      %3772 = vmatprep.mubr.f32.mxu0 %v267
      %3773 = vmatmul.mubr.f32.gmra.mrb[0].mxu0 %v266
      %v3774 = vpop.f32.mrb[0].mxu0
      %v3775 = vadd.f32 0.0, %v3774
      %v3776 = vpop.f32.mrb[0].mxu0
      %v3777 = vadd.f32 0.0, %v3776
      %3778 = vmatprep.mubr.f32.mxu0 %v269
      %3779 = vmatmul.mubr.f32.gmra.mrb[0].mxu0 %v268
      %v3780 = vpop.f32.mrb[0].mxu0
      %v3781 = vadd.f32 0.0, %v3780
      %v3782 = vpop.f32.mrb[0].mxu0
      %v3783 = vadd.f32 0.0, %v3782
      %3784 = vmatprep.mubr.f32.mxu0 %v271
      %3785 = vmatmul.mubr.f32.gmra.mrb[0].mxu0 %v270
      %v3786 = vpop.f32.mrb[0].mxu0
      %v3787 = vadd.f32 0.0, %v3786
      %v3788 = vpop.f32.mrb[0].mxu0
      %v3789 = vadd.f32 0.0, %v3788
      %3790 = vmatprep.mubr.f32.mxu0 %v273
      %3791 = vmatmul.mubr.f32.gmra.mrb[0].mxu0 %v272
      %v3792 = vpop.f32.mrb[0].mxu0
      %v3793 = vadd.f32 0.0, %v3792
      %v3794 = vpop.f32.mrb[0].mxu0
      %v3795 = vadd.f32 0.0, %v3794
      %3796 = vmatprep.mubr.f32.mxu0 %v275
      %3797 = vmatmul.mubr.f32.gmra.mrb[0].mxu0 %v274
      %v3798 = vpop.f32.mrb[0].mxu0
      %v3799 = vadd.f32 0.0, %v3798
      %v3800 = vpop.f32.mrb[0].mxu0
      %v3801 = vadd.f32 0.0, %v3800
      %3802 = vmatprep.mubr.f32.mxu0 %v277
      %3803 = vmatmul.mubr.f32.gmra.mrb[0].mxu0 %v276
      %v3804 = vpop.f32.mrb[0].mxu0
      %v3805 = vadd.f32 0.0, %v3804
      %v3806 = vpop.f32.mrb[0].mxu0
      %v3807 = vadd.f32 0.0, %v3806
      %3808 = vmatprep.mubr.f32.mxu0 %v279
      %3809 = vmatmul.mubr.f32.gmra.mrb[0].mxu0 %v278
      %v3810 = vpop.f32.mrb[0].mxu0
      %v3811 = vadd.f32 0.0, %v3810
      %v3812 = vpop.f32.mrb[0].mxu0
      %v3813 = vadd.f32 0.0, %v3812
      %3814 = vmatprep.mubr.f32.mxu0 %v281
      %3815 = vmatmul.mubr.f32.gmra.mrb[0].mxu0 %v280
      %v3816 = vpop.f32.mrb[0].mxu0
      %v3817 = vadd.f32 0.0, %v3816
      %v3818 = vpop.f32.mrb[0].mxu0
      %v3819 = vadd.f32 0.0, %v3818
      %3820 = vdwg.mxu0
      %v3881 = vrot.slane %v3643, 2
      %v3882 = vrot.slane %v3649, 2
      %v3883 = vsel %vm1826, %v3881, %v3882
      %v3884 = vrot.slane %v3645, 2
      %v3885 = vrot.slane %v3651, 2
      %v3886 = vsel %vm1826, %v3884, %v3885
      %v3887 = vrot.slane %v3655, 2
      %v3888 = vsel %vm1826, %v3882, %v3887
      %v3889 = vrot.slane %v3657, 2
      %v3890 = vsel %vm1826, %v3885, %v3889
      %v3891 = vrot.slane %v3661, 2
      %v3892 = vsel %vm1826, %v3887, %v3891
      %v3893 = vrot.slane %v3663, 2
      %v3894 = vsel %vm1826, %v3889, %v3893
      %v3895 = vrot.slane %v3667, 2
      %v3896 = vsel %vm1826, %v3891, %v3895
      %v3897 = vrot.slane %v3669, 2
      %v3898 = vsel %vm1826, %v3893, %v3897
      %v3899 = vrot.slane %v3673, 2
      %v3900 = vsel %vm1826, %v3895, %v3899
      %v3901 = vrot.slane %v3675, 2
      %v3902 = vsel %vm1826, %v3897, %v3901
      %v3903 = vrot.slane %v3679, 2
      %v3904 = vsel %vm1826, %v3899, %v3903
      %v3905 = vrot.slane %v3681, 2
      %v3906 = vsel %vm1826, %v3901, %v3905
      %v3907 = vrot.slane %v3685, 2
      %v3908 = vsel %vm1826, %v3903, %v3907
      %v3909 = vrot.slane %v3687, 2
      %v3910 = vsel %vm1826, %v3905, %v3909
      %v3911 = vrot.slane %v3691, 2
      %v3912 = vsel %vm1826, %v3907, %v3911
      %v3913 = vrot.slane %v3693, 2
      %v3914 = vsel %vm1826, %v3909, %v3913
      %v3915 = vrot.slane %v3697, 2
      %v3916 = vsel %vm1826, %v3911, %v3915
      %v3917 = vrot.slane %v3699, 2
      %v3918 = vsel %vm1826, %v3913, %v3917
      %v3919 = vrot.slane %v3703, 2
      %v3920 = vsel %vm1826, %v3915, %v3919
      %v3921 = vrot.slane %v3705, 2
      %v3922 = vsel %vm1826, %v3917, %v3921
      %v3923 = vrot.slane %v3709, 2
      %v3924 = vsel %vm1826, %v3919, %v3923
      %v3925 = vrot.slane %v3711, 2
      %v3926 = vsel %vm1826, %v3921, %v3925
      %v3927 = vrot.slane %v3715, 2
      %v3928 = vsel %vm1826, %v3923, %v3927
      %v3929 = vrot.slane %v3717, 2
      %v3930 = vsel %vm1826, %v3925, %v3929
      %v3931 = vrot.slane %v3721, 2
      %v3932 = vsel %vm1826, %v3927, %v3931
      %v3933 = vrot.slane %v3723, 2
      %v3934 = vsel %vm1826, %v3929, %v3933
      %v3935 = vrot.slane %v3727, 2
      %v3936 = vsel %vm1826, %v3931, %v3935
      %v3937 = vrot.slane %v3729, 2
      %v3938 = vsel %vm1826, %v3933, %v3937
      %v3939 = vrot.slane %v3733, 2
      %v3940 = vsel %vm1826, %v3935, %v3939
      %v3941 = vrot.slane %v3735, 2
      %v3942 = vsel %vm1826, %v3937, %v3941
      %v3943 = vrot.slane %v3739, 2
      %v3944 = vsel %vm1826, %v3939, %v3943
      %v3945 = vrot.slane %v3741, 2
      %v3946 = vsel %vm1826, %v3941, %v3945
      %v3947 = vrot.slane %v3745, 2
      %v3948 = vsel %vm1826, %v3943, %v3947
      %v3949 = vrot.slane %v3747, 2
      %v3950 = vsel %vm1826, %v3945, %v3949
      %v3951 = vrot.slane %v3751, 2
      %v3952 = vsel %vm1826, %v3947, %v3951
      %v3953 = vrot.slane %v3753, 2
      %v3954 = vsel %vm1826, %v3949, %v3953
      %v3955 = vrot.slane %v3757, 2
      %v3956 = vsel %vm1826, %v3951, %v3955
      %v3957 = vrot.slane %v3759, 2
      %v3958 = vsel %vm1826, %v3953, %v3957
      %v3959 = vrot.slane %v3763, 2
      %v3960 = vsel %vm1826, %v3955, %v3959
      %v3961 = vrot.slane %v3765, 2
      %v3962 = vsel %vm1826, %v3957, %v3961
      %v3963 = vrot.slane %v3769, 2
      %v3964 = vsel %vm1826, %v3959, %v3963
      %v3965 = vrot.slane %v3771, 2
      %v3966 = vsel %vm1826, %v3961, %v3965
      %v3967 = vrot.slane %v3775, 2
      %v3968 = vsel %vm1826, %v3963, %v3967
      %v3969 = vrot.slane %v3777, 2
      %v3970 = vsel %vm1826, %v3965, %v3969
      %v3971 = vrot.slane %v3781, 2
      %v3972 = vsel %vm1826, %v3967, %v3971
      %v3973 = vrot.slane %v3783, 2
      %v3974 = vsel %vm1826, %v3969, %v3973
      %v3975 = vrot.slane %v3787, 2
      %v3976 = vsel %vm1826, %v3971, %v3975
      %v3977 = vrot.slane %v3789, 2
      %v3978 = vsel %vm1826, %v3973, %v3977
      %v3979 = vrot.slane %v3793, 2
      %v3980 = vsel %vm1826, %v3975, %v3979
      %v3981 = vrot.slane %v3795, 2
      %v3982 = vsel %vm1826, %v3977, %v3981
      %v3983 = vrot.slane %v3799, 2
      %v3984 = vsel %vm1826, %v3979, %v3983
      %v3985 = vrot.slane %v3801, 2
      %v3986 = vsel %vm1826, %v3981, %v3985
      %v3987 = vrot.slane %v3805, 2
      %v3988 = vsel %vm1826, %v3983, %v3987
      %v3989 = vrot.slane %v3807, 2
      %v3990 = vsel %vm1826, %v3985, %v3989
      %v3991 = vrot.slane %v3811, 2
      %v3992 = vsel %vm1826, %v3987, %v3991
      %v3993 = vrot.slane %v3813, 2
      %v3994 = vsel %vm1826, %v3989, %v3993
      %v3995 = vrot.slane %v3817, 2
      %v3996 = vsel %vm1826, %v3991, %v3995
      %v3997 = vrot.slane %v3819, 2
      %v3998 = vsel %vm1826, %v3993, %v3997
      %v4063 = vrot.slane %v3631, 2
      %v4064 = vrot.slane %v3633, 2
      %v4065 = vrot.slane %v3637, 2
      %v4066 = vsel %vm1826, %v4063, %v4065
      %v4067 = vrot.slane %v3639, 2
      %v4068 = vsel %vm1826, %v4064, %v4067
      %v4069 = vsel %vm1826, %v4065, %v3881
      %v4070 = vsel %vm1826, %v4067, %v3884
      %v4077 = vsel %vm1826, %v3995, %v4063
      %v4078 = vsel %vm1826, %v3997, %v4064
      %v4079 = vld [vmem:[#allocation2] sm:$0xff]
      %v4080 = vld [vmem:[#allocation2 + $0x8] sm:$0xff]
      %v4081 = vld [vmem:[#allocation2 + $0x10] sm:$0xff]
      %v4082 = vld [vmem:[#allocation2 + $0x18] sm:$0xff]
      %v4083 = vld [vmem:[#allocation2 + $0x20] sm:$0xff]
      %v4084 = vld [vmem:[#allocation2 + $0x28] sm:$0xff]
      %v4085 = vld [vmem:[#allocation2 + $0x30] sm:$0xff]
      %v4086 = vld [vmem:[#allocation2 + $0x38] sm:$0xff]
      %v4087 = vld [vmem:[#allocation2 + $0x40] sm:$0xff]
      %v4088 = vld [vmem:[#allocation2 + $0x48] sm:$0xff]
      %v4089 = vld [vmem:[#allocation2 + $0x50] sm:$0xff]
      %v4090 = vld [vmem:[#allocation2 + $0x58] sm:$0xff]
      %v4091 = vld [vmem:[#allocation2 + $0x60] sm:$0xff]
      %v4092 = vld [vmem:[#allocation2 + $0x68] sm:$0xff]
      %v4093 = vld [vmem:[#allocation2 + $0x70] sm:$0xff]
      %v4094 = vld [vmem:[#allocation2 + $0x78] sm:$0xff]
      %v4095 = vld [vmem:[#allocation2 + $0x80] sm:$0xff]
      %v4096 = vld [vmem:[#allocation2 + $0x88] sm:$0xff]
      %v4097 = vld [vmem:[#allocation2 + $0x90] sm:$0xff]
      %v4098 = vld [vmem:[#allocation2 + $0x98] sm:$0xff]
      %v4099 = vld [vmem:[#allocation2 + $0xa0] sm:$0xff]
      %v4100 = vld [vmem:[#allocation2 + $0xa8] sm:$0xff]
      %v4101 = vld [vmem:[#allocation2 + $0xb0] sm:$0xff]
      %v4102 = vld [vmem:[#allocation2 + $0xb8] sm:$0xff]
      %v4103 = vld [vmem:[#allocation2 + $0xc0] sm:$0xff]
      %v4104 = vld [vmem:[#allocation2 + $0xc8] sm:$0xff]
      %v4105 = vld [vmem:[#allocation2 + $0xd0] sm:$0xff]
      %v4106 = vld [vmem:[#allocation2 + $0xd8] sm:$0xff]
      %v4107 = vld [vmem:[#allocation2 + $0xe0] sm:$0xff]
      %v4108 = vld [vmem:[#allocation2 + $0xe8] sm:$0xff]
      %v4109 = vld [vmem:[#allocation2 + $0xf0] sm:$0xff]
      %v4110 = vld [vmem:[#allocation2 + $0xf8] sm:$0xff]
      %v4111 = vld [vmem:[#allocation2 + $0x100] sm:$0xff]
      %v4112 = vld [vmem:[#allocation2 + $0x108] sm:$0xff]
      %v4113 = vld [vmem:[#allocation2 + $0x110] sm:$0xff]
      %v4114 = vld [vmem:[#allocation2 + $0x118] sm:$0xff]
      %v4115 = vld [vmem:[#allocation2 + $0x120] sm:$0xff]
      %v4116 = vld [vmem:[#allocation2 + $0x128] sm:$0xff]
      %v4117 = vld [vmem:[#allocation2 + $0x130] sm:$0xff]
      %v4118 = vld [vmem:[#allocation2 + $0x138] sm:$0xff]
      %v4119 = vld [vmem:[#allocation2 + $0x140] sm:$0xff]
      %v4120 = vld [vmem:[#allocation2 + $0x148] sm:$0xff]
      %v4121 = vld [vmem:[#allocation2 + $0x150] sm:$0xff]
      %v4122 = vld [vmem:[#allocation2 + $0x158] sm:$0xff]
      %v4123 = vld [vmem:[#allocation2 + $0x160] sm:$0xff]
      %v4124 = vld [vmem:[#allocation2 + $0x168] sm:$0xff]
      %v4125 = vld [vmem:[#allocation2 + $0x170] sm:$0xff]
      %v4126 = vld [vmem:[#allocation2 + $0x178] sm:$0xff]
      %v4127 = vld [vmem:[#allocation2 + $0x180] sm:$0xff]
      %v4128 = vld [vmem:[#allocation2 + $0x188] sm:$0xff]
      %v4129 = vld [vmem:[#allocation2 + $0x190] sm:$0xff]
      %v4130 = vld [vmem:[#allocation2 + $0x198] sm:$0xff]
      %v4131 = vld [vmem:[#allocation2 + $0x1a0] sm:$0xff]
      %v4132 = vld [vmem:[#allocation2 + $0x1a8] sm:$0xff]
      %v4133 = vld [vmem:[#allocation2 + $0x1b0] sm:$0xff]
      %v4134 = vld [vmem:[#allocation2 + $0x1b8] sm:$0xff]
      %v4135 = vld [vmem:[#allocation2 + $0x1c0] sm:$0xff]
      %v4136 = vld [vmem:[#allocation2 + $0x1c8] sm:$0xff]
      %v4137 = vld [vmem:[#allocation2 + $0x1d0] sm:$0xff]
      %v4138 = vld [vmem:[#allocation2 + $0x1d8] sm:$0xff]
      %v4139 = vld [vmem:[#allocation2 + $0x1e0] sm:$0xff]
      %v4140 = vld [vmem:[#allocation2 + $0x1e8] sm:$0xff]
      %v4141 = vld [vmem:[#allocation2 + $0x1f0] sm:$0xff]
      %v4142 = vld [vmem:[#allocation2 + $0x1f8] sm:$0xff]
      %v4143 = vadd.f32 %v4079, %v3883
      %v4144 = vadd.f32 %v4080, %v3886
      %v4145 = vadd.f32 %v4081, %v3888
      %v4146 = vadd.f32 %v4082, %v3890
      %v4147 = vadd.f32 %v4083, %v3892
      %v4148 = vadd.f32 %v4084, %v3894
      %v4149 = vadd.f32 %v4085, %v3896
      %v4150 = vadd.f32 %v4086, %v3898
      %v4151 = vadd.f32 %v4087, %v3900
      %v4152 = vadd.f32 %v4088, %v3902
      %v4153 = vadd.f32 %v4089, %v3904
      %v4154 = vadd.f32 %v4090, %v3906
      %v4155 = vadd.f32 %v4091, %v3908
      %v4156 = vadd.f32 %v4092, %v3910
      %v4157 = vadd.f32 %v4093, %v3912
      %v4158 = vadd.f32 %v4094, %v3914
      %v4159 = vadd.f32 %v4095, %v3916
      %v4160 = vadd.f32 %v4096, %v3918
      %v4161 = vadd.f32 %v4097, %v3920
      %v4162 = vadd.f32 %v4098, %v3922
      %v4163 = vadd.f32 %v4099, %v3924
      %v4164 = vadd.f32 %v4100, %v3926
      %v4165 = vadd.f32 %v4101, %v3928
      %v4166 = vadd.f32 %v4102, %v3930
      %v4167 = vadd.f32 %v4103, %v3932
      %v4168 = vadd.f32 %v4104, %v3934
      %v4169 = vadd.f32 %v4105, %v3936
      %v4170 = vadd.f32 %v4106, %v3938
      %v4171 = vadd.f32 %v4107, %v3940
      %v4172 = vadd.f32 %v4108, %v3942
      %v4173 = vadd.f32 %v4109, %v3944
      %v4174 = vadd.f32 %v4110, %v3946
      %v4175 = vadd.f32 %v4111, %v3948
      %v4176 = vadd.f32 %v4112, %v3950
      %v4177 = vadd.f32 %v4113, %v3952
      %v4178 = vadd.f32 %v4114, %v3954
      %v4179 = vadd.f32 %v4115, %v3956
      %v4180 = vadd.f32 %v4116, %v3958
      %v4181 = vadd.f32 %v4117, %v3960
      %v4182 = vadd.f32 %v4118, %v3962
      %v4183 = vadd.f32 %v4119, %v3964
      %v4184 = vadd.f32 %v4120, %v3966
      %v4185 = vadd.f32 %v4121, %v3968
      %v4186 = vadd.f32 %v4122, %v3970
      %v4187 = vadd.f32 %v4123, %v3972
      %v4188 = vadd.f32 %v4124, %v3974
      %v4189 = vadd.f32 %v4125, %v3976
      %v4190 = vadd.f32 %v4126, %v3978
      %v4191 = vadd.f32 %v4127, %v3980
      %v4192 = vadd.f32 %v4128, %v3982
      %v4193 = vadd.f32 %v4129, %v3984
      %v4194 = vadd.f32 %v4130, %v3986
      %v4195 = vadd.f32 %v4131, %v3988
      %v4196 = vadd.f32 %v4132, %v3990
      %v4197 = vadd.f32 %v4133, %v3992
      %v4198 = vadd.f32 %v4134, %v3994
      %v4199 = vadd.f32 %v4135, %v3996
      %v4200 = vadd.f32 %v4136, %v3998
      %v4201 = vadd.f32 %v4137, %v4077
      %v4202 = vadd.f32 %v4138, %v4078
      %v4203 = vadd.f32 %v4139, %v4066
      %v4204 = vadd.f32 %v4140, %v4068
      %v4205 = vadd.f32 %v4141, %v4069
      %v4206 = vadd.f32 %v4142, %v4070
      %4207 = vst [vmem:[#allocation2] sm:$0xff] %v4143
      %4208 = vst [vmem:[#allocation2 + $0x8] sm:$0xff] %v4144
      %4209 = vst [vmem:[#allocation2 + $0x10] sm:$0xff] %v4145
      %4210 = vst [vmem:[#allocation2 + $0x18] sm:$0xff] %v4146
      %4211 = vst [vmem:[#allocation2 + $0x20] sm:$0xff] %v4147
      %4212 = vst [vmem:[#allocation2 + $0x28] sm:$0xff] %v4148
      %4213 = vst [vmem:[#allocation2 + $0x30] sm:$0xff] %v4149
      %4214 = vst [vmem:[#allocation2 + $0x38] sm:$0xff] %v4150
      %4215 = vst [vmem:[#allocation2 + $0x40] sm:$0xff] %v4151
      %4216 = vst [vmem:[#allocation2 + $0x48] sm:$0xff] %v4152
      %4217 = vst [vmem:[#allocation2 + $0x50] sm:$0xff] %v4153
      %4218 = vst [vmem:[#allocation2 + $0x58] sm:$0xff] %v4154
      %4219 = vst [vmem:[#allocation2 + $0x60] sm:$0xff] %v4155
      %4220 = vst [vmem:[#allocation2 + $0x68] sm:$0xff] %v4156
      %4221 = vst [vmem:[#allocation2 + $0x70] sm:$0xff] %v4157
      %4222 = vst [vmem:[#allocation2 + $0x78] sm:$0xff] %v4158
      %4223 = vst [vmem:[#allocation2 + $0x80] sm:$0xff] %v4159
      %4224 = vst [vmem:[#allocation2 + $0x88] sm:$0xff] %v4160
      %4225 = vst [vmem:[#allocation2 + $0x90] sm:$0xff] %v4161
      %4226 = vst [vmem:[#allocation2 + $0x98] sm:$0xff] %v4162
      %4227 = vst [vmem:[#allocation2 + $0xa0] sm:$0xff] %v4163
      %4228 = vst [vmem:[#allocation2 + $0xa8] sm:$0xff] %v4164
      %4229 = vst [vmem:[#allocation2 + $0xb0] sm:$0xff] %v4165
      %4230 = vst [vmem:[#allocation2 + $0xb8] sm:$0xff] %v4166
      %4231 = vst [vmem:[#allocation2 + $0xc0] sm:$0xff] %v4167
      %4232 = vst [vmem:[#allocation2 + $0xc8] sm:$0xff] %v4168
      %4233 = vst [vmem:[#allocation2 + $0xd0] sm:$0xff] %v4169
      %4234 = vst [vmem:[#allocation2 + $0xd8] sm:$0xff] %v4170
      %4235 = vst [vmem:[#allocation2 + $0xe0] sm:$0xff] %v4171
      %4236 = vst [vmem:[#allocation2 + $0xe8] sm:$0xff] %v4172
      %4237 = vst [vmem:[#allocation2 + $0xf0] sm:$0xff] %v4173
      %4238 = vst [vmem:[#allocation2 + $0xf8] sm:$0xff] %v4174
      %4239 = vst [vmem:[#allocation2 + $0x100] sm:$0xff] %v4175
      %4240 = vst [vmem:[#allocation2 + $0x108] sm:$0xff] %v4176
      %4241 = vst [vmem:[#allocation2 + $0x110] sm:$0xff] %v4177
      %4242 = vst [vmem:[#allocation2 + $0x118] sm:$0xff] %v4178
      %4243 = vst [vmem:[#allocation2 + $0x120] sm:$0xff] %v4179
      %4244 = vst [vmem:[#allocation2 + $0x128] sm:$0xff] %v4180
      %4245 = vst [vmem:[#allocation2 + $0x130] sm:$0xff] %v4181
      %4246 = vst [vmem:[#allocation2 + $0x138] sm:$0xff] %v4182
      %4247 = vst [vmem:[#allocation2 + $0x140] sm:$0xff] %v4183
      %4248 = vst [vmem:[#allocation2 + $0x148] sm:$0xff] %v4184
      %4249 = vst [vmem:[#allocation2 + $0x150] sm:$0xff] %v4185
      %4250 = vst [vmem:[#allocation2 + $0x158] sm:$0xff] %v4186
      %4251 = vst [vmem:[#allocation2 + $0x160] sm:$0xff] %v4187
      %4252 = vst [vmem:[#allocation2 + $0x168] sm:$0xff] %v4188
      %4253 = vst [vmem:[#allocation2 + $0x170] sm:$0xff] %v4189
      %4254 = vst [vmem:[#allocation2 + $0x178] sm:$0xff] %v4190
      %4255 = vst [vmem:[#allocation2 + $0x180] sm:$0xff] %v4191
      %4256 = vst [vmem:[#allocation2 + $0x188] sm:$0xff] %v4192
      %4257 = vst [vmem:[#allocation2 + $0x190] sm:$0xff] %v4193
      %4258 = vst [vmem:[#allocation2 + $0x198] sm:$0xff] %v4194
      %4259 = vst [vmem:[#allocation2 + $0x1a0] sm:$0xff] %v4195
      %4260 = vst [vmem:[#allocation2 + $0x1a8] sm:$0xff] %v4196
      %4261 = vst [vmem:[#allocation2 + $0x1b0] sm:$0xff] %v4197
      %4262 = vst [vmem:[#allocation2 + $0x1b8] sm:$0xff] %v4198
      %4263 = vst [vmem:[#allocation2 + $0x1c0] sm:$0xff] %v4199
      %4264 = vst [vmem:[#allocation2 + $0x1c8] sm:$0xff] %v4200
      %4265 = vst [vmem:[#allocation2 + $0x1d0] sm:$0xff] %v4201
      %4266 = vst [vmem:[#allocation2 + $0x1d8] sm:$0xff] %v4202
      %4267 = vst [vmem:[#allocation2 + $0x1e0] sm:$0xff] %v4203
      %4268 = vst [vmem:[#allocation2 + $0x1e8] sm:$0xff] %v4204
      %4269 = vst [vmem:[#allocation2 + $0x1f0] sm:$0xff] %v4205
      %4270 = vst [vmem:[#allocation2 + $0x1f8] sm:$0xff] %v4206
      %s4271 = scalar_lea.vmem %s1, 3072
      %v4272 = vld [vmem:[%s4271] sm:$0xff]
      %v4273 = vld [vmem:[%s4271 + $0x8] sm:$0xff]
      %v4274 = vld [vmem:[%s4271 + $0x10] sm:$0xff]
      %v4275 = vld [vmem:[%s4271 + $0x18] sm:$0xff]
      %v4276 = vld [vmem:[%s4271 + $0x20] sm:$0xff]
      %v4277 = vld [vmem:[%s4271 + $0x28] sm:$0xff]
      %v4278 = vld [vmem:[%s4271 + $0x30] sm:$0xff]
      %v4279 = vld [vmem:[%s4271 + $0x38] sm:$0xff]
      %v4280 = vld [vmem:[%s4271 + $0x40] sm:$0xff]
      %v4281 = vld [vmem:[%s4271 + $0x48] sm:$0xff]
      %v4282 = vld [vmem:[%s4271 + $0x50] sm:$0xff]
      %v4283 = vld [vmem:[%s4271 + $0x58] sm:$0xff]
      %v4284 = vld [vmem:[%s4271 + $0x60] sm:$0xff]
      %v4285 = vld [vmem:[%s4271 + $0x68] sm:$0xff]
      %v4286 = vld [vmem:[%s4271 + $0x70] sm:$0xff]
      %v4287 = vld [vmem:[%s4271 + $0x78] sm:$0xff]
      %v4288 = vld [vmem:[%s4271 + $0x80] sm:$0xff]
      %v4289 = vld [vmem:[%s4271 + $0x88] sm:$0xff]
      %v4290 = vld [vmem:[%s4271 + $0x90] sm:$0xff]
      %v4291 = vld [vmem:[%s4271 + $0x98] sm:$0xff]
      %v4292 = vld [vmem:[%s4271 + $0xa0] sm:$0xff]
      %v4293 = vld [vmem:[%s4271 + $0xa8] sm:$0xff]
      %v4294 = vld [vmem:[%s4271 + $0xb0] sm:$0xff]
      %v4295 = vld [vmem:[%s4271 + $0xb8] sm:$0xff]
      %v4296 = vld [vmem:[%s4271 + $0xc0] sm:$0xff]
      %v4297 = vld [vmem:[%s4271 + $0xc8] sm:$0xff]
      %v4298 = vld [vmem:[%s4271 + $0xd0] sm:$0xff]
      %v4299 = vld [vmem:[%s4271 + $0xd8] sm:$0xff]
      %v4300 = vld [vmem:[%s4271 + $0xe0] sm:$0xff]
      %v4301 = vld [vmem:[%s4271 + $0xe8] sm:$0xff]
      %v4302 = vld [vmem:[%s4271 + $0xf0] sm:$0xff]
      %v4303 = vld [vmem:[%s4271 + $0xf8] sm:$0xff]
      %v4304 = vld [vmem:[%s4271 + $0x100] sm:$0xff]
      %v4305 = vld [vmem:[%s4271 + $0x108] sm:$0xff]
      %v4306 = vld [vmem:[%s4271 + $0x110] sm:$0xff]
      %v4307 = vld [vmem:[%s4271 + $0x118] sm:$0xff]
      %v4308 = vld [vmem:[%s4271 + $0x120] sm:$0xff]
      %v4309 = vld [vmem:[%s4271 + $0x128] sm:$0xff]
      %v4310 = vld [vmem:[%s4271 + $0x130] sm:$0xff]
      %v4311 = vld [vmem:[%s4271 + $0x138] sm:$0xff]
      %v4312 = vld [vmem:[%s4271 + $0x140] sm:$0xff]
      %v4313 = vld [vmem:[%s4271 + $0x148] sm:$0xff]
      %v4314 = vld [vmem:[%s4271 + $0x150] sm:$0xff]
      %v4315 = vld [vmem:[%s4271 + $0x158] sm:$0xff]
      %v4316 = vld [vmem:[%s4271 + $0x160] sm:$0xff]
      %v4317 = vld [vmem:[%s4271 + $0x168] sm:$0xff]
      %v4318 = vld [vmem:[%s4271 + $0x170] sm:$0xff]
      %v4319 = vld [vmem:[%s4271 + $0x178] sm:$0xff]
      %v4320 = vld [vmem:[%s4271 + $0x180] sm:$0xff]
      %v4321 = vld [vmem:[%s4271 + $0x188] sm:$0xff]
      %v4322 = vld [vmem:[%s4271 + $0x190] sm:$0xff]
      %v4323 = vld [vmem:[%s4271 + $0x198] sm:$0xff]
      %v4324 = vld [vmem:[%s4271 + $0x1a0] sm:$0xff]
      %v4325 = vld [vmem:[%s4271 + $0x1a8] sm:$0xff]
      %v4326 = vld [vmem:[%s4271 + $0x1b0] sm:$0xff]
      %v4327 = vld [vmem:[%s4271 + $0x1b8] sm:$0xff]
      %v4328 = vld [vmem:[%s4271 + $0x1c0] sm:$0xff]
      %v4329 = vld [vmem:[%s4271 + $0x1c8] sm:$0xff]
      %v4330 = vld [vmem:[%s4271 + $0x1d0] sm:$0xff]
      %v4331 = vld [vmem:[%s4271 + $0x1d8] sm:$0xff]
      %v4332 = vld [vmem:[%s4271 + $0x1e0] sm:$0xff]
      %v4333 = vld [vmem:[%s4271 + $0x1e8] sm:$0xff]
      %v4334 = vld [vmem:[%s4271 + $0x1f0] sm:$0xff]
      %v4335 = vld [vmem:[%s4271 + $0x1f8] sm:$0xff]
      %4336 = vmatprep.subr.mxu0 %v4273
      %4337 = vmatpush1.msra.mxu0 %v4272
      %4338 = vmatprep.subr.mxu0 %v4275
      %4339 = vmatpush1.msra.mxu0 %v4274
      %4340 = vmatprep.subr.mxu0 %v4277
      %4341 = vmatpush1.msra.mxu0 %v4276
      %4342 = vmatprep.subr.mxu0 %v4279
      %4343 = vmatpush1.msra.mxu0 %v4278
      %4344 = vmatprep.subr.mxu0 %v4281
      %4345 = vmatpush1.msra.mxu0 %v4280
      %4346 = vmatprep.subr.mxu0 %v4283
      %4347 = vmatpush1.msra.mxu0 %v4282
      %4348 = vmatprep.subr.mxu0 %v4285
      %4349 = vmatpush1.msra.mxu0 %v4284
      %4350 = vmatprep.subr.mxu0 %v4287
      %4351 = vmatpush1.msra.mxu0 %v4286
      %4352 = vmatprep.subr.mxu0 %v4289
      %4353 = vmatpush1.msra.mxu0 %v4288
      %4354 = vmatprep.subr.mxu0 %v4291
      %4355 = vmatpush1.msra.mxu0 %v4290
      %4356 = vmatprep.subr.mxu0 %v4293
      %4357 = vmatpush1.msra.mxu0 %v4292
      %4358 = vmatprep.subr.mxu0 %v4295
      %4359 = vmatpush1.msra.mxu0 %v4294
      %4360 = vmatprep.subr.mxu0 %v4297
      %4361 = vmatpush1.msra.mxu0 %v4296
      %4362 = vmatprep.subr.mxu0 %v4299
      %4363 = vmatpush1.msra.mxu0 %v4298
      %4364 = vmatprep.subr.mxu0 %v4301
      %4365 = vmatpush1.msra.mxu0 %v4300
      %4366 = vmatprep.subr.mxu0 %v4303
      %4367 = vmatpush1.msra.mxu0 %v4302
      %4368 = vmatprep.subr.mxu0 %v4305
      %4369 = vmatpush1.msra.mxu0 %v4304
      %4370 = vmatprep.subr.mxu0 %v4307
      %4371 = vmatpush1.msra.mxu0 %v4306
      %4372 = vmatprep.subr.mxu0 %v4309
      %4373 = vmatpush1.msra.mxu0 %v4308
      %4374 = vmatprep.subr.mxu0 %v4311
      %4375 = vmatpush1.msra.mxu0 %v4310
      %4376 = vmatprep.subr.mxu0 %v4313
      %4377 = vmatpush1.msra.mxu0 %v4312
      %4378 = vmatprep.subr.mxu0 %v4315
      %4379 = vmatpush1.msra.mxu0 %v4314
      %4380 = vmatprep.subr.mxu0 %v4317
      %4381 = vmatpush1.msra.mxu0 %v4316
      %4382 = vmatprep.subr.mxu0 %v4319
      %4383 = vmatpush1.msra.mxu0 %v4318
      %4384 = vmatprep.subr.mxu0 %v4321
      %4385 = vmatpush1.msra.mxu0 %v4320
      %4386 = vmatprep.subr.mxu0 %v4323
      %4387 = vmatpush1.msra.mxu0 %v4322
      %4388 = vmatprep.subr.mxu0 %v4325
      %4389 = vmatpush1.msra.mxu0 %v4324
      %4390 = vmatprep.subr.mxu0 %v4327
      %4391 = vmatpush1.msra.mxu0 %v4326
      %4392 = vmatprep.subr.mxu0 %v4329
      %4393 = vmatpush1.msra.mxu0 %v4328
      %4394 = vmatprep.subr.mxu0 %v4331
      %4395 = vmatpush1.msra.mxu0 %v4330
      %4396 = vmatprep.subr.mxu0 %v4333
      %4397 = vmatpush1.msra.mxu0 %v4332
      %4398 = vmatprep.subr.mxu0 %v4335
      %4399 = vmatpush1.msra.mxu0 %v4334
      %4400 = vmatprep.mubr.f32.mxu0 %v219
      %4401 = vmatmul.mubr.f32.gmra.mrb[0].mxu0 %v218
      %v4402 = vpop.f32.mrb[0].mxu0
      %v4403 = vadd.f32 0.0, %v4402
      %v4404 = vpop.f32.mrb[0].mxu0
      %v4405 = vadd.f32 0.0, %v4404
      %4406 = vmatprep.mubr.f32.mxu0 %v221
      %4407 = vmatmul.mubr.f32.gmra.mrb[0].mxu0 %v220
      %v4408 = vpop.f32.mrb[0].mxu0
      %v4409 = vadd.f32 0.0, %v4408
      %v4410 = vpop.f32.mrb[0].mxu0
      %v4411 = vadd.f32 0.0, %v4410
      %4412 = vmatprep.mubr.f32.mxu0 %v223
      %4413 = vmatmul.mubr.f32.gmra.mrb[0].mxu0 %v222
      %v4414 = vpop.f32.mrb[0].mxu0
      %v4415 = vadd.f32 0.0, %v4414
      %v4416 = vpop.f32.mrb[0].mxu0
      %v4417 = vadd.f32 0.0, %v4416
      %4418 = vmatprep.mubr.f32.mxu0 %v225
      %4419 = vmatmul.mubr.f32.gmra.mrb[0].mxu0 %v224
      %v4420 = vpop.f32.mrb[0].mxu0
      %v4421 = vadd.f32 0.0, %v4420
      %v4422 = vpop.f32.mrb[0].mxu0
      %v4423 = vadd.f32 0.0, %v4422
      %4424 = vmatprep.mubr.f32.mxu0 %v227
      %4425 = vmatmul.mubr.f32.gmra.mrb[0].mxu0 %v226
      %v4426 = vpop.f32.mrb[0].mxu0
      %v4427 = vadd.f32 0.0, %v4426
      %v4428 = vpop.f32.mrb[0].mxu0
      %v4429 = vadd.f32 0.0, %v4428
      %4430 = vmatprep.mubr.f32.mxu0 %v229
      %4431 = vmatmul.mubr.f32.gmra.mrb[0].mxu0 %v228
      %v4432 = vpop.f32.mrb[0].mxu0
      %v4433 = vadd.f32 0.0, %v4432
      %v4434 = vpop.f32.mrb[0].mxu0
      %v4435 = vadd.f32 0.0, %v4434
      %4436 = vmatprep.mubr.f32.mxu0 %v231
      %4437 = vmatmul.mubr.f32.gmra.mrb[0].mxu0 %v230
      %v4438 = vpop.f32.mrb[0].mxu0
      %v4439 = vadd.f32 0.0, %v4438
      %v4440 = vpop.f32.mrb[0].mxu0
      %v4441 = vadd.f32 0.0, %v4440
      %4442 = vmatprep.mubr.f32.mxu0 %v233
      %4443 = vmatmul.mubr.f32.gmra.mrb[0].mxu0 %v232
      %v4444 = vpop.f32.mrb[0].mxu0
      %v4445 = vadd.f32 0.0, %v4444
      %v4446 = vpop.f32.mrb[0].mxu0
      %v4447 = vadd.f32 0.0, %v4446
      %4448 = vmatprep.mubr.f32.mxu0 %v235
      %4449 = vmatmul.mubr.f32.gmra.mrb[0].mxu0 %v234
      %v4450 = vpop.f32.mrb[0].mxu0
      %v4451 = vadd.f32 0.0, %v4450
      %v4452 = vpop.f32.mrb[0].mxu0
      %v4453 = vadd.f32 0.0, %v4452
      %4454 = vmatprep.mubr.f32.mxu0 %v237
      %4455 = vmatmul.mubr.f32.gmra.mrb[0].mxu0 %v236
      %v4456 = vpop.f32.mrb[0].mxu0
      %v4457 = vadd.f32 0.0, %v4456
      %v4458 = vpop.f32.mrb[0].mxu0
      %v4459 = vadd.f32 0.0, %v4458
      %4460 = vmatprep.mubr.f32.mxu0 %v239
      %4461 = vmatmul.mubr.f32.gmra.mrb[0].mxu0 %v238
      %v4462 = vpop.f32.mrb[0].mxu0
      %v4463 = vadd.f32 0.0, %v4462
      %v4464 = vpop.f32.mrb[0].mxu0
      %v4465 = vadd.f32 0.0, %v4464
      %4466 = vmatprep.mubr.f32.mxu0 %v241
      %4467 = vmatmul.mubr.f32.gmra.mrb[0].mxu0 %v240
      %v4468 = vpop.f32.mrb[0].mxu0
      %v4469 = vadd.f32 0.0, %v4468
      %v4470 = vpop.f32.mrb[0].mxu0
      %v4471 = vadd.f32 0.0, %v4470
      %4472 = vmatprep.mubr.f32.mxu0 %v243
      %4473 = vmatmul.mubr.f32.gmra.mrb[0].mxu0 %v242
      %v4474 = vpop.f32.mrb[0].mxu0
      %v4475 = vadd.f32 0.0, %v4474
      %v4476 = vpop.f32.mrb[0].mxu0
      %v4477 = vadd.f32 0.0, %v4476
      %4478 = vmatprep.mubr.f32.mxu0 %v245
      %4479 = vmatmul.mubr.f32.gmra.mrb[0].mxu0 %v244
      %v4480 = vpop.f32.mrb[0].mxu0
      %v4481 = vadd.f32 0.0, %v4480
      %v4482 = vpop.f32.mrb[0].mxu0
      %v4483 = vadd.f32 0.0, %v4482
      %4484 = vmatprep.mubr.f32.mxu0 %v247
      %4485 = vmatmul.mubr.f32.gmra.mrb[0].mxu0 %v246
      %v4486 = vpop.f32.mrb[0].mxu0
      %v4487 = vadd.f32 0.0, %v4486
      %v4488 = vpop.f32.mrb[0].mxu0
      %v4489 = vadd.f32 0.0, %v4488
      %4490 = vmatprep.mubr.f32.mxu0 %v249
      %4491 = vmatmul.mubr.f32.gmra.mrb[0].mxu0 %v248
      %v4492 = vpop.f32.mrb[0].mxu0
      %v4493 = vadd.f32 0.0, %v4492
      %v4494 = vpop.f32.mrb[0].mxu0
      %v4495 = vadd.f32 0.0, %v4494
      %4496 = vmatprep.mubr.f32.mxu0 %v251
      %4497 = vmatmul.mubr.f32.gmra.mrb[0].mxu0 %v250
      %v4498 = vpop.f32.mrb[0].mxu0
      %v4499 = vadd.f32 0.0, %v4498
      %v4500 = vpop.f32.mrb[0].mxu0
      %v4501 = vadd.f32 0.0, %v4500
      %4502 = vmatprep.mubr.f32.mxu0 %v253
      %4503 = vmatmul.mubr.f32.gmra.mrb[0].mxu0 %v252
      %v4504 = vpop.f32.mrb[0].mxu0
      %v4505 = vadd.f32 0.0, %v4504
      %v4506 = vpop.f32.mrb[0].mxu0
      %v4507 = vadd.f32 0.0, %v4506
      %4508 = vmatprep.mubr.f32.mxu0 %v255
      %4509 = vmatmul.mubr.f32.gmra.mrb[0].mxu0 %v254
      %v4510 = vpop.f32.mrb[0].mxu0
      %v4511 = vadd.f32 0.0, %v4510
      %v4512 = vpop.f32.mrb[0].mxu0
      %v4513 = vadd.f32 0.0, %v4512
      %4514 = vmatprep.mubr.f32.mxu0 %v257
      %4515 = vmatmul.mubr.f32.gmra.mrb[0].mxu0 %v256
      %v4516 = vpop.f32.mrb[0].mxu0
      %v4517 = vadd.f32 0.0, %v4516
      %v4518 = vpop.f32.mrb[0].mxu0
      %v4519 = vadd.f32 0.0, %v4518
      %4520 = vmatprep.mubr.f32.mxu0 %v259
      %4521 = vmatmul.mubr.f32.gmra.mrb[0].mxu0 %v258
      %v4522 = vpop.f32.mrb[0].mxu0
      %v4523 = vadd.f32 0.0, %v4522
      %v4524 = vpop.f32.mrb[0].mxu0
      %v4525 = vadd.f32 0.0, %v4524
      %4526 = vmatprep.mubr.f32.mxu0 %v261
      %4527 = vmatmul.mubr.f32.gmra.mrb[0].mxu0 %v260
      %v4528 = vpop.f32.mrb[0].mxu0
      %v4529 = vadd.f32 0.0, %v4528
      %v4530 = vpop.f32.mrb[0].mxu0
      %v4531 = vadd.f32 0.0, %v4530
      %4532 = vmatprep.mubr.f32.mxu0 %v263
      %4533 = vmatmul.mubr.f32.gmra.mrb[0].mxu0 %v262
      %v4534 = vpop.f32.mrb[0].mxu0
      %v4535 = vadd.f32 0.0, %v4534
      %v4536 = vpop.f32.mrb[0].mxu0
      %v4537 = vadd.f32 0.0, %v4536
      %4538 = vmatprep.mubr.f32.mxu0 %v265
      %4539 = vmatmul.mubr.f32.gmra.mrb[0].mxu0 %v264
      %v4540 = vpop.f32.mrb[0].mxu0
      %v4541 = vadd.f32 0.0, %v4540
      %v4542 = vpop.f32.mrb[0].mxu0
      %v4543 = vadd.f32 0.0, %v4542
      %4544 = vmatprep.mubr.f32.mxu0 %v267
      %4545 = vmatmul.mubr.f32.gmra.mrb[0].mxu0 %v266
      %v4546 = vpop.f32.mrb[0].mxu0
      %v4547 = vadd.f32 0.0, %v4546
      %v4548 = vpop.f32.mrb[0].mxu0
      %v4549 = vadd.f32 0.0, %v4548
      %4550 = vmatprep.mubr.f32.mxu0 %v269
      %4551 = vmatmul.mubr.f32.gmra.mrb[0].mxu0 %v268
      %v4552 = vpop.f32.mrb[0].mxu0
      %v4553 = vadd.f32 0.0, %v4552
      %v4554 = vpop.f32.mrb[0].mxu0
      %v4555 = vadd.f32 0.0, %v4554
      %4556 = vmatprep.mubr.f32.mxu0 %v271
      %4557 = vmatmul.mubr.f32.gmra.mrb[0].mxu0 %v270
      %v4558 = vpop.f32.mrb[0].mxu0
      %v4559 = vadd.f32 0.0, %v4558
      %v4560 = vpop.f32.mrb[0].mxu0
      %v4561 = vadd.f32 0.0, %v4560
      %4562 = vmatprep.mubr.f32.mxu0 %v273
      %4563 = vmatmul.mubr.f32.gmra.mrb[0].mxu0 %v272
      %v4564 = vpop.f32.mrb[0].mxu0
      %v4565 = vadd.f32 0.0, %v4564
      %v4566 = vpop.f32.mrb[0].mxu0
      %v4567 = vadd.f32 0.0, %v4566
      %4568 = vmatprep.mubr.f32.mxu0 %v275
      %4569 = vmatmul.mubr.f32.gmra.mrb[0].mxu0 %v274
      %v4570 = vpop.f32.mrb[0].mxu0
      %v4571 = vadd.f32 0.0, %v4570
      %v4572 = vpop.f32.mrb[0].mxu0
      %v4573 = vadd.f32 0.0, %v4572
      %4574 = vmatprep.mubr.f32.mxu0 %v277
      %4575 = vmatmul.mubr.f32.gmra.mrb[0].mxu0 %v276
      %v4576 = vpop.f32.mrb[0].mxu0
      %v4577 = vadd.f32 0.0, %v4576
      %v4578 = vpop.f32.mrb[0].mxu0
      %v4579 = vadd.f32 0.0, %v4578
      %4580 = vmatprep.mubr.f32.mxu0 %v279
      %4581 = vmatmul.mubr.f32.gmra.mrb[0].mxu0 %v278
      %v4582 = vpop.f32.mrb[0].mxu0
      %v4583 = vadd.f32 0.0, %v4582
      %v4584 = vpop.f32.mrb[0].mxu0
      %v4585 = vadd.f32 0.0, %v4584
      %4586 = vmatprep.mubr.f32.mxu0 %v281
      %4587 = vmatmul.mubr.f32.gmra.mrb[0].mxu0 %v280
      %v4588 = vpop.f32.mrb[0].mxu0
      %v4589 = vadd.f32 0.0, %v4588
      %v4590 = vpop.f32.mrb[0].mxu0
      %v4591 = vadd.f32 0.0, %v4590
      %4592 = vdwg.mxu0
      %v4593 = vld [vmem:[#allocation2] sm:$0xff]
      %v4594 = vld [vmem:[#allocation2 + $0x8] sm:$0xff]
      %v4595 = vld [vmem:[#allocation2 + $0x10] sm:$0xff]
      %v4596 = vld [vmem:[#allocation2 + $0x18] sm:$0xff]
      %v4597 = vld [vmem:[#allocation2 + $0x20] sm:$0xff]
      %v4598 = vld [vmem:[#allocation2 + $0x28] sm:$0xff]
      %v4599 = vld [vmem:[#allocation2 + $0x30] sm:$0xff]
      %v4600 = vld [vmem:[#allocation2 + $0x38] sm:$0xff]
      %v4601 = vld [vmem:[#allocation2 + $0x40] sm:$0xff]
      %v4602 = vld [vmem:[#allocation2 + $0x48] sm:$0xff]
      %v4603 = vld [vmem:[#allocation2 + $0x50] sm:$0xff]
      %v4604 = vld [vmem:[#allocation2 + $0x58] sm:$0xff]
      %v4605 = vld [vmem:[#allocation2 + $0x60] sm:$0xff]
      %v4606 = vld [vmem:[#allocation2 + $0x68] sm:$0xff]
      %v4607 = vld [vmem:[#allocation2 + $0x70] sm:$0xff]
      %v4608 = vld [vmem:[#allocation2 + $0x78] sm:$0xff]
      %v4609 = vld [vmem:[#allocation2 + $0x80] sm:$0xff]
      %v4610 = vld [vmem:[#allocation2 + $0x88] sm:$0xff]
      %v4611 = vld [vmem:[#allocation2 + $0x90] sm:$0xff]
      %v4612 = vld [vmem:[#allocation2 + $0x98] sm:$0xff]
      %v4613 = vld [vmem:[#allocation2 + $0xa0] sm:$0xff]
      %v4614 = vld [vmem:[#allocation2 + $0xa8] sm:$0xff]
      %v4615 = vld [vmem:[#allocation2 + $0xb0] sm:$0xff]
      %v4616 = vld [vmem:[#allocation2 + $0xb8] sm:$0xff]
      %v4617 = vld [vmem:[#allocation2 + $0xc0] sm:$0xff]
      %v4618 = vld [vmem:[#allocation2 + $0xc8] sm:$0xff]
      %v4619 = vld [vmem:[#allocation2 + $0xd0] sm:$0xff]
      %v4620 = vld [vmem:[#allocation2 + $0xd8] sm:$0xff]
      %v4621 = vld [vmem:[#allocation2 + $0xe0] sm:$0xff]
      %v4622 = vld [vmem:[#allocation2 + $0xe8] sm:$0xff]
      %v4623 = vld [vmem:[#allocation2 + $0xf0] sm:$0xff]
      %v4624 = vld [vmem:[#allocation2 + $0xf8] sm:$0xff]
      %v4625 = vld [vmem:[#allocation2 + $0x100] sm:$0xff]
      %v4626 = vld [vmem:[#allocation2 + $0x108] sm:$0xff]
      %v4627 = vld [vmem:[#allocation2 + $0x110] sm:$0xff]
      %v4628 = vld [vmem:[#allocation2 + $0x118] sm:$0xff]
      %v4629 = vld [vmem:[#allocation2 + $0x120] sm:$0xff]
      %v4630 = vld [vmem:[#allocation2 + $0x128] sm:$0xff]
      %v4631 = vld [vmem:[#allocation2 + $0x130] sm:$0xff]
      %v4632 = vld [vmem:[#allocation2 + $0x138] sm:$0xff]
      %v4633 = vld [vmem:[#allocation2 + $0x140] sm:$0xff]
      %v4634 = vld [vmem:[#allocation2 + $0x148] sm:$0xff]
      %v4635 = vld [vmem:[#allocation2 + $0x150] sm:$0xff]
      %v4636 = vld [vmem:[#allocation2 + $0x158] sm:$0xff]
      %v4637 = vld [vmem:[#allocation2 + $0x160] sm:$0xff]
      %v4638 = vld [vmem:[#allocation2 + $0x168] sm:$0xff]
      %v4639 = vld [vmem:[#allocation2 + $0x170] sm:$0xff]
      %v4640 = vld [vmem:[#allocation2 + $0x178] sm:$0xff]
      %v4641 = vld [vmem:[#allocation2 + $0x180] sm:$0xff]
      %v4642 = vld [vmem:[#allocation2 + $0x188] sm:$0xff]
      %v4643 = vld [vmem:[#allocation2 + $0x190] sm:$0xff]
      %v4644 = vld [vmem:[#allocation2 + $0x198] sm:$0xff]
      %v4645 = vld [vmem:[#allocation2 + $0x1a0] sm:$0xff]
      %v4646 = vld [vmem:[#allocation2 + $0x1a8] sm:$0xff]
      %v4647 = vld [vmem:[#allocation2 + $0x1b0] sm:$0xff]
      %v4648 = vld [vmem:[#allocation2 + $0x1b8] sm:$0xff]
      %v4649 = vld [vmem:[#allocation2 + $0x1c0] sm:$0xff]
      %v4650 = vld [vmem:[#allocation2 + $0x1c8] sm:$0xff]
      %v4651 = vld [vmem:[#allocation2 + $0x1d0] sm:$0xff]
      %v4652 = vld [vmem:[#allocation2 + $0x1d8] sm:$0xff]
      %v4653 = vld [vmem:[#allocation2 + $0x1e0] sm:$0xff]
      %v4654 = vld [vmem:[#allocation2 + $0x1e8] sm:$0xff]
      %v4655 = vld [vmem:[#allocation2 + $0x1f0] sm:$0xff]
      %v4656 = vld [vmem:[#allocation2 + $0x1f8] sm:$0xff]
      %v4657 = vadd.f32 %v4593, %v4427
      %v4658 = vadd.f32 %v4594, %v4429
      %v4659 = vadd.f32 %v4595, %v4433
      %v4660 = vadd.f32 %v4596, %v4435
      %v4661 = vadd.f32 %v4597, %v4439
      %v4662 = vadd.f32 %v4598, %v4441
      %v4663 = vadd.f32 %v4599, %v4445
      %v4664 = vadd.f32 %v4600, %v4447
      %v4665 = vadd.f32 %v4601, %v4451
      %v4666 = vadd.f32 %v4602, %v4453
      %v4667 = vadd.f32 %v4603, %v4457
      %v4668 = vadd.f32 %v4604, %v4459
      %v4669 = vadd.f32 %v4605, %v4463
      %v4670 = vadd.f32 %v4606, %v4465
      %v4671 = vadd.f32 %v4607, %v4469
      %v4672 = vadd.f32 %v4608, %v4471
      %v4673 = vadd.f32 %v4609, %v4475
      %v4674 = vadd.f32 %v4610, %v4477
      %v4675 = vadd.f32 %v4611, %v4481
      %v4676 = vadd.f32 %v4612, %v4483
      %v4677 = vadd.f32 %v4613, %v4487
      %v4678 = vadd.f32 %v4614, %v4489
      %v4679 = vadd.f32 %v4615, %v4493
      %v4680 = vadd.f32 %v4616, %v4495
      %v4681 = vadd.f32 %v4617, %v4499
      %v4682 = vadd.f32 %v4618, %v4501
      %v4683 = vadd.f32 %v4619, %v4505
      %v4684 = vadd.f32 %v4620, %v4507
      %v4685 = vadd.f32 %v4621, %v4511
      %v4686 = vadd.f32 %v4622, %v4513
      %v4687 = vadd.f32 %v4623, %v4517
      %v4688 = vadd.f32 %v4624, %v4519
      %v4689 = vadd.f32 %v4625, %v4523
      %v4690 = vadd.f32 %v4626, %v4525
      %v4691 = vadd.f32 %v4627, %v4529
      %v4692 = vadd.f32 %v4628, %v4531
      %v4693 = vadd.f32 %v4629, %v4535
      %v4694 = vadd.f32 %v4630, %v4537
      %v4695 = vadd.f32 %v4631, %v4541
      %v4696 = vadd.f32 %v4632, %v4543
      %v4697 = vadd.f32 %v4633, %v4547
      %v4698 = vadd.f32 %v4634, %v4549
      %v4699 = vadd.f32 %v4635, %v4553
      %v4700 = vadd.f32 %v4636, %v4555
      %v4701 = vadd.f32 %v4637, %v4559
      %v4702 = vadd.f32 %v4638, %v4561
      %v4703 = vadd.f32 %v4639, %v4565
      %v4704 = vadd.f32 %v4640, %v4567
      %v4705 = vadd.f32 %v4641, %v4571
      %v4706 = vadd.f32 %v4642, %v4573
      %v4707 = vadd.f32 %v4643, %v4577
      %v4708 = vadd.f32 %v4644, %v4579
      %v4709 = vadd.f32 %v4645, %v4583
      %v4710 = vadd.f32 %v4646, %v4585
      %v4711 = vadd.f32 %v4647, %v4589
      %v4712 = vadd.f32 %v4648, %v4591
      %v4713 = vadd.f32 %v4649, %v4403
      %v4714 = vadd.f32 %v4650, %v4405
      %v4715 = vadd.f32 %v4651, %v4409
      %v4716 = vadd.f32 %v4652, %v4411
      %v4717 = vadd.f32 %v4653, %v4415
      %v4718 = vadd.f32 %v4654, %v4417
      %v4719 = vadd.f32 %v4655, %v4421
      %v4720 = vadd.f32 %v4656, %v4423
      %4721 = vst [vmem:[#allocation2] sm:$0xff] %v4657
      %4722 = vst [vmem:[#allocation2 + $0x8] sm:$0xff] %v4658
      %4723 = vst [vmem:[#allocation2 + $0x10] sm:$0xff] %v4659
      %4724 = vst [vmem:[#allocation2 + $0x18] sm:$0xff] %v4660
      %4725 = vst [vmem:[#allocation2 + $0x20] sm:$0xff] %v4661
      %4726 = vst [vmem:[#allocation2 + $0x28] sm:$0xff] %v4662
      %4727 = vst [vmem:[#allocation2 + $0x30] sm:$0xff] %v4663
      %4728 = vst [vmem:[#allocation2 + $0x38] sm:$0xff] %v4664
      %4729 = vst [vmem:[#allocation2 + $0x40] sm:$0xff] %v4665
      %4730 = vst [vmem:[#allocation2 + $0x48] sm:$0xff] %v4666
      %4731 = vst [vmem:[#allocation2 + $0x50] sm:$0xff] %v4667
      %4732 = vst [vmem:[#allocation2 + $0x58] sm:$0xff] %v4668
      %4733 = vst [vmem:[#allocation2 + $0x60] sm:$0xff] %v4669
      %4734 = vst [vmem:[#allocation2 + $0x68] sm:$0xff] %v4670
      %4735 = vst [vmem:[#allocation2 + $0x70] sm:$0xff] %v4671
      %4736 = vst [vmem:[#allocation2 + $0x78] sm:$0xff] %v4672
      %4737 = vst [vmem:[#allocation2 + $0x80] sm:$0xff] %v4673
      %4738 = vst [vmem:[#allocation2 + $0x88] sm:$0xff] %v4674
      %4739 = vst [vmem:[#allocation2 + $0x90] sm:$0xff] %v4675
      %4740 = vst [vmem:[#allocation2 + $0x98] sm:$0xff] %v4676
      %4741 = vst [vmem:[#allocation2 + $0xa0] sm:$0xff] %v4677
      %4742 = vst [vmem:[#allocation2 + $0xa8] sm:$0xff] %v4678
      %4743 = vst [vmem:[#allocation2 + $0xb0] sm:$0xff] %v4679
      %4744 = vst [vmem:[#allocation2 + $0xb8] sm:$0xff] %v4680
      %4745 = vst [vmem:[#allocation2 + $0xc0] sm:$0xff] %v4681
      %4746 = vst [vmem:[#allocation2 + $0xc8] sm:$0xff] %v4682
      %4747 = vst [vmem:[#allocation2 + $0xd0] sm:$0xff] %v4683
      %4748 = vst [vmem:[#allocation2 + $0xd8] sm:$0xff] %v4684
      %4749 = vst [vmem:[#allocation2 + $0xe0] sm:$0xff] %v4685
      %4750 = vst [vmem:[#allocation2 + $0xe8] sm:$0xff] %v4686
      %4751 = vst [vmem:[#allocation2 + $0xf0] sm:$0xff] %v4687
      %4752 = vst [vmem:[#allocation2 + $0xf8] sm:$0xff] %v4688
      %4753 = vst [vmem:[#allocation2 + $0x100] sm:$0xff] %v4689
      %4754 = vst [vmem:[#allocation2 + $0x108] sm:$0xff] %v4690
      %4755 = vst [vmem:[#allocation2 + $0x110] sm:$0xff] %v4691
      %4756 = vst [vmem:[#allocation2 + $0x118] sm:$0xff] %v4692
      %4757 = vst [vmem:[#allocation2 + $0x120] sm:$0xff] %v4693
      %4758 = vst [vmem:[#allocation2 + $0x128] sm:$0xff] %v4694
      %4759 = vst [vmem:[#allocation2 + $0x130] sm:$0xff] %v4695
      %4760 = vst [vmem:[#allocation2 + $0x138] sm:$0xff] %v4696
      %4761 = vst [vmem:[#allocation2 + $0x140] sm:$0xff] %v4697
      %4762 = vst [vmem:[#allocation2 + $0x148] sm:$0xff] %v4698
      %4763 = vst [vmem:[#allocation2 + $0x150] sm:$0xff] %v4699
      %4764 = vst [vmem:[#allocation2 + $0x158] sm:$0xff] %v4700
      %4765 = vst [vmem:[#allocation2 + $0x160] sm:$0xff] %v4701
      %4766 = vst [vmem:[#allocation2 + $0x168] sm:$0xff] %v4702
      %4767 = vst [vmem:[#allocation2 + $0x170] sm:$0xff] %v4703
      %4768 = vst [vmem:[#allocation2 + $0x178] sm:$0xff] %v4704
      %4769 = vst [vmem:[#allocation2 + $0x180] sm:$0xff] %v4705
      %4770 = vst [vmem:[#allocation2 + $0x188] sm:$0xff] %v4706
      %4771 = vst [vmem:[#allocation2 + $0x190] sm:$0xff] %v4707
      %4772 = vst [vmem:[#allocation2 + $0x198] sm:$0xff] %v4708
      %4773 = vst [vmem:[#allocation2 + $0x1a0] sm:$0xff] %v4709
      %4774 = vst [vmem:[#allocation2 + $0x1a8] sm:$0xff] %v4710
      %4775 = vst [vmem:[#allocation2 + $0x1b0] sm:$0xff] %v4711
      %4776 = vst [vmem:[#allocation2 + $0x1b8] sm:$0xff] %v4712
      %4777 = vst [vmem:[#allocation2 + $0x1c0] sm:$0xff] %v4713
      %4778 = vst [vmem:[#allocation2 + $0x1c8] sm:$0xff] %v4714
      %4779 = vst [vmem:[#allocation2 + $0x1d0] sm:$0xff] %v4715
      %4780 = vst [vmem:[#allocation2 + $0x1d8] sm:$0xff] %v4716
      %4781 = vst [vmem:[#allocation2 + $0x1e0] sm:$0xff] %v4717
      %4782 = vst [vmem:[#allocation2 + $0x1e8] sm:$0xff] %v4718
      %4783 = vst [vmem:[#allocation2 + $0x1f0] sm:$0xff] %v4719
      %4784 = vst [vmem:[#allocation2 + $0x1f8] sm:$0xff] %v4720
      %s4785 = scalar_lea.vmem %s1, 3584
      %v4786 = vld [vmem:[%s4785] sm:$0xff]
      %v4787 = vld [vmem:[%s4785 + $0x8] sm:$0xff]
      %v4788 = vld [vmem:[%s4785 + $0x10] sm:$0xff]
      %v4789 = vld [vmem:[%s4785 + $0x18] sm:$0xff]
      %v4790 = vld [vmem:[%s4785 + $0x20] sm:$0xff]
      %v4791 = vld [vmem:[%s4785 + $0x28] sm:$0xff]
      %v4792 = vld [vmem:[%s4785 + $0x30] sm:$0xff]
      %v4793 = vld [vmem:[%s4785 + $0x38] sm:$0xff]
      %v4794 = vld [vmem:[%s4785 + $0x40] sm:$0xff]
      %v4795 = vld [vmem:[%s4785 + $0x48] sm:$0xff]
      %v4796 = vld [vmem:[%s4785 + $0x50] sm:$0xff]
      %v4797 = vld [vmem:[%s4785 + $0x58] sm:$0xff]
      %v4798 = vld [vmem:[%s4785 + $0x60] sm:$0xff]
      %v4799 = vld [vmem:[%s4785 + $0x68] sm:$0xff]
      %v4800 = vld [vmem:[%s4785 + $0x70] sm:$0xff]
      %v4801 = vld [vmem:[%s4785 + $0x78] sm:$0xff]
      %v4802 = vld [vmem:[%s4785 + $0x80] sm:$0xff]
      %v4803 = vld [vmem:[%s4785 + $0x88] sm:$0xff]
      %v4804 = vld [vmem:[%s4785 + $0x90] sm:$0xff]
      %v4805 = vld [vmem:[%s4785 + $0x98] sm:$0xff]
      %v4806 = vld [vmem:[%s4785 + $0xa0] sm:$0xff]
      %v4807 = vld [vmem:[%s4785 + $0xa8] sm:$0xff]
      %v4808 = vld [vmem:[%s4785 + $0xb0] sm:$0xff]
      %v4809 = vld [vmem:[%s4785 + $0xb8] sm:$0xff]
      %v4810 = vld [vmem:[%s4785 + $0xc0] sm:$0xff]
      %v4811 = vld [vmem:[%s4785 + $0xc8] sm:$0xff]
      %v4812 = vld [vmem:[%s4785 + $0xd0] sm:$0xff]
      %v4813 = vld [vmem:[%s4785 + $0xd8] sm:$0xff]
      %v4814 = vld [vmem:[%s4785 + $0xe0] sm:$0xff]
      %v4815 = vld [vmem:[%s4785 + $0xe8] sm:$0xff]
      %v4816 = vld [vmem:[%s4785 + $0xf0] sm:$0xff]
      %v4817 = vld [vmem:[%s4785 + $0xf8] sm:$0xff]
      %v4818 = vld [vmem:[%s4785 + $0x100] sm:$0xff]
      %v4819 = vld [vmem:[%s4785 + $0x108] sm:$0xff]
      %v4820 = vld [vmem:[%s4785 + $0x110] sm:$0xff]
      %v4821 = vld [vmem:[%s4785 + $0x118] sm:$0xff]
      %v4822 = vld [vmem:[%s4785 + $0x120] sm:$0xff]
      %v4823 = vld [vmem:[%s4785 + $0x128] sm:$0xff]
      %v4824 = vld [vmem:[%s4785 + $0x130] sm:$0xff]
      %v4825 = vld [vmem:[%s4785 + $0x138] sm:$0xff]
      %v4826 = vld [vmem:[%s4785 + $0x140] sm:$0xff]
      %v4827 = vld [vmem:[%s4785 + $0x148] sm:$0xff]
      %v4828 = vld [vmem:[%s4785 + $0x150] sm:$0xff]
      %v4829 = vld [vmem:[%s4785 + $0x158] sm:$0xff]
      %v4830 = vld [vmem:[%s4785 + $0x160] sm:$0xff]
      %v4831 = vld [vmem:[%s4785 + $0x168] sm:$0xff]
      %v4832 = vld [vmem:[%s4785 + $0x170] sm:$0xff]
      %v4833 = vld [vmem:[%s4785 + $0x178] sm:$0xff]
      %v4834 = vld [vmem:[%s4785 + $0x180] sm:$0xff]
      %v4835 = vld [vmem:[%s4785 + $0x188] sm:$0xff]
      %v4836 = vld [vmem:[%s4785 + $0x190] sm:$0xff]
      %v4837 = vld [vmem:[%s4785 + $0x198] sm:$0xff]
      %v4838 = vld [vmem:[%s4785 + $0x1a0] sm:$0xff]
      %v4839 = vld [vmem:[%s4785 + $0x1a8] sm:$0xff]
      %v4840 = vld [vmem:[%s4785 + $0x1b0] sm:$0xff]
      %v4841 = vld [vmem:[%s4785 + $0x1b8] sm:$0xff]
      %v4842 = vld [vmem:[%s4785 + $0x1c0] sm:$0xff]
      %v4843 = vld [vmem:[%s4785 + $0x1c8] sm:$0xff]
      %v4844 = vld [vmem:[%s4785 + $0x1d0] sm:$0xff]
      %v4845 = vld [vmem:[%s4785 + $0x1d8] sm:$0xff]
      %v4846 = vld [vmem:[%s4785 + $0x1e0] sm:$0xff]
      %v4847 = vld [vmem:[%s4785 + $0x1e8] sm:$0xff]
      %v4848 = vld [vmem:[%s4785 + $0x1f0] sm:$0xff]
      %v4849 = vld [vmem:[%s4785 + $0x1f8] sm:$0xff]
      %4850 = vmatprep.subr.mxu0 %v4787
      %4851 = vmatpush1.msra.mxu0 %v4786
      %4852 = vmatprep.subr.mxu0 %v4789
      %4853 = vmatpush1.msra.mxu0 %v4788
      %4854 = vmatprep.subr.mxu0 %v4791
      %4855 = vmatpush1.msra.mxu0 %v4790
      %4856 = vmatprep.subr.mxu0 %v4793
      %4857 = vmatpush1.msra.mxu0 %v4792
      %4858 = vmatprep.subr.mxu0 %v4795
      %4859 = vmatpush1.msra.mxu0 %v4794
      %4860 = vmatprep.subr.mxu0 %v4797
      %4861 = vmatpush1.msra.mxu0 %v4796
      %4862 = vmatprep.subr.mxu0 %v4799
      %4863 = vmatpush1.msra.mxu0 %v4798
      %4864 = vmatprep.subr.mxu0 %v4801
      %4865 = vmatpush1.msra.mxu0 %v4800
      %4866 = vmatprep.subr.mxu0 %v4803
      %4867 = vmatpush1.msra.mxu0 %v4802
      %4868 = vmatprep.subr.mxu0 %v4805
      %4869 = vmatpush1.msra.mxu0 %v4804
      %4870 = vmatprep.subr.mxu0 %v4807
      %4871 = vmatpush1.msra.mxu0 %v4806
      %4872 = vmatprep.subr.mxu0 %v4809
      %4873 = vmatpush1.msra.mxu0 %v4808
      %4874 = vmatprep.subr.mxu0 %v4811
      %4875 = vmatpush1.msra.mxu0 %v4810
      %4876 = vmatprep.subr.mxu0 %v4813
      %4877 = vmatpush1.msra.mxu0 %v4812
      %4878 = vmatprep.subr.mxu0 %v4815
      %4879 = vmatpush1.msra.mxu0 %v4814
      %4880 = vmatprep.subr.mxu0 %v4817
      %4881 = vmatpush1.msra.mxu0 %v4816
      %4882 = vmatprep.subr.mxu0 %v4819
      %4883 = vmatpush1.msra.mxu0 %v4818
      %4884 = vmatprep.subr.mxu0 %v4821
      %4885 = vmatpush1.msra.mxu0 %v4820
      %4886 = vmatprep.subr.mxu0 %v4823
      %4887 = vmatpush1.msra.mxu0 %v4822
      %4888 = vmatprep.subr.mxu0 %v4825
      %4889 = vmatpush1.msra.mxu0 %v4824
      %4890 = vmatprep.subr.mxu0 %v4827
      %4891 = vmatpush1.msra.mxu0 %v4826
      %4892 = vmatprep.subr.mxu0 %v4829
      %4893 = vmatpush1.msra.mxu0 %v4828
      %4894 = vmatprep.subr.mxu0 %v4831
      %4895 = vmatpush1.msra.mxu0 %v4830
      %4896 = vmatprep.subr.mxu0 %v4833
      %4897 = vmatpush1.msra.mxu0 %v4832
      %4898 = vmatprep.subr.mxu0 %v4835
      %4899 = vmatpush1.msra.mxu0 %v4834
      %4900 = vmatprep.subr.mxu0 %v4837
      %4901 = vmatpush1.msra.mxu0 %v4836
      %4902 = vmatprep.subr.mxu0 %v4839
      %4903 = vmatpush1.msra.mxu0 %v4838
      %4904 = vmatprep.subr.mxu0 %v4841
      %4905 = vmatpush1.msra.mxu0 %v4840
      %4906 = vmatprep.subr.mxu0 %v4843
      %4907 = vmatpush1.msra.mxu0 %v4842
      %4908 = vmatprep.subr.mxu0 %v4845
      %4909 = vmatpush1.msra.mxu0 %v4844
      %4910 = vmatprep.subr.mxu0 %v4847
      %4911 = vmatpush1.msra.mxu0 %v4846
      %4912 = vmatprep.subr.mxu0 %v4849
      %4913 = vmatpush1.msra.mxu0 %v4848
      %4914 = vmatprep.mubr.f32.mxu0 %v219
      %4915 = vmatmul.mubr.f32.gmra.mrb[0].mxu0 %v218
      %v4916 = vpop.f32.mrb[0].mxu0
      %v4917 = vadd.f32 0.0, %v4916
      %v4918 = vpop.f32.mrb[0].mxu0
      %v4919 = vadd.f32 0.0, %v4918
      %4920 = vmatprep.mubr.f32.mxu0 %v221
      %4921 = vmatmul.mubr.f32.gmra.mrb[0].mxu0 %v220
      %v4922 = vpop.f32.mrb[0].mxu0
      %v4923 = vadd.f32 0.0, %v4922
      %v4924 = vpop.f32.mrb[0].mxu0
      %v4925 = vadd.f32 0.0, %v4924
      %4926 = vmatprep.mubr.f32.mxu0 %v223
      %4927 = vmatmul.mubr.f32.gmra.mrb[0].mxu0 %v222
      %v4928 = vpop.f32.mrb[0].mxu0
      %v4929 = vadd.f32 0.0, %v4928
      %v4930 = vpop.f32.mrb[0].mxu0
      %v4931 = vadd.f32 0.0, %v4930
      %4932 = vmatprep.mubr.f32.mxu0 %v225
      %4933 = vmatmul.mubr.f32.gmra.mrb[0].mxu0 %v224
      %v4934 = vpop.f32.mrb[0].mxu0
      %v4935 = vadd.f32 0.0, %v4934
      %v4936 = vpop.f32.mrb[0].mxu0
      %v4937 = vadd.f32 0.0, %v4936
      %4938 = vmatprep.mubr.f32.mxu0 %v227
      %4939 = vmatmul.mubr.f32.gmra.mrb[0].mxu0 %v226
      %v4940 = vpop.f32.mrb[0].mxu0
      %v4941 = vadd.f32 0.0, %v4940
      %v4942 = vpop.f32.mrb[0].mxu0
      %v4943 = vadd.f32 0.0, %v4942
      %4944 = vmatprep.mubr.f32.mxu0 %v229
      %4945 = vmatmul.mubr.f32.gmra.mrb[0].mxu0 %v228
      %v4946 = vpop.f32.mrb[0].mxu0
      %v4947 = vadd.f32 0.0, %v4946
      %v4948 = vpop.f32.mrb[0].mxu0
      %v4949 = vadd.f32 0.0, %v4948
      %4950 = vmatprep.mubr.f32.mxu0 %v231
      %4951 = vmatmul.mubr.f32.gmra.mrb[0].mxu0 %v230
      %v4952 = vpop.f32.mrb[0].mxu0
      %v4953 = vadd.f32 0.0, %v4952
      %v4954 = vpop.f32.mrb[0].mxu0
      %v4955 = vadd.f32 0.0, %v4954
      %4956 = vmatprep.mubr.f32.mxu0 %v233
      %4957 = vmatmul.mubr.f32.gmra.mrb[0].mxu0 %v232
      %v4958 = vpop.f32.mrb[0].mxu0
      %v4959 = vadd.f32 0.0, %v4958
      %v4960 = vpop.f32.mrb[0].mxu0
      %v4961 = vadd.f32 0.0, %v4960
      %4962 = vmatprep.mubr.f32.mxu0 %v235
      %4963 = vmatmul.mubr.f32.gmra.mrb[0].mxu0 %v234
      %v4964 = vpop.f32.mrb[0].mxu0
      %v4965 = vadd.f32 0.0, %v4964
      %v4966 = vpop.f32.mrb[0].mxu0
      %v4967 = vadd.f32 0.0, %v4966
      %4968 = vmatprep.mubr.f32.mxu0 %v237
      %4969 = vmatmul.mubr.f32.gmra.mrb[0].mxu0 %v236
      %v4970 = vpop.f32.mrb[0].mxu0
      %v4971 = vadd.f32 0.0, %v4970
      %v4972 = vpop.f32.mrb[0].mxu0
      %v4973 = vadd.f32 0.0, %v4972
      %4974 = vmatprep.mubr.f32.mxu0 %v239
      %4975 = vmatmul.mubr.f32.gmra.mrb[0].mxu0 %v238
      %v4976 = vpop.f32.mrb[0].mxu0
      %v4977 = vadd.f32 0.0, %v4976
      %v4978 = vpop.f32.mrb[0].mxu0
      %v4979 = vadd.f32 0.0, %v4978
      %4980 = vmatprep.mubr.f32.mxu0 %v241
      %4981 = vmatmul.mubr.f32.gmra.mrb[0].mxu0 %v240
      %v4982 = vpop.f32.mrb[0].mxu0
      %v4983 = vadd.f32 0.0, %v4982
      %v4984 = vpop.f32.mrb[0].mxu0
      %v4985 = vadd.f32 0.0, %v4984
      %4986 = vmatprep.mubr.f32.mxu0 %v243
      %4987 = vmatmul.mubr.f32.gmra.mrb[0].mxu0 %v242
      %v4988 = vpop.f32.mrb[0].mxu0
      %v4989 = vadd.f32 0.0, %v4988
      %v4990 = vpop.f32.mrb[0].mxu0
      %v4991 = vadd.f32 0.0, %v4990
      %4992 = vmatprep.mubr.f32.mxu0 %v245
      %4993 = vmatmul.mubr.f32.gmra.mrb[0].mxu0 %v244
      %v4994 = vpop.f32.mrb[0].mxu0
      %v4995 = vadd.f32 0.0, %v4994
      %v4996 = vpop.f32.mrb[0].mxu0
      %v4997 = vadd.f32 0.0, %v4996
      %4998 = vmatprep.mubr.f32.mxu0 %v247
      %4999 = vmatmul.mubr.f32.gmra.mrb[0].mxu0 %v246
      %v5000 = vpop.f32.mrb[0].mxu0
      %v5001 = vadd.f32 0.0, %v5000
      %v5002 = vpop.f32.mrb[0].mxu0
      %v5003 = vadd.f32 0.0, %v5002
      %5004 = vmatprep.mubr.f32.mxu0 %v249
      %5005 = vmatmul.mubr.f32.gmra.mrb[0].mxu0 %v248
      %v5006 = vpop.f32.mrb[0].mxu0
      %v5007 = vadd.f32 0.0, %v5006
      %v5008 = vpop.f32.mrb[0].mxu0
      %v5009 = vadd.f32 0.0, %v5008
      %5010 = vmatprep.mubr.f32.mxu0 %v251
      %5011 = vmatmul.mubr.f32.gmra.mrb[0].mxu0 %v250
      %v5012 = vpop.f32.mrb[0].mxu0
      %v5013 = vadd.f32 0.0, %v5012
      %v5014 = vpop.f32.mrb[0].mxu0
      %v5015 = vadd.f32 0.0, %v5014
      %5016 = vmatprep.mubr.f32.mxu0 %v253
      %5017 = vmatmul.mubr.f32.gmra.mrb[0].mxu0 %v252
      %v5018 = vpop.f32.mrb[0].mxu0
      %v5019 = vadd.f32 0.0, %v5018
      %v5020 = vpop.f32.mrb[0].mxu0
      %v5021 = vadd.f32 0.0, %v5020
      %5022 = vmatprep.mubr.f32.mxu0 %v255
      %5023 = vmatmul.mubr.f32.gmra.mrb[0].mxu0 %v254
      %v5024 = vpop.f32.mrb[0].mxu0
      %v5025 = vadd.f32 0.0, %v5024
      %v5026 = vpop.f32.mrb[0].mxu0
      %v5027 = vadd.f32 0.0, %v5026
      %5028 = vmatprep.mubr.f32.mxu0 %v257
      %5029 = vmatmul.mubr.f32.gmra.mrb[0].mxu0 %v256
      %v5030 = vpop.f32.mrb[0].mxu0
      %v5031 = vadd.f32 0.0, %v5030
      %v5032 = vpop.f32.mrb[0].mxu0
      %v5033 = vadd.f32 0.0, %v5032
      %5034 = vmatprep.mubr.f32.mxu0 %v259
      %5035 = vmatmul.mubr.f32.gmra.mrb[0].mxu0 %v258
      %v5036 = vpop.f32.mrb[0].mxu0
      %v5037 = vadd.f32 0.0, %v5036
      %v5038 = vpop.f32.mrb[0].mxu0
      %v5039 = vadd.f32 0.0, %v5038
      %5040 = vmatprep.mubr.f32.mxu0 %v261
      %5041 = vmatmul.mubr.f32.gmra.mrb[0].mxu0 %v260
      %v5042 = vpop.f32.mrb[0].mxu0
      %v5043 = vadd.f32 0.0, %v5042
      %v5044 = vpop.f32.mrb[0].mxu0
      %v5045 = vadd.f32 0.0, %v5044
      %5046 = vmatprep.mubr.f32.mxu0 %v263
      %5047 = vmatmul.mubr.f32.gmra.mrb[0].mxu0 %v262
      %v5048 = vpop.f32.mrb[0].mxu0
      %v5049 = vadd.f32 0.0, %v5048
      %v5050 = vpop.f32.mrb[0].mxu0
      %v5051 = vadd.f32 0.0, %v5050
      %5052 = vmatprep.mubr.f32.mxu0 %v265
      %5053 = vmatmul.mubr.f32.gmra.mrb[0].mxu0 %v264
      %v5054 = vpop.f32.mrb[0].mxu0
      %v5055 = vadd.f32 0.0, %v5054
      %v5056 = vpop.f32.mrb[0].mxu0
      %v5057 = vadd.f32 0.0, %v5056
      %5058 = vmatprep.mubr.f32.mxu0 %v267
      %5059 = vmatmul.mubr.f32.gmra.mrb[0].mxu0 %v266
      %v5060 = vpop.f32.mrb[0].mxu0
      %v5061 = vadd.f32 0.0, %v5060
      %v5062 = vpop.f32.mrb[0].mxu0
      %v5063 = vadd.f32 0.0, %v5062
      %5064 = vmatprep.mubr.f32.mxu0 %v269
      %5065 = vmatmul.mubr.f32.gmra.mrb[0].mxu0 %v268
      %v5066 = vpop.f32.mrb[0].mxu0
      %v5067 = vadd.f32 0.0, %v5066
      %v5068 = vpop.f32.mrb[0].mxu0
      %v5069 = vadd.f32 0.0, %v5068
      %5070 = vmatprep.mubr.f32.mxu0 %v271
      %5071 = vmatmul.mubr.f32.gmra.mrb[0].mxu0 %v270
      %v5072 = vpop.f32.mrb[0].mxu0
      %v5073 = vadd.f32 0.0, %v5072
      %v5074 = vpop.f32.mrb[0].mxu0
      %v5075 = vadd.f32 0.0, %v5074
      %5076 = vmatprep.mubr.f32.mxu0 %v273
      %5077 = vmatmul.mubr.f32.gmra.mrb[0].mxu0 %v272
      %v5078 = vpop.f32.mrb[0].mxu0
      %v5079 = vadd.f32 0.0, %v5078
      %v5080 = vpop.f32.mrb[0].mxu0
      %v5081 = vadd.f32 0.0, %v5080
      %5082 = vmatprep.mubr.f32.mxu0 %v275
      %5083 = vmatmul.mubr.f32.gmra.mrb[0].mxu0 %v274
      %v5084 = vpop.f32.mrb[0].mxu0
      %v5085 = vadd.f32 0.0, %v5084
      %v5086 = vpop.f32.mrb[0].mxu0
      %v5087 = vadd.f32 0.0, %v5086
      %5088 = vmatprep.mubr.f32.mxu0 %v277
      %5089 = vmatmul.mubr.f32.gmra.mrb[0].mxu0 %v276
      %v5090 = vpop.f32.mrb[0].mxu0
      %v5091 = vadd.f32 0.0, %v5090
      %v5092 = vpop.f32.mrb[0].mxu0
      %v5093 = vadd.f32 0.0, %v5092
      %5094 = vmatprep.mubr.f32.mxu0 %v279
      %5095 = vmatmul.mubr.f32.gmra.mrb[0].mxu0 %v278
      %v5096 = vpop.f32.mrb[0].mxu0
      %v5097 = vadd.f32 0.0, %v5096
      %v5098 = vpop.f32.mrb[0].mxu0
      %v5099 = vadd.f32 0.0, %v5098
      %5100 = vmatprep.mubr.f32.mxu0 %v281
      %5101 = vmatmul.mubr.f32.gmra.mrb[0].mxu0 %v280
      %v5102 = vpop.f32.mrb[0].mxu0
      %v5103 = vadd.f32 0.0, %v5102
      %v5104 = vpop.f32.mrb[0].mxu0
      %v5105 = vadd.f32 0.0, %v5104
      %5106 = vdwg.mxu0
      %v5163 = vrot.slane %v4941, 1
      %v5164 = vrot.slane %v4947, 1
      %v5165 = vsel %vm1053, %v5163, %v5164
      %v5166 = vrot.slane %v4943, 1
      %v5167 = vrot.slane %v4949, 1
      %v5168 = vsel %vm1053, %v5166, %v5167
      %v5169 = vrot.slane %v4953, 1
      %v5170 = vsel %vm1053, %v5164, %v5169
      %v5171 = vrot.slane %v4955, 1
      %v5172 = vsel %vm1053, %v5167, %v5171
      %v5173 = vrot.slane %v4959, 1
      %v5174 = vsel %vm1053, %v5169, %v5173
      %v5175 = vrot.slane %v4961, 1
      %v5176 = vsel %vm1053, %v5171, %v5175
      %v5177 = vrot.slane %v4965, 1
      %v5178 = vsel %vm1053, %v5173, %v5177
      %v5179 = vrot.slane %v4967, 1
      %v5180 = vsel %vm1053, %v5175, %v5179
      %v5181 = vrot.slane %v4971, 1
      %v5182 = vsel %vm1053, %v5177, %v5181
      %v5183 = vrot.slane %v4973, 1
      %v5184 = vsel %vm1053, %v5179, %v5183
      %v5185 = vrot.slane %v4977, 1
      %v5186 = vsel %vm1053, %v5181, %v5185
      %v5187 = vrot.slane %v4979, 1
      %v5188 = vsel %vm1053, %v5183, %v5187
      %v5189 = vrot.slane %v4983, 1
      %v5190 = vsel %vm1053, %v5185, %v5189
      %v5191 = vrot.slane %v4985, 1
      %v5192 = vsel %vm1053, %v5187, %v5191
      %v5193 = vrot.slane %v4989, 1
      %v5194 = vsel %vm1053, %v5189, %v5193
      %v5195 = vrot.slane %v4991, 1
      %v5196 = vsel %vm1053, %v5191, %v5195
      %v5197 = vrot.slane %v4995, 1
      %v5198 = vsel %vm1053, %v5193, %v5197
      %v5199 = vrot.slane %v4997, 1
      %v5200 = vsel %vm1053, %v5195, %v5199
      %v5201 = vrot.slane %v5001, 1
      %v5202 = vsel %vm1053, %v5197, %v5201
      %v5203 = vrot.slane %v5003, 1
      %v5204 = vsel %vm1053, %v5199, %v5203
      %v5205 = vrot.slane %v5007, 1
      %v5206 = vsel %vm1053, %v5201, %v5205
      %v5207 = vrot.slane %v5009, 1
      %v5208 = vsel %vm1053, %v5203, %v5207
      %v5209 = vrot.slane %v5013, 1
      %v5210 = vsel %vm1053, %v5205, %v5209
      %v5211 = vrot.slane %v5015, 1
      %v5212 = vsel %vm1053, %v5207, %v5211
      %v5213 = vrot.slane %v5019, 1
      %v5214 = vsel %vm1053, %v5209, %v5213
      %v5215 = vrot.slane %v5021, 1
      %v5216 = vsel %vm1053, %v5211, %v5215
      %v5217 = vrot.slane %v5025, 1
      %v5218 = vsel %vm1053, %v5213, %v5217
      %v5219 = vrot.slane %v5027, 1
      %v5220 = vsel %vm1053, %v5215, %v5219
      %v5221 = vrot.slane %v5031, 1
      %v5222 = vsel %vm1053, %v5217, %v5221
      %v5223 = vrot.slane %v5033, 1
      %v5224 = vsel %vm1053, %v5219, %v5223
      %v5225 = vrot.slane %v5037, 1
      %v5226 = vsel %vm1053, %v5221, %v5225
      %v5227 = vrot.slane %v5039, 1
      %v5228 = vsel %vm1053, %v5223, %v5227
      %v5229 = vrot.slane %v5043, 1
      %v5230 = vsel %vm1053, %v5225, %v5229
      %v5231 = vrot.slane %v5045, 1
      %v5232 = vsel %vm1053, %v5227, %v5231
      %v5233 = vrot.slane %v5049, 1
      %v5234 = vsel %vm1053, %v5229, %v5233
      %v5235 = vrot.slane %v5051, 1
      %v5236 = vsel %vm1053, %v5231, %v5235
      %v5237 = vrot.slane %v5055, 1
      %v5238 = vsel %vm1053, %v5233, %v5237
      %v5239 = vrot.slane %v5057, 1
      %v5240 = vsel %vm1053, %v5235, %v5239
      %v5241 = vrot.slane %v5061, 1
      %v5242 = vsel %vm1053, %v5237, %v5241
      %v5243 = vrot.slane %v5063, 1
      %v5244 = vsel %vm1053, %v5239, %v5243
      %v5245 = vrot.slane %v5067, 1
      %v5246 = vsel %vm1053, %v5241, %v5245
      %v5247 = vrot.slane %v5069, 1
      %v5248 = vsel %vm1053, %v5243, %v5247
      %v5249 = vrot.slane %v5073, 1
      %v5250 = vsel %vm1053, %v5245, %v5249
      %v5251 = vrot.slane %v5075, 1
      %v5252 = vsel %vm1053, %v5247, %v5251
      %v5253 = vrot.slane %v5079, 1
      %v5254 = vsel %vm1053, %v5249, %v5253
      %v5255 = vrot.slane %v5081, 1
      %v5256 = vsel %vm1053, %v5251, %v5255
      %v5257 = vrot.slane %v5085, 1
      %v5258 = vsel %vm1053, %v5253, %v5257
      %v5259 = vrot.slane %v5087, 1
      %v5260 = vsel %vm1053, %v5255, %v5259
      %v5261 = vrot.slane %v5091, 1
      %v5262 = vsel %vm1053, %v5257, %v5261
      %v5263 = vrot.slane %v5093, 1
      %v5264 = vsel %vm1053, %v5259, %v5263
      %v5265 = vrot.slane %v5097, 1
      %v5266 = vsel %vm1053, %v5261, %v5265
      %v5267 = vrot.slane %v5099, 1
      %v5268 = vsel %vm1053, %v5263, %v5267
      %v5269 = vrot.slane %v5103, 1
      %v5270 = vsel %vm1053, %v5265, %v5269
      %v5271 = vrot.slane %v5105, 1
      %v5272 = vsel %vm1053, %v5267, %v5271
      %v5337 = vrot.slane %v4917, 1
      %v5338 = vrot.slane %v4919, 1
      %v5339 = vrot.slane %v4923, 1
      %v5340 = vsel %vm1053, %v5337, %v5339
      %v5341 = vrot.slane %v4925, 1
      %v5342 = vsel %vm1053, %v5338, %v5341
      %v5343 = vrot.slane %v4929, 1
      %v5344 = vsel %vm1053, %v5339, %v5343
      %v5345 = vrot.slane %v4931, 1
      %v5346 = vsel %vm1053, %v5341, %v5345
      %v5347 = vrot.slane %v4935, 1
      %v5348 = vsel %vm1053, %v5343, %v5347
      %v5349 = vrot.slane %v4937, 1
      %v5350 = vsel %vm1053, %v5345, %v5349
      %v5351 = vsel %vm1053, %v5347, %v5163
      %v5352 = vsel %vm1053, %v5349, %v5166
      %v5363 = vsel %vm1053, %v5269, %v5337
      %v5364 = vsel %vm1053, %v5271, %v5338
      %v5365 = vld [vmem:[#allocation2] sm:$0xff]
      %v5366 = vld [vmem:[#allocation2 + $0x8] sm:$0xff]
      %v5367 = vld [vmem:[#allocation2 + $0x10] sm:$0xff]
      %v5368 = vld [vmem:[#allocation2 + $0x18] sm:$0xff]
      %v5369 = vld [vmem:[#allocation2 + $0x20] sm:$0xff]
      %v5370 = vld [vmem:[#allocation2 + $0x28] sm:$0xff]
      %v5371 = vld [vmem:[#allocation2 + $0x30] sm:$0xff]
      %v5372 = vld [vmem:[#allocation2 + $0x38] sm:$0xff]
      %v5373 = vld [vmem:[#allocation2 + $0x40] sm:$0xff]
      %v5374 = vld [vmem:[#allocation2 + $0x48] sm:$0xff]
      %v5375 = vld [vmem:[#allocation2 + $0x50] sm:$0xff]
      %v5376 = vld [vmem:[#allocation2 + $0x58] sm:$0xff]
      %v5377 = vld [vmem:[#allocation2 + $0x60] sm:$0xff]
      %v5378 = vld [vmem:[#allocation2 + $0x68] sm:$0xff]
      %v5379 = vld [vmem:[#allocation2 + $0x70] sm:$0xff]
      %v5380 = vld [vmem:[#allocation2 + $0x78] sm:$0xff]
      %v5381 = vld [vmem:[#allocation2 + $0x80] sm:$0xff]
      %v5382 = vld [vmem:[#allocation2 + $0x88] sm:$0xff]
      %v5383 = vld [vmem:[#allocation2 + $0x90] sm:$0xff]
      %v5384 = vld [vmem:[#allocation2 + $0x98] sm:$0xff]
      %v5385 = vld [vmem:[#allocation2 + $0xa0] sm:$0xff]
      %v5386 = vld [vmem:[#allocation2 + $0xa8] sm:$0xff]
      %v5387 = vld [vmem:[#allocation2 + $0xb0] sm:$0xff]
      %v5388 = vld [vmem:[#allocation2 + $0xb8] sm:$0xff]
      %v5389 = vld [vmem:[#allocation2 + $0xc0] sm:$0xff]
      %v5390 = vld [vmem:[#allocation2 + $0xc8] sm:$0xff]
      %v5391 = vld [vmem:[#allocation2 + $0xd0] sm:$0xff]
      %v5392 = vld [vmem:[#allocation2 + $0xd8] sm:$0xff]
      %v5393 = vld [vmem:[#allocation2 + $0xe0] sm:$0xff]
      %v5394 = vld [vmem:[#allocation2 + $0xe8] sm:$0xff]
      %v5395 = vld [vmem:[#allocation2 + $0xf0] sm:$0xff]
      %v5396 = vld [vmem:[#allocation2 + $0xf8] sm:$0xff]
      %v5397 = vld [vmem:[#allocation2 + $0x100] sm:$0xff]
      %v5398 = vld [vmem:[#allocation2 + $0x108] sm:$0xff]
      %v5399 = vld [vmem:[#allocation2 + $0x110] sm:$0xff]
      %v5400 = vld [vmem:[#allocation2 + $0x118] sm:$0xff]
      %v5401 = vld [vmem:[#allocation2 + $0x120] sm:$0xff]
      %v5402 = vld [vmem:[#allocation2 + $0x128] sm:$0xff]
      %v5403 = vld [vmem:[#allocation2 + $0x130] sm:$0xff]
      %v5404 = vld [vmem:[#allocation2 + $0x138] sm:$0xff]
      %v5405 = vld [vmem:[#allocation2 + $0x140] sm:$0xff]
      %v5406 = vld [vmem:[#allocation2 + $0x148] sm:$0xff]
      %v5407 = vld [vmem:[#allocation2 + $0x150] sm:$0xff]
      %v5408 = vld [vmem:[#allocation2 + $0x158] sm:$0xff]
      %v5409 = vld [vmem:[#allocation2 + $0x160] sm:$0xff]
      %v5410 = vld [vmem:[#allocation2 + $0x168] sm:$0xff]
      %v5411 = vld [vmem:[#allocation2 + $0x170] sm:$0xff]
      %v5412 = vld [vmem:[#allocation2 + $0x178] sm:$0xff]
      %v5413 = vld [vmem:[#allocation2 + $0x180] sm:$0xff]
      %v5414 = vld [vmem:[#allocation2 + $0x188] sm:$0xff]
      %v5415 = vld [vmem:[#allocation2 + $0x190] sm:$0xff]
      %v5416 = vld [vmem:[#allocation2 + $0x198] sm:$0xff]
      %v5417 = vld [vmem:[#allocation2 + $0x1a0] sm:$0xff]
      %v5418 = vld [vmem:[#allocation2 + $0x1a8] sm:$0xff]
      %v5419 = vld [vmem:[#allocation2 + $0x1b0] sm:$0xff]
      %v5420 = vld [vmem:[#allocation2 + $0x1b8] sm:$0xff]
      %v5421 = vld [vmem:[#allocation2 + $0x1c0] sm:$0xff]
      %v5422 = vld [vmem:[#allocation2 + $0x1c8] sm:$0xff]
      %v5423 = vld [vmem:[#allocation2 + $0x1d0] sm:$0xff]
      %v5424 = vld [vmem:[#allocation2 + $0x1d8] sm:$0xff]
      %v5425 = vld [vmem:[#allocation2 + $0x1e0] sm:$0xff]
      %v5426 = vld [vmem:[#allocation2 + $0x1e8] sm:$0xff]
      %v5427 = vld [vmem:[#allocation2 + $0x1f0] sm:$0xff]
      %v5428 = vld [vmem:[#allocation2 + $0x1f8] sm:$0xff]
      %v5429 = vadd.f32 %v5365, %v5165
      %v5430 = vadd.f32 %v5366, %v5168
      %v5431 = vadd.f32 %v5367, %v5170
      %v5432 = vadd.f32 %v5368, %v5172
      %v5433 = vadd.f32 %v5369, %v5174
      %v5434 = vadd.f32 %v5370, %v5176
      %v5435 = vadd.f32 %v5371, %v5178
      %v5436 = vadd.f32 %v5372, %v5180
      %v5437 = vadd.f32 %v5373, %v5182
      %v5438 = vadd.f32 %v5374, %v5184
      %v5439 = vadd.f32 %v5375, %v5186
      %v5440 = vadd.f32 %v5376, %v5188
      %v5441 = vadd.f32 %v5377, %v5190
      %v5442 = vadd.f32 %v5378, %v5192
      %v5443 = vadd.f32 %v5379, %v5194
      %v5444 = vadd.f32 %v5380, %v5196
      %v5445 = vadd.f32 %v5381, %v5198
      %v5446 = vadd.f32 %v5382, %v5200
      %v5447 = vadd.f32 %v5383, %v5202
      %v5448 = vadd.f32 %v5384, %v5204
      %v5449 = vadd.f32 %v5385, %v5206
      %v5450 = vadd.f32 %v5386, %v5208
      %v5451 = vadd.f32 %v5387, %v5210
      %v5452 = vadd.f32 %v5388, %v5212
      %v5453 = vadd.f32 %v5389, %v5214
      %v5454 = vadd.f32 %v5390, %v5216
      %v5455 = vadd.f32 %v5391, %v5218
      %v5456 = vadd.f32 %v5392, %v5220
      %v5457 = vadd.f32 %v5393, %v5222
      %v5458 = vadd.f32 %v5394, %v5224
      %v5459 = vadd.f32 %v5395, %v5226
      %v5460 = vadd.f32 %v5396, %v5228
      %v5461 = vadd.f32 %v5397, %v5230
      %v5462 = vadd.f32 %v5398, %v5232
      %v5463 = vadd.f32 %v5399, %v5234
      %v5464 = vadd.f32 %v5400, %v5236
      %v5465 = vadd.f32 %v5401, %v5238
      %v5466 = vadd.f32 %v5402, %v5240
      %v5467 = vadd.f32 %v5403, %v5242
      %v5468 = vadd.f32 %v5404, %v5244
      %v5469 = vadd.f32 %v5405, %v5246
      %v5470 = vadd.f32 %v5406, %v5248
      %v5471 = vadd.f32 %v5407, %v5250
      %v5472 = vadd.f32 %v5408, %v5252
      %v5473 = vadd.f32 %v5409, %v5254
      %v5474 = vadd.f32 %v5410, %v5256
      %v5475 = vadd.f32 %v5411, %v5258
      %v5476 = vadd.f32 %v5412, %v5260
      %v5477 = vadd.f32 %v5413, %v5262
      %v5478 = vadd.f32 %v5414, %v5264
      %v5479 = vadd.f32 %v5415, %v5266
      %v5480 = vadd.f32 %v5416, %v5268
      %v5481 = vadd.f32 %v5417, %v5270
      %v5482 = vadd.f32 %v5418, %v5272
      %v5483 = vadd.f32 %v5419, %v5363
      %v5484 = vadd.f32 %v5420, %v5364
      %v5485 = vadd.f32 %v5421, %v5340
      %v5486 = vadd.f32 %v5422, %v5342
      %v5487 = vadd.f32 %v5423, %v5344
      %v5488 = vadd.f32 %v5424, %v5346
      %v5489 = vadd.f32 %v5425, %v5348
      %v5490 = vadd.f32 %v5426, %v5350
      %v5491 = vadd.f32 %v5427, %v5351
      %v5492 = vadd.f32 %v5428, %v5352
      %5493 = vst [vmem:[#allocation2] sm:$0xff] %v5429
      %5494 = vst [vmem:[#allocation2 + $0x8] sm:$0xff] %v5430
      %5495 = vst [vmem:[#allocation2 + $0x10] sm:$0xff] %v5431
      %5496 = vst [vmem:[#allocation2 + $0x18] sm:$0xff] %v5432
      %5497 = vst [vmem:[#allocation2 + $0x20] sm:$0xff] %v5433
      %5498 = vst [vmem:[#allocation2 + $0x28] sm:$0xff] %v5434
      %5499 = vst [vmem:[#allocation2 + $0x30] sm:$0xff] %v5435
      %5500 = vst [vmem:[#allocation2 + $0x38] sm:$0xff] %v5436
      %5501 = vst [vmem:[#allocation2 + $0x40] sm:$0xff] %v5437
      %5502 = vst [vmem:[#allocation2 + $0x48] sm:$0xff] %v5438
      %5503 = vst [vmem:[#allocation2 + $0x50] sm:$0xff] %v5439
      %5504 = vst [vmem:[#allocation2 + $0x58] sm:$0xff] %v5440
      %5505 = vst [vmem:[#allocation2 + $0x60] sm:$0xff] %v5441
      %5506 = vst [vmem:[#allocation2 + $0x68] sm:$0xff] %v5442
      %5507 = vst [vmem:[#allocation2 + $0x70] sm:$0xff] %v5443
      %5508 = vst [vmem:[#allocation2 + $0x78] sm:$0xff] %v5444
      %5509 = vst [vmem:[#allocation2 + $0x80] sm:$0xff] %v5445
      %5510 = vst [vmem:[#allocation2 + $0x88] sm:$0xff] %v5446
      %5511 = vst [vmem:[#allocation2 + $0x90] sm:$0xff] %v5447
      %5512 = vst [vmem:[#allocation2 + $0x98] sm:$0xff] %v5448
      %5513 = vst [vmem:[#allocation2 + $0xa0] sm:$0xff] %v5449
      %5514 = vst [vmem:[#allocation2 + $0xa8] sm:$0xff] %v5450
      %5515 = vst [vmem:[#allocation2 + $0xb0] sm:$0xff] %v5451
      %5516 = vst [vmem:[#allocation2 + $0xb8] sm:$0xff] %v5452
      %5517 = vst [vmem:[#allocation2 + $0xc0] sm:$0xff] %v5453
      %5518 = vst [vmem:[#allocation2 + $0xc8] sm:$0xff] %v5454
      %5519 = vst [vmem:[#allocation2 + $0xd0] sm:$0xff] %v5455
      %5520 = vst [vmem:[#allocation2 + $0xd8] sm:$0xff] %v5456
      %5521 = vst [vmem:[#allocation2 + $0xe0] sm:$0xff] %v5457
      %5522 = vst [vmem:[#allocation2 + $0xe8] sm:$0xff] %v5458
      %5523 = vst [vmem:[#allocation2 + $0xf0] sm:$0xff] %v5459
      %5524 = vst [vmem:[#allocation2 + $0xf8] sm:$0xff] %v5460
      %5525 = vst [vmem:[#allocation2 + $0x100] sm:$0xff] %v5461
      %5526 = vst [vmem:[#allocation2 + $0x108] sm:$0xff] %v5462
      %5527 = vst [vmem:[#allocation2 + $0x110] sm:$0xff] %v5463
      %5528 = vst [vmem:[#allocation2 + $0x118] sm:$0xff] %v5464
      %5529 = vst [vmem:[#allocation2 + $0x120] sm:$0xff] %v5465
      %5530 = vst [vmem:[#allocation2 + $0x128] sm:$0xff] %v5466
      %5531 = vst [vmem:[#allocation2 + $0x130] sm:$0xff] %v5467
      %5532 = vst [vmem:[#allocation2 + $0x138] sm:$0xff] %v5468
      %5533 = vst [vmem:[#allocation2 + $0x140] sm:$0xff] %v5469
      %5534 = vst [vmem:[#allocation2 + $0x148] sm:$0xff] %v5470
      %5535 = vst [vmem:[#allocation2 + $0x150] sm:$0xff] %v5471
      %5536 = vst [vmem:[#allocation2 + $0x158] sm:$0xff] %v5472
      %5537 = vst [vmem:[#allocation2 + $0x160] sm:$0xff] %v5473
      %5538 = vst [vmem:[#allocation2 + $0x168] sm:$0xff] %v5474
      %5539 = vst [vmem:[#allocation2 + $0x170] sm:$0xff] %v5475
      %5540 = vst [vmem:[#allocation2 + $0x178] sm:$0xff] %v5476
      %5541 = vst [vmem:[#allocation2 + $0x180] sm:$0xff] %v5477
      %5542 = vst [vmem:[#allocation2 + $0x188] sm:$0xff] %v5478
      %5543 = vst [vmem:[#allocation2 + $0x190] sm:$0xff] %v5479
      %5544 = vst [vmem:[#allocation2 + $0x198] sm:$0xff] %v5480
      %5545 = vst [vmem:[#allocation2 + $0x1a0] sm:$0xff] %v5481
      %5546 = vst [vmem:[#allocation2 + $0x1a8] sm:$0xff] %v5482
      %5547 = vst [vmem:[#allocation2 + $0x1b0] sm:$0xff] %v5483
      %5548 = vst [vmem:[#allocation2 + $0x1b8] sm:$0xff] %v5484
      %5549 = vst [vmem:[#allocation2 + $0x1c0] sm:$0xff] %v5485
      %5550 = vst [vmem:[#allocation2 + $0x1c8] sm:$0xff] %v5486
      %5551 = vst [vmem:[#allocation2 + $0x1d0] sm:$0xff] %v5487
      %5552 = vst [vmem:[#allocation2 + $0x1d8] sm:$0xff] %v5488
      %5553 = vst [vmem:[#allocation2 + $0x1e0] sm:$0xff] %v5489
      %5554 = vst [vmem:[#allocation2 + $0x1e8] sm:$0xff] %v5490
      %5555 = vst [vmem:[#allocation2 + $0x1f0] sm:$0xff] %v5491
      %5556 = vst [vmem:[#allocation2 + $0x1f8] sm:$0xff] %v5492
      %s5557 = scalar_lea.vmem %s1, 4096
      %v5558 = vld [vmem:[%s5557] sm:$0xff]
      %v5559 = vld [vmem:[%s5557 + $0x8] sm:$0xff]
      %v5560 = vld [vmem:[%s5557 + $0x10] sm:$0xff]
      %v5561 = vld [vmem:[%s5557 + $0x18] sm:$0xff]
      %v5562 = vld [vmem:[%s5557 + $0x20] sm:$0xff]
      %v5563 = vld [vmem:[%s5557 + $0x28] sm:$0xff]
      %v5564 = vld [vmem:[%s5557 + $0x30] sm:$0xff]
      %v5565 = vld [vmem:[%s5557 + $0x38] sm:$0xff]
      %v5566 = vld [vmem:[%s5557 + $0x40] sm:$0xff]
      %v5567 = vld [vmem:[%s5557 + $0x48] sm:$0xff]
      %v5568 = vld [vmem:[%s5557 + $0x50] sm:$0xff]
      %v5569 = vld [vmem:[%s5557 + $0x58] sm:$0xff]
      %v5570 = vld [vmem:[%s5557 + $0x60] sm:$0xff]
      %v5571 = vld [vmem:[%s5557 + $0x68] sm:$0xff]
      %v5572 = vld [vmem:[%s5557 + $0x70] sm:$0xff]
      %v5573 = vld [vmem:[%s5557 + $0x78] sm:$0xff]
      %v5574 = vld [vmem:[%s5557 + $0x80] sm:$0xff]
      %v5575 = vld [vmem:[%s5557 + $0x88] sm:$0xff]
      %v5576 = vld [vmem:[%s5557 + $0x90] sm:$0xff]
      %v5577 = vld [vmem:[%s5557 + $0x98] sm:$0xff]
      %v5578 = vld [vmem:[%s5557 + $0xa0] sm:$0xff]
      %v5579 = vld [vmem:[%s5557 + $0xa8] sm:$0xff]
      %v5580 = vld [vmem:[%s5557 + $0xb0] sm:$0xff]
      %v5581 = vld [vmem:[%s5557 + $0xb8] sm:$0xff]
      %v5582 = vld [vmem:[%s5557 + $0xc0] sm:$0xff]
      %v5583 = vld [vmem:[%s5557 + $0xc8] sm:$0xff]
      %v5584 = vld [vmem:[%s5557 + $0xd0] sm:$0xff]
      %v5585 = vld [vmem:[%s5557 + $0xd8] sm:$0xff]
      %v5586 = vld [vmem:[%s5557 + $0xe0] sm:$0xff]
      %v5587 = vld [vmem:[%s5557 + $0xe8] sm:$0xff]
      %v5588 = vld [vmem:[%s5557 + $0xf0] sm:$0xff]
      %v5589 = vld [vmem:[%s5557 + $0xf8] sm:$0xff]
      %v5590 = vld [vmem:[%s5557 + $0x100] sm:$0xff]
      %v5591 = vld [vmem:[%s5557 + $0x108] sm:$0xff]
      %v5592 = vld [vmem:[%s5557 + $0x110] sm:$0xff]
      %v5593 = vld [vmem:[%s5557 + $0x118] sm:$0xff]
      %v5594 = vld [vmem:[%s5557 + $0x120] sm:$0xff]
      %v5595 = vld [vmem:[%s5557 + $0x128] sm:$0xff]
      %v5596 = vld [vmem:[%s5557 + $0x130] sm:$0xff]
      %v5597 = vld [vmem:[%s5557 + $0x138] sm:$0xff]
      %v5598 = vld [vmem:[%s5557 + $0x140] sm:$0xff]
      %v5599 = vld [vmem:[%s5557 + $0x148] sm:$0xff]
      %v5600 = vld [vmem:[%s5557 + $0x150] sm:$0xff]
      %v5601 = vld [vmem:[%s5557 + $0x158] sm:$0xff]
      %v5602 = vld [vmem:[%s5557 + $0x160] sm:$0xff]
      %v5603 = vld [vmem:[%s5557 + $0x168] sm:$0xff]
      %v5604 = vld [vmem:[%s5557 + $0x170] sm:$0xff]
      %v5605 = vld [vmem:[%s5557 + $0x178] sm:$0xff]
      %v5606 = vld [vmem:[%s5557 + $0x180] sm:$0xff]
      %v5607 = vld [vmem:[%s5557 + $0x188] sm:$0xff]
      %v5608 = vld [vmem:[%s5557 + $0x190] sm:$0xff]
      %v5609 = vld [vmem:[%s5557 + $0x198] sm:$0xff]
      %v5610 = vld [vmem:[%s5557 + $0x1a0] sm:$0xff]
      %v5611 = vld [vmem:[%s5557 + $0x1a8] sm:$0xff]
      %v5612 = vld [vmem:[%s5557 + $0x1b0] sm:$0xff]
      %v5613 = vld [vmem:[%s5557 + $0x1b8] sm:$0xff]
      %v5614 = vld [vmem:[%s5557 + $0x1c0] sm:$0xff]
      %v5615 = vld [vmem:[%s5557 + $0x1c8] sm:$0xff]
      %v5616 = vld [vmem:[%s5557 + $0x1d0] sm:$0xff]
      %v5617 = vld [vmem:[%s5557 + $0x1d8] sm:$0xff]
      %v5618 = vld [vmem:[%s5557 + $0x1e0] sm:$0xff]
      %v5619 = vld [vmem:[%s5557 + $0x1e8] sm:$0xff]
      %v5620 = vld [vmem:[%s5557 + $0x1f0] sm:$0xff]
      %v5621 = vld [vmem:[%s5557 + $0x1f8] sm:$0xff]
      %5622 = vmatprep.subr.mxu0 %v5559
      %5623 = vmatpush1.msra.mxu0 %v5558
      %5624 = vmatprep.subr.mxu0 %v5561
      %5625 = vmatpush1.msra.mxu0 %v5560
      %5626 = vmatprep.subr.mxu0 %v5563
      %5627 = vmatpush1.msra.mxu0 %v5562
      %5628 = vmatprep.subr.mxu0 %v5565
      %5629 = vmatpush1.msra.mxu0 %v5564
      %5630 = vmatprep.subr.mxu0 %v5567
      %5631 = vmatpush1.msra.mxu0 %v5566
      %5632 = vmatprep.subr.mxu0 %v5569
      %5633 = vmatpush1.msra.mxu0 %v5568
      %5634 = vmatprep.subr.mxu0 %v5571
      %5635 = vmatpush1.msra.mxu0 %v5570
      %5636 = vmatprep.subr.mxu0 %v5573
      %5637 = vmatpush1.msra.mxu0 %v5572
      %5638 = vmatprep.subr.mxu0 %v5575
      %5639 = vmatpush1.msra.mxu0 %v5574
      %5640 = vmatprep.subr.mxu0 %v5577
      %5641 = vmatpush1.msra.mxu0 %v5576
      %5642 = vmatprep.subr.mxu0 %v5579
      %5643 = vmatpush1.msra.mxu0 %v5578
      %5644 = vmatprep.subr.mxu0 %v5581
      %5645 = vmatpush1.msra.mxu0 %v5580
      %5646 = vmatprep.subr.mxu0 %v5583
      %5647 = vmatpush1.msra.mxu0 %v5582
      %5648 = vmatprep.subr.mxu0 %v5585
      %5649 = vmatpush1.msra.mxu0 %v5584
      %5650 = vmatprep.subr.mxu0 %v5587
      %5651 = vmatpush1.msra.mxu0 %v5586
      %5652 = vmatprep.subr.mxu0 %v5589
      %5653 = vmatpush1.msra.mxu0 %v5588
      %5654 = vmatprep.subr.mxu0 %v5591
      %5655 = vmatpush1.msra.mxu0 %v5590
      %5656 = vmatprep.subr.mxu0 %v5593
      %5657 = vmatpush1.msra.mxu0 %v5592
      %5658 = vmatprep.subr.mxu0 %v5595
      %5659 = vmatpush1.msra.mxu0 %v5594
      %5660 = vmatprep.subr.mxu0 %v5597
      %5661 = vmatpush1.msra.mxu0 %v5596
      %5662 = vmatprep.subr.mxu0 %v5599
      %5663 = vmatpush1.msra.mxu0 %v5598
      %5664 = vmatprep.subr.mxu0 %v5601
      %5665 = vmatpush1.msra.mxu0 %v5600
      %5666 = vmatprep.subr.mxu0 %v5603
      %5667 = vmatpush1.msra.mxu0 %v5602
      %5668 = vmatprep.subr.mxu0 %v5605
      %5669 = vmatpush1.msra.mxu0 %v5604
      %5670 = vmatprep.subr.mxu0 %v5607
      %5671 = vmatpush1.msra.mxu0 %v5606
      %5672 = vmatprep.subr.mxu0 %v5609
      %5673 = vmatpush1.msra.mxu0 %v5608
      %5674 = vmatprep.subr.mxu0 %v5611
      %5675 = vmatpush1.msra.mxu0 %v5610
      %5676 = vmatprep.subr.mxu0 %v5613
      %5677 = vmatpush1.msra.mxu0 %v5612
      %5678 = vmatprep.subr.mxu0 %v5615
      %5679 = vmatpush1.msra.mxu0 %v5614
      %5680 = vmatprep.subr.mxu0 %v5617
      %5681 = vmatpush1.msra.mxu0 %v5616
      %5682 = vmatprep.subr.mxu0 %v5619
      %5683 = vmatpush1.msra.mxu0 %v5618
      %5684 = vmatprep.subr.mxu0 %v5621
      %5685 = vmatpush1.msra.mxu0 %v5620
      %5686 = vmatprep.mubr.f32.mxu0 %v219
      %5687 = vmatmul.mubr.f32.gmra.mrb[0].mxu0 %v218
      %v5688 = vpop.f32.mrb[0].mxu0
      %v5689 = vadd.f32 0.0, %v5688
      %v5690 = vpop.f32.mrb[0].mxu0
      %v5691 = vadd.f32 0.0, %v5690
      %5692 = vmatprep.mubr.f32.mxu0 %v221
      %5693 = vmatmul.mubr.f32.gmra.mrb[0].mxu0 %v220
      %v5694 = vpop.f32.mrb[0].mxu0
      %v5695 = vadd.f32 0.0, %v5694
      %v5696 = vpop.f32.mrb[0].mxu0
      %v5697 = vadd.f32 0.0, %v5696
      %5698 = vmatprep.mubr.f32.mxu0 %v223
      %5699 = vmatmul.mubr.f32.gmra.mrb[0].mxu0 %v222
      %v5700 = vpop.f32.mrb[0].mxu0
      %v5701 = vadd.f32 0.0, %v5700
      %v5702 = vpop.f32.mrb[0].mxu0
      %v5703 = vadd.f32 0.0, %v5702
      %5704 = vmatprep.mubr.f32.mxu0 %v225
      %5705 = vmatmul.mubr.f32.gmra.mrb[0].mxu0 %v224
      %v5706 = vpop.f32.mrb[0].mxu0
      %v5707 = vadd.f32 0.0, %v5706
      %v5708 = vpop.f32.mrb[0].mxu0
      %v5709 = vadd.f32 0.0, %v5708
      %5710 = vmatprep.mubr.f32.mxu0 %v227
      %5711 = vmatmul.mubr.f32.gmra.mrb[0].mxu0 %v226
      %v5712 = vpop.f32.mrb[0].mxu0
      %v5713 = vadd.f32 0.0, %v5712
      %v5714 = vpop.f32.mrb[0].mxu0
      %v5715 = vadd.f32 0.0, %v5714
      %5716 = vmatprep.mubr.f32.mxu0 %v229
      %5717 = vmatmul.mubr.f32.gmra.mrb[0].mxu0 %v228
      %v5718 = vpop.f32.mrb[0].mxu0
      %v5719 = vadd.f32 0.0, %v5718
      %v5720 = vpop.f32.mrb[0].mxu0
      %v5721 = vadd.f32 0.0, %v5720
      %5722 = vmatprep.mubr.f32.mxu0 %v231
      %5723 = vmatmul.mubr.f32.gmra.mrb[0].mxu0 %v230
      %v5724 = vpop.f32.mrb[0].mxu0
      %v5725 = vadd.f32 0.0, %v5724
      %v5726 = vpop.f32.mrb[0].mxu0
      %v5727 = vadd.f32 0.0, %v5726
      %5728 = vmatprep.mubr.f32.mxu0 %v233
      %5729 = vmatmul.mubr.f32.gmra.mrb[0].mxu0 %v232
      %v5730 = vpop.f32.mrb[0].mxu0
      %v5731 = vadd.f32 0.0, %v5730
      %v5732 = vpop.f32.mrb[0].mxu0
      %v5733 = vadd.f32 0.0, %v5732
      %5734 = vmatprep.mubr.f32.mxu0 %v235
      %5735 = vmatmul.mubr.f32.gmra.mrb[0].mxu0 %v234
      %v5736 = vpop.f32.mrb[0].mxu0
      %v5737 = vadd.f32 0.0, %v5736
      %v5738 = vpop.f32.mrb[0].mxu0
      %v5739 = vadd.f32 0.0, %v5738
      %5740 = vmatprep.mubr.f32.mxu0 %v237
      %5741 = vmatmul.mubr.f32.gmra.mrb[0].mxu0 %v236
      %v5742 = vpop.f32.mrb[0].mxu0
      %v5743 = vadd.f32 0.0, %v5742
      %v5744 = vpop.f32.mrb[0].mxu0
      %v5745 = vadd.f32 0.0, %v5744
      %5746 = vmatprep.mubr.f32.mxu0 %v239
      %5747 = vmatmul.mubr.f32.gmra.mrb[0].mxu0 %v238
      %v5748 = vpop.f32.mrb[0].mxu0
      %v5749 = vadd.f32 0.0, %v5748
      %v5750 = vpop.f32.mrb[0].mxu0
      %v5751 = vadd.f32 0.0, %v5750
      %5752 = vmatprep.mubr.f32.mxu0 %v241
      %5753 = vmatmul.mubr.f32.gmra.mrb[0].mxu0 %v240
      %v5754 = vpop.f32.mrb[0].mxu0
      %v5755 = vadd.f32 0.0, %v5754
      %v5756 = vpop.f32.mrb[0].mxu0
      %v5757 = vadd.f32 0.0, %v5756
      %5758 = vmatprep.mubr.f32.mxu0 %v243
      %5759 = vmatmul.mubr.f32.gmra.mrb[0].mxu0 %v242
      %v5760 = vpop.f32.mrb[0].mxu0
      %v5761 = vadd.f32 0.0, %v5760
      %v5762 = vpop.f32.mrb[0].mxu0
      %v5763 = vadd.f32 0.0, %v5762
      %5764 = vmatprep.mubr.f32.mxu0 %v245
      %5765 = vmatmul.mubr.f32.gmra.mrb[0].mxu0 %v244
      %v5766 = vpop.f32.mrb[0].mxu0
      %v5767 = vadd.f32 0.0, %v5766
      %v5768 = vpop.f32.mrb[0].mxu0
      %v5769 = vadd.f32 0.0, %v5768
      %5770 = vmatprep.mubr.f32.mxu0 %v247
      %5771 = vmatmul.mubr.f32.gmra.mrb[0].mxu0 %v246
      %v5772 = vpop.f32.mrb[0].mxu0
      %v5773 = vadd.f32 0.0, %v5772
      %v5774 = vpop.f32.mrb[0].mxu0
      %v5775 = vadd.f32 0.0, %v5774
      %5776 = vmatprep.mubr.f32.mxu0 %v249
      %5777 = vmatmul.mubr.f32.gmra.mrb[0].mxu0 %v248
      %v5778 = vpop.f32.mrb[0].mxu0
      %v5779 = vadd.f32 0.0, %v5778
      %v5780 = vpop.f32.mrb[0].mxu0
      %v5781 = vadd.f32 0.0, %v5780
      %5782 = vmatprep.mubr.f32.mxu0 %v251
      %5783 = vmatmul.mubr.f32.gmra.mrb[0].mxu0 %v250
      %v5784 = vpop.f32.mrb[0].mxu0
      %v5785 = vadd.f32 0.0, %v5784
      %v5786 = vpop.f32.mrb[0].mxu0
      %v5787 = vadd.f32 0.0, %v5786
      %5788 = vmatprep.mubr.f32.mxu0 %v253
      %5789 = vmatmul.mubr.f32.gmra.mrb[0].mxu0 %v252
      %v5790 = vpop.f32.mrb[0].mxu0
      %v5791 = vadd.f32 0.0, %v5790
      %v5792 = vpop.f32.mrb[0].mxu0
      %v5793 = vadd.f32 0.0, %v5792
      %5794 = vmatprep.mubr.f32.mxu0 %v255
      %5795 = vmatmul.mubr.f32.gmra.mrb[0].mxu0 %v254
      %v5796 = vpop.f32.mrb[0].mxu0
      %v5797 = vadd.f32 0.0, %v5796
      %v5798 = vpop.f32.mrb[0].mxu0
      %v5799 = vadd.f32 0.0, %v5798
      %5800 = vmatprep.mubr.f32.mxu0 %v257
      %5801 = vmatmul.mubr.f32.gmra.mrb[0].mxu0 %v256
      %v5802 = vpop.f32.mrb[0].mxu0
      %v5803 = vadd.f32 0.0, %v5802
      %v5804 = vpop.f32.mrb[0].mxu0
      %v5805 = vadd.f32 0.0, %v5804
      %5806 = vmatprep.mubr.f32.mxu0 %v259
      %5807 = vmatmul.mubr.f32.gmra.mrb[0].mxu0 %v258
      %v5808 = vpop.f32.mrb[0].mxu0
      %v5809 = vadd.f32 0.0, %v5808
      %v5810 = vpop.f32.mrb[0].mxu0
      %v5811 = vadd.f32 0.0, %v5810
      %5812 = vmatprep.mubr.f32.mxu0 %v261
      %5813 = vmatmul.mubr.f32.gmra.mrb[0].mxu0 %v260
      %v5814 = vpop.f32.mrb[0].mxu0
      %v5815 = vadd.f32 0.0, %v5814
      %v5816 = vpop.f32.mrb[0].mxu0
      %v5817 = vadd.f32 0.0, %v5816
      %5818 = vmatprep.mubr.f32.mxu0 %v263
      %5819 = vmatmul.mubr.f32.gmra.mrb[0].mxu0 %v262
      %v5820 = vpop.f32.mrb[0].mxu0
      %v5821 = vadd.f32 0.0, %v5820
      %v5822 = vpop.f32.mrb[0].mxu0
      %v5823 = vadd.f32 0.0, %v5822
      %5824 = vmatprep.mubr.f32.mxu0 %v265
      %5825 = vmatmul.mubr.f32.gmra.mrb[0].mxu0 %v264
      %v5826 = vpop.f32.mrb[0].mxu0
      %v5827 = vadd.f32 0.0, %v5826
      %v5828 = vpop.f32.mrb[0].mxu0
      %v5829 = vadd.f32 0.0, %v5828
      %5830 = vmatprep.mubr.f32.mxu0 %v267
      %5831 = vmatmul.mubr.f32.gmra.mrb[0].mxu0 %v266
      %v5832 = vpop.f32.mrb[0].mxu0
      %v5833 = vadd.f32 0.0, %v5832
      %v5834 = vpop.f32.mrb[0].mxu0
      %v5835 = vadd.f32 0.0, %v5834
      %5836 = vmatprep.mubr.f32.mxu0 %v269
      %5837 = vmatmul.mubr.f32.gmra.mrb[0].mxu0 %v268
      %v5838 = vpop.f32.mrb[0].mxu0
      %v5839 = vadd.f32 0.0, %v5838
      %v5840 = vpop.f32.mrb[0].mxu0
      %v5841 = vadd.f32 0.0, %v5840
      %5842 = vmatprep.mubr.f32.mxu0 %v271
      %5843 = vmatmul.mubr.f32.gmra.mrb[0].mxu0 %v270
      %v5844 = vpop.f32.mrb[0].mxu0
      %v5845 = vadd.f32 0.0, %v5844
      %v5846 = vpop.f32.mrb[0].mxu0
      %v5847 = vadd.f32 0.0, %v5846
      %5848 = vmatprep.mubr.f32.mxu0 %v273
      %5849 = vmatmul.mubr.f32.gmra.mrb[0].mxu0 %v272
      %v5850 = vpop.f32.mrb[0].mxu0
      %v5851 = vadd.f32 0.0, %v5850
      %v5852 = vpop.f32.mrb[0].mxu0
      %v5853 = vadd.f32 0.0, %v5852
      %5854 = vmatprep.mubr.f32.mxu0 %v275
      %5855 = vmatmul.mubr.f32.gmra.mrb[0].mxu0 %v274
      %v5856 = vpop.f32.mrb[0].mxu0
      %v5857 = vadd.f32 0.0, %v5856
      %v5858 = vpop.f32.mrb[0].mxu0
      %v5859 = vadd.f32 0.0, %v5858
      %5860 = vmatprep.mubr.f32.mxu0 %v277
      %5861 = vmatmul.mubr.f32.gmra.mrb[0].mxu0 %v276
      %v5862 = vpop.f32.mrb[0].mxu0
      %v5863 = vadd.f32 0.0, %v5862
      %v5864 = vpop.f32.mrb[0].mxu0
      %v5865 = vadd.f32 0.0, %v5864
      %5866 = vmatprep.mubr.f32.mxu0 %v279
      %5867 = vmatmul.mubr.f32.gmra.mrb[0].mxu0 %v278
      %v5868 = vpop.f32.mrb[0].mxu0
      %v5869 = vadd.f32 0.0, %v5868
      %v5870 = vpop.f32.mrb[0].mxu0
      %v5871 = vadd.f32 0.0, %v5870
      %5872 = vmatprep.mubr.f32.mxu0 %v281
      %5873 = vmatmul.mubr.f32.gmra.mrb[0].mxu0 %v280
      %v5874 = vpop.f32.mrb[0].mxu0
      %v5875 = vadd.f32 0.0, %v5874
      %v5876 = vpop.f32.mrb[0].mxu0
      %v5877 = vadd.f32 0.0, %v5876
      %5878 = vdwg.mxu0
      %v5935 = vrot.slane %v5713, 2
      %v5936 = vrot.slane %v5719, 2
      %v5937 = vsel %vm1826, %v5935, %v5936
      %v5938 = vrot.slane %v5715, 2
      %v5939 = vrot.slane %v5721, 2
      %v5940 = vsel %vm1826, %v5938, %v5939
      %v5941 = vrot.slane %v5725, 2
      %v5942 = vsel %vm1826, %v5936, %v5941
      %v5943 = vrot.slane %v5727, 2
      %v5944 = vsel %vm1826, %v5939, %v5943
      %v5945 = vrot.slane %v5731, 2
      %v5946 = vsel %vm1826, %v5941, %v5945
      %v5947 = vrot.slane %v5733, 2
      %v5948 = vsel %vm1826, %v5943, %v5947
      %v5949 = vrot.slane %v5737, 2
      %v5950 = vsel %vm1826, %v5945, %v5949
      %v5951 = vrot.slane %v5739, 2
      %v5952 = vsel %vm1826, %v5947, %v5951
      %v5953 = vrot.slane %v5743, 2
      %v5954 = vsel %vm1826, %v5949, %v5953
      %v5955 = vrot.slane %v5745, 2
      %v5956 = vsel %vm1826, %v5951, %v5955
      %v5957 = vrot.slane %v5749, 2
      %v5958 = vsel %vm1826, %v5953, %v5957
      %v5959 = vrot.slane %v5751, 2
      %v5960 = vsel %vm1826, %v5955, %v5959
      %v5961 = vrot.slane %v5755, 2
      %v5962 = vsel %vm1826, %v5957, %v5961
      %v5963 = vrot.slane %v5757, 2
      %v5964 = vsel %vm1826, %v5959, %v5963
      %v5965 = vrot.slane %v5761, 2
      %v5966 = vsel %vm1826, %v5961, %v5965
      %v5967 = vrot.slane %v5763, 2
      %v5968 = vsel %vm1826, %v5963, %v5967
      %v5969 = vrot.slane %v5767, 2
      %v5970 = vsel %vm1826, %v5965, %v5969
      %v5971 = vrot.slane %v5769, 2
      %v5972 = vsel %vm1826, %v5967, %v5971
      %v5973 = vrot.slane %v5773, 2
      %v5974 = vsel %vm1826, %v5969, %v5973
      %v5975 = vrot.slane %v5775, 2
      %v5976 = vsel %vm1826, %v5971, %v5975
      %v5977 = vrot.slane %v5779, 2
      %v5978 = vsel %vm1826, %v5973, %v5977
      %v5979 = vrot.slane %v5781, 2
      %v5980 = vsel %vm1826, %v5975, %v5979
      %v5981 = vrot.slane %v5785, 2
      %v5982 = vsel %vm1826, %v5977, %v5981
      %v5983 = vrot.slane %v5787, 2
      %v5984 = vsel %vm1826, %v5979, %v5983
      %v5985 = vrot.slane %v5791, 2
      %v5986 = vsel %vm1826, %v5981, %v5985
      %v5987 = vrot.slane %v5793, 2
      %v5988 = vsel %vm1826, %v5983, %v5987
      %v5989 = vrot.slane %v5797, 2
      %v5990 = vsel %vm1826, %v5985, %v5989
      %v5991 = vrot.slane %v5799, 2
      %v5992 = vsel %vm1826, %v5987, %v5991
      %v5993 = vrot.slane %v5803, 2
      %v5994 = vsel %vm1826, %v5989, %v5993
      %v5995 = vrot.slane %v5805, 2
      %v5996 = vsel %vm1826, %v5991, %v5995
      %v5997 = vrot.slane %v5809, 2
      %v5998 = vsel %vm1826, %v5993, %v5997
      %v5999 = vrot.slane %v5811, 2
      %v6000 = vsel %vm1826, %v5995, %v5999
      %v6001 = vrot.slane %v5815, 2
      %v6002 = vsel %vm1826, %v5997, %v6001
      %v6003 = vrot.slane %v5817, 2
      %v6004 = vsel %vm1826, %v5999, %v6003
      %v6005 = vrot.slane %v5821, 2
      %v6006 = vsel %vm1826, %v6001, %v6005
      %v6007 = vrot.slane %v5823, 2
      %v6008 = vsel %vm1826, %v6003, %v6007
      %v6009 = vrot.slane %v5827, 2
      %v6010 = vsel %vm1826, %v6005, %v6009
      %v6011 = vrot.slane %v5829, 2
      %v6012 = vsel %vm1826, %v6007, %v6011
      %v6013 = vrot.slane %v5833, 2
      %v6014 = vsel %vm1826, %v6009, %v6013
      %v6015 = vrot.slane %v5835, 2
      %v6016 = vsel %vm1826, %v6011, %v6015
      %v6017 = vrot.slane %v5839, 2
      %v6018 = vsel %vm1826, %v6013, %v6017
      %v6019 = vrot.slane %v5841, 2
      %v6020 = vsel %vm1826, %v6015, %v6019
      %v6021 = vrot.slane %v5845, 2
      %v6022 = vsel %vm1826, %v6017, %v6021
      %v6023 = vrot.slane %v5847, 2
      %v6024 = vsel %vm1826, %v6019, %v6023
      %v6025 = vrot.slane %v5851, 2
      %v6026 = vsel %vm1826, %v6021, %v6025
      %v6027 = vrot.slane %v5853, 2
      %v6028 = vsel %vm1826, %v6023, %v6027
      %v6029 = vrot.slane %v5857, 2
      %v6030 = vsel %vm1826, %v6025, %v6029
      %v6031 = vrot.slane %v5859, 2
      %v6032 = vsel %vm1826, %v6027, %v6031
      %v6033 = vrot.slane %v5863, 2
      %v6034 = vsel %vm1826, %v6029, %v6033
      %v6035 = vrot.slane %v5865, 2
      %v6036 = vsel %vm1826, %v6031, %v6035
      %v6037 = vrot.slane %v5869, 2
      %v6038 = vsel %vm1826, %v6033, %v6037
      %v6039 = vrot.slane %v5871, 2
      %v6040 = vsel %vm1826, %v6035, %v6039
      %v6041 = vrot.slane %v5875, 2
      %v6042 = vsel %vm1826, %v6037, %v6041
      %v6043 = vrot.slane %v5877, 2
      %v6044 = vsel %vm1826, %v6039, %v6043
      %v6109 = vrot.slane %v5689, 2
      %v6110 = vrot.slane %v5691, 2
      %v6111 = vrot.slane %v5695, 2
      %v6112 = vsel %vm1826, %v6109, %v6111
      %v6113 = vrot.slane %v5697, 2
      %v6114 = vsel %vm1826, %v6110, %v6113
      %v6115 = vrot.slane %v5701, 2
      %v6116 = vsel %vm1826, %v6111, %v6115
      %v6117 = vrot.slane %v5703, 2
      %v6118 = vsel %vm1826, %v6113, %v6117
      %v6119 = vrot.slane %v5707, 2
      %v6120 = vsel %vm1826, %v6115, %v6119
      %v6121 = vrot.slane %v5709, 2
      %v6122 = vsel %vm1826, %v6117, %v6121
      %v6123 = vsel %vm1826, %v6119, %v5935
      %v6124 = vsel %vm1826, %v6121, %v5938
      %v6135 = vsel %vm1826, %v6041, %v6109
      %v6136 = vsel %vm1826, %v6043, %v6110
      %v6137 = vld [vmem:[#allocation2] sm:$0xff]
      %v6138 = vld [vmem:[#allocation2 + $0x8] sm:$0xff]
      %v6139 = vld [vmem:[#allocation2 + $0x10] sm:$0xff]
      %v6140 = vld [vmem:[#allocation2 + $0x18] sm:$0xff]
      %v6141 = vld [vmem:[#allocation2 + $0x20] sm:$0xff]
      %v6142 = vld [vmem:[#allocation2 + $0x28] sm:$0xff]
      %v6143 = vld [vmem:[#allocation2 + $0x30] sm:$0xff]
      %v6144 = vld [vmem:[#allocation2 + $0x38] sm:$0xff]
      %v6145 = vld [vmem:[#allocation2 + $0x40] sm:$0xff]
      %v6146 = vld [vmem:[#allocation2 + $0x48] sm:$0xff]
      %v6147 = vld [vmem:[#allocation2 + $0x50] sm:$0xff]
      %v6148 = vld [vmem:[#allocation2 + $0x58] sm:$0xff]
      %v6149 = vld [vmem:[#allocation2 + $0x60] sm:$0xff]
      %v6150 = vld [vmem:[#allocation2 + $0x68] sm:$0xff]
      %v6151 = vld [vmem:[#allocation2 + $0x70] sm:$0xff]
      %v6152 = vld [vmem:[#allocation2 + $0x78] sm:$0xff]
      %v6153 = vld [vmem:[#allocation2 + $0x80] sm:$0xff]
      %v6154 = vld [vmem:[#allocation2 + $0x88] sm:$0xff]
      %v6155 = vld [vmem:[#allocation2 + $0x90] sm:$0xff]
      %v6156 = vld [vmem:[#allocation2 + $0x98] sm:$0xff]
      %v6157 = vld [vmem:[#allocation2 + $0xa0] sm:$0xff]
      %v6158 = vld [vmem:[#allocation2 + $0xa8] sm:$0xff]
      %v6159 = vld [vmem:[#allocation2 + $0xb0] sm:$0xff]
      %v6160 = vld [vmem:[#allocation2 + $0xb8] sm:$0xff]
      %v6161 = vld [vmem:[#allocation2 + $0xc0] sm:$0xff]
      %v6162 = vld [vmem:[#allocation2 + $0xc8] sm:$0xff]
      %v6163 = vld [vmem:[#allocation2 + $0xd0] sm:$0xff]
      %v6164 = vld [vmem:[#allocation2 + $0xd8] sm:$0xff]
      %v6165 = vld [vmem:[#allocation2 + $0xe0] sm:$0xff]
      %v6166 = vld [vmem:[#allocation2 + $0xe8] sm:$0xff]
      %v6167 = vld [vmem:[#allocation2 + $0xf0] sm:$0xff]
      %v6168 = vld [vmem:[#allocation2 + $0xf8] sm:$0xff]
      %v6169 = vld [vmem:[#allocation2 + $0x100] sm:$0xff]
      %v6170 = vld [vmem:[#allocation2 + $0x108] sm:$0xff]
      %v6171 = vld [vmem:[#allocation2 + $0x110] sm:$0xff]
      %v6172 = vld [vmem:[#allocation2 + $0x118] sm:$0xff]
      %v6173 = vld [vmem:[#allocation2 + $0x120] sm:$0xff]
      %v6174 = vld [vmem:[#allocation2 + $0x128] sm:$0xff]
      %v6175 = vld [vmem:[#allocation2 + $0x130] sm:$0xff]
      %v6176 = vld [vmem:[#allocation2 + $0x138] sm:$0xff]
      %v6177 = vld [vmem:[#allocation2 + $0x140] sm:$0xff]
      %v6178 = vld [vmem:[#allocation2 + $0x148] sm:$0xff]
      %v6179 = vld [vmem:[#allocation2 + $0x150] sm:$0xff]
      %v6180 = vld [vmem:[#allocation2 + $0x158] sm:$0xff]
      %v6181 = vld [vmem:[#allocation2 + $0x160] sm:$0xff]
      %v6182 = vld [vmem:[#allocation2 + $0x168] sm:$0xff]
      %v6183 = vld [vmem:[#allocation2 + $0x170] sm:$0xff]
      %v6184 = vld [vmem:[#allocation2 + $0x178] sm:$0xff]
      %v6185 = vld [vmem:[#allocation2 + $0x180] sm:$0xff]
      %v6186 = vld [vmem:[#allocation2 + $0x188] sm:$0xff]
      %v6187 = vld [vmem:[#allocation2 + $0x190] sm:$0xff]
      %v6188 = vld [vmem:[#allocation2 + $0x198] sm:$0xff]
      %v6189 = vld [vmem:[#allocation2 + $0x1a0] sm:$0xff]
      %v6190 = vld [vmem:[#allocation2 + $0x1a8] sm:$0xff]
      %v6191 = vld [vmem:[#allocation2 + $0x1b0] sm:$0xff]
      %v6192 = vld [vmem:[#allocation2 + $0x1b8] sm:$0xff]
      %v6193 = vld [vmem:[#allocation2 + $0x1c0] sm:$0xff]
      %v6194 = vld [vmem:[#allocation2 + $0x1c8] sm:$0xff]
      %v6195 = vld [vmem:[#allocation2 + $0x1d0] sm:$0xff]
      %v6196 = vld [vmem:[#allocation2 + $0x1d8] sm:$0xff]
      %v6197 = vld [vmem:[#allocation2 + $0x1e0] sm:$0xff]
      %v6198 = vld [vmem:[#allocation2 + $0x1e8] sm:$0xff]
      %v6199 = vld [vmem:[#allocation2 + $0x1f0] sm:$0xff]
      %v6200 = vld [vmem:[#allocation2 + $0x1f8] sm:$0xff]
      %v6201 = vadd.f32 %v6137, %v5937
      %v6202 = vadd.f32 %v6138, %v5940
      %v6203 = vadd.f32 %v6139, %v5942
      %v6204 = vadd.f32 %v6140, %v5944
      %v6205 = vadd.f32 %v6141, %v5946
      %v6206 = vadd.f32 %v6142, %v5948
      %v6207 = vadd.f32 %v6143, %v5950
      %v6208 = vadd.f32 %v6144, %v5952
      %v6209 = vadd.f32 %v6145, %v5954
      %v6210 = vadd.f32 %v6146, %v5956
      %v6211 = vadd.f32 %v6147, %v5958
      %v6212 = vadd.f32 %v6148, %v5960
      %v6213 = vadd.f32 %v6149, %v5962
      %v6214 = vadd.f32 %v6150, %v5964
      %v6215 = vadd.f32 %v6151, %v5966
      %v6216 = vadd.f32 %v6152, %v5968
      %v6217 = vadd.f32 %v6153, %v5970
      %v6218 = vadd.f32 %v6154, %v5972
      %v6219 = vadd.f32 %v6155, %v5974
      %v6220 = vadd.f32 %v6156, %v5976
      %v6221 = vadd.f32 %v6157, %v5978
      %v6222 = vadd.f32 %v6158, %v5980
      %v6223 = vadd.f32 %v6159, %v5982
      %v6224 = vadd.f32 %v6160, %v5984
      %v6225 = vadd.f32 %v6161, %v5986
      %v6226 = vadd.f32 %v6162, %v5988
      %v6227 = vadd.f32 %v6163, %v5990
      %v6228 = vadd.f32 %v6164, %v5992
      %v6229 = vadd.f32 %v6165, %v5994
      %v6230 = vadd.f32 %v6166, %v5996
      %v6231 = vadd.f32 %v6167, %v5998
      %v6232 = vadd.f32 %v6168, %v6000
      %v6233 = vadd.f32 %v6169, %v6002
      %v6234 = vadd.f32 %v6170, %v6004
      %v6235 = vadd.f32 %v6171, %v6006
      %v6236 = vadd.f32 %v6172, %v6008
      %v6237 = vadd.f32 %v6173, %v6010
      %v6238 = vadd.f32 %v6174, %v6012
      %v6239 = vadd.f32 %v6175, %v6014
      %v6240 = vadd.f32 %v6176, %v6016
      %v6241 = vadd.f32 %v6177, %v6018
      %v6242 = vadd.f32 %v6178, %v6020
      %v6243 = vadd.f32 %v6179, %v6022
      %v6244 = vadd.f32 %v6180, %v6024
      %v6245 = vadd.f32 %v6181, %v6026
      %v6246 = vadd.f32 %v6182, %v6028
      %v6247 = vadd.f32 %v6183, %v6030
      %v6248 = vadd.f32 %v6184, %v6032
      %v6249 = vadd.f32 %v6185, %v6034
      %v6250 = vadd.f32 %v6186, %v6036
      %v6251 = vadd.f32 %v6187, %v6038
      %v6252 = vadd.f32 %v6188, %v6040
      %v6253 = vadd.f32 %v6189, %v6042
      %v6254 = vadd.f32 %v6190, %v6044
      %v6255 = vadd.f32 %v6191, %v6135
      %v6256 = vadd.f32 %v6192, %v6136
      %v6257 = vadd.f32 %v6193, %v6112
      %v6258 = vadd.f32 %v6194, %v6114
      %v6259 = vadd.f32 %v6195, %v6116
      %v6260 = vadd.f32 %v6196, %v6118
      %v6261 = vadd.f32 %v6197, %v6120
      %v6262 = vadd.f32 %v6198, %v6122
      %v6263 = vadd.f32 %v6199, %v6123
      %v6264 = vadd.f32 %v6200, %v6124
      %6265 = vst [vmem:[#allocation2] sm:$0xff] %v6201
      %6266 = vst [vmem:[#allocation2 + $0x8] sm:$0xff] %v6202
      %6267 = vst [vmem:[#allocation2 + $0x10] sm:$0xff] %v6203
      %6268 = vst [vmem:[#allocation2 + $0x18] sm:$0xff] %v6204
      %6269 = vst [vmem:[#allocation2 + $0x20] sm:$0xff] %v6205
      %6270 = vst [vmem:[#allocation2 + $0x28] sm:$0xff] %v6206
      %6271 = vst [vmem:[#allocation2 + $0x30] sm:$0xff] %v6207
      %6272 = vst [vmem:[#allocation2 + $0x38] sm:$0xff] %v6208
      %6273 = vst [vmem:[#allocation2 + $0x40] sm:$0xff] %v6209
      %6274 = vst [vmem:[#allocation2 + $0x48] sm:$0xff] %v6210
      %6275 = vst [vmem:[#allocation2 + $0x50] sm:$0xff] %v6211
      %6276 = vst [vmem:[#allocation2 + $0x58] sm:$0xff] %v6212
      %6277 = vst [vmem:[#allocation2 + $0x60] sm:$0xff] %v6213
      %6278 = vst [vmem:[#allocation2 + $0x68] sm:$0xff] %v6214
      %6279 = vst [vmem:[#allocation2 + $0x70] sm:$0xff] %v6215
      %6280 = vst [vmem:[#allocation2 + $0x78] sm:$0xff] %v6216
      %6281 = vst [vmem:[#allocation2 + $0x80] sm:$0xff] %v6217
      %6282 = vst [vmem:[#allocation2 + $0x88] sm:$0xff] %v6218
      %6283 = vst [vmem:[#allocation2 + $0x90] sm:$0xff] %v6219
      %6284 = vst [vmem:[#allocation2 + $0x98] sm:$0xff] %v6220
      %6285 = vst [vmem:[#allocation2 + $0xa0] sm:$0xff] %v6221
      %6286 = vst [vmem:[#allocation2 + $0xa8] sm:$0xff] %v6222
      %6287 = vst [vmem:[#allocation2 + $0xb0] sm:$0xff] %v6223
      %6288 = vst [vmem:[#allocation2 + $0xb8] sm:$0xff] %v6224
      %6289 = vst [vmem:[#allocation2 + $0xc0] sm:$0xff] %v6225
      %6290 = vst [vmem:[#allocation2 + $0xc8] sm:$0xff] %v6226
      %6291 = vst [vmem:[#allocation2 + $0xd0] sm:$0xff] %v6227
      %6292 = vst [vmem:[#allocation2 + $0xd8] sm:$0xff] %v6228
      %6293 = vst [vmem:[#allocation2 + $0xe0] sm:$0xff] %v6229
      %6294 = vst [vmem:[#allocation2 + $0xe8] sm:$0xff] %v6230
      %6295 = vst [vmem:[#allocation2 + $0xf0] sm:$0xff] %v6231
      %6296 = vst [vmem:[#allocation2 + $0xf8] sm:$0xff] %v6232
      %6297 = vst [vmem:[#allocation2 + $0x100] sm:$0xff] %v6233
      %6298 = vst [vmem:[#allocation2 + $0x108] sm:$0xff] %v6234
      %6299 = vst [vmem:[#allocation2 + $0x110] sm:$0xff] %v6235
      %6300 = vst [vmem:[#allocation2 + $0x118] sm:$0xff] %v6236
      %6301 = vst [vmem:[#allocation2 + $0x120] sm:$0xff] %v6237
      %6302 = vst [vmem:[#allocation2 + $0x128] sm:$0xff] %v6238
      %6303 = vst [vmem:[#allocation2 + $0x130] sm:$0xff] %v6239
      %6304 = vst [vmem:[#allocation2 + $0x138] sm:$0xff] %v6240
      %6305 = vst [vmem:[#allocation2 + $0x140] sm:$0xff] %v6241
      %6306 = vst [vmem:[#allocation2 + $0x148] sm:$0xff] %v6242
      %6307 = vst [vmem:[#allocation2 + $0x150] sm:$0xff] %v6243
      %6308 = vst [vmem:[#allocation2 + $0x158] sm:$0xff] %v6244
      %6309 = vst [vmem:[#allocation2 + $0x160] sm:$0xff] %v6245
      %6310 = vst [vmem:[#allocation2 + $0x168] sm:$0xff] %v6246
      %6311 = vst [vmem:[#allocation2 + $0x170] sm:$0xff] %v6247
      %6312 = vst [vmem:[#allocation2 + $0x178] sm:$0xff] %v6248
      %6313 = vst [vmem:[#allocation2 + $0x180] sm:$0xff] %v6249
      %6314 = vst [vmem:[#allocation2 + $0x188] sm:$0xff] %v6250
      %6315 = vst [vmem:[#allocation2 + $0x190] sm:$0xff] %v6251
      %6316 = vst [vmem:[#allocation2 + $0x198] sm:$0xff] %v6252
      %6317 = vst [vmem:[#allocation2 + $0x1a0] sm:$0xff] %v6253
      %6318 = vst [vmem:[#allocation2 + $0x1a8] sm:$0xff] %v6254
      %6319 = vst [vmem:[#allocation2 + $0x1b0] sm:$0xff] %v6255
      %6320 = vst [vmem:[#allocation2 + $0x1b8] sm:$0xff] %v6256
      %6321 = vst [vmem:[#allocation2 + $0x1c0] sm:$0xff] %v6257
      %6322 = vst [vmem:[#allocation2 + $0x1c8] sm:$0xff] %v6258
      %6323 = vst [vmem:[#allocation2 + $0x1d0] sm:$0xff] %v6259
      %6324 = vst [vmem:[#allocation2 + $0x1d8] sm:$0xff] %v6260
      %6325 = vst [vmem:[#allocation2 + $0x1e0] sm:$0xff] %v6261
      %6326 = vst [vmem:[#allocation2 + $0x1e8] sm:$0xff] %v6262
      %6327 = vst [vmem:[#allocation2 + $0x1f0] sm:$0xff] %v6263
      %6328 = vst [vmem:[#allocation2 + $0x1f8] sm:$0xff] %v6264
      %v6329 = vld [vmem:[#allocation2] sm:$0xff]
      %v6330 = vld [vmem:[#allocation2 + $0x8] sm:$0xff]
      %v6331 = vld [vmem:[#allocation2 + $0x10] sm:$0xff]
      %v6332 = vld [vmem:[#allocation2 + $0x18] sm:$0xff]
      %v6333 = vld [vmem:[#allocation2 + $0x20] sm:$0xff]
      %v6334 = vld [vmem:[#allocation2 + $0x28] sm:$0xff]
      %v6335 = vld [vmem:[#allocation2 + $0x30] sm:$0xff]
      %v6336 = vld [vmem:[#allocation2 + $0x38] sm:$0xff]
      %v6337 = vld [vmem:[#allocation2 + $0x40] sm:$0xff]
      %v6338 = vld [vmem:[#allocation2 + $0x48] sm:$0xff]
      %v6339 = vld [vmem:[#allocation2 + $0x50] sm:$0xff]
      %v6340 = vld [vmem:[#allocation2 + $0x58] sm:$0xff]
      %v6341 = vld [vmem:[#allocation2 + $0x60] sm:$0xff]
      %v6342 = vld [vmem:[#allocation2 + $0x68] sm:$0xff]
      %v6343 = vld [vmem:[#allocation2 + $0x70] sm:$0xff]
      %v6344 = vld [vmem:[#allocation2 + $0x78] sm:$0xff]
      %v6345 = vld [vmem:[#allocation2 + $0x80] sm:$0xff]
      %v6346 = vld [vmem:[#allocation2 + $0x88] sm:$0xff]
      %v6347 = vld [vmem:[#allocation2 + $0x90] sm:$0xff]
      %v6348 = vld [vmem:[#allocation2 + $0x98] sm:$0xff]
      %v6349 = vld [vmem:[#allocation2 + $0xa0] sm:$0xff]
      %v6350 = vld [vmem:[#allocation2 + $0xa8] sm:$0xff]
      %v6351 = vld [vmem:[#allocation2 + $0xb0] sm:$0xff]
      %v6352 = vld [vmem:[#allocation2 + $0xb8] sm:$0xff]
      %v6353 = vld [vmem:[#allocation2 + $0xc0] sm:$0xff]
      %v6354 = vld [vmem:[#allocation2 + $0xc8] sm:$0xff]
      %v6355 = vld [vmem:[#allocation2 + $0xd0] sm:$0xff]
      %v6356 = vld [vmem:[#allocation2 + $0xd8] sm:$0xff]
      %v6357 = vld [vmem:[#allocation2 + $0xe0] sm:$0xff]
      %v6358 = vld [vmem:[#allocation2 + $0xe8] sm:$0xff]
      %v6359 = vld [vmem:[#allocation2 + $0xf0] sm:$0xff]
      %v6360 = vld [vmem:[#allocation2 + $0xf8] sm:$0xff]
      %v6361 = vld [vmem:[#allocation2 + $0x100] sm:$0xff]
      %v6362 = vld [vmem:[#allocation2 + $0x108] sm:$0xff]
      %v6363 = vld [vmem:[#allocation2 + $0x110] sm:$0xff]
      %v6364 = vld [vmem:[#allocation2 + $0x118] sm:$0xff]
      %v6365 = vld [vmem:[#allocation2 + $0x120] sm:$0xff]
      %v6366 = vld [vmem:[#allocation2 + $0x128] sm:$0xff]
      %v6367 = vld [vmem:[#allocation2 + $0x130] sm:$0xff]
      %v6368 = vld [vmem:[#allocation2 + $0x138] sm:$0xff]
      %v6369 = vld [vmem:[#allocation2 + $0x140] sm:$0xff]
      %v6370 = vld [vmem:[#allocation2 + $0x148] sm:$0xff]
      %v6371 = vld [vmem:[#allocation2 + $0x150] sm:$0xff]
      %v6372 = vld [vmem:[#allocation2 + $0x158] sm:$0xff]
      %v6373 = vld [vmem:[#allocation2 + $0x160] sm:$0xff]
      %v6374 = vld [vmem:[#allocation2 + $0x168] sm:$0xff]
      %v6375 = vld [vmem:[#allocation2 + $0x170] sm:$0xff]
      %v6376 = vld [vmem:[#allocation2 + $0x178] sm:$0xff]
      %v6377 = vld [vmem:[#allocation2 + $0x180] sm:$0xff]
      %v6378 = vld [vmem:[#allocation2 + $0x188] sm:$0xff]
      %v6379 = vld [vmem:[#allocation2 + $0x190] sm:$0xff]
      %v6380 = vld [vmem:[#allocation2 + $0x198] sm:$0xff]
      %v6381 = vld [vmem:[#allocation2 + $0x1a0] sm:$0xff]
      %v6382 = vld [vmem:[#allocation2 + $0x1a8] sm:$0xff]
      %v6383 = vld [vmem:[#allocation2 + $0x1b0] sm:$0xff]
      %v6384 = vld [vmem:[#allocation2 + $0x1b8] sm:$0xff]
      %v6385 = vld [vmem:[#allocation2 + $0x1c0] sm:$0xff]
      %v6386 = vld [vmem:[#allocation2 + $0x1c8] sm:$0xff]
      %v6387 = vld [vmem:[#allocation2 + $0x1d0] sm:$0xff]
      %v6388 = vld [vmem:[#allocation2 + $0x1d8] sm:$0xff]
      %v6389 = vld [vmem:[#allocation2 + $0x1e0] sm:$0xff]
      %v6390 = vld [vmem:[#allocation2 + $0x1e8] sm:$0xff]
      %v6391 = vld [vmem:[#allocation2 + $0x1f0] sm:$0xff]
      %v6392 = vld [vmem:[#allocation2 + $0x1f8] sm:$0xff]
      %v6393 = vlaneseq
      %v6394 = vshrl.u32 %v6393, 7
      %v6395 = vadd.s32 %v6394, 8
      %v6396 = vadd.s32 %v6394, 16
      %v6397 = vadd.s32 %v6394, 24
      %v6398 = vadd.s32 %v6394, 32
      %v6399 = vadd.s32 %v6394, 40
      %v6400 = vadd.s32 %v6394, 48
      %v6401 = vadd.s32 %v6394, 56
      %v6402 = vadd.s32 %v6394, 64
      %v6403 = vadd.s32 %v6394, 72
      %v6404 = vadd.s32 %v6394, 80
      %v6405 = vadd.s32 %v6394, 88
      %v6406 = vadd.s32 %v6394, 96
      %v6407 = vadd.s32 %v6394, 104
      %v6408 = vadd.s32 %v6394, 112
      %v6409 = vadd.s32 %v6394, 120
      %v6410 = vadd.s32 %v6394, 128
      %v6411 = vadd.s32 %v6394, 136
      %v6412 = vadd.s32 %v6394, 144
      %v6413 = vadd.s32 %v6394, 152
      %v6414 = vadd.s32 %v6394, 160
      %v6415 = vadd.s32 %v6394, 168
      %v6416 = vadd.s32 %v6394, 176
      %v6417 = vadd.s32 %v6394, 184
      %v6418 = vadd.s32 %v6394, 192
      %v6419 = vadd.s32 %v6394, 200
      %v6420 = vadd.s32 %v6394, 208
      %v6421 = vadd.s32 %v6394, 216
      %v6422 = vadd.s32 %v6394, 224
      %v6423 = vadd.s32 %v6394, 232
      %v6424 = vadd.s32 %v6394, 240
      %v6425 = vadd.s32 %v6394, 248
      %vm6426 = vcmp.lt.s32.totalorder %v6394, 224
      %vm6427 = vcmp.lt.s32.totalorder %v6395, 224
      %vm6428 = vcmp.lt.s32.totalorder %v6396, 224
      %vm6429 = vcmp.lt.s32.totalorder %v6397, 224
      %vm6430 = vcmp.lt.s32.totalorder %v6398, 224
      %vm6431 = vcmp.lt.s32.totalorder %v6399, 224
      %vm6432 = vcmp.lt.s32.totalorder %v6400, 224
      %vm6433 = vcmp.lt.s32.totalorder %v6401, 224
      %vm6434 = vcmp.lt.s32.totalorder %v6402, 224
      %vm6435 = vcmp.lt.s32.totalorder %v6403, 224
      %vm6436 = vcmp.lt.s32.totalorder %v6404, 224
      %vm6437 = vcmp.lt.s32.totalorder %v6405, 224
      %vm6438 = vcmp.lt.s32.totalorder %v6406, 224
      %vm6439 = vcmp.lt.s32.totalorder %v6407, 224
      %vm6440 = vcmp.lt.s32.totalorder %v6408, 224
      %vm6441 = vcmp.lt.s32.totalorder %v6409, 224
      %vm6442 = vcmp.lt.s32.totalorder %v6410, 224
      %vm6443 = vcmp.lt.s32.totalorder %v6411, 224
      %vm6444 = vcmp.lt.s32.totalorder %v6412, 224
      %vm6445 = vcmp.lt.s32.totalorder %v6413, 224
      %vm6446 = vcmp.lt.s32.totalorder %v6414, 224
      %vm6447 = vcmp.lt.s32.totalorder %v6415, 224
      %vm6448 = vcmp.lt.s32.totalorder %v6416, 224
      %vm6449 = vcmp.lt.s32.totalorder %v6417, 224
      %vm6450 = vcmp.lt.s32.totalorder %v6418, 224
      %vm6451 = vcmp.lt.s32.totalorder %v6419, 224
      %vm6452 = vcmp.lt.s32.totalorder %v6420, 224
      %vm6453 = vcmp.lt.s32.totalorder %v6421, 224
      %vm6454 = vcmp.lt.s32.totalorder %v6422, 224
      %vm6455 = vcmp.lt.s32.totalorder %v6423, 224
      %vm6456 = vcmp.lt.s32.totalorder %v6424, 224
      %vm6457 = vcmp.lt.s32.totalorder %v6425, 224
      %vm6458 = vcmp.lt.s32.totalorder %v6394, 0
      %v6459 = vsub.s32 0, %v6394
      %v6460 = vsel %vm6458, %v6459, %v6394
      %v6461 = vshrl.u32 %v6460, 4
      %v6462 = vand.u32 %v6460, 15
      %v6463 = vsub.s32 0, %v6462
      %v6464 = vsel %vm6458, %v6463, %v6462
      %vm6465 = vcmp.lt.s32.totalorder %v6395, 0
      %v6466 = vsub.s32 0, %v6395
      %v6467 = vsel %vm6465, %v6466, %v6395
      %v6468 = vshrl.u32 %v6467, 4
      %v6469 = vand.u32 %v6467, 15
      %v6470 = vsub.s32 0, %v6469
      %v6471 = vsel %vm6465, %v6470, %v6469
      %vm6472 = vcmp.lt.s32.totalorder %v6396, 0
      %v6473 = vsub.s32 0, %v6396
      %v6474 = vsel %vm6472, %v6473, %v6396
      %v6475 = vshrl.u32 %v6474, 4
      %v6476 = vand.u32 %v6474, 15
      %v6477 = vsub.s32 0, %v6476
      %v6478 = vsel %vm6472, %v6477, %v6476
      %vm6479 = vcmp.lt.s32.totalorder %v6397, 0
      %v6480 = vsub.s32 0, %v6397
      %v6481 = vsel %vm6479, %v6480, %v6397
      %v6482 = vshrl.u32 %v6481, 4
      %v6483 = vand.u32 %v6481, 15
      %v6484 = vsub.s32 0, %v6483
      %v6485 = vsel %vm6479, %v6484, %v6483
      %vm6486 = vcmp.lt.s32.totalorder %v6398, 0
      %v6487 = vsub.s32 0, %v6398
      %v6488 = vsel %vm6486, %v6487, %v6398
      %v6489 = vshrl.u32 %v6488, 4
      %v6490 = vand.u32 %v6488, 15
      %v6491 = vsub.s32 0, %v6490
      %v6492 = vsel %vm6486, %v6491, %v6490
      %vm6493 = vcmp.lt.s32.totalorder %v6399, 0
      %v6494 = vsub.s32 0, %v6399
      %v6495 = vsel %vm6493, %v6494, %v6399
      %v6496 = vshrl.u32 %v6495, 4
      %v6497 = vand.u32 %v6495, 15
      %v6498 = vsub.s32 0, %v6497
      %v6499 = vsel %vm6493, %v6498, %v6497
      %vm6500 = vcmp.lt.s32.totalorder %v6400, 0
      %v6501 = vsub.s32 0, %v6400
      %v6502 = vsel %vm6500, %v6501, %v6400
      %v6503 = vshrl.u32 %v6502, 4
      %v6504 = vand.u32 %v6502, 15
      %v6505 = vsub.s32 0, %v6504
      %v6506 = vsel %vm6500, %v6505, %v6504
      %vm6507 = vcmp.lt.s32.totalorder %v6401, 0
      %v6508 = vsub.s32 0, %v6401
      %v6509 = vsel %vm6507, %v6508, %v6401
      %v6510 = vshrl.u32 %v6509, 4
      %v6511 = vand.u32 %v6509, 15
      %v6512 = vsub.s32 0, %v6511
      %v6513 = vsel %vm6507, %v6512, %v6511
      %vm6514 = vcmp.lt.s32.totalorder %v6402, 0
      %v6515 = vsub.s32 0, %v6402
      %v6516 = vsel %vm6514, %v6515, %v6402
      %v6517 = vshrl.u32 %v6516, 4
      %v6518 = vand.u32 %v6516, 15
      %v6519 = vsub.s32 0, %v6518
      %v6520 = vsel %vm6514, %v6519, %v6518
      %vm6521 = vcmp.lt.s32.totalorder %v6403, 0
      %v6522 = vsub.s32 0, %v6403
      %v6523 = vsel %vm6521, %v6522, %v6403
      %v6524 = vshrl.u32 %v6523, 4
      %v6525 = vand.u32 %v6523, 15
      %v6526 = vsub.s32 0, %v6525
      %v6527 = vsel %vm6521, %v6526, %v6525
      %vm6528 = vcmp.lt.s32.totalorder %v6404, 0
      %v6529 = vsub.s32 0, %v6404
      %v6530 = vsel %vm6528, %v6529, %v6404
      %v6531 = vshrl.u32 %v6530, 4
      %v6532 = vand.u32 %v6530, 15
      %v6533 = vsub.s32 0, %v6532
      %v6534 = vsel %vm6528, %v6533, %v6532
      %vm6535 = vcmp.lt.s32.totalorder %v6405, 0
      %v6536 = vsub.s32 0, %v6405
      %v6537 = vsel %vm6535, %v6536, %v6405
      %v6538 = vshrl.u32 %v6537, 4
      %v6539 = vand.u32 %v6537, 15
      %v6540 = vsub.s32 0, %v6539
      %v6541 = vsel %vm6535, %v6540, %v6539
      %vm6542 = vcmp.lt.s32.totalorder %v6406, 0
      %v6543 = vsub.s32 0, %v6406
      %v6544 = vsel %vm6542, %v6543, %v6406
      %v6545 = vshrl.u32 %v6544, 4
      %v6546 = vand.u32 %v6544, 15
      %v6547 = vsub.s32 0, %v6546
      %v6548 = vsel %vm6542, %v6547, %v6546
      %vm6549 = vcmp.lt.s32.totalorder %v6407, 0
      %v6550 = vsub.s32 0, %v6407
      %v6551 = vsel %vm6549, %v6550, %v6407
      %v6552 = vshrl.u32 %v6551, 4
      %v6553 = vand.u32 %v6551, 15
      %v6554 = vsub.s32 0, %v6553
      %v6555 = vsel %vm6549, %v6554, %v6553
      %vm6556 = vcmp.lt.s32.totalorder %v6408, 0
      %v6557 = vsub.s32 0, %v6408
      %v6558 = vsel %vm6556, %v6557, %v6408
      %v6559 = vshrl.u32 %v6558, 4
      %v6560 = vand.u32 %v6558, 15
      %v6561 = vsub.s32 0, %v6560
      %v6562 = vsel %vm6556, %v6561, %v6560
      %vm6563 = vcmp.lt.s32.totalorder %v6409, 0
      %v6564 = vsub.s32 0, %v6409
      %v6565 = vsel %vm6563, %v6564, %v6409
      %v6566 = vshrl.u32 %v6565, 4
      %v6567 = vand.u32 %v6565, 15
      %v6568 = vsub.s32 0, %v6567
      %v6569 = vsel %vm6563, %v6568, %v6567
      %vm6570 = vcmp.lt.s32.totalorder %v6410, 0
      %v6571 = vsub.s32 0, %v6410
      %v6572 = vsel %vm6570, %v6571, %v6410
      %v6573 = vshrl.u32 %v6572, 4
      %v6574 = vand.u32 %v6572, 15
      %v6575 = vsub.s32 0, %v6574
      %v6576 = vsel %vm6570, %v6575, %v6574
      %vm6577 = vcmp.lt.s32.totalorder %v6411, 0
      %v6578 = vsub.s32 0, %v6411
      %v6579 = vsel %vm6577, %v6578, %v6411
      %v6580 = vshrl.u32 %v6579, 4
      %v6581 = vand.u32 %v6579, 15
      %v6582 = vsub.s32 0, %v6581
      %v6583 = vsel %vm6577, %v6582, %v6581
      %vm6584 = vcmp.lt.s32.totalorder %v6412, 0
      %v6585 = vsub.s32 0, %v6412
      %v6586 = vsel %vm6584, %v6585, %v6412
      %v6587 = vshrl.u32 %v6586, 4
      %v6588 = vand.u32 %v6586, 15
      %v6589 = vsub.s32 0, %v6588
      %v6590 = vsel %vm6584, %v6589, %v6588
      %vm6591 = vcmp.lt.s32.totalorder %v6413, 0
      %v6592 = vsub.s32 0, %v6413
      %v6593 = vsel %vm6591, %v6592, %v6413
      %v6594 = vshrl.u32 %v6593, 4
      %v6595 = vand.u32 %v6593, 15
      %v6596 = vsub.s32 0, %v6595
      %v6597 = vsel %vm6591, %v6596, %v6595
      %vm6598 = vcmp.lt.s32.totalorder %v6414, 0
      %v6599 = vsub.s32 0, %v6414
      %v6600 = vsel %vm6598, %v6599, %v6414
      %v6601 = vshrl.u32 %v6600, 4
      %v6602 = vand.u32 %v6600, 15
      %v6603 = vsub.s32 0, %v6602
      %v6604 = vsel %vm6598, %v6603, %v6602
      %vm6605 = vcmp.lt.s32.totalorder %v6415, 0
      %v6606 = vsub.s32 0, %v6415
      %v6607 = vsel %vm6605, %v6606, %v6415
      %v6608 = vshrl.u32 %v6607, 4
      %v6609 = vand.u32 %v6607, 15
      %v6610 = vsub.s32 0, %v6609
      %v6611 = vsel %vm6605, %v6610, %v6609
      %vm6612 = vcmp.lt.s32.totalorder %v6416, 0
      %v6613 = vsub.s32 0, %v6416
      %v6614 = vsel %vm6612, %v6613, %v6416
      %v6615 = vshrl.u32 %v6614, 4
      %v6616 = vand.u32 %v6614, 15
      %v6617 = vsub.s32 0, %v6616
      %v6618 = vsel %vm6612, %v6617, %v6616
      %vm6619 = vcmp.lt.s32.totalorder %v6417, 0
      %v6620 = vsub.s32 0, %v6417
      %v6621 = vsel %vm6619, %v6620, %v6417
      %v6622 = vshrl.u32 %v6621, 4
      %v6623 = vand.u32 %v6621, 15
      %v6624 = vsub.s32 0, %v6623
      %v6625 = vsel %vm6619, %v6624, %v6623
      %vm6626 = vcmp.lt.s32.totalorder %v6418, 0
      %v6627 = vsub.s32 0, %v6418
      %v6628 = vsel %vm6626, %v6627, %v6418
      %v6629 = vshrl.u32 %v6628, 4
      %v6630 = vand.u32 %v6628, 15
      %v6631 = vsub.s32 0, %v6630
      %v6632 = vsel %vm6626, %v6631, %v6630
      %vm6633 = vcmp.lt.s32.totalorder %v6419, 0
      %v6634 = vsub.s32 0, %v6419
      %v6635 = vsel %vm6633, %v6634, %v6419
      %v6636 = vshrl.u32 %v6635, 4
      %v6637 = vand.u32 %v6635, 15
      %v6638 = vsub.s32 0, %v6637
      %v6639 = vsel %vm6633, %v6638, %v6637
      %vm6640 = vcmp.lt.s32.totalorder %v6420, 0
      %v6641 = vsub.s32 0, %v6420
      %v6642 = vsel %vm6640, %v6641, %v6420
      %v6643 = vshrl.u32 %v6642, 4
      %v6644 = vand.u32 %v6642, 15
      %v6645 = vsub.s32 0, %v6644
      %v6646 = vsel %vm6640, %v6645, %v6644
      %vm6647 = vcmp.lt.s32.totalorder %v6421, 0
      %v6648 = vsub.s32 0, %v6421
      %v6649 = vsel %vm6647, %v6648, %v6421
      %v6650 = vshrl.u32 %v6649, 4
      %v6651 = vand.u32 %v6649, 15
      %v6652 = vsub.s32 0, %v6651
      %v6653 = vsel %vm6647, %v6652, %v6651
      %vm6654 = vcmp.lt.s32.totalorder %v6422, 0
      %v6655 = vsub.s32 0, %v6422
      %v6656 = vsel %vm6654, %v6655, %v6422
      %v6657 = vshrl.u32 %v6656, 4
      %v6658 = vand.u32 %v6656, 15
      %v6659 = vsub.s32 0, %v6658
      %v6660 = vsel %vm6654, %v6659, %v6658
      %vm6661 = vcmp.lt.s32.totalorder %v6423, 0
      %v6662 = vsub.s32 0, %v6423
      %v6663 = vsel %vm6661, %v6662, %v6423
      %v6664 = vshrl.u32 %v6663, 4
      %v6665 = vand.u32 %v6663, 15
      %v6666 = vsub.s32 0, %v6665
      %v6667 = vsel %vm6661, %v6666, %v6665
      %vm6668 = vcmp.lt.s32.totalorder %v6424, 0
      %v6669 = vsub.s32 0, %v6424
      %v6670 = vsel %vm6668, %v6669, %v6424
      %v6671 = vshrl.u32 %v6670, 4
      %v6672 = vand.u32 %v6670, 15
      %v6673 = vsub.s32 0, %v6672
      %v6674 = vsel %vm6668, %v6673, %v6672
      %vm6675 = vcmp.lt.s32.totalorder %v6425, 0
      %v6676 = vsub.s32 0, %v6425
      %v6677 = vsel %vm6675, %v6676, %v6425
      %v6678 = vshrl.u32 %v6677, 4
      %v6679 = vand.u32 %v6677, 15
      %v6680 = vsub.s32 0, %v6679
      %v6681 = vsel %vm6675, %v6680, %v6679
      %vm6682 = vcmp.ne.s32.totalorder %v6464, 0
      %vm6683 = vcmp.ne.s32.totalorder %v6471, 0
      %vm6684 = vcmp.ne.s32.totalorder %v6478, 0
      %vm6685 = vcmp.ne.s32.totalorder %v6485, 0
      %vm6686 = vcmp.ne.s32.totalorder %v6492, 0
      %vm6687 = vcmp.ne.s32.totalorder %v6499, 0
      %vm6688 = vcmp.ne.s32.totalorder %v6506, 0
      %vm6689 = vcmp.ne.s32.totalorder %v6513, 0
      %vm6690 = vcmp.ne.s32.totalorder %v6520, 0
      %vm6691 = vcmp.ne.s32.totalorder %v6527, 0
      %vm6692 = vcmp.ne.s32.totalorder %v6534, 0
      %vm6693 = vcmp.ne.s32.totalorder %v6541, 0
      %vm6694 = vcmp.ne.s32.totalorder %v6548, 0
      %vm6695 = vcmp.ne.s32.totalorder %v6555, 0
      %vm6696 = vcmp.ne.s32.totalorder %v6562, 0
      %vm6697 = vcmp.ne.s32.totalorder %v6569, 0
      %vm6698 = vcmp.ne.s32.totalorder %v6576, 0
      %vm6699 = vcmp.ne.s32.totalorder %v6583, 0
      %vm6700 = vcmp.ne.s32.totalorder %v6590, 0
      %vm6701 = vcmp.ne.s32.totalorder %v6597, 0
      %vm6702 = vcmp.ne.s32.totalorder %v6604, 0
      %vm6703 = vcmp.ne.s32.totalorder %v6611, 0
      %vm6704 = vcmp.ne.s32.totalorder %v6618, 0
      %vm6705 = vcmp.ne.s32.totalorder %v6625, 0
      %vm6706 = vcmp.ne.s32.totalorder %v6632, 0
      %vm6707 = vcmp.ne.s32.totalorder %v6639, 0
      %vm6708 = vcmp.ne.s32.totalorder %v6646, 0
      %vm6709 = vcmp.ne.s32.totalorder %v6653, 0
      %vm6710 = vcmp.ne.s32.totalorder %v6660, 0
      %vm6711 = vcmp.ne.s32.totalorder %v6667, 0
      %vm6712 = vcmp.ne.s32.totalorder %v6674, 0
      %vm6713 = vcmp.ne.s32.totalorder %v6681, 0
      %vm6714 = vcmp.lt.s32.totalorder %v6464, 0
      %vm6715 = vcmp.lt.s32.totalorder %v6471, 0
      %vm6716 = vcmp.lt.s32.totalorder %v6478, 0
      %vm6717 = vcmp.lt.s32.totalorder %v6485, 0
      %vm6718 = vcmp.lt.s32.totalorder %v6492, 0
      %vm6719 = vcmp.lt.s32.totalorder %v6499, 0
      %vm6720 = vcmp.lt.s32.totalorder %v6506, 0
      %vm6721 = vcmp.lt.s32.totalorder %v6513, 0
      %vm6722 = vcmp.lt.s32.totalorder %v6520, 0
      %vm6723 = vcmp.lt.s32.totalorder %v6527, 0
      %vm6724 = vcmp.lt.s32.totalorder %v6534, 0
      %vm6725 = vcmp.lt.s32.totalorder %v6541, 0
      %vm6726 = vcmp.lt.s32.totalorder %v6548, 0
      %vm6727 = vcmp.lt.s32.totalorder %v6555, 0
      %vm6728 = vcmp.lt.s32.totalorder %v6562, 0
      %vm6729 = vcmp.lt.s32.totalorder %v6569, 0
      %vm6730 = vcmp.lt.s32.totalorder %v6576, 0
      %vm6731 = vcmp.lt.s32.totalorder %v6583, 0
      %vm6732 = vcmp.lt.s32.totalorder %v6590, 0
      %vm6733 = vcmp.lt.s32.totalorder %v6597, 0
      %vm6734 = vcmp.lt.s32.totalorder %v6604, 0
      %vm6735 = vcmp.lt.s32.totalorder %v6611, 0
      %vm6736 = vcmp.lt.s32.totalorder %v6618, 0
      %vm6737 = vcmp.lt.s32.totalorder %v6625, 0
      %vm6738 = vcmp.lt.s32.totalorder %v6632, 0
      %vm6739 = vcmp.lt.s32.totalorder %v6639, 0
      %vm6740 = vcmp.lt.s32.totalorder %v6646, 0
      %vm6741 = vcmp.lt.s32.totalorder %v6653, 0
      %vm6742 = vcmp.lt.s32.totalorder %v6660, 0
      %vm6743 = vcmp.lt.s32.totalorder %v6667, 0
      %vm6744 = vcmp.lt.s32.totalorder %v6674, 0
      %vm6745 = vcmp.lt.s32.totalorder %v6681, 0
      %vm6746 = vmand %vm6714, %vm6682
      %vm6747 = vmand %vm6715, %vm6683
      %vm6748 = vmand %vm6716, %vm6684
      %vm6749 = vmand %vm6717, %vm6685
      %vm6750 = vmand %vm6718, %vm6686
      %vm6751 = vmand %vm6719, %vm6687
      %vm6752 = vmand %vm6720, %vm6688
      %vm6753 = vmand %vm6721, %vm6689
      %vm6754 = vmand %vm6722, %vm6690
      %vm6755 = vmand %vm6723, %vm6691
      %vm6756 = vmand %vm6724, %vm6692
      %vm6757 = vmand %vm6725, %vm6693
      %vm6758 = vmand %vm6726, %vm6694
      %vm6759 = vmand %vm6727, %vm6695
      %vm6760 = vmand %vm6728, %vm6696
      %vm6761 = vmand %vm6729, %vm6697
      %vm6762 = vmand %vm6730, %vm6698
      %vm6763 = vmand %vm6731, %vm6699
      %vm6764 = vmand %vm6732, %vm6700
      %vm6765 = vmand %vm6733, %vm6701
      %vm6766 = vmand %vm6734, %vm6702
      %vm6767 = vmand %vm6735, %vm6703
      %vm6768 = vmand %vm6736, %vm6704
      %vm6769 = vmand %vm6737, %vm6705
      %vm6770 = vmand %vm6738, %vm6706
      %vm6771 = vmand %vm6739, %vm6707
      %vm6772 = vmand %vm6740, %vm6708
      %vm6773 = vmand %vm6741, %vm6709
      %vm6774 = vmand %vm6742, %vm6710
      %vm6775 = vmand %vm6743, %vm6711
      %vm6776 = vmand %vm6744, %vm6712
      %vm6777 = vmand %vm6745, %vm6713
      %v6778 = vadd.s32 %v6464, 16
      %v6779 = vadd.s32 %v6471, 16
      %v6780 = vadd.s32 %v6478, 16
      %v6781 = vadd.s32 %v6485, 16
      %v6782 = vadd.s32 %v6492, 16
      %v6783 = vadd.s32 %v6499, 16
      %v6784 = vadd.s32 %v6506, 16
      %v6785 = vadd.s32 %v6513, 16
      %v6786 = vadd.s32 %v6520, 16
      %v6787 = vadd.s32 %v6527, 16
      %v6788 = vadd.s32 %v6534, 16
      %v6789 = vadd.s32 %v6541, 16
      %v6790 = vadd.s32 %v6548, 16
      %v6791 = vadd.s32 %v6555, 16
      %v6792 = vadd.s32 %v6562, 16
      %v6793 = vadd.s32 %v6569, 16
      %v6794 = vadd.s32 %v6576, 16
      %v6795 = vadd.s32 %v6583, 16
      %v6796 = vadd.s32 %v6590, 16
      %v6797 = vadd.s32 %v6597, 16
      %v6798 = vadd.s32 %v6604, 16
      %v6799 = vadd.s32 %v6611, 16
      %v6800 = vadd.s32 %v6618, 16
      %v6801 = vadd.s32 %v6625, 16
      %v6802 = vadd.s32 %v6632, 16
      %v6803 = vadd.s32 %v6639, 16
      %v6804 = vadd.s32 %v6646, 16
      %v6805 = vadd.s32 %v6653, 16
      %v6806 = vadd.s32 %v6660, 16
      %v6807 = vadd.s32 %v6667, 16
      %v6808 = vadd.s32 %v6674, 16
      %v6809 = vadd.s32 %v6681, 16
      %v6810 = vsel %vm6746, %v6778, %v6464
      %v6811 = vsel %vm6747, %v6779, %v6471
      %v6812 = vsel %vm6748, %v6780, %v6478
      %v6813 = vsel %vm6749, %v6781, %v6485
      %v6814 = vsel %vm6750, %v6782, %v6492
      %v6815 = vsel %vm6751, %v6783, %v6499
      %v6816 = vsel %vm6752, %v6784, %v6506
      %v6817 = vsel %vm6753, %v6785, %v6513
      %v6818 = vsel %vm6754, %v6786, %v6520
      %v6819 = vsel %vm6755, %v6787, %v6527
      %v6820 = vsel %vm6756, %v6788, %v6534
      %v6821 = vsel %vm6757, %v6789, %v6541
      %v6822 = vsel %vm6758, %v6790, %v6548
      %v6823 = vsel %vm6759, %v6791, %v6555
      %v6824 = vsel %vm6760, %v6792, %v6562
      %v6825 = vsel %vm6761, %v6793, %v6569
      %v6826 = vsel %vm6762, %v6794, %v6576
      %v6827 = vsel %vm6763, %v6795, %v6583
      %v6828 = vsel %vm6764, %v6796, %v6590
      %v6829 = vsel %vm6765, %v6797, %v6597
      %v6830 = vsel %vm6766, %v6798, %v6604
      %v6831 = vsel %vm6767, %v6799, %v6611
      %v6832 = vsel %vm6768, %v6800, %v6618
      %v6833 = vsel %vm6769, %v6801, %v6625
      %v6834 = vsel %vm6770, %v6802, %v6632
      %v6835 = vsel %vm6771, %v6803, %v6639
      %v6836 = vsel %vm6772, %v6804, %v6646
      %v6837 = vsel %vm6773, %v6805, %v6653
      %v6838 = vsel %vm6774, %v6806, %v6660
      %v6839 = vsel %vm6775, %v6807, %v6667
      %v6840 = vsel %vm6776, %v6808, %v6674
      %v6841 = vsel %vm6777, %v6809, %v6681
      %vm6842 = vcmp.lt.s32.totalorder %v6810, 14
      %vm6843 = vcmp.lt.s32.totalorder %v6811, 14
      %vm6844 = vcmp.lt.s32.totalorder %v6812, 14
      %vm6845 = vcmp.lt.s32.totalorder %v6813, 14
      %vm6846 = vcmp.lt.s32.totalorder %v6814, 14
      %vm6847 = vcmp.lt.s32.totalorder %v6815, 14
      %vm6848 = vcmp.lt.s32.totalorder %v6816, 14
      %vm6849 = vcmp.lt.s32.totalorder %v6817, 14
      %vm6850 = vcmp.lt.s32.totalorder %v6818, 14
      %vm6851 = vcmp.lt.s32.totalorder %v6819, 14
      %vm6852 = vcmp.lt.s32.totalorder %v6820, 14
      %vm6853 = vcmp.lt.s32.totalorder %v6821, 14
      %vm6854 = vcmp.lt.s32.totalorder %v6822, 14
      %vm6855 = vcmp.lt.s32.totalorder %v6823, 14
      %vm6856 = vcmp.lt.s32.totalorder %v6824, 14
      %vm6857 = vcmp.lt.s32.totalorder %v6825, 14
      %vm6858 = vcmp.lt.s32.totalorder %v6826, 14
      %vm6859 = vcmp.lt.s32.totalorder %v6827, 14
      %vm6860 = vcmp.lt.s32.totalorder %v6828, 14
      %vm6861 = vcmp.lt.s32.totalorder %v6829, 14
      %vm6862 = vcmp.lt.s32.totalorder %v6830, 14
      %vm6863 = vcmp.lt.s32.totalorder %v6831, 14
      %vm6864 = vcmp.lt.s32.totalorder %v6832, 14
      %vm6865 = vcmp.lt.s32.totalorder %v6833, 14
      %vm6866 = vcmp.lt.s32.totalorder %v6834, 14
      %vm6867 = vcmp.lt.s32.totalorder %v6835, 14
      %vm6868 = vcmp.lt.s32.totalorder %v6836, 14
      %vm6869 = vcmp.lt.s32.totalorder %v6837, 14
      %vm6870 = vcmp.lt.s32.totalorder %v6838, 14
      %vm6871 = vcmp.lt.s32.totalorder %v6839, 14
      %vm6872 = vcmp.lt.s32.totalorder %v6840, 14
      %vm6873 = vcmp.lt.s32.totalorder %v6841, 14
      %vm6874 = vmand %vm6426, %vm6842
      %vm6875 = vmand %vm6427, %vm6843
      %vm6876 = vmand %vm6428, %vm6844
      %vm6877 = vmand %vm6429, %vm6845
      %vm6878 = vmand %vm6430, %vm6846
      %vm6879 = vmand %vm6431, %vm6847
      %vm6880 = vmand %vm6432, %vm6848
      %vm6881 = vmand %vm6433, %vm6849
      %vm6882 = vmand %vm6434, %vm6850
      %vm6883 = vmand %vm6435, %vm6851
      %vm6884 = vmand %vm6436, %vm6852
      %vm6885 = vmand %vm6437, %vm6853
      %vm6886 = vmand %vm6438, %vm6854
      %vm6887 = vmand %vm6439, %vm6855
      %vm6888 = vmand %vm6440, %vm6856
      %vm6889 = vmand %vm6441, %vm6857
      %vm6890 = vmand %vm6442, %vm6858
      %vm6891 = vmand %vm6443, %vm6859
      %vm6892 = vmand %vm6444, %vm6860
      %vm6893 = vmand %vm6445, %vm6861
      %vm6894 = vmand %vm6446, %vm6862
      %vm6895 = vmand %vm6447, %vm6863
      %vm6896 = vmand %vm6448, %vm6864
      %vm6897 = vmand %vm6449, %vm6865
      %vm6898 = vmand %vm6450, %vm6866
      %vm6899 = vmand %vm6451, %vm6867
      %vm6900 = vmand %vm6452, %vm6868
      %vm6901 = vmand %vm6453, %vm6869
      %vm6902 = vmand %vm6454, %vm6870
      %vm6903 = vmand %vm6455, %vm6871
      %vm6904 = vmand %vm6456, %vm6872
      %vm6905 = vmand %vm6457, %vm6873
      %v6906 = vsel %vm6874, 1, 0
      %v6907 = vsel %vm6875, 1, 0
      %v6908 = vsel %vm6876, 1, 0
      %v6909 = vsel %vm6877, 1, 0
      %v6910 = vsel %vm6878, 1, 0
      %v6911 = vsel %vm6879, 1, 0
      %v6912 = vsel %vm6880, 1, 0
      %v6913 = vsel %vm6881, 1, 0
      %v6914 = vsel %vm6882, 1, 0
      %v6915 = vsel %vm6883, 1, 0
      %v6916 = vsel %vm6884, 1, 0
      %v6917 = vsel %vm6885, 1, 0
      %v6918 = vsel %vm6886, 1, 0
      %v6919 = vsel %vm6887, 1, 0
      %v6920 = vsel %vm6888, 1, 0
      %v6921 = vsel %vm6889, 1, 0
      %v6922 = vsel %vm6890, 1, 0
      %v6923 = vsel %vm6891, 1, 0
      %v6924 = vsel %vm6892, 1, 0
      %v6925 = vsel %vm6893, 1, 0
      %v6926 = vsel %vm6894, 1, 0
      %v6927 = vsel %vm6895, 1, 0
      %v6928 = vsel %vm6896, 1, 0
      %v6929 = vsel %vm6897, 1, 0
      %v6930 = vsel %vm6898, 1, 0
      %v6931 = vsel %vm6899, 1, 0
      %v6932 = vsel %vm6900, 1, 0
      %v6933 = vsel %vm6901, 1, 0
      %v6934 = vsel %vm6902, 1, 0
      %v6935 = vsel %vm6903, 1, 0
      %v6936 = vsel %vm6904, 1, 0
      %v6937 = vsel %vm6905, 1, 0
      %vm6938 = vcmp.eq.s32.totalorder %v6906, 1
      %vm6939 = vcmp.eq.s32.totalorder %v6907, 1
      %vm6940 = vcmp.eq.s32.totalorder %v6908, 1
      %vm6941 = vcmp.eq.s32.totalorder %v6909, 1
      %vm6942 = vcmp.eq.s32.totalorder %v6910, 1
      %vm6943 = vcmp.eq.s32.totalorder %v6911, 1
      %vm6944 = vcmp.eq.s32.totalorder %v6912, 1
      %vm6945 = vcmp.eq.s32.totalorder %v6913, 1
      %vm6946 = vcmp.eq.s32.totalorder %v6914, 1
      %vm6947 = vcmp.eq.s32.totalorder %v6915, 1
      %vm6948 = vcmp.eq.s32.totalorder %v6916, 1
      %vm6949 = vcmp.eq.s32.totalorder %v6917, 1
      %vm6950 = vcmp.eq.s32.totalorder %v6918, 1
      %vm6951 = vcmp.eq.s32.totalorder %v6919, 1
      %vm6952 = vcmp.eq.s32.totalorder %v6920, 1
      %vm6953 = vcmp.eq.s32.totalorder %v6921, 1
      %vm6954 = vcmp.eq.s32.totalorder %v6922, 1
      %vm6955 = vcmp.eq.s32.totalorder %v6923, 1
      %vm6956 = vcmp.eq.s32.totalorder %v6924, 1
      %vm6957 = vcmp.eq.s32.totalorder %v6925, 1
      %vm6958 = vcmp.eq.s32.totalorder %v6926, 1
      %vm6959 = vcmp.eq.s32.totalorder %v6927, 1
      %vm6960 = vcmp.eq.s32.totalorder %v6928, 1
      %vm6961 = vcmp.eq.s32.totalorder %v6929, 1
      %vm6962 = vcmp.eq.s32.totalorder %v6930, 1
      %vm6963 = vcmp.eq.s32.totalorder %v6931, 1
      %vm6964 = vcmp.eq.s32.totalorder %v6932, 1
      %vm6965 = vcmp.eq.s32.totalorder %v6933, 1
      %vm6966 = vcmp.eq.s32.totalorder %v6934, 1
      %vm6967 = vcmp.eq.s32.totalorder %v6935, 1
      %vm6968 = vcmp.eq.s32.totalorder %v6936, 1
      %vm6969 = vcmp.eq.s32.totalorder %v6937, 1
      %v6970 = vsel %vm6938, %v6329, 0.0
      %v6971 = vsel %vm6938, %v6330, 0.0
      %v6972 = vsel %vm6939, %v6331, 0.0
      %v6973 = vsel %vm6939, %v6332, 0.0
      %v6974 = vsel %vm6940, %v6333, 0.0
      %v6975 = vsel %vm6940, %v6334, 0.0
      %v6976 = vsel %vm6941, %v6335, 0.0
      %v6977 = vsel %vm6941, %v6336, 0.0
      %v6978 = vsel %vm6942, %v6337, 0.0
      %v6979 = vsel %vm6942, %v6338, 0.0
      %v6980 = vsel %vm6943, %v6339, 0.0
      %v6981 = vsel %vm6943, %v6340, 0.0
      %v6982 = vsel %vm6944, %v6341, 0.0
      %v6983 = vsel %vm6944, %v6342, 0.0
      %v6984 = vsel %vm6945, %v6343, 0.0
      %v6985 = vsel %vm6945, %v6344, 0.0
      %v6986 = vsel %vm6946, %v6345, 0.0
      %v6987 = vsel %vm6946, %v6346, 0.0
      %v6988 = vsel %vm6947, %v6347, 0.0
      %v6989 = vsel %vm6947, %v6348, 0.0
      %v6990 = vsel %vm6948, %v6349, 0.0
      %v6991 = vsel %vm6948, %v6350, 0.0
      %v6992 = vsel %vm6949, %v6351, 0.0
      %v6993 = vsel %vm6949, %v6352, 0.0
      %v6994 = vsel %vm6950, %v6353, 0.0
      %v6995 = vsel %vm6950, %v6354, 0.0
      %v6996 = vsel %vm6951, %v6355, 0.0
      %v6997 = vsel %vm6951, %v6356, 0.0
      %v6998 = vsel %vm6952, %v6357, 0.0
      %v6999 = vsel %vm6952, %v6358, 0.0
      %v7000 = vsel %vm6953, %v6359, 0.0
      %v7001 = vsel %vm6953, %v6360, 0.0
      %v7002 = vsel %vm6954, %v6361, 0.0
      %v7003 = vsel %vm6954, %v6362, 0.0
      %v7004 = vsel %vm6955, %v6363, 0.0
      %v7005 = vsel %vm6955, %v6364, 0.0
      %v7006 = vsel %vm6956, %v6365, 0.0
      %v7007 = vsel %vm6956, %v6366, 0.0
      %v7008 = vsel %vm6957, %v6367, 0.0
      %v7009 = vsel %vm6957, %v6368, 0.0
      %v7010 = vsel %vm6958, %v6369, 0.0
      %v7011 = vsel %vm6958, %v6370, 0.0
      %v7012 = vsel %vm6959, %v6371, 0.0
      %v7013 = vsel %vm6959, %v6372, 0.0
      %v7014 = vsel %vm6960, %v6373, 0.0
      %v7015 = vsel %vm6960, %v6374, 0.0
      %v7016 = vsel %vm6961, %v6375, 0.0
      %v7017 = vsel %vm6961, %v6376, 0.0
      %v7018 = vsel %vm6962, %v6377, 0.0
      %v7019 = vsel %vm6962, %v6378, 0.0
      %v7020 = vsel %vm6963, %v6379, 0.0
      %v7021 = vsel %vm6963, %v6380, 0.0
      %v7022 = vsel %vm6964, %v6381, 0.0
      %v7023 = vsel %vm6964, %v6382, 0.0
      %v7024 = vsel %vm6965, %v6383, 0.0
      %v7025 = vsel %vm6965, %v6384, 0.0
      %v7026 = vsel %vm6966, %v6385, 0.0
      %v7027 = vsel %vm6966, %v6386, 0.0
      %v7028 = vsel %vm6967, %v6387, 0.0
      %v7029 = vsel %vm6967, %v6388, 0.0
      %v7030 = vsel %vm6968, %v6389, 0.0
      %v7031 = vsel %vm6968, %v6390, 0.0
      %v7032 = vsel %vm6969, %v6391, 0.0
      %v7033 = vsel %vm6969, %v6392, 0.0
      %p7034 = scmp.eq.s32.totalorder %s19, 0
      %p7035 = scmp.eq.s32.totalorder %s20, 0
      %p7036 = pnand %p7034, %p7035
      %p7037 = pneg %p7036
      // Predicated region
      $region37: #{conv2d_batchnorm.1} parent=35 // pred_check
        _
      $region38: #{conv2d_batchnorm.1} parent=35 // pred_check_branch
        %7039 = sbr.rel (%p7036) target = $region40
      $region39: #{conv2d_batchnorm.1} parent=35 // pred_region
        %v7040 = vlaneseq
        %vm7041 = vcmp.ge.s32.totalorder %v7040, 0
        %vm7042 = vcmp.lt.s32.totalorder %v7040, 256
        %vm7043 = vmand %vm7041, %vm7042
        %7044 = vst.msk [vmem:[#allocation3] sm:$0x3] %vm7043, 0.0
        %7045 = vst.msk [vmem:[#allocation4] sm:$0x3] %vm7043, 0.0
      $region40: #{conv2d_batchnorm.1} parent=35 // pred_fallthru
        _
      // Predicated region
      $region41: #{conv2d_batchnorm.1} parent=35 // pred_check
        %p7046 = pneg %p7034
      $region42: #{conv2d_batchnorm.1} parent=35 // pred_check_branch
        %7048 = sbr.rel (%p7046) target = $region44
      $region43: #{conv2d_batchnorm.1} parent=35 // pred_region
        %v7049 = vld [vmem:[#allocation3] sm:$0x3]
        %v7050 = vadd.f32 %v6970, %v6972
        %v7051 = vadd.f32 %v7050, %v6974
        %v7052 = vadd.f32 %v7051, %v6976
        %v7053 = vadd.f32 %v7052, %v6978
        %v7054 = vadd.f32 %v7053, %v6980
        %v7055 = vadd.f32 %v7054, %v6982
        %v7056 = vadd.f32 %v7055, %v6984
        %v7057 = vadd.f32 %v7056, %v6986
        %v7058 = vadd.f32 %v7057, %v6988
        %v7059 = vadd.f32 %v7058, %v6990
        %v7060 = vadd.f32 %v7059, %v6992
        %v7061 = vadd.f32 %v7060, %v6994
        %v7062 = vadd.f32 %v7061, %v6996
        %v7063 = vadd.f32 %v7062, %v6998
        %v7064 = vadd.f32 %v7063, %v7000
        %v7065 = vadd.f32 %v7064, %v7002
        %v7066 = vadd.f32 %v7065, %v7004
        %v7067 = vadd.f32 %v7066, %v7006
        %v7068 = vadd.f32 %v7067, %v7008
        %v7069 = vadd.f32 %v7068, %v7010
        %v7070 = vadd.f32 %v7069, %v7012
        %v7071 = vadd.f32 %v7070, %v7014
        %v7072 = vadd.f32 %v7071, %v7016
        %v7073 = vadd.f32 %v7072, %v7018
        %v7074 = vadd.f32 %v7073, %v7020
        %v7075 = vadd.f32 %v7074, %v7022
        %v7076 = vadd.f32 %v7075, %v7024
        %v7077 = vadd.f32 %v7076, %v7026
        %v7078 = vadd.f32 %v7077, %v7028
        %v7079 = vadd.f32 %v7078, %v7030
        %v7080 = vadd.f32 %v7079, %v7032
        %v7081 = vrot.slane %v7080, 4
        %v7082 = vadd.f32 %v7080, %v7081
        %v7083 = vrot.slane %v7082, 2
        %v7084 = vadd.f32 %v7082, %v7083
        %v7085 = vrot.slane %v7084, 1
        %v7086 = vadd.f32 %v7084, %v7085
        %v7087 = vadd.f32 %v6971, %v6973
        %v7088 = vadd.f32 %v7087, %v6975
        %v7089 = vadd.f32 %v7088, %v6977
        %v7090 = vadd.f32 %v7089, %v6979
        %v7091 = vadd.f32 %v7090, %v6981
        %v7092 = vadd.f32 %v7091, %v6983
        %v7093 = vadd.f32 %v7092, %v6985
        %v7094 = vadd.f32 %v7093, %v6987
        %v7095 = vadd.f32 %v7094, %v6989
        %v7096 = vadd.f32 %v7095, %v6991
        %v7097 = vadd.f32 %v7096, %v6993
        %v7098 = vadd.f32 %v7097, %v6995
        %v7099 = vadd.f32 %v7098, %v6997
        %v7100 = vadd.f32 %v7099, %v6999
        %v7101 = vadd.f32 %v7100, %v7001
        %v7102 = vadd.f32 %v7101, %v7003
        %v7103 = vadd.f32 %v7102, %v7005
        %v7104 = vadd.f32 %v7103, %v7007
        %v7105 = vadd.f32 %v7104, %v7009
        %v7106 = vadd.f32 %v7105, %v7011
        %v7107 = vadd.f32 %v7106, %v7013
        %v7108 = vadd.f32 %v7107, %v7015
        %v7109 = vadd.f32 %v7108, %v7017
        %v7110 = vadd.f32 %v7109, %v7019
        %v7111 = vadd.f32 %v7110, %v7021
        %v7112 = vadd.f32 %v7111, %v7023
        %v7113 = vadd.f32 %v7112, %v7025
        %v7114 = vadd.f32 %v7113, %v7027
        %v7115 = vadd.f32 %v7114, %v7029
        %v7116 = vadd.f32 %v7115, %v7031
        %v7117 = vadd.f32 %v7116, %v7033
        %v7118 = vrot.slane %v7117, 4
        %v7119 = vadd.f32 %v7117, %v7118
        %v7120 = vrot.slane %v7119, 2
        %v7121 = vadd.f32 %v7119, %v7120
        %v7122 = vrot.slane %v7121, 1
        %v7123 = vadd.f32 %v7121, %v7122
        %v7126 = vcombine.low %v7086, %v7123
        %v7128 = vunpack.c.l.s4 1966171168
        %v7129 = vunpack.c.0.s8 %v7128
        %v7130 = vlaneseq
        %v7131 = vshrl.u32 %v7130, 7
        %v7132 = vsub.s32 %v7129, %v7131
        %v7133 = vrot.slane %v7126, %v7132
        %v7135 = vunpack.c.l.s4 1966171168
        %v7136 = vunpack.c.0.s8 %v7135
        %v7137 = vlaneseq
        %v7138 = vshrl.u32 %v7137, 7
        %v7139 = vsub.s32 %v7136, %v7138
        %v7140 = vrot.slane %v7133, %v7139
        %v7142 = vadd.f32 %v7049, %v7140
        %v7143 = vlaneseq
        %vm7144 = vcmp.ge.s32.totalorder %v7143, 0
        %vm7145 = vcmp.lt.s32.totalorder %v7143, 256
        %vm7146 = vmand %vm7144, %vm7145
        %7147 = vst.msk [vmem:[#allocation3] sm:$0x3] %vm7146, %v7142
        %v7148 = vld [vmem:[#allocation4] sm:$0x3]
        %v7149 = vmul.f32 %v6970, %v6329
        %v7150 = vmul.f32 %v6971, %v6330
        %v7151 = vmul.f32 %v6972, %v6331
        %v7152 = vmul.f32 %v6973, %v6332
        %v7153 = vmul.f32 %v6974, %v6333
        %v7154 = vmul.f32 %v6975, %v6334
        %v7155 = vmul.f32 %v6976, %v6335
        %v7156 = vmul.f32 %v6977, %v6336
        %v7157 = vmul.f32 %v6978, %v6337
        %v7158 = vmul.f32 %v6979, %v6338
        %v7159 = vmul.f32 %v6980, %v6339
        %v7160 = vmul.f32 %v6981, %v6340
        %v7161 = vmul.f32 %v6982, %v6341
        %v7162 = vmul.f32 %v6983, %v6342
        %v7163 = vmul.f32 %v6984, %v6343
        %v7164 = vmul.f32 %v6985, %v6344
        %v7165 = vmul.f32 %v6986, %v6345
        %v7166 = vmul.f32 %v6987, %v6346
        %v7167 = vmul.f32 %v6988, %v6347
        %v7168 = vmul.f32 %v6989, %v6348
        %v7169 = vmul.f32 %v6990, %v6349
        %v7170 = vmul.f32 %v6991, %v6350
        %v7171 = vmul.f32 %v6992, %v6351
        %v7172 = vmul.f32 %v6993, %v6352
        %v7173 = vmul.f32 %v6994, %v6353
        %v7174 = vmul.f32 %v6995, %v6354
        %v7175 = vmul.f32 %v6996, %v6355
        %v7176 = vmul.f32 %v6997, %v6356
        %v7177 = vmul.f32 %v6998, %v6357
        %v7178 = vmul.f32 %v6999, %v6358
        %v7179 = vmul.f32 %v7000, %v6359
        %v7180 = vmul.f32 %v7001, %v6360
        %v7181 = vmul.f32 %v7002, %v6361
        %v7182 = vmul.f32 %v7003, %v6362
        %v7183 = vmul.f32 %v7004, %v6363
        %v7184 = vmul.f32 %v7005, %v6364
        %v7185 = vmul.f32 %v7006, %v6365
        %v7186 = vmul.f32 %v7007, %v6366
        %v7187 = vmul.f32 %v7008, %v6367
        %v7188 = vmul.f32 %v7009, %v6368
        %v7189 = vmul.f32 %v7010, %v6369
        %v7190 = vmul.f32 %v7011, %v6370
        %v7191 = vmul.f32 %v7012, %v6371
        %v7192 = vmul.f32 %v7013, %v6372
        %v7193 = vmul.f32 %v7014, %v6373
        %v7194 = vmul.f32 %v7015, %v6374
        %v7195 = vmul.f32 %v7016, %v6375
        %v7196 = vmul.f32 %v7017, %v6376
        %v7197 = vmul.f32 %v7018, %v6377
        %v7198 = vmul.f32 %v7019, %v6378
        %v7199 = vmul.f32 %v7020, %v6379
        %v7200 = vmul.f32 %v7021, %v6380
        %v7201 = vmul.f32 %v7022, %v6381
        %v7202 = vmul.f32 %v7023, %v6382
        %v7203 = vmul.f32 %v7024, %v6383
        %v7204 = vmul.f32 %v7025, %v6384
        %v7205 = vmul.f32 %v7026, %v6385
        %v7206 = vmul.f32 %v7027, %v6386
        %v7207 = vmul.f32 %v7028, %v6387
        %v7208 = vmul.f32 %v7029, %v6388
        %v7209 = vmul.f32 %v7030, %v6389
        %v7210 = vmul.f32 %v7031, %v6390
        %v7211 = vmul.f32 %v7032, %v6391
        %v7212 = vmul.f32 %v7033, %v6392
        %v7213 = vadd.f32 %v7149, %v7151
        %v7214 = vadd.f32 %v7213, %v7153
        %v7215 = vadd.f32 %v7214, %v7155
        %v7216 = vadd.f32 %v7215, %v7157
        %v7217 = vadd.f32 %v7216, %v7159
        %v7218 = vadd.f32 %v7217, %v7161
        %v7219 = vadd.f32 %v7218, %v7163
        %v7220 = vadd.f32 %v7219, %v7165
        %v7221 = vadd.f32 %v7220, %v7167
        %v7222 = vadd.f32 %v7221, %v7169
        %v7223 = vadd.f32 %v7222, %v7171
        %v7224 = vadd.f32 %v7223, %v7173
        %v7225 = vadd.f32 %v7224, %v7175
        %v7226 = vadd.f32 %v7225, %v7177
        %v7227 = vadd.f32 %v7226, %v7179
        %v7228 = vadd.f32 %v7227, %v7181
        %v7229 = vadd.f32 %v7228, %v7183
        %v7230 = vadd.f32 %v7229, %v7185
        %v7231 = vadd.f32 %v7230, %v7187
        %v7232 = vadd.f32 %v7231, %v7189
        %v7233 = vadd.f32 %v7232, %v7191
        %v7234 = vadd.f32 %v7233, %v7193
        %v7235 = vadd.f32 %v7234, %v7195
        %v7236 = vadd.f32 %v7235, %v7197
        %v7237 = vadd.f32 %v7236, %v7199
        %v7238 = vadd.f32 %v7237, %v7201
        %v7239 = vadd.f32 %v7238, %v7203
        %v7240 = vadd.f32 %v7239, %v7205
        %v7241 = vadd.f32 %v7240, %v7207
        %v7242 = vadd.f32 %v7241, %v7209
        %v7243 = vadd.f32 %v7242, %v7211
        %v7244 = vrot.slane %v7243, 4
        %v7245 = vadd.f32 %v7243, %v7244
        %v7246 = vrot.slane %v7245, 2
        %v7247 = vadd.f32 %v7245, %v7246
        %v7248 = vrot.slane %v7247, 1
        %v7249 = vadd.f32 %v7247, %v7248
        %v7250 = vadd.f32 %v7150, %v7152
        %v7251 = vadd.f32 %v7250, %v7154
        %v7252 = vadd.f32 %v7251, %v7156
        %v7253 = vadd.f32 %v7252, %v7158
        %v7254 = vadd.f32 %v7253, %v7160
        %v7255 = vadd.f32 %v7254, %v7162
        %v7256 = vadd.f32 %v7255, %v7164
        %v7257 = vadd.f32 %v7256, %v7166
        %v7258 = vadd.f32 %v7257, %v7168
        %v7259 = vadd.f32 %v7258, %v7170
        %v7260 = vadd.f32 %v7259, %v7172
        %v7261 = vadd.f32 %v7260, %v7174
        %v7262 = vadd.f32 %v7261, %v7176
        %v7263 = vadd.f32 %v7262, %v7178
        %v7264 = vadd.f32 %v7263, %v7180
        %v7265 = vadd.f32 %v7264, %v7182
        %v7266 = vadd.f32 %v7265, %v7184
        %v7267 = vadd.f32 %v7266, %v7186
        %v7268 = vadd.f32 %v7267, %v7188
        %v7269 = vadd.f32 %v7268, %v7190
        %v7270 = vadd.f32 %v7269, %v7192
        %v7271 = vadd.f32 %v7270, %v7194
        %v7272 = vadd.f32 %v7271, %v7196
        %v7273 = vadd.f32 %v7272, %v7198
        %v7274 = vadd.f32 %v7273, %v7200
        %v7275 = vadd.f32 %v7274, %v7202
        %v7276 = vadd.f32 %v7275, %v7204
        %v7277 = vadd.f32 %v7276, %v7206
        %v7278 = vadd.f32 %v7277, %v7208
        %v7279 = vadd.f32 %v7278, %v7210
        %v7280 = vadd.f32 %v7279, %v7212
        %v7281 = vrot.slane %v7280, 4
        %v7282 = vadd.f32 %v7280, %v7281
        %v7283 = vrot.slane %v7282, 2
        %v7284 = vadd.f32 %v7282, %v7283
        %v7285 = vrot.slane %v7284, 1
        %v7286 = vadd.f32 %v7284, %v7285
        %v7289 = vcombine.low %v7249, %v7286
        %v7291 = vunpack.c.l.s4 1966171168
        %v7292 = vunpack.c.0.s8 %v7291
        %v7293 = vlaneseq
        %v7294 = vshrl.u32 %v7293, 7
        %v7295 = vsub.s32 %v7292, %v7294
        %v7296 = vrot.slane %v7289, %v7295
        %v7298 = vunpack.c.l.s4 1966171168
        %v7299 = vunpack.c.0.s8 %v7298
        %v7300 = vlaneseq
        %v7301 = vshrl.u32 %v7300, 7
        %v7302 = vsub.s32 %v7299, %v7301
        %v7303 = vrot.slane %v7296, %v7302
        %v7305 = vadd.f32 %v7148, %v7303
        %7306 = vst.msk [vmem:[#allocation4] sm:$0x3] %vm7146, %v7305
        %7307 = vst [vmem:[%s216] sm:$0xff] %v6329
        %7308 = vst [vmem:[%s216 + $0x8] sm:$0xff] %v6330
        %7309 = vst [vmem:[%s216 + $0x10] sm:$0xff] %v6331
        %7310 = vst [vmem:[%s216 + $0x18] sm:$0xff] %v6332
        %7311 = vst [vmem:[%s216 + $0x20] sm:$0xff] %v6333
        %7312 = vst [vmem:[%s216 + $0x28] sm:$0xff] %v6334
        %7313 = vst [vmem:[%s216 + $0x30] sm:$0xff] %v6335
        %7314 = vst [vmem:[%s216 + $0x38] sm:$0xff] %v6336
        %7315 = vst [vmem:[%s216 + $0x40] sm:$0xff] %v6337
        %7316 = vst [vmem:[%s216 + $0x48] sm:$0xff] %v6338
        %7317 = vst [vmem:[%s216 + $0x50] sm:$0xff] %v6339
        %7318 = vst [vmem:[%s216 + $0x58] sm:$0xff] %v6340
        %7319 = vst [vmem:[%s216 + $0x60] sm:$0xff] %v6341
        %7320 = vst [vmem:[%s216 + $0x68] sm:$0xff] %v6342
        %7321 = vst [vmem:[%s216 + $0x70] sm:$0xff] %v6343
        %7322 = vst [vmem:[%s216 + $0x78] sm:$0xff] %v6344
        %7323 = vst [vmem:[%s216 + $0x80] sm:$0xff] %v6345
        %7324 = vst [vmem:[%s216 + $0x88] sm:$0xff] %v6346
        %7325 = vst [vmem:[%s216 + $0x90] sm:$0xff] %v6347
        %7326 = vst [vmem:[%s216 + $0x98] sm:$0xff] %v6348
        %7327 = vst [vmem:[%s216 + $0xa0] sm:$0xff] %v6349
        %7328 = vst [vmem:[%s216 + $0xa8] sm:$0xff] %v6350
        %7329 = vst [vmem:[%s216 + $0xb0] sm:$0xff] %v6351
        %7330 = vst [vmem:[%s216 + $0xb8] sm:$0xff] %v6352
        %7331 = vst [vmem:[%s216 + $0xc0] sm:$0xff] %v6353
        %7332 = vst [vmem:[%s216 + $0xc8] sm:$0xff] %v6354
        %7333 = vst [vmem:[%s216 + $0xd0] sm:$0xff] %v6355
        %7334 = vst [vmem:[%s216 + $0xd8] sm:$0xff] %v6356
        %7335 = vst [vmem:[%s216 + $0xe0] sm:$0xff] %v6357
        %7336 = vst [vmem:[%s216 + $0xe8] sm:$0xff] %v6358
        %7337 = vst [vmem:[%s216 + $0xf0] sm:$0xff] %v6359
        %7338 = vst [vmem:[%s216 + $0xf8] sm:$0xff] %v6360
        %7339 = vst [vmem:[%s216 + $0x100] sm:$0xff] %v6361
        %7340 = vst [vmem:[%s216 + $0x108] sm:$0xff] %v6362
        %7341 = vst [vmem:[%s216 + $0x110] sm:$0xff] %v6363
        %7342 = vst [vmem:[%s216 + $0x118] sm:$0xff] %v6364
        %7343 = vst [vmem:[%s216 + $0x120] sm:$0xff] %v6365
        %7344 = vst [vmem:[%s216 + $0x128] sm:$0xff] %v6366
        %7345 = vst [vmem:[%s216 + $0x130] sm:$0xff] %v6367
        %7346 = vst [vmem:[%s216 + $0x138] sm:$0xff] %v6368
        %7347 = vst [vmem:[%s216 + $0x140] sm:$0xff] %v6369
        %7348 = vst [vmem:[%s216 + $0x148] sm:$0xff] %v6370
        %7349 = vst [vmem:[%s216 + $0x150] sm:$0xff] %v6371
        %7350 = vst [vmem:[%s216 + $0x158] sm:$0xff] %v6372
        %7351 = vst [vmem:[%s216 + $0x160] sm:$0xff] %v6373
        %7352 = vst [vmem:[%s216 + $0x168] sm:$0xff] %v6374
        %7353 = vst [vmem:[%s216 + $0x170] sm:$0xff] %v6375
        %7354 = vst [vmem:[%s216 + $0x178] sm:$0xff] %v6376
        %7355 = vst [vmem:[%s216 + $0x180] sm:$0xff] %v6377
        %7356 = vst [vmem:[%s216 + $0x188] sm:$0xff] %v6378
        %7357 = vst [vmem:[%s216 + $0x190] sm:$0xff] %v6379
        %7358 = vst [vmem:[%s216 + $0x198] sm:$0xff] %v6380
        %7359 = vst [vmem:[%s216 + $0x1a0] sm:$0xff] %v6381
        %7360 = vst [vmem:[%s216 + $0x1a8] sm:$0xff] %v6382
        %7361 = vst [vmem:[%s216 + $0x1b0] sm:$0xff] %v6383
        %7362 = vst [vmem:[%s216 + $0x1b8] sm:$0xff] %v6384
        %7363 = vst [vmem:[%s216 + $0x1c0] sm:$0xff] %v6385
        %7364 = vst [vmem:[%s216 + $0x1c8] sm:$0xff] %v6386
        %7365 = vst [vmem:[%s216 + $0x1d0] sm:$0xff] %v6387
        %7366 = vst [vmem:[%s216 + $0x1d8] sm:$0xff] %v6388
        %7367 = vst [vmem:[%s216 + $0x1e0] sm:$0xff] %v6389
        %7368 = vst [vmem:[%s216 + $0x1e8] sm:$0xff] %v6390
        %7369 = vst [vmem:[%s216 + $0x1f0] sm:$0xff] %v6391
        %7370 = vst [vmem:[%s216 + $0x1f8] sm:$0xff] %v6392
      $region44: #{conv2d_batchnorm.1} parent=35 // pred_fallthru
        _
      %p7371 = scmp.eq.s32.totalorder %s19, 1
      %p7372 = pnand %p7371, %p7035
      %p7373 = pneg %p7372
      // Predicated region
      $region45: #{conv2d_batchnorm.1} parent=35 // pred_check
        _
      $region46: #{conv2d_batchnorm.1} parent=35 // pred_check_branch
        %7375 = sbr.rel (%p7372) target = $region48
      $region47: #{conv2d_batchnorm.1} parent=35 // pred_region
        %v7376 = vld [vmem:[#allocation3] sm:$0x3]
        %v7377 = vmul.f32 %v7376, 0.0051020407
        %v7378 = vld [vmem:[#allocation4] sm:$0x3]
        %v7379 = vmul.f32 %v7378, 0.0051020407
        %v7380 = vmul.f32 %v7377, %v7377
        %v7381 = vsub.f32 %v7379, %v7380
        %v7382 = vadd.f32 %v7381, 1e-05
        %v7383 = vrsqrt.pop %v7382
        %v7384 = vld [vmem:[%s2] sm:$0x3]
        %v7385 = vmul.f32 %v7383, %v7384
        %v7386 = vlaneseq
        %vm7387 = vcmp.ge.s32.totalorder %v7386, 0
        %vm7388 = vcmp.lt.s32.totalorder %v7386, 256
        %vm7389 = vmand %vm7387, %vm7388
        %7390 = vst.msk [vmem:[#allocation5] sm:$0x3] %vm7389, %v7385
        %v7391 = vld [vmem:[%s3] sm:$0x3]
        %v7392 = vmul.f32 %v7377, %v7385
        %v7393 = vsub.f32 %v7391, %v7392
        %7394 = vst.msk [vmem:[#allocation6] sm:$0x3] %vm7389, %v7393
      $region48: #{conv2d_batchnorm.1} parent=35 // pred_fallthru
        _
      // Predicated region
      $region49: #{conv2d_batchnorm.1} parent=35 // pred_check
        %p7395 = pneg %p7371
      $region50: #{conv2d_batchnorm.1} parent=35 // pred_check_branch
        %7397 = sbr.rel (%p7395) target = $region52
      $region51: #{conv2d_batchnorm.1} parent=35 // pred_region
        %v7398 = vld [vmem:[#allocation5] sm:$0x3]
        %v7400 = vlaneseq
        %v7401 = vshrl.u32 %v7400, 7
        %v7402 = vsub.s32 0, %v7401
        %v7403 = vrot.slane %v7398, %v7402
        %v7404 = vlaneseq
        %v7405 = vshrl.u32 %v7404, 7
        %v7406 = vsub.s32 1, %v7405
        %v7407 = vrot.slane %v7398, %v7406
        %v7410 = vmul.f32 %v6329, %v7403
        %v7411 = vmul.f32 %v6330, %v7407
        %v7412 = vmul.f32 %v6331, %v7403
        %v7413 = vmul.f32 %v6332, %v7407
        %v7414 = vmul.f32 %v6333, %v7403
        %v7415 = vmul.f32 %v6334, %v7407
        %v7416 = vmul.f32 %v6335, %v7403
        %v7417 = vmul.f32 %v6336, %v7407
        %v7418 = vmul.f32 %v6337, %v7403
        %v7419 = vmul.f32 %v6338, %v7407
        %v7420 = vmul.f32 %v6339, %v7403
        %v7421 = vmul.f32 %v6340, %v7407
        %v7422 = vmul.f32 %v6341, %v7403
        %v7423 = vmul.f32 %v6342, %v7407
        %v7424 = vmul.f32 %v6343, %v7403
        %v7425 = vmul.f32 %v6344, %v7407
        %v7426 = vmul.f32 %v6345, %v7403
        %v7427 = vmul.f32 %v6346, %v7407
        %v7428 = vmul.f32 %v6347, %v7403
        %v7429 = vmul.f32 %v6348, %v7407
        %v7430 = vmul.f32 %v6349, %v7403
        %v7431 = vmul.f32 %v6350, %v7407
        %v7432 = vmul.f32 %v6351, %v7403
        %v7433 = vmul.f32 %v6352, %v7407
        %v7434 = vmul.f32 %v6353, %v7403
        %v7435 = vmul.f32 %v6354, %v7407
        %v7436 = vmul.f32 %v6355, %v7403
        %v7437 = vmul.f32 %v6356, %v7407
        %v7438 = vmul.f32 %v6357, %v7403
        %v7439 = vmul.f32 %v6358, %v7407
        %v7440 = vmul.f32 %v6359, %v7403
        %v7441 = vmul.f32 %v6360, %v7407
        %v7442 = vmul.f32 %v6361, %v7403
        %v7443 = vmul.f32 %v6362, %v7407
        %v7444 = vmul.f32 %v6363, %v7403
        %v7445 = vmul.f32 %v6364, %v7407
        %v7446 = vmul.f32 %v6365, %v7403
        %v7447 = vmul.f32 %v6366, %v7407
        %v7448 = vmul.f32 %v6367, %v7403
        %v7449 = vmul.f32 %v6368, %v7407
        %v7450 = vmul.f32 %v6369, %v7403
        %v7451 = vmul.f32 %v6370, %v7407
        %v7452 = vmul.f32 %v6371, %v7403
        %v7453 = vmul.f32 %v6372, %v7407
        %v7454 = vmul.f32 %v6373, %v7403
        %v7455 = vmul.f32 %v6374, %v7407
        %v7456 = vmul.f32 %v6375, %v7403
        %v7457 = vmul.f32 %v6376, %v7407
        %v7458 = vmul.f32 %v6377, %v7403
        %v7459 = vmul.f32 %v6378, %v7407
        %v7460 = vmul.f32 %v6379, %v7403
        %v7461 = vmul.f32 %v6380, %v7407
        %v7462 = vmul.f32 %v6381, %v7403
        %v7463 = vmul.f32 %v6382, %v7407
        %v7464 = vmul.f32 %v6383, %v7403
        %v7465 = vmul.f32 %v6384, %v7407
        %v7466 = vmul.f32 %v6385, %v7403
        %v7467 = vmul.f32 %v6386, %v7407
        %v7468 = vmul.f32 %v6387, %v7403
        %v7469 = vmul.f32 %v6388, %v7407
        %v7470 = vmul.f32 %v6389, %v7403
        %v7471 = vmul.f32 %v6390, %v7407
        %v7472 = vmul.f32 %v6391, %v7403
        %v7473 = vmul.f32 %v6392, %v7407
        %v7474 = vld [vmem:[#allocation6] sm:$0x3]
        %v7476 = vlaneseq
        %v7477 = vshrl.u32 %v7476, 7
        %v7478 = vsub.s32 0, %v7477
        %v7479 = vrot.slane %v7474, %v7478
        %v7480 = vlaneseq
        %v7481 = vshrl.u32 %v7480, 7
        %v7482 = vsub.s32 1, %v7481
        %v7483 = vrot.slane %v7474, %v7482
        %v7486 = vadd.f32 %v7410, %v7479
        %v7487 = vadd.f32 %v7411, %v7483
        %v7488 = vadd.f32 %v7412, %v7479
        %v7489 = vadd.f32 %v7413, %v7483
        %v7490 = vadd.f32 %v7414, %v7479
        %v7491 = vadd.f32 %v7415, %v7483
        %v7492 = vadd.f32 %v7416, %v7479
        %v7493 = vadd.f32 %v7417, %v7483
        %v7494 = vadd.f32 %v7418, %v7479
        %v7495 = vadd.f32 %v7419, %v7483
        %v7496 = vadd.f32 %v7420, %v7479
        %v7497 = vadd.f32 %v7421, %v7483
        %v7498 = vadd.f32 %v7422, %v7479
        %v7499 = vadd.f32 %v7423, %v7483
        %v7500 = vadd.f32 %v7424, %v7479
        %v7501 = vadd.f32 %v7425, %v7483
        %v7502 = vadd.f32 %v7426, %v7479
        %v7503 = vadd.f32 %v7427, %v7483
        %v7504 = vadd.f32 %v7428, %v7479
        %v7505 = vadd.f32 %v7429, %v7483
        %v7506 = vadd.f32 %v7430, %v7479
        %v7507 = vadd.f32 %v7431, %v7483
        %v7508 = vadd.f32 %v7432, %v7479
        %v7509 = vadd.f32 %v7433, %v7483
        %v7510 = vadd.f32 %v7434, %v7479
        %v7511 = vadd.f32 %v7435, %v7483
        %v7512 = vadd.f32 %v7436, %v7479
        %v7513 = vadd.f32 %v7437, %v7483
        %v7514 = vadd.f32 %v7438, %v7479
        %v7515 = vadd.f32 %v7439, %v7483
        %v7516 = vadd.f32 %v7440, %v7479
        %v7517 = vadd.f32 %v7441, %v7483
        %v7518 = vadd.f32 %v7442, %v7479
        %v7519 = vadd.f32 %v7443, %v7483
        %v7520 = vadd.f32 %v7444, %v7479
        %v7521 = vadd.f32 %v7445, %v7483
        %v7522 = vadd.f32 %v7446, %v7479
        %v7523 = vadd.f32 %v7447, %v7483
        %v7524 = vadd.f32 %v7448, %v7479
        %v7525 = vadd.f32 %v7449, %v7483
        %v7526 = vadd.f32 %v7450, %v7479
        %v7527 = vadd.f32 %v7451, %v7483
        %v7528 = vadd.f32 %v7452, %v7479
        %v7529 = vadd.f32 %v7453, %v7483
        %v7530 = vadd.f32 %v7454, %v7479
        %v7531 = vadd.f32 %v7455, %v7483
        %v7532 = vadd.f32 %v7456, %v7479
        %v7533 = vadd.f32 %v7457, %v7483
        %v7534 = vadd.f32 %v7458, %v7479
        %v7535 = vadd.f32 %v7459, %v7483
        %v7536 = vadd.f32 %v7460, %v7479
        %v7537 = vadd.f32 %v7461, %v7483
        %v7538 = vadd.f32 %v7462, %v7479
        %v7539 = vadd.f32 %v7463, %v7483
        %v7540 = vadd.f32 %v7464, %v7479
        %v7541 = vadd.f32 %v7465, %v7483
        %v7542 = vadd.f32 %v7466, %v7479
        %v7543 = vadd.f32 %v7467, %v7483
        %v7544 = vadd.f32 %v7468, %v7479
        %v7545 = vadd.f32 %v7469, %v7483
        %v7546 = vadd.f32 %v7470, %v7479
        %v7547 = vadd.f32 %v7471, %v7483
        %v7548 = vadd.f32 %v7472, %v7479
        %v7549 = vadd.f32 %v7473, %v7483
        %7550 = vst [vmem:[%s216] sm:$0xff] %v7486
        %7551 = vst [vmem:[%s216 + $0x8] sm:$0xff] %v7487
        %7552 = vst [vmem:[%s216 + $0x10] sm:$0xff] %v7488
        %7553 = vst [vmem:[%s216 + $0x18] sm:$0xff] %v7489
        %7554 = vst [vmem:[%s216 + $0x20] sm:$0xff] %v7490
        %7555 = vst [vmem:[%s216 + $0x28] sm:$0xff] %v7491
        %7556 = vst [vmem:[%s216 + $0x30] sm:$0xff] %v7492
        %7557 = vst [vmem:[%s216 + $0x38] sm:$0xff] %v7493
        %7558 = vst [vmem:[%s216 + $0x40] sm:$0xff] %v7494
        %7559 = vst [vmem:[%s216 + $0x48] sm:$0xff] %v7495
        %7560 = vst [vmem:[%s216 + $0x50] sm:$0xff] %v7496
        %7561 = vst [vmem:[%s216 + $0x58] sm:$0xff] %v7497
        %7562 = vst [vmem:[%s216 + $0x60] sm:$0xff] %v7498
        %7563 = vst [vmem:[%s216 + $0x68] sm:$0xff] %v7499
        %7564 = vst [vmem:[%s216 + $0x70] sm:$0xff] %v7500
        %7565 = vst [vmem:[%s216 + $0x78] sm:$0xff] %v7501
        %7566 = vst [vmem:[%s216 + $0x80] sm:$0xff] %v7502
        %7567 = vst [vmem:[%s216 + $0x88] sm:$0xff] %v7503
        %7568 = vst [vmem:[%s216 + $0x90] sm:$0xff] %v7504
        %7569 = vst [vmem:[%s216 + $0x98] sm:$0xff] %v7505
        %7570 = vst [vmem:[%s216 + $0xa0] sm:$0xff] %v7506
        %7571 = vst [vmem:[%s216 + $0xa8] sm:$0xff] %v7507
        %7572 = vst [vmem:[%s216 + $0xb0] sm:$0xff] %v7508
        %7573 = vst [vmem:[%s216 + $0xb8] sm:$0xff] %v7509
        %7574 = vst [vmem:[%s216 + $0xc0] sm:$0xff] %v7510
        %7575 = vst [vmem:[%s216 + $0xc8] sm:$0xff] %v7511
        %7576 = vst [vmem:[%s216 + $0xd0] sm:$0xff] %v7512
        %7577 = vst [vmem:[%s216 + $0xd8] sm:$0xff] %v7513
        %7578 = vst [vmem:[%s216 + $0xe0] sm:$0xff] %v7514
        %7579 = vst [vmem:[%s216 + $0xe8] sm:$0xff] %v7515
        %7580 = vst [vmem:[%s216 + $0xf0] sm:$0xff] %v7516
        %7581 = vst [vmem:[%s216 + $0xf8] sm:$0xff] %v7517
        %7582 = vst [vmem:[%s216 + $0x100] sm:$0xff] %v7518
        %7583 = vst [vmem:[%s216 + $0x108] sm:$0xff] %v7519
        %7584 = vst [vmem:[%s216 + $0x110] sm:$0xff] %v7520
        %7585 = vst [vmem:[%s216 + $0x118] sm:$0xff] %v7521
        %7586 = vst [vmem:[%s216 + $0x120] sm:$0xff] %v7522
        %7587 = vst [vmem:[%s216 + $0x128] sm:$0xff] %v7523
        %7588 = vst [vmem:[%s216 + $0x130] sm:$0xff] %v7524
        %7589 = vst [vmem:[%s216 + $0x138] sm:$0xff] %v7525
        %7590 = vst [vmem:[%s216 + $0x140] sm:$0xff] %v7526
        %7591 = vst [vmem:[%s216 + $0x148] sm:$0xff] %v7527
        %7592 = vst [vmem:[%s216 + $0x150] sm:$0xff] %v7528
        %7593 = vst [vmem:[%s216 + $0x158] sm:$0xff] %v7529
        %7594 = vst [vmem:[%s216 + $0x160] sm:$0xff] %v7530
        %7595 = vst [vmem:[%s216 + $0x168] sm:$0xff] %v7531
        %7596 = vst [vmem:[%s216 + $0x170] sm:$0xff] %v7532
        %7597 = vst [vmem:[%s216 + $0x178] sm:$0xff] %v7533
        %7598 = vst [vmem:[%s216 + $0x180] sm:$0xff] %v7534
        %7599 = vst [vmem:[%s216 + $0x188] sm:$0xff] %v7535
        %7600 = vst [vmem:[%s216 + $0x190] sm:$0xff] %v7536
        %7601 = vst [vmem:[%s216 + $0x198] sm:$0xff] %v7537
        %7602 = vst [vmem:[%s216 + $0x1a0] sm:$0xff] %v7538
        %7603 = vst [vmem:[%s216 + $0x1a8] sm:$0xff] %v7539
        %7604 = vst [vmem:[%s216 + $0x1b0] sm:$0xff] %v7540
        %7605 = vst [vmem:[%s216 + $0x1b8] sm:$0xff] %v7541
        %7606 = vst [vmem:[%s216 + $0x1c0] sm:$0xff] %v7542
        %7607 = vst [vmem:[%s216 + $0x1c8] sm:$0xff] %v7543
        %7608 = vst [vmem:[%s216 + $0x1d0] sm:$0xff] %v7544
        %7609 = vst [vmem:[%s216 + $0x1d8] sm:$0xff] %v7545
        %7610 = vst [vmem:[%s216 + $0x1e0] sm:$0xff] %v7546
        %7611 = vst [vmem:[%s216 + $0x1e8] sm:$0xff] %v7547
        %7612 = vst [vmem:[%s216 + $0x1f0] sm:$0xff] %v7548
        %7613 = vst [vmem:[%s216 + $0x1f8] sm:$0xff] %v7549
      $region52: #{conv2d_batchnorm.1} parent=35 // pred_fallthru
        _
      %s7614 = smul.u32 32, %s20
      %p7615 = scmp.lt.s32.totalorder %s7614, 31
      %s7616 = scalar_select %p7615, %s7614, 31
      %s7617 = smul.addr %s7616, 2
      %s7618 = smul.addr %s7617, 8
      %s7619 = scalar_lea.vmem %s4, %s7618
      // Predicated region
      $region53: #{conv2d_batchnorm.1} parent=35 // pred_check
        %p7620 = pneg %p134
      $region54: #{conv2d_batchnorm.1} parent=35 // pred_check_branch
        %7622 = sbr.rel (%p7620) target = $region56
      $region55: #{conv2d_batchnorm.1} parent=35 // pred_region
        %s7623 = smul.u32 32, %s20
      $region56: #{conv2d_batchnorm.1} parent=35 // pred_fallthru
        _
      // Predicated region
      $region57: #{conv2d_batchnorm.1} parent=35 // pred_check
        %p7624 = pneg %p134
      $region58: #{conv2d_batchnorm.1} parent=35 // pred_check_branch
        %7626 = sbr.rel (%p7624) target = $region60
      $region59: #{conv2d_batchnorm.1} parent=35 // pred_region
        %s7627 = smul.u32 32, %s20
        %p7628 = scmp.lt.s32.totalorder %s7627, 31
        %s7629 = scalar_select %p7628, %s7627, 31
        %s7630 = smul.addr %s7629, 2
        %s7631 = smul.addr %s7630, 8
        %s7632 = scalar_lea.vmem %s4, %s7631
      $region60: #{conv2d_batchnorm.1} parent=35 // pred_fallthru
        _
    $region36: #{conv2d_batchnorm.1} parent=5 // pred_fallthru
      _
    %p7633 = scmp.le.s32.totalorder 2, %s10
    // Predicated region
    $region61: #{conv2d_batchnorm.1} parent=5 // pred_check
      %p7634 = pneg %p7633
    $region62: #{conv2d_batchnorm.1} parent=5 // pred_check_branch
      %7636 = sbr.rel (%p7634) target = $region64
    $region63: #{conv2d_batchnorm.1} parent=5 // pred_region
      %s7637 = ssub.s32 %s10, 2
    $region64: #{conv2d_batchnorm.1} parent=5 // pred_fallthru
      _
  $region6: #{conv2d_batchnorm.1} parent=0 // loop_footer
    %s14 = sadd.s32 1, %s10
  $region7: #{conv2d_batchnorm.1} parent=0 // loop_footer_branch
    %9 = sbr.rel target = $region3
  $region8: #{conv2d_batchnorm.1} parent=0 // loop_exit
    _

</llo_original>
